<compile_context>
chip_gen: v7x
topology: tpu7x:2x2x1
jax: 0.10.0
libtpu: 0.0.40
codegen_flags: <defaults>
</compile_context>

<pallas_src>
import jax
import jax.numpy as jnp
from jax import lax
from jax.experimental import pallas as pl
from jax.experimental.pallas import tpu as pltpu

# ----- hyper-parameters (consistent with the module) ------------------------
BATCH = 128                 # raised per perf review (weight-DMA amortization)
LATENT_DIM = 32
N_CLASSES = 10
CHANNELS = 1
IMG_SIZE = 16
N_FEATURES = CHANNELS * IMG_SIZE * IMG_SIZE   # 256 (already lane-aligned)

H1, H1P = 200, 256          # z_map width  (padded to multiple of 128)
H2, H2P = 1000, 1024        # y_map width
H3, H3P = 1200, 1280        # zy_map width (1280 = 10 x 128)
HCAT = H1P + H2P            # 1280: fused concat width (padded)
TH3 = 640                   # H3 column-tile width -> grid of 2 steps
BN_EPS = 1e-5


def _bn_relu(x, gamma, beta):
    """BatchNorm1d (training-mode batch stats, biased var) + ReLU, in f32."""
    mean = jnp.mean(x, axis=0, keepdims=True)
    var = jnp.mean((x - mean) * (x - mean), axis=0, keepdims=True)
    xhat = (x - mean) * lax.rsqrt(var + BN_EPS)
    return jnp.maximum(xhat * gamma + beta, 0.0)


def generator_kernel(z_ref, y_ref,
                     w1_ref, bn1_ref,
                     w2_ref, bn2_ref,
                     w3_ref, bn3_ref,
                     w4_ref, b4_ref,
                     out_ref,
                     zy_scr):
    k = pl.program_id(0)

    # First grid step: compute the (small) z_map / y_map branches once, store
    # them contiguously as the padded concat in VMEM scratch, and zero the
    # resident output accumulator.  (Mosaic preserves ref write ordering, so
    # the zero-init below happens before this step's accumulate.)
    @pl.when(k == 0)
    def _():
        zh = jnp.dot(z_ref[...].astype(jnp.bfloat16), w1_ref[...],
                     preferred_element_type=jnp.float32)
        zy_scr[:, :H1P] = _bn_relu(zh + bn1_ref[0:1, :], bn1_ref[1:2, :],
                                   bn1_ref[2:3, :]).astype(jnp.bfloat16)
        # y is one-hot; the (B,10)@(10,1024) matmul is negligible vs weight DMA.
        yh = jnp.dot(y_ref[...].astype(jnp.bfloat16), w2_ref[...],
                     preferred_element_type=jnp.float32)
        zy_scr[:, H1P:] = _bn_relu(yh + bn2_ref[0:1, :], bn2_ref[1:2, :],
                                   bn2_ref[2:3, :]).astype(jnp.bfloat16)
        out_ref[...] = jnp.zeros_like(out_ref)

    # Current column tile of the zy layer (Linear + BN + ReLU is per-feature,
    # so column tiling is exact), accumulated into the resident output block:
    #   out += zyh[:, tile] @ w4[tile_rows, :].
    zy = jnp.dot(zy_scr[...], w3_ref[...],
                 preferred_element_type=jnp.float32) + bn3_ref[0:1, :]
    zyh = _bn_relu(zy, bn3_ref[1:2, :], bn3_ref[2:3, :])
    out_ref[...] += jnp.dot(zyh.astype(jnp.bfloat16), w4_ref[...],
                            preferred_element_type=jnp.float32)

    # Last grid step: bias + tanh in place.
    @pl.when(k == pl.num_programs(0) - 1)
    def _():
        out_ref[...] = jnp.tanh(out_ref[...] + b4_ref[...])


def generator_forward(z, y, params):
    """z: (B, LATENT_DIM) f32, y: (B, N_CLASSES) f32 -> (B, C, H, W) f32."""
    B = z.shape[0]
    num_tiles = H3P // TH3   # 2

    args = (z, y,
            params["w1"], params["bn1"],
            params["w2"], params["bn2"],
            params["w3"], params["bn3"],
            params["w4"], params["b4"])

    def const2d(shape):
        # Block index never changes -> Pallas keeps it resident (no re-DMA).
        return pl.BlockSpec(shape, lambda k: (0, 0))

    in_specs = [
        const2d((B, LATENT_DIM)),                        # z
        const2d((B, N_CLASSES)),                         # y
        const2d((LATENT_DIM, H1P)),                      # w1
        const2d((3, H1P)),                               # bn1 = [b1; g1; be1]
        const2d((N_CLASSES, H2P)),                       # w2
        const2d((3, H2P)),                               # bn2 = [b2; g2; be2]
        pl.BlockSpec((HCAT, TH3), lambda k: (0, k)),     # fused w3 column tile
        pl.BlockSpec((3, TH3), lambda k: (0, k)),        # bn3 tile
        pl.BlockSpec((TH3, N_FEATURES), lambda k: (k, 0)),  # w4 row tile
        const2d((1, N_FEATURES)),                        # b4
    ]
    # Same block index every step -> resident f32 accumulator in VMEM.
    out_spec = pl.BlockSpec((B, N_FEATURES), lambda k: (0, 0))

    # Advisory cost estimate (unpadded math; rsqrt is per-feature).
    flops = 2 * B * (LATENT_DIM * H1 + N_CLASSES * H2 + (H1 + H2) * H3
                     + H3 * N_FEATURES)
    transcendentals = B * N_FEATURES + (H1 + H2 + H3)
    bytes_accessed = (sum(int(a.size) * a.dtype.itemsize for a in args)
                      + B * N_FEATURES * 4)

    flat = pl.pallas_call(
        generator_kernel,
        out_shape=jax.ShapeDtypeStruct((B, N_FEATURES), jnp.float32),
        grid_spec=pltpu.PrefetchScalarGridSpec(
            num_scalar_prefetch=0,
            grid=(num_tiles,),
            in_specs=in_specs,
            out_specs=out_spec,
            scratch_shapes=[
                pltpu.VMEM((B, HCAT), jnp.bfloat16),     # [zh | yh] resident
            ],
        ),
        compiler_params=pltpu.CompilerParams(
            dimension_semantics=("arbitrary",),          # reduction over H3 tiles
            vmem_limit_bytes=32 << 20,
        ),
        cost_estimate=pl.CostEstimate(
            flops=flops,
            transcendentals=transcendentals,
            bytes_accessed=bytes_accessed),
    )(*args)

    # PyTorch: x.view(B, C, H, W) on a row-major (B, C*H*W) tensor.
    return flat.reshape(B, CHANNELS, IMG_SIZE, IMG_SIZE)


def init_params(key):
    """Deterministic synthetic weights (shapes from the module __init__),
    zero-padded to lane-dense widths; weights bf16, BN/bias vectors f32."""
    ks = jax.random.split(key, 8)

    def lin(k, fan_in, fan_out):
        bound = 1.0 / jnp.sqrt(fan_in)
        kw, kb = jax.random.split(k)
        w = jax.random.uniform(kw, (fan_in, fan_out), jnp.float32, -bound, bound)
        b = jax.random.uniform(kb, (1, fan_out), jnp.float32, -bound, bound)
        return w, b

    def bn(k, width):
        kg, kb = jax.random.split(k)
        g = 1.0 + 0.1 * jax.random.normal(kg, (1, width), jnp.float32)
        be = 0.1 * jax.random.normal(kb, (1, width), jnp.float32)
        return g, be

    w1, b1 = lin(ks[0], LATENT_DIM, H1)
    w2, b2 = lin(ks[1], N_CLASSES, H2)
    w3, b3 = lin(ks[2], H1 + H2, H3)
    w4, b4 = lin(ks[3], H3, N_FEATURES)
    g1, be1 = bn(ks[4], H1)
    g2, be2 = bn(ks[5], H2)
    g3, be3 = bn(ks[6], H3)

    def pad_c(a, n):   # zero-pad columns (features)
        return jnp.pad(a, ((0, 0), (0, n - a.shape[1])))

    def pad_r(a, n):   # zero-pad rows (input features)
        return jnp.pad(a, ((0, n - a.shape[0]), (0, 0)))

    def pack_bn(b, g, be, width):   # (3, width): rows = [bias, gamma, beta]
        return jnp.concatenate([pad_c(b, width), pad_c(g, width),
                                pad_c(be, width)], axis=0)

    # Fused zy weight: rows [0:H1P] multiply zh, rows [H1P:] multiply yh.
    # Padded rows/cols are zero, padded BN gamma/beta are zero -> padded
    # features are exactly 0 end-to-end.
    w3_fused = jnp.zeros((HCAT, H3P), jnp.float32)
    w3_fused = w3_fused.at[:H1, :H3].set(w3[:H1])
    w3_fused = w3_fused.at[H1P:H1P + H2, :H3].set(w3[H1:])

    bf16 = jnp.bfloat16
    return dict(
        w1=pad_c(w1, H1P).astype(bf16),
        bn1=pack_bn(b1, g1, be1, H1P),
        w2=pad_c(w2, H2P).astype(bf16),
        bn2=pack_bn(b2, g2, be2, H2P),
        w3=w3_fused.astype(bf16),
        bn3=pack_bn(b3, g3, be3, H3P),
        w4=pad_r(w4, H3P).astype(bf16),
        b4=b4,
    )


def generator_ref(z, y, p):
    """Pure-JAX f32 reference using the same (bf16-rounded) weights."""
    def bn_relu(x, g, b):
        m = jnp.mean(x, axis=0, keepdims=True)
        v = jnp.mean((x - m) ** 2, axis=0, keepdims=True)
        return jnp.maximum((x - m) * lax.rsqrt(v + BN_EPS) * g + b, 0.0)

    f32 = lambda a: a.astype(jnp.float32)
    b1, g1, be1 = p["bn1"][0:1], p["bn1"][1:2], p["bn1"][2:3]
    b2, g2, be2 = p["bn2"][0:1], p["bn2"][1:2], p["bn2"][2:3]
    b3, g3, be3 = p["bn3"][0:1], p["bn3"][1:2], p["bn3"][2:3]

    zh = bn_relu(z @ f32(p["w1"]) + b1, g1, be1)          # (B, H1P)
    yh = bn_relu(y @ f32(p["w2"]) + b2, g2, be2)          # (B, H2P)
    zy_cat = jnp.concatenate([zh, yh], axis=1)            # (B, HCAT)
    zy = zy_cat @ f32(p["w3"]) + b3
    zyh = bn_relu(zy, g3, be3)
    x = jnp.tanh(zyh @ f32(p["w4"]) + p["b4"])
    return x.reshape(z.shape[0], CHANNELS, IMG_SIZE, IMG_SIZE)


if __name__ == "__main__":
    key = jax.random.PRNGKey(0)
    kp, kz, ky = jax.random.split(key, 3)

    params = init_params(kp)
    z = jax.random.normal(kz, (BATCH, LATENT_DIM), jnp.float32)
    # one-hot class labels, as in a conditional GAN
    labels = jax.random.randint(ky, (BATCH,), 0, N_CLASSES)
    y = jax.nn.one_hot(labels, N_CLASSES, dtype=jnp.float32)

    out = generator_forward(z, y, params)
    out = jax.block_until_ready(out)

    assert out.shape == (BATCH, CHANNELS, IMG_SIZE, IMG_SIZE)
    assert out.dtype == jnp.float32
    assert bool(jnp.all(jnp.abs(out) <= 1.0))  # tanh output range

    # Numerical check against a pure-JAX f32 reference (bf16 activation casts
    # in the kernel bound the deviation well below this threshold).
    ref = generator_ref(z, y, params)
    max_err = float(jnp.max(jnp.abs(out - ref)))
    assert max_err < 0.1, f"max abs err {max_err}"

    print("KERNEL_OK")
</pallas_src>

<mosaic_0001>
module attributes {stable_mosaic.version = 11 : i64} {
  func.func @generator_kernel(%arg0: i32, %arg1: memref<128x32xf32, #tpu.memory_space<vmem>>, %arg2: memref<128x10xf32, #tpu.memory_space<vmem>>, %arg3: memref<32x256xbf16, #tpu.memory_space<vmem>>, %arg4: memref<3x256xf32, #tpu.memory_space<vmem>>, %arg5: memref<10x1024xbf16, #tpu.memory_space<vmem>>, %arg6: memref<3x1024xf32, #tpu.memory_space<vmem>>, %arg7: memref<1280x640xbf16, #tpu.memory_space<vmem>>, %arg8: memref<3x640xf32, #tpu.memory_space<vmem>>, %arg9: memref<640x256xbf16, #tpu.memory_space<vmem>>, %arg10: memref<1x256xf32, #tpu.memory_space<vmem>>, %arg11: memref<128x256xf32, #tpu.memory_space<vmem>>, %arg12: memref<128x1280xbf16, #tpu.memory_space<vmem>>) attributes {dimension_semantics = [#tpu.dimension_semantics<arbitrary>], iteration_bounds = array<i64: 2>, scalar_prefetch = 0 : i64, scratch_operands = 1 : i64, tpu.core_type = #tpu.core_type<tc>, window_params = [{pipeline_mode = #tpu.pipeline_mode<synchronous>, transform_indices = @transform_0, window_bounds = array<i64: 128, 32>}, {pipeline_mode = #tpu.pipeline_mode<synchronous>, transform_indices = @transform_1, window_bounds = array<i64: 128, 10>}, {pipeline_mode = #tpu.pipeline_mode<synchronous>, transform_indices = @transform_2, window_bounds = array<i64: 32, 256>}, {pipeline_mode = #tpu.pipeline_mode<synchronous>, transform_indices = @transform_3, window_bounds = array<i64: 3, 256>}, {pipeline_mode = #tpu.pipeline_mode<synchronous>, transform_indices = @transform_4, window_bounds = array<i64: 10, 1024>}, {pipeline_mode = #tpu.pipeline_mode<synchronous>, transform_indices = @transform_5, window_bounds = array<i64: 3, 1024>}, {transform_indices = @transform_6, window_bounds = array<i64: 1280, 640>}, {transform_indices = @transform_7, window_bounds = array<i64: 3, 640>}, {transform_indices = @transform_8, window_bounds = array<i64: 640, 256>}, {pipeline_mode = #tpu.pipeline_mode<synchronous>, transform_indices = @transform_9, window_bounds = array<i64: 1, 256>}, {pipeline_mode = #tpu.pipeline_mode<synchronous>, transform_indices = @transform_10, window_bounds = array<i64: 128, 256>}]} {
    %c0_i32 = arith.constant 0 : i32
    %0 = arith.cmpi eq, %arg0, %c0_i32 : i32
    %1 = arith.extui %0 : i1 to i32
    %c0_i32_0 = arith.constant 0 : i32
    %2 = arith.cmpi ne, %1, %c0_i32_0 : i32
    scf.if %2 {
      %c0_22 = arith.constant 0 : index
      %c0_23 = arith.constant 0 : index
      %46 = vector.load %arg1[%c0_22, %c0_23] : memref<128x32xf32, #tpu.memory_space<vmem>>, vector<128x32xf32>
      %47 = arith.truncf %46 : vector<128x32xf32> to vector<128x32xbf16>
      %c0_24 = arith.constant 0 : index
      %c0_25 = arith.constant 0 : index
      %48 = vector.load %arg3[%c0_24, %c0_25] : memref<32x256xbf16, #tpu.memory_space<vmem>>, vector<32x256xbf16>
      %cst_26 = arith.constant dense<0.000000e+00> : vector<128x256xf32>
      %49 = tpu.matmul %47, %48, %cst_26 {dimension_numbers = #tpu.dot_dimension_numbers<[1], [0], [0], [1], [0, 0, 1, 1], [], []>} : vector<128x32xbf16>, vector<32x256xbf16>, vector<128x256xf32> -> vector<128x256xf32>
      %c0_27 = arith.constant 0 : index
      %c0_28 = arith.constant 0 : index
      %50 = vector.load %arg4[%c0_27, %c0_28] : memref<3x256xf32, #tpu.memory_space<vmem>>, vector<1x256xf32>
      %51 = vector.broadcast %50 : vector<1x256xf32> to vector<128x256xf32>
      %52 = arith.addf %49, %51 : vector<128x256xf32>
      %c1_29 = arith.constant 1 : index
      %c0_30 = arith.constant 0 : index
      %53 = vector.load %arg4[%c1_29, %c0_30] : memref<3x256xf32, #tpu.memory_space<vmem>>, vector<1x256xf32>
      %c2_31 = arith.constant 2 : index
      %c0_32 = arith.constant 0 : index
      %54 = vector.load %arg4[%c2_31, %c0_32] : memref<3x256xf32, #tpu.memory_space<vmem>>, vector<1x256xf32>
      %cst_33 = arith.constant dense<0.000000e+00> : vector<256xf32>
      %55 = vector.multi_reduction <add>, %52, %cst_33 [0] : vector<128x256xf32> to vector<256xf32>
      %56 = vector.shape_cast %55 : vector<256xf32> to vector<1x256xf32>
      %cst_34 = arith.constant 1.280000e+02 : f32
      %57 = vector.broadcast %cst_34 : f32 to vector<1x256xf32>
      %58 = arith.divf %56, %57 : vector<1x256xf32>
      %59 = vector.broadcast %58 : vector<1x256xf32> to vector<128x256xf32>
      %60 = arith.subf %52, %59 : vector<128x256xf32>
      %61 = vector.broadcast %58 : vector<1x256xf32> to vector<128x256xf32>
      %62 = arith.subf %52, %61 : vector<128x256xf32>
      %63 = arith.mulf %60, %62 : vector<128x256xf32>
      %cst_35 = arith.constant dense<0.000000e+00> : vector<256xf32>
      %64 = vector.multi_reduction <add>, %63, %cst_35 [0] : vector<128x256xf32> to vector<256xf32>
      %65 = vector.shape_cast %64 : vector<256xf32> to vector<1x256xf32>
      %cst_36 = arith.constant 1.280000e+02 : f32
      %66 = vector.broadcast %cst_36 : f32 to vector<1x256xf32>
      %67 = arith.divf %65, %66 : vector<1x256xf32>
      %68 = vector.broadcast %58 : vector<1x256xf32> to vector<128x256xf32>
      %69 = arith.subf %52, %68 : vector<128x256xf32>
      %cst_37 = arith.constant 9.99999974E-6 : f32
      %70 = vector.broadcast %cst_37 : f32 to vector<1x256xf32>
      %71 = arith.addf %67, %70 : vector<1x256xf32>
      %72 = math.rsqrt %71 : vector<1x256xf32>
      %73 = vector.broadcast %72 : vector<1x256xf32> to vector<128x256xf32>
      %74 = arith.mulf %69, %73 : vector<128x256xf32>
      %75 = vector.broadcast %53 : vector<1x256xf32> to vector<128x256xf32>
      %76 = arith.mulf %74, %75 : vector<128x256xf32>
      %77 = vector.broadcast %54 : vector<1x256xf32> to vector<128x256xf32>
      %78 = arith.addf %76, %77 : vector<128x256xf32>
      %cst_38 = arith.constant 0.000000e+00 : f32
      %79 = vector.broadcast %cst_38 : f32 to vector<128x256xf32>
      %80 = arith.maximumf %78, %79 : vector<128x256xf32>
      %81 = arith.truncf %80 : vector<128x256xf32> to vector<128x256xbf16>
      %c0_39 = arith.constant 0 : index
      %c0_40 = arith.constant 0 : index
      %82 = vector.load %arg12[%c0_39, %c0_40] : memref<128x1280xbf16, #tpu.memory_space<vmem>>, vector<128x256xbf16>
      tpu.vector_store %arg12[%c0_39, %c0_40], %81 {strides = array<i32>} : memref<128x1280xbf16, #tpu.memory_space<vmem>>, vector<128x256xbf16>,
      %c0_41 = arith.constant 0 : index
      %c0_42 = arith.constant 0 : index
      %83 = vector.load %arg2[%c0_41, %c0_42] : memref<128x10xf32, #tpu.memory_space<vmem>>, vector<128x10xf32>
      %84 = arith.truncf %83 : vector<128x10xf32> to vector<128x10xbf16>
      %c0_43 = arith.constant 0 : index
      %c0_44 = arith.constant 0 : index
      %85 = vector.load %arg5[%c0_43, %c0_44] : memref<10x1024xbf16, #tpu.memory_space<vmem>>, vector<10x1024xbf16>
      %cst_45 = arith.constant dense<0.000000e+00> : vector<128x1024xf32>
      %86 = tpu.matmul %84, %85, %cst_45 {dimension_numbers = #tpu.dot_dimension_numbers<[1], [0], [0], [1], [0, 0, 1, 1], [], []>} : vector<128x10xbf16>, vector<10x1024xbf16>, vector<128x1024xf32> -> vector<128x1024xf32>
      %c0_46 = arith.constant 0 : index
      %c0_47 = arith.constant 0 : index
      %87 = vector.load %arg6[%c0_46, %c0_47] : memref<3x1024xf32, #tpu.memory_space<vmem>>, vector<1x1024xf32>
      %88 = vector.broadcast %87 : vector<1x1024xf32> to vector<128x1024xf32>
      %89 = arith.addf %86, %88 : vector<128x1024xf32>
      %c1_48 = arith.constant 1 : index
      %c0_49 = arith.constant 0 : index
      %90 = vector.load %arg6[%c1_48, %c0_49] : memref<3x1024xf32, #tpu.memory_space<vmem>>, vector<1x1024xf32>
      %c2_50 = arith.constant 2 : index
      %c0_51 = arith.constant 0 : index
      %91 = vector.load %arg6[%c2_50, %c0_51] : memref<3x1024xf32, #tpu.memory_space<vmem>>, vector<1x1024xf32>
      %cst_52 = arith.constant dense<0.000000e+00> : vector<1024xf32>
      %92 = vector.multi_reduction <add>, %89, %cst_52 [0] : vector<128x1024xf32> to vector<1024xf32>
      %93 = vector.shape_cast %92 : vector<1024xf32> to vector<1x1024xf32>
      %cst_53 = arith.constant 1.280000e+02 : f32
      %94 = vector.broadcast %cst_53 : f32 to vector<1x1024xf32>
      %95 = arith.divf %93, %94 : vector<1x1024xf32>
      %96 = vector.broadcast %95 : vector<1x1024xf32> to vector<128x1024xf32>
      %97 = arith.subf %89, %96 : vector<128x1024xf32>
      %98 = vector.broadcast %95 : vector<1x1024xf32> to vector<128x1024xf32>
      %99 = arith.subf %89, %98 : vector<128x1024xf32>
      %100 = arith.mulf %97, %99 : vector<128x1024xf32>
      %cst_54 = arith.constant dense<0.000000e+00> : vector<1024xf32>
      %101 = vector.multi_reduction <add>, %100, %cst_54 [0] : vector<128x1024xf32> to vector<1024xf32>
      %102 = vector.shape_cast %101 : vector<1024xf32> to vector<1x1024xf32>
      %cst_55 = arith.constant 1.280000e+02 : f32
      %103 = vector.broadcast %cst_55 : f32 to vector<1x1024xf32>
      %104 = arith.divf %102, %103 : vector<1x1024xf32>
      %105 = vector.broadcast %95 : vector<1x1024xf32> to vector<128x1024xf32>
      %106 = arith.subf %89, %105 : vector<128x1024xf32>
      %cst_56 = arith.constant 9.99999974E-6 : f32
      %107 = vector.broadcast %cst_56 : f32 to vector<1x1024xf32>
      %108 = arith.addf %104, %107 : vector<1x1024xf32>
      %109 = math.rsqrt %108 : vector<1x1024xf32>
      %110 = vector.broadcast %109 : vector<1x1024xf32> to vector<128x1024xf32>
      %111 = arith.mulf %106, %110 : vector<128x1024xf32>
      %112 = vector.broadcast %90 : vector<1x1024xf32> to vector<128x1024xf32>
      %113 = arith.mulf %111, %112 : vector<128x1024xf32>
      %114 = vector.broadcast %91 : vector<1x1024xf32> to vector<128x1024xf32>
      %115 = arith.addf %113, %114 : vector<128x1024xf32>
      %cst_57 = arith.constant 0.000000e+00 : f32
      %116 = vector.broadcast %cst_57 : f32 to vector<128x1024xf32>
      %117 = arith.maximumf %115, %116 : vector<128x1024xf32>
      %118 = arith.truncf %117 : vector<128x1024xf32> to vector<128x1024xbf16>
      %c0_58 = arith.constant 0 : index
      %c256 = arith.constant 256 : index
      %119 = vector.load %arg12[%c0_58, %c256] : memref<128x1280xbf16, #tpu.memory_space<vmem>>, vector<128x1024xbf16>
      tpu.vector_store %arg12[%c0_58, %c256], %118 {strides = array<i32>} : memref<128x1280xbf16, #tpu.memory_space<vmem>>, vector<128x1024xbf16>,
      %cst_59 = arith.constant 0.000000e+00 : f32
      %120 = vector.broadcast %cst_59 : f32 to vector<128x256xf32>
      %c0_60 = arith.constant 0 : index
      %c0_61 = arith.constant 0 : index
      %121 = vector.load %arg11[%c0_60, %c0_61] : memref<128x256xf32, #tpu.memory_space<vmem>>, vector<128x256xf32>
      tpu.vector_store %arg11[%c0_60, %c0_61], %120 {strides = array<i32>} : memref<128x256xf32, #tpu.memory_space<vmem>>, vector<128x256xf32>,
    } else {
    }
    %c0 = arith.constant 0 : index
    %c0_1 = arith.constant 0 : index
    %3 = vector.load %arg12[%c0, %c0_1] : memref<128x1280xbf16, #tpu.memory_space<vmem>>, vector<128x1280xbf16>
    %c0_2 = arith.constant 0 : index
    %c0_3 = arith.constant 0 : index
    %4 = vector.load %arg7[%c0_2, %c0_3] : memref<1280x640xbf16, #tpu.memory_space<vmem>>, vector<1280x640xbf16>
    %cst = arith.constant dense<0.000000e+00> : vector<128x640xf32>
    %5 = tpu.matmul %3, %4, %cst {dimension_numbers = #tpu.dot_dimension_numbers<[1], [0], [0], [1], [0, 0, 1, 1], [], []>} : vector<128x1280xbf16>, vector<1280x640xbf16>, vector<128x640xf32> -> vector<128x640xf32>
    %c0_4 = arith.constant 0 : index
    %c0_5 = arith.constant 0 : index
    %6 = vector.load %arg8[%c0_4, %c0_5] : memref<3x640xf32, #tpu.memory_space<vmem>>, vector<1x640xf32>
    %7 = vector.broadcast %6 : vector<1x640xf32> to vector<128x640xf32>
    %8 = arith.addf %5, %7 : vector<128x640xf32>
    %c1 = arith.constant 1 : index
    %c0_6 = arith.constant 0 : index
    %9 = vector.load %arg8[%c1, %c0_6] : memref<3x640xf32, #tpu.memory_space<vmem>>, vector<1x640xf32>
    %c2 = arith.constant 2 : index
    %c0_7 = arith.constant 0 : index
    %10 = vector.load %arg8[%c2, %c0_7] : memref<3x640xf32, #tpu.memory_space<vmem>>, vector<1x640xf32>
    %cst_8 = arith.constant dense<0.000000e+00> : vector<640xf32>
    %11 = vector.multi_reduction <add>, %8, %cst_8 [0] : vector<128x640xf32> to vector<640xf32>
    %12 = vector.shape_cast %11 : vector<640xf32> to vector<1x640xf32>
    %cst_9 = arith.constant 1.280000e+02 : f32
    %13 = vector.broadcast %cst_9 : f32 to vector<1x640xf32>
    %14 = arith.divf %12, %13 : vector<1x640xf32>
    %15 = vector.broadcast %14 : vector<1x640xf32> to vector<128x640xf32>
    %16 = arith.subf %8, %15 : vector<128x640xf32>
    %17 = vector.broadcast %14 : vector<1x640xf32> to vector<128x640xf32>
    %18 = arith.subf %8, %17 : vector<128x640xf32>
    %19 = arith.mulf %16, %18 : vector<128x640xf32>
    %cst_10 = arith.constant dense<0.000000e+00> : vector<640xf32>
    %20 = vector.multi_reduction <add>, %19, %cst_10 [0] : vector<128x640xf32> to vector<640xf32>
    %21 = vector.shape_cast %20 : vector<640xf32> to vector<1x640xf32>
    %cst_11 = arith.constant 1.280000e+02 : f32
    %22 = vector.broadcast %cst_11 : f32 to vector<1x640xf32>
    %23 = arith.divf %21, %22 : vector<1x640xf32>
    %24 = vector.broadcast %14 : vector<1x640xf32> to vector<128x640xf32>
    %25 = arith.subf %8, %24 : vector<128x640xf32>
    %cst_12 = arith.constant 9.99999974E-6 : f32
    %26 = vector.broadcast %cst_12 : f32 to vector<1x640xf32>
    %27 = arith.addf %23, %26 : vector<1x640xf32>
    %28 = math.rsqrt %27 : vector<1x640xf32>
    %29 = vector.broadcast %28 : vector<1x640xf32> to vector<128x640xf32>
    %30 = arith.mulf %25, %29 : vector<128x640xf32>
    %31 = vector.broadcast %9 : vector<1x640xf32> to vector<128x640xf32>
    %32 = arith.mulf %30, %31 : vector<128x640xf32>
    %33 = vector.broadcast %10 : vector<1x640xf32> to vector<128x640xf32>
    %34 = arith.addf %32, %33 : vector<128x640xf32>
    %cst_13 = arith.constant 0.000000e+00 : f32
    %35 = vector.broadcast %cst_13 : f32 to vector<128x640xf32>
    %36 = arith.maximumf %34, %35 : vector<128x640xf32>
    %c0_14 = arith.constant 0 : index
    %c0_15 = arith.constant 0 : index
    %37 = vector.load %arg11[%c0_14, %c0_15] : memref<128x256xf32, #tpu.memory_space<vmem>>, vector<128x256xf32>
    %38 = arith.truncf %36 : vector<128x640xf32> to vector<128x640xbf16>
    %c0_16 = arith.constant 0 : index
    %c0_17 = arith.constant 0 : index
    %39 = vector.load %arg9[%c0_16, %c0_17] : memref<640x256xbf16, #tpu.memory_space<vmem>>, vector<640x256xbf16>
    %cst_18 = arith.constant dense<0.000000e+00> : vector<128x256xf32>
    %40 = tpu.matmul %38, %39, %cst_18 {dimension_numbers = #tpu.dot_dimension_numbers<[1], [0], [0], [1], [0, 0, 1, 1], [], []>} : vector<128x640xbf16>, vector<640x256xbf16>, vector<128x256xf32> -> vector<128x256xf32>
    %41 = arith.addf %37, %40 : vector<128x256xf32>
    %c0_19 = arith.constant 0 : index
    %c0_20 = arith.constant 0 : index
    %42 = vector.load %arg11[%c0_19, %c0_20] : memref<128x256xf32, #tpu.memory_space<vmem>>, vector<128x256xf32>
    tpu.vector_store %arg11[%c0_19, %c0_20], %41 {strides = array<i32>} : memref<128x256xf32, #tpu.memory_space<vmem>>, vector<128x256xf32>,
    %c1_i32 = arith.constant 1 : i32
    %43 = arith.cmpi eq, %arg0, %c1_i32 : i32
    %44 = arith.extui %43 : i1 to i32
    %c0_i32_21 = arith.constant 0 : i32
    %45 = arith.cmpi ne, %44, %c0_i32_21 : i32
    scf.if %45 {
      %c0_22 = arith.constant 0 : index
      %c0_23 = arith.constant 0 : index
      %46 = vector.load %arg11[%c0_22, %c0_23] : memref<128x256xf32, #tpu.memory_space<vmem>>, vector<128x256xf32>
      %c0_24 = arith.constant 0 : index
      %c0_25 = arith.constant 0 : index
      %47 = vector.load %arg10[%c0_24, %c0_25] : memref<1x256xf32, #tpu.memory_space<vmem>>, vector<1x256xf32>
      %48 = vector.broadcast %47 : vector<1x256xf32> to vector<128x256xf32>
      %49 = arith.addf %46, %48 : vector<128x256xf32>
      %50 = math.tanh %49 : vector<128x256xf32>
      %c0_26 = arith.constant 0 : index
      %c0_27 = arith.constant 0 : index
      %51 = vector.load %arg11[%c0_26, %c0_27] : memref<128x256xf32, #tpu.memory_space<vmem>>, vector<128x256xf32>
      tpu.vector_store %arg11[%c0_26, %c0_27], %50 {strides = array<i32>} : memref<128x256xf32, #tpu.memory_space<vmem>>, vector<128x256xf32>,
    } else {
    }
    return
  }
  func.func @transform_0(%arg0: i32) -> (i32, i32) {
    %c0_i32 = arith.constant 0 : i32
    %c0_i32_0 = arith.constant 0 : i32
    %c0_i32_1 = arith.constant 0 : i32
    return %c0_i32, %c0_i32_0 : i32, i32
  }
  func.func @transform_1(%arg0: i32) -> (i32, i32) {
    %c0_i32 = arith.constant 0 : i32
    %c0_i32_0 = arith.constant 0 : i32
    %c0_i32_1 = arith.constant 0 : i32
    return %c0_i32, %c0_i32_0 : i32, i32
  }
  func.func @transform_2(%arg0: i32) -> (i32, i32) {
    %c0_i32 = arith.constant 0 : i32
    %c0_i32_0 = arith.constant 0 : i32
    %c0_i32_1 = arith.constant 0 : i32
    return %c0_i32, %c0_i32_0 : i32, i32
  }
  func.func @transform_3(%arg0: i32) -> (i32, i32) {
    %c0_i32 = arith.constant 0 : i32
    %c0_i32_0 = arith.constant 0 : i32
    %c0_i32_1 = arith.constant 0 : i32
    return %c0_i32, %c0_i32_0 : i32, i32
  }
  func.func @transform_4(%arg0: i32) -> (i32, i32) {
    %c0_i32 = arith.constant 0 : i32
    %c0_i32_0 = arith.constant 0 : i32
    %c0_i32_1 = arith.constant 0 : i32
    return %c0_i32, %c0_i32_0 : i32, i32
  }
  func.func @transform_5(%arg0: i32) -> (i32, i32) {
    %c0_i32 = arith.constant 0 : i32
    %c0_i32_0 = arith.constant 0 : i32
    %c0_i32_1 = arith.constant 0 : i32
    return %c0_i32, %c0_i32_0 : i32, i32
  }
  func.func @transform_6(%arg0: i32) -> (i32, i32) {
    %c0_i32 = arith.constant 0 : i32
    %c0_i32_0 = arith.constant 0 : i32
    return %c0_i32, %arg0 : i32, i32
  }
  func.func @transform_7(%arg0: i32) -> (i32, i32) {
    %c0_i32 = arith.constant 0 : i32
    %c0_i32_0 = arith.constant 0 : i32
    return %c0_i32, %arg0 : i32, i32
  }
  func.func @transform_8(%arg0: i32) -> (i32, i32) {
    %c0_i32 = arith.constant 0 : i32
    %c0_i32_0 = arith.constant 0 : i32
    return %arg0, %c0_i32 : i32, i32
  }
  func.func @transform_9(%arg0: i32) -> (i32, i32) {
    %c0_i32 = arith.constant 0 : i32
    %c0_i32_0 = arith.constant 0 : i32
    %c0_i32_1 = arith.constant 0 : i32
    return %c0_i32, %c0_i32_0 : i32, i32
  }
  func.func @transform_10(%arg0: i32) -> (i32, i32) {
    %c0_i32 = arith.constant 0 : i32
    %c0_i32_0 = arith.constant 0 : i32
    %c0_i32_1 = arith.constant 0 : i32
    return %c0_i32, %c0_i32_0 : i32, i32
  }
}

</mosaic_0001>

<llo_original>
// kernel: tpu_custom_call.1
$region0: #{tpu_custom_call.1}
  #allocation0 [shape = 'u32[]', space=smem, size = 0x4, offset = 0x4, fixed_abs, tag = 'smem constant byte address 0x4 - core index']
  #allocation1 [shape = 'u32[144,128]{1,0:T(1,128)}', space=vmem, size = 0x12000, scoped, tag = 'internal scratch']
  #allocation2 [shape = 'bf16[128,1280]{1,0:T(16,128)(2,1)}', space=vmem, size = 0x50000, scoped, tag = 'scratch operand']
  %s0 = inlined_call_operand.vmem [shape: f32[128,32], index: 0, kind: input, shape index: {}]
  %s1 = inlined_call_operand.vmem [shape: f32[128,10], index: 1, kind: input, shape index: {}]
  %s2 = inlined_call_operand.hbm [shape: bf16[32,256], index: 2, kind: input, shape index: {}]
  %s3 = inlined_call_operand.hbm [shape: f32[3,256], index: 3, kind: input, shape index: {}]
  %s4 = inlined_call_operand.hbm [shape: bf16[10,1024], index: 4, kind: input, shape index: {}]
  %s5 = inlined_call_operand.hbm [shape: f32[3,1024], index: 5, kind: input, shape index: {}]
  %s6 = inlined_call_operand.hbm [shape: bf16[1280,1280], index: 6, kind: input, shape index: {}]
  %s7 = inlined_call_operand.hbm [shape: f32[3,1280], index: 7, kind: input, shape index: {}]
  %s8 = inlined_call_operand.hbm [shape: bf16[1280,256], index: 8, kind: input, shape index: {}]
  %s9 = inlined_call_operand.hbm [shape: f32[1,256], index: 9, kind: input, shape index: {}]
  %s10 = inlined_call_operand.hbm [shape: f32[128,256], index: 10, kind: output, shape index: {}]
  %s11 = sld [smem:[#allocation0]]
  $region113: #{tpu_custom_call.1} parent=0
    _
  %s13 = ssub.s32 1, %s11
  %s14 = scalar_select 0, %s13, %s11
  $region1: #{tpu_custom_call.1} parent=0
    #allocation3 [shape = 'u8[16384]{0}', space=vmem, size = 0x4000, scoped, tag = 'input window, operand 2, single buffered']
    #allocation4 [shape = 's32[2]{0}', space=sflag, size = 0x8, scoped, tag = 'scoped memory for tpu_custom_call.1']
    #allocation5 [shape = 's32[2]{0}', space=sflag, size = 0x8, scoped, tag = 'scoped memory for tpu_custom_call.1']
    #allocation6 [shape = 'u8[4096]{0}', space=vmem, size = 0x1000, scoped, tag = 'input window, operand 3, single buffered']
    #allocation7 [shape = 's32[1]{0}', space=sflag, size = 0x4, scoped, tag = 'scoped memory for tpu_custom_call.1']
    #allocation8 [shape = 'u8[32768]{0}', space=vmem, size = 0x8000, scoped, tag = 'input window, operand 4, single buffered']
    #allocation9 [shape = 'u8[16384]{0}', space=vmem, size = 0x4000, scoped, tag = 'input window, operand 5, single buffered']
    #allocation10 [shape = 's32[1]{0}', space=sflag, size = 0x4, scoped, tag = 'scoped memory for tpu_custom_call.1']
    #allocation11 [shape = 'u8[3276800]{0}', space=vmem, size = 0x320000, scoped, tag = 'input window, operand 6']
    #allocation12 [shape = 'u8[20480]{0}', space=vmem, size = 0x5000, scoped, tag = 'input window, operand 7']
    #allocation13 [shape = 'u8[655360]{0}', space=vmem, size = 0xa0000, scoped, tag = 'input window, operand 8']
    #allocation14 [shape = 'u8[1024]{0}', space=vmem, size = 0x400, scoped, tag = 'input window, operand 9, single buffered']
    #allocation15 [shape = 'u8[131072]{0}', space=vmem, size = 0x20000, scoped, tag = 'output window, operand 0, single buffered']
    %15 = vsyncpa [#allocation4], 0
    %16 = vsyncpa [#allocation7], 0
    %17 = vsyncpa [#allocation10], 0
    %18 = vsyncpa [#allocation5], 0
    loop: start=0, step=1, limit=4
    $region2: #{tpu_custom_call.1} parent=1 // loop_pre_header
      _
    $region3: #{tpu_custom_call.1} parent=1 // loop_header
      %s20 = sphi 0, %s24
      %p21 = scmp.ge.s32.totalorder %s20, 4
      %s28 = sphi 0, %s28
      %s30 = sphi 0, %s28
      %s31 = sphi 0, %s30
      %s45 = sphi 0, %s31
      %s49 = sphi 0, %s49
      %s51 = sphi 0, %s49
      %s52 = sphi 0, %s51
      %s66 = sphi 0, %s52
      %s70 = sphi 0, %s70
      %s72 = sphi 0, %s70
      %s73 = sphi 0, %s72
      %s87 = sphi 0, %s73
      %s91 = sphi 0, %s91
      %s93 = sphi 0, %s91
      %s94 = sphi 0, %s93
      %s108 = sphi 0, %s94
      %s112 = sphi 0, %s112
      %s114 = sphi 0, %s112
      %s115 = sphi 0, %s114
      %s129 = sphi 0, %s115
      %s133 = sphi 0, %s133
      %s135 = sphi 0, %s133
      %s136 = sphi 0, %s135
      %s150 = sphi 0, %s136
      %s156 = sphi 0, %s158
      %s159 = sphi 0, %s156
      %s160 = sphi 0, %s159
      %s176 = sphi 0, %s160
      %s182 = sphi 0, %s184
      %s185 = sphi 0, %s182
      %s186 = sphi 0, %s185
      %s202 = sphi 0, %s186
      %s208 = sphi 0, %s210
      %s211 = sphi 0, %s208
      %s212 = sphi 0, %s211
      %s228 = sphi 0, %s212
      %s232 = sphi 0, %s232
      %s234 = sphi 0, %s232
      %s235 = sphi 0, %s234
      %s249 = sphi 0, %s235
      %s253 = sphi 0, %s253
      %s255 = sphi 0, %s253
      %s256 = sphi 0, %s255
      %s270 = sphi 0, %s256
    $region4: #{tpu_custom_call.1} parent=1 // loop_header_branch
      %23 = sbr.rel (%p21) target = $region8
    $region5: #{tpu_custom_call.1} parent=1 // loop_body
      %s25 = ssub.s32 %s20, 1
      %s26 = ssub.s32 %s20, 2
      %s27 = sadd.s32 %s20, 1
      %s29 = sadd.s32 %s28, 1
      %p32 = scmp.eq.s32.totalorder %s20, 1
      %p33 = scmp.ne.s32.totalorder %s28, %s30
      %p34 = scmp.eq.s32.totalorder %s20, 0
      %p35 = por %p33, %p34
      %p36 = scmp.ne.s32.totalorder %s28, %s30
      %p37 = scmp.eq.s32.totalorder %s25, 1
      %p38 = por %p36, %p37
      %p39 = scmp.ne.s32.totalorder %s30, %s31
      %p40 = scmp.eq.s32.totalorder %s25, 0
      %p41 = por %p39, %p40
      %p42 = scmp.ne.s32.totalorder %s30, %s31
      %p43 = scmp.eq.s32.totalorder %s26, 1
      %p44 = por %p42, %p43
      %p46 = scmp.ne.s32.totalorder %s31, %s45
      %p47 = scmp.eq.s32.totalorder %s26, 0
      %p48 = por %p46, %p47
      %s50 = sadd.s32 %s49, 1
      %p53 = scmp.eq.s32.totalorder %s20, 1
      %p54 = scmp.ne.s32.totalorder %s49, %s51
      %p55 = scmp.eq.s32.totalorder %s20, 0
      %p56 = por %p54, %p55
      %p57 = scmp.ne.s32.totalorder %s49, %s51
      %p58 = scmp.eq.s32.totalorder %s25, 1
      %p59 = por %p57, %p58
      %p60 = scmp.ne.s32.totalorder %s51, %s52
      %p61 = scmp.eq.s32.totalorder %s25, 0
      %p62 = por %p60, %p61
      %p63 = scmp.ne.s32.totalorder %s51, %s52
      %p64 = scmp.eq.s32.totalorder %s26, 1
      %p65 = por %p63, %p64
      %p67 = scmp.ne.s32.totalorder %s52, %s66
      %p68 = scmp.eq.s32.totalorder %s26, 0
      %p69 = por %p67, %p68
      %s71 = sadd.s32 %s70, 1
      %p74 = scmp.eq.s32.totalorder %s20, 1
      %p75 = scmp.ne.s32.totalorder %s70, %s72
      %p76 = scmp.eq.s32.totalorder %s20, 0
      %p77 = por %p75, %p76
      %p78 = scmp.ne.s32.totalorder %s70, %s72
      %p79 = scmp.eq.s32.totalorder %s25, 1
      %p80 = por %p78, %p79
      %p81 = scmp.ne.s32.totalorder %s72, %s73
      %p82 = scmp.eq.s32.totalorder %s25, 0
      %p83 = por %p81, %p82
      %p84 = scmp.ne.s32.totalorder %s72, %s73
      %p85 = scmp.eq.s32.totalorder %s26, 1
      %p86 = por %p84, %p85
      %p88 = scmp.ne.s32.totalorder %s73, %s87
      %p89 = scmp.eq.s32.totalorder %s26, 0
      %p90 = por %p88, %p89
      %s92 = sadd.s32 %s91, 1
      %p95 = scmp.eq.s32.totalorder %s20, 1
      %p96 = scmp.ne.s32.totalorder %s91, %s93
      %p97 = scmp.eq.s32.totalorder %s20, 0
      %p98 = por %p96, %p97
      %p99 = scmp.ne.s32.totalorder %s91, %s93
      %p100 = scmp.eq.s32.totalorder %s25, 1
      %p101 = por %p99, %p100
      %p102 = scmp.ne.s32.totalorder %s93, %s94
      %p103 = scmp.eq.s32.totalorder %s25, 0
      %p104 = por %p102, %p103
      %p105 = scmp.ne.s32.totalorder %s93, %s94
      %p106 = scmp.eq.s32.totalorder %s26, 1
      %p107 = por %p105, %p106
      %p109 = scmp.ne.s32.totalorder %s94, %s108
      %p110 = scmp.eq.s32.totalorder %s26, 0
      %p111 = por %p109, %p110
      %s113 = sadd.s32 %s112, 1
      %p116 = scmp.eq.s32.totalorder %s20, 1
      %p117 = scmp.ne.s32.totalorder %s112, %s114
      %p118 = scmp.eq.s32.totalorder %s20, 0
      %p119 = por %p117, %p118
      %p120 = scmp.ne.s32.totalorder %s112, %s114
      %p121 = scmp.eq.s32.totalorder %s25, 1
      %p122 = por %p120, %p121
      %p123 = scmp.ne.s32.totalorder %s114, %s115
      %p124 = scmp.eq.s32.totalorder %s25, 0
      %p125 = por %p123, %p124
      %p126 = scmp.ne.s32.totalorder %s114, %s115
      %p127 = scmp.eq.s32.totalorder %s26, 1
      %p128 = por %p126, %p127
      %p130 = scmp.ne.s32.totalorder %s115, %s129
      %p131 = scmp.eq.s32.totalorder %s26, 0
      %p132 = por %p130, %p131
      %s134 = sadd.s32 %s133, 1
      %p137 = scmp.eq.s32.totalorder %s20, 1
      %p138 = scmp.ne.s32.totalorder %s133, %s135
      %p139 = scmp.eq.s32.totalorder %s20, 0
      %p140 = por %p138, %p139
      %p141 = scmp.ne.s32.totalorder %s133, %s135
      %p142 = scmp.eq.s32.totalorder %s25, 1
      %p143 = por %p141, %p142
      %p144 = scmp.ne.s32.totalorder %s135, %s136
      %p145 = scmp.eq.s32.totalorder %s25, 0
      %p146 = por %p144, %p145
      %p147 = scmp.ne.s32.totalorder %s135, %s136
      %p148 = scmp.eq.s32.totalorder %s26, 1
      %p149 = por %p147, %p148
      %p151 = scmp.ne.s32.totalorder %s136, %s150
      %p152 = scmp.eq.s32.totalorder %s26, 0
      %p153 = por %p151, %p152
      %s154 = ssub.s32 %s20, %s27
      %p155 = scmp.eq.s32.totalorder %s154, 0
      %s157 = sadd.s32 %s156, 1
      %s158 = scalar_select %p155, %s156, %s157
      %p161 = pneg %p155
      %p162 = scmp.eq.s32.totalorder %s20, 1
      %p163 = por %p161, %p162
      %p164 = scmp.ne.s32.totalorder %s156, %s159
      %p165 = scmp.eq.s32.totalorder %s20, 0
      %p166 = por %p164, %p165
      %p167 = scmp.ne.s32.totalorder %s156, %s159
      %p168 = scmp.eq.s32.totalorder %s25, 1
      %p169 = por %p167, %p168
      %p170 = scmp.ne.s32.totalorder %s159, %s160
      %p171 = scmp.eq.s32.totalorder %s25, 0
      %p172 = por %p170, %p171
      %p173 = scmp.ne.s32.totalorder %s159, %s160
      %p174 = scmp.eq.s32.totalorder %s26, 1
      %p175 = por %p173, %p174
      %p177 = scmp.ne.s32.totalorder %s160, %s176
      %p178 = scmp.eq.s32.totalorder %s26, 0
      %p179 = por %p177, %p178
      %s180 = ssub.s32 %s20, %s27
      %p181 = scmp.eq.s32.totalorder %s180, 0
      %s183 = sadd.s32 %s182, 1
      %s184 = scalar_select %p181, %s182, %s183
      %p187 = pneg %p181
      %p188 = scmp.eq.s32.totalorder %s20, 1
      %p189 = por %p187, %p188
      %p190 = scmp.ne.s32.totalorder %s182, %s185
      %p191 = scmp.eq.s32.totalorder %s20, 0
      %p192 = por %p190, %p191
      %p193 = scmp.ne.s32.totalorder %s182, %s185
      %p194 = scmp.eq.s32.totalorder %s25, 1
      %p195 = por %p193, %p194
      %p196 = scmp.ne.s32.totalorder %s185, %s186
      %p197 = scmp.eq.s32.totalorder %s25, 0
      %p198 = por %p196, %p197
      %p199 = scmp.ne.s32.totalorder %s185, %s186
      %p200 = scmp.eq.s32.totalorder %s26, 1
      %p201 = por %p199, %p200
      %p203 = scmp.ne.s32.totalorder %s186, %s202
      %p204 = scmp.eq.s32.totalorder %s26, 0
      %p205 = por %p203, %p204
      %s206 = ssub.s32 %s20, %s27
      %p207 = scmp.eq.s32.totalorder %s206, 0
      %s209 = sadd.s32 %s208, 1
      %s210 = scalar_select %p207, %s208, %s209
      %p213 = pneg %p207
      %p214 = scmp.eq.s32.totalorder %s20, 1
      %p215 = por %p213, %p214
      %p216 = scmp.ne.s32.totalorder %s208, %s211
      %p217 = scmp.eq.s32.totalorder %s20, 0
      %p218 = por %p216, %p217
      %p219 = scmp.ne.s32.totalorder %s208, %s211
      %p220 = scmp.eq.s32.totalorder %s25, 1
      %p221 = por %p219, %p220
      %p222 = scmp.ne.s32.totalorder %s211, %s212
      %p223 = scmp.eq.s32.totalorder %s25, 0
      %p224 = por %p222, %p223
      %p225 = scmp.ne.s32.totalorder %s211, %s212
      %p226 = scmp.eq.s32.totalorder %s26, 1
      %p227 = por %p225, %p226
      %p229 = scmp.ne.s32.totalorder %s212, %s228
      %p230 = scmp.eq.s32.totalorder %s26, 0
      %p231 = por %p229, %p230
      %s233 = sadd.s32 %s232, 1
      %p236 = scmp.eq.s32.totalorder %s20, 1
      %p237 = scmp.ne.s32.totalorder %s232, %s234
      %p238 = scmp.eq.s32.totalorder %s20, 0
      %p239 = por %p237, %p238
      %p240 = scmp.ne.s32.totalorder %s232, %s234
      %p241 = scmp.eq.s32.totalorder %s25, 1
      %p242 = por %p240, %p241
      %p243 = scmp.ne.s32.totalorder %s234, %s235
      %p244 = scmp.eq.s32.totalorder %s25, 0
      %p245 = por %p243, %p244
      %p246 = scmp.ne.s32.totalorder %s234, %s235
      %p247 = scmp.eq.s32.totalorder %s26, 1
      %p248 = por %p246, %p247
      %p250 = scmp.ne.s32.totalorder %s235, %s249
      %p251 = scmp.eq.s32.totalorder %s26, 0
      %p252 = por %p250, %p251
      %s254 = sadd.s32 %s253, 1
      %p257 = scmp.eq.s32.totalorder %s20, 1
      %p258 = scmp.ne.s32.totalorder %s253, %s255
      %p259 = scmp.eq.s32.totalorder %s20, 0
      %p260 = por %p258, %p259
      %p261 = scmp.ne.s32.totalorder %s253, %s255
      %p262 = scmp.eq.s32.totalorder %s25, 1
      %p263 = por %p261, %p262
      %p264 = scmp.ne.s32.totalorder %s255, %s256
      %p265 = scmp.eq.s32.totalorder %s25, 0
      %p266 = por %p264, %p265
      %p267 = scmp.ne.s32.totalorder %s255, %s256
      %p268 = scmp.eq.s32.totalorder %s26, 1
      %p269 = por %p267, %p268
      %p271 = scmp.ne.s32.totalorder %s256, %s270
      %p272 = scmp.eq.s32.totalorder %s26, 0
      %p273 = por %p271, %p272
      %p274 = scmp.le.s32.totalorder 1, %s20
      %p275 = scmp.lt.s32.totalorder %s20, 3
      %p276 = pnand %p274, %p275
      %p277 = pneg %p276
      // Predicated region
      $region9: #{tpu_custom_call.1} parent=5 // pred_check
        _
      $region10: #{tpu_custom_call.1} parent=5 // pred_check_branch
        %279 = sbr.rel (%p276) target = $region12
      $region11: #{tpu_custom_call.1} parent=5 // pred_region
        %s280 = ssub.s32 %s20, 1
        // Predicated region
        $region13: #{tpu_custom_call.1} parent=11 // pred_check
          %p281 = pneg %p41
        $region14: #{tpu_custom_call.1} parent=11 // pred_check_branch
          %283 = sbr.rel (%p281) target = $region16
        $region15: #{tpu_custom_call.1} parent=11 // pred_region
          _
        $region16: #{tpu_custom_call.1} parent=11 // pred_fallthru
          _
        // Predicated region
        $region17: #{tpu_custom_call.1} parent=11 // pred_check
          %p284 = pneg %p62
        $region18: #{tpu_custom_call.1} parent=11 // pred_check_branch
          %286 = sbr.rel (%p284) target = $region20
        $region19: #{tpu_custom_call.1} parent=11 // pred_region
          _
        $region20: #{tpu_custom_call.1} parent=11 // pred_fallthru
          _
        // Predicated region
        $region21: #{tpu_custom_call.1} parent=11 // pred_check
          %p287 = pneg %p83
        $region22: #{tpu_custom_call.1} parent=11 // pred_check_branch
          %289 = sbr.rel (%p287) target = $region24
        $region23: #{tpu_custom_call.1} parent=11 // pred_region
          %s291 = ssub.s32 512, 512
          %292 = vsyncadd [#allocation4], %s291
          %s293 = sshll.u32 [#allocation3], 4
          %s294 = int_to_ptr.vmem [resolvable:$true] %s293
          %299 = dma.hbm_to_vmem [thread:$0]  %s2, 512, %s294, [#allocation4], 128, 128, 8
        $region24: #{tpu_custom_call.1} parent=11 // pred_fallthru
          _
        // Predicated region
        $region25: #{tpu_custom_call.1} parent=11 // pred_check
          %p300 = pneg %p104
        $region26: #{tpu_custom_call.1} parent=11 // pred_check_branch
          %302 = sbr.rel (%p300) target = $region28
        $region27: #{tpu_custom_call.1} parent=11 // pred_region
          %s304 = ssub.s32 128, 128
          %305 = vsyncadd [#allocation7], %s304
          %s307 = sshll.u32 [#allocation6], 4
          %s308 = int_to_ptr.vmem [resolvable:$true] %s307
          %310 = dma.hbm_to_vmem [thread:$0]  %s3, 128, %s308, [#allocation7]
        $region28: #{tpu_custom_call.1} parent=11 // pred_fallthru
          _
        // Predicated region
        $region29: #{tpu_custom_call.1} parent=11 // pred_check
          %p311 = pneg %p125
        $region30: #{tpu_custom_call.1} parent=11 // pred_check_branch
          %313 = sbr.rel (%p311) target = $region32
        $region31: #{tpu_custom_call.1} parent=11 // pred_region
          %s315 = ssub.s32 1024, 1024
          %316 = vsyncadd [#allocation7], %s315
          %s317 = sshll.u32 [#allocation8], 4
          %s318 = int_to_ptr.vmem [resolvable:$true] %s317
          %323 = dma.hbm_to_vmem [thread:$0]  %s4, 1024, %s318, [#allocation7], 512, 512, 32
        $region32: #{tpu_custom_call.1} parent=11 // pred_fallthru
          _
        // Predicated region
        $region33: #{tpu_custom_call.1} parent=11 // pred_check
          %p324 = pneg %p146
        $region34: #{tpu_custom_call.1} parent=11 // pred_check_branch
          %326 = sbr.rel (%p324) target = $region36
        $region35: #{tpu_custom_call.1} parent=11 // pred_region
          %s328 = ssub.s32 512, 512
          %329 = vsyncadd [#allocation10], %s328
          %s331 = sshll.u32 [#allocation9], 4
          %s332 = int_to_ptr.vmem [resolvable:$true] %s331
          %334 = dma.hbm_to_vmem [thread:$0]  %s5, 512, %s332, [#allocation10]
        $region36: #{tpu_custom_call.1} parent=11 // pred_fallthru
          _
        // Predicated region
        $region37: #{tpu_custom_call.1} parent=11 // pred_check
          %p335 = pneg %p245
        $region38: #{tpu_custom_call.1} parent=11 // pred_check_branch
          %337 = sbr.rel (%p335) target = $region40
        $region39: #{tpu_custom_call.1} parent=11 // pred_region
          %s339 = ssub.s32 32, 32
          %340 = vsyncadd [#allocation7], %s339
          %s342 = sshll.u32 [#allocation14], 4
          %s343 = int_to_ptr.vmem [resolvable:$true] %s342
          %345 = dma.hbm_to_vmem [thread:$0]  %s9, 32, %s343, [#allocation7]
        $region40: #{tpu_custom_call.1} parent=11 // pred_fallthru
          _
      $region12: #{tpu_custom_call.1} parent=5 // pred_fallthru
        _
      %p346 = scmp.lt.s32.totalorder %s20, 2
      // Predicated region
      $region41: #{tpu_custom_call.1} parent=5 // pred_check
        %p347 = pneg %p346
      $region42: #{tpu_custom_call.1} parent=5 // pred_check_branch
        %349 = sbr.rel (%p347) target = $region44
      $region43: #{tpu_custom_call.1} parent=5 // pred_region
        // Predicated region
        $region45: #{tpu_custom_call.1} parent=43 // pred_check
          %p350 = pneg %p166
        $region46: #{tpu_custom_call.1} parent=43 // pred_check_branch
          %352 = sbr.rel (%p350) target = $region48
        $region47: #{tpu_custom_call.1} parent=43 // pred_region
          %s353 = sand.u32 %s20, 1
          %s354 = scalar_lea.sflag [#allocation4], %s353
          %s355 = sand.u32 %s156, 1
          %s356 = smul.addr %s355, 3200
          %s357 = scalar_lea.vmem [#allocation11], %s356
          %s358 = smul.u32 5, %s20
          %s360 = ssub.s32 51200, 51200
          %361 = vsyncadd %s354, %s360
          %s362 = smul.addr %s358, 64
          %s363 = scalar_lea.hbm %s6, %s362
          %s364 = sshll.u32 %s357, 4
          %s365 = int_to_ptr.vmem [resolvable:$true] %s364
          %370 = dma.hbm_to_vmem [thread:$0]  %s363, 51200, %s365, %s354, 640, 320, 20
        $region48: #{tpu_custom_call.1} parent=43 // pred_fallthru
          _
        // Predicated region
        $region49: #{tpu_custom_call.1} parent=43 // pred_check
          %p371 = pneg %p192
        $region50: #{tpu_custom_call.1} parent=43 // pred_check_branch
          %373 = sbr.rel (%p371) target = $region52
        $region51: #{tpu_custom_call.1} parent=43 // pred_region
          %s374 = sand.u32 %s20, 1
          %s375 = scalar_lea.sflag [#allocation4], %s374
          %s376 = sand.u32 %s182, 1
          %s377 = smul.addr %s376, 20
          %s378 = scalar_lea.vmem [#allocation12], %s377
          %s379 = smul.u32 5, %s20
          %s381 = ssub.s32 320, 320
          %382 = vsyncadd %s375, %s381
          %s383 = smul.addr %s379, 64
          %s384 = scalar_lea.hbm %s7, %s383
          %s386 = sshll.u32 %s378, 4
          %s387 = int_to_ptr.vmem [resolvable:$true] %s386
          %389 = dma.hbm_to_vmem [thread:$0]  %s384, 320, %s387, %s375
        $region52: #{tpu_custom_call.1} parent=43 // pred_fallthru
          _
        // Predicated region
        $region53: #{tpu_custom_call.1} parent=43 // pred_check
          %p390 = pneg %p218
        $region54: #{tpu_custom_call.1} parent=43 // pred_check_branch
          %392 = sbr.rel (%p390) target = $region56
        $region55: #{tpu_custom_call.1} parent=43 // pred_region
          %s393 = sand.u32 %s20, 1
          %s394 = scalar_lea.sflag [#allocation4], %s393
          %s395 = sand.u32 %s208, 1
          %s396 = smul.addr %s395, 640
          %s397 = scalar_lea.vmem [#allocation13], %s396
          %s398 = smul.u32 80, %s20
          %s400 = ssub.s32 10240, 10240
          %401 = vsyncadd %s394, %s400
          %s402 = smul.addr %s398, 2
          %s403 = smul.addr %s402, 64
          %s404 = scalar_lea.hbm %s8, %s403
          %s405 = sshll.u32 %s397, 4
          %s406 = int_to_ptr.vmem [resolvable:$true] %s405
          %411 = dma.hbm_to_vmem [thread:$0]  %s404, 10240, %s406, %s394, 128, 128, 8
        $region56: #{tpu_custom_call.1} parent=43 // pred_fallthru
          _
      $region44: #{tpu_custom_call.1} parent=5 // pred_fallthru
        _
      %p412 = scmp.le.s32.totalorder 1, %s20
      %p413 = scmp.lt.s32.totalorder %s20, 3
      %p414 = pnand %p412, %p413
      %p415 = pneg %p414
      // Predicated region
      $region57: #{tpu_custom_call.1} parent=5 // pred_check
        _
      $region58: #{tpu_custom_call.1} parent=5 // pred_check_branch
        %417 = sbr.rel (%p414) target = $region60
      $region59: #{tpu_custom_call.1} parent=5 // pred_region
        %s418 = ssub.s32 %s20, 1
        // Predicated region
        $region61: #{tpu_custom_call.1} parent=59 // pred_check
          %p419 = pneg %p83
        $region62: #{tpu_custom_call.1} parent=59 // pred_check_branch
          %421 = sbr.rel (%p419) target = $region64
        $region63: #{tpu_custom_call.1} parent=59 // pred_region
          %422 = dma.done [#allocation4], 512
        $region64: #{tpu_custom_call.1} parent=59 // pred_fallthru
          _
        // Predicated region
        $region65: #{tpu_custom_call.1} parent=59 // pred_check
          %p423 = pneg %p104
        $region66: #{tpu_custom_call.1} parent=59 // pred_check_branch
          %425 = sbr.rel (%p423) target = $region68
        $region67: #{tpu_custom_call.1} parent=59 // pred_region
          %426 = dma.done [#allocation7], 128
        $region68: #{tpu_custom_call.1} parent=59 // pred_fallthru
          _
        // Predicated region
        $region69: #{tpu_custom_call.1} parent=59 // pred_check
          %p427 = pneg %p125
        $region70: #{tpu_custom_call.1} parent=59 // pred_check_branch
          %429 = sbr.rel (%p427) target = $region72
        $region71: #{tpu_custom_call.1} parent=59 // pred_region
          %430 = dma.done [#allocation7], 1024
        $region72: #{tpu_custom_call.1} parent=59 // pred_fallthru
          _
        // Predicated region
        $region73: #{tpu_custom_call.1} parent=59 // pred_check
          %p431 = pneg %p146
        $region74: #{tpu_custom_call.1} parent=59 // pred_check_branch
          %433 = sbr.rel (%p431) target = $region76
        $region75: #{tpu_custom_call.1} parent=59 // pred_region
          %434 = dma.done [#allocation10], 512
        $region76: #{tpu_custom_call.1} parent=59 // pred_fallthru
          _
        %s435 = sand.u32 %s25, 1
        %s436 = scalar_lea.sflag [#allocation4], %s435
        %s437 = sand.u32 %s159, 1
        %s438 = smul.addr %s437, 3200
        %s439 = scalar_lea.vmem [#allocation11], %s438
        // Predicated region
        $region77: #{tpu_custom_call.1} parent=59 // pred_check
          %p440 = pneg %p172
        $region78: #{tpu_custom_call.1} parent=59 // pred_check_branch
          %442 = sbr.rel (%p440) target = $region80
        $region79: #{tpu_custom_call.1} parent=59 // pred_region
          %443 = dma.done %s436, 51200
        $region80: #{tpu_custom_call.1} parent=59 // pred_fallthru
          _
        %s444 = sand.u32 %s25, 1
        %s445 = scalar_lea.sflag [#allocation4], %s444
        %s446 = sand.u32 %s185, 1
        %s447 = smul.addr %s446, 20
        %s448 = scalar_lea.vmem [#allocation12], %s447
        // Predicated region
        $region81: #{tpu_custom_call.1} parent=59 // pred_check
          %p449 = pneg %p198
        $region82: #{tpu_custom_call.1} parent=59 // pred_check_branch
          %451 = sbr.rel (%p449) target = $region84
        $region83: #{tpu_custom_call.1} parent=59 // pred_region
          %452 = dma.done %s445, 320
        $region84: #{tpu_custom_call.1} parent=59 // pred_fallthru
          _
        %s453 = sand.u32 %s25, 1
        %s454 = scalar_lea.sflag [#allocation4], %s453
        %s455 = sand.u32 %s211, 1
        %s456 = smul.addr %s455, 640
        %s457 = scalar_lea.vmem [#allocation13], %s456
        // Predicated region
        $region85: #{tpu_custom_call.1} parent=59 // pred_check
          %p458 = pneg %p224
        $region86: #{tpu_custom_call.1} parent=59 // pred_check_branch
          %460 = sbr.rel (%p458) target = $region88
        $region87: #{tpu_custom_call.1} parent=59 // pred_region
          %461 = dma.done %s454, 10240
        $region88: #{tpu_custom_call.1} parent=59 // pred_fallthru
          _
        // Predicated region
        $region89: #{tpu_custom_call.1} parent=59 // pred_check
          %p462 = pneg %p245
        $region90: #{tpu_custom_call.1} parent=59 // pred_check_branch
          %464 = sbr.rel (%p462) target = $region92
        $region91: #{tpu_custom_call.1} parent=59 // pred_region
          %465 = dma.done [#allocation7], 32
        $region92: #{tpu_custom_call.1} parent=59 // pred_fallthru
          _
        %p466 = pneg %p41
        %p467 = pneg %p38
        %p468 = pneg %p62
        %p469 = pneg %p59
        %p470 = pneg %p83
        %p471 = pneg %p80
        %p472 = pneg %p104
        %p473 = pneg %p101
        %p474 = pneg %p125
        %p475 = pneg %p122
        %p476 = pneg %p146
        %p477 = pneg %p143
        %s478 = sand.u32 %s25, 1
        %s479 = scalar_lea.sflag [#allocation4], %s478
        %s480 = sand.u32 %s159, 1
        %s481 = smul.addr %s480, 3200
        %s482 = scalar_lea.vmem [#allocation11], %s481
        %p483 = pneg %p172
        %p484 = pneg %p169
        %s485 = sand.u32 %s25, 1
        %s486 = scalar_lea.sflag [#allocation4], %s485
        %s487 = sand.u32 %s185, 1
        %s488 = smul.addr %s487, 20
        %s489 = scalar_lea.vmem [#allocation12], %s488
        %p490 = pneg %p198
        %p491 = pneg %p195
        %s492 = sand.u32 %s25, 1
        %s493 = scalar_lea.sflag [#allocation4], %s492
        %s494 = sand.u32 %s211, 1
        %s495 = smul.addr %s494, 640
        %s496 = scalar_lea.vmem [#allocation13], %s495
        %p497 = pneg %p224
        %p498 = pneg %p221
        %p499 = pneg %p245
        %p500 = pneg %p242
        %p501 = pneg %p266
        %p502 = pneg %p263
        %s503 = smul.u32 5, %s25
        %s504 = smul.u32 5, %s25
        %s505 = smul.u32 80, %s25
        %p507 = scmp.eq.s32.totalorder %s25, 0
        // Predicated region
        $region93: #{tpu_custom_call.1} parent=59 // pred_check
          %p508 = pneg %p507
        $region94: #{tpu_custom_call.1} parent=59 // pred_check_branch
          %510 = sbr.rel (%p508) target = $region96
        $region95: #{tpu_custom_call.1} parent=59 // pred_region
          %v511 = vld [vmem:[%s0] sm:$0xff]
          %v512 = vld [vmem:[%s0 + $0x8] sm:$0xff]
          %v513 = vld [vmem:[%s0 + $0x10] sm:$0xff]
          %v514 = vld [vmem:[%s0 + $0x18] sm:$0xff]
          %v515 = vld [vmem:[%s0 + $0x20] sm:$0xff]
          %v516 = vld [vmem:[%s0 + $0x28] sm:$0xff]
          %v517 = vld [vmem:[%s0 + $0x30] sm:$0xff]
          %v518 = vld [vmem:[%s0 + $0x38] sm:$0xff]
          %v519 = vld [vmem:[%s0 + $0x40] sm:$0xff]
          %v520 = vld [vmem:[%s0 + $0x48] sm:$0xff]
          %v521 = vld [vmem:[%s0 + $0x50] sm:$0xff]
          %v522 = vld [vmem:[%s0 + $0x58] sm:$0xff]
          %v523 = vld [vmem:[%s0 + $0x60] sm:$0xff]
          %v524 = vld [vmem:[%s0 + $0x68] sm:$0xff]
          %v525 = vld [vmem:[%s0 + $0x70] sm:$0xff]
          %v526 = vld [vmem:[%s0 + $0x78] sm:$0xff]
          %v527 = vpack.c.bf16 %v512, %v511
          %v528 = vpack.c.bf16 %v514, %v513
          %v529 = vpack.c.bf16 %v516, %v515
          %v530 = vpack.c.bf16 %v518, %v517
          %v531 = vpack.c.bf16 %v520, %v519
          %v532 = vpack.c.bf16 %v522, %v521
          %v533 = vpack.c.bf16 %v524, %v523
          %v534 = vpack.c.bf16 %v526, %v525
          %v535 = vld [vmem:[#allocation3] sm:$0xff]
          %v536 = vld [vmem:[#allocation3 + $0x8] sm:$0xff]
          %v537 = vld [vmem:[#allocation3 + $0x10] sm:$0xff]
          %v538 = vld [vmem:[#allocation3 + $0x18] sm:$0xff]
          %v539 = vld [vmem:[#allocation6] ss:$4 sm:$0x3]
          %v541 = vlaneseq
          %v542 = vshrl.u32 %v541, 7
          %v543 = vsub.s32 0, %v542
          %v544 = vrot.slane %v539, %v543
          %v545 = vlaneseq
          %v546 = vshrl.u32 %v545, 7
          %v547 = vsub.s32 1, %v546
          %v548 = vrot.slane %v539, %v547
          %v555 = vunpack.c.l.b16 %v535
          %v556 = vunpack.c.h.b16 %v535
          %v557 = vunpack.c.l.b16 %v536
          %v558 = vunpack.c.h.b16 %v536
          %v559 = vunpack.c.l.b16 %v537
          %v560 = vunpack.c.h.b16 %v537
          %v561 = vunpack.c.l.b16 %v538
          %v562 = vunpack.c.h.b16 %v538
          %v563 = vpack.c.b16 %v557, %v555
          %v564 = vpack.c.b16 %v558, %v556
          %v565 = vpack.c.b16 %v561, %v559
          %v566 = vpack.c.b16 %v562, %v560
          %vm571 = vcmask 261120
          %v573 = vsel %vm571, %v527, 0
          %v576 = vsel %vm571, %v528, 0
          %v579 = vsel %vm571, %v529, 0
          %v582 = vsel %vm571, %v530, 0
          %v585 = vsel %vm571, %v531, 0
          %v588 = vsel %vm571, %v532, 0
          %v591 = vsel %vm571, %v533, 0
          %v594 = vsel %vm571, %v534, 0
          %596 = vmatprep.subr.bf16.mxu0 %v564
          %597 = vmatpush1.bf16.msra.mxu0 %v563
          %598 = vmatprep.subr.bf16.mxu0 %v566
          %599 = vmatpush1.bf16.msra.mxu0 %v565
          %600 = vmatprep.subr.bf16.mxu0 0
          %601 = vmatpush1.bf16.msra.mxu0 0
          %602 = vmatprep.subr.bf16.mxu0 0
          %603 = vmatpush1.bf16.msra.mxu0 0
          %604 = vmatprep.subr.bf16.mxu0 0
          %605 = vmatpush1.bf16.msra.mxu0 0
          %606 = vmatprep.subr.bf16.mxu0 0
          %607 = vmatpush1.bf16.msra.mxu0 0
          %608 = vmatprep.subr.bf16.mxu0 0
          %609 = vmatpush1.bf16.msra.mxu0 0
          %610 = vmatprep.subr.bf16.mxu0 0
          %611 = vmatpush1.bf16.msra.mxu0 0
          %612 = vmatprep.subr.bf16.mxu0 0
          %613 = vmatpush1.bf16.msra.mxu0 0
          %614 = vmatprep.subr.bf16.mxu0 0
          %615 = vmatpush1.bf16.msra.mxu0 0
          %616 = vmatprep.subr.bf16.mxu0 0
          %617 = vmatpush1.bf16.msra.mxu0 0
          %618 = vmatprep.subr.bf16.mxu0 0
          %619 = vmatpush1.bf16.msra.mxu0 0
          %620 = vmatprep.subr.bf16.mxu0 0
          %621 = vmatpush1.bf16.msra.mxu0 0
          %622 = vmatprep.subr.bf16.mxu0 0
          %623 = vmatpush1.bf16.msra.mxu0 0
          %624 = vmatprep.subr.bf16.mxu0 0
          %625 = vmatpush1.bf16.msra.mxu0 0
          %626 = vmatprep.subr.bf16.mxu0 0
          %627 = vmatpush1.bf16.msra.mxu0 0
          %628 = vmatprep.mubr.bf16.mxu0 0
          %629 = vmatmul.mubr.bf16.gmra.mrb[0].mxu0 %v573
          %v630 = vpop.f32.mrb[0].mxu0
          %v631 = vadd.f32 %v544, %v630
          %v632 = vpop.f32.mrb[0].mxu0
          %v633 = vadd.f32 %v548, %v632
          %v634 = vpop.f32.mrb[0].mxu0
          %v635 = vadd.f32 %v544, %v634
          %v636 = vpop.f32.mrb[0].mxu0
          %v637 = vadd.f32 %v548, %v636
          %638 = vmatprep.mubr.bf16.mxu0 0
          %639 = vmatmul.mubr.bf16.gmra.mrb[0].mxu0 %v576
          %v640 = vpop.f32.mrb[0].mxu0
          %v641 = vadd.f32 %v544, %v640
          %v642 = vpop.f32.mrb[0].mxu0
          %v643 = vadd.f32 %v548, %v642
          %v644 = vpop.f32.mrb[0].mxu0
          %v645 = vadd.f32 %v544, %v644
          %v646 = vpop.f32.mrb[0].mxu0
          %v647 = vadd.f32 %v548, %v646
          %648 = vmatprep.mubr.bf16.mxu0 0
          %649 = vmatmul.mubr.bf16.gmra.mrb[0].mxu0 %v579
          %v650 = vpop.f32.mrb[0].mxu0
          %v651 = vadd.f32 %v544, %v650
          %v652 = vpop.f32.mrb[0].mxu0
          %v653 = vadd.f32 %v548, %v652
          %v654 = vpop.f32.mrb[0].mxu0
          %v655 = vadd.f32 %v544, %v654
          %v656 = vpop.f32.mrb[0].mxu0
          %v657 = vadd.f32 %v548, %v656
          %658 = vmatprep.mubr.bf16.mxu0 0
          %659 = vmatmul.mubr.bf16.gmra.mrb[0].mxu0 %v582
          %v660 = vpop.f32.mrb[0].mxu0
          %v661 = vadd.f32 %v544, %v660
          %v662 = vpop.f32.mrb[0].mxu0
          %v663 = vadd.f32 %v548, %v662
          %v664 = vpop.f32.mrb[0].mxu0
          %v665 = vadd.f32 %v544, %v664
          %v666 = vpop.f32.mrb[0].mxu0
          %v667 = vadd.f32 %v548, %v666
          %668 = vmatprep.mubr.bf16.mxu0 0
          %669 = vmatmul.mubr.bf16.gmra.mrb[0].mxu0 %v585
          %v670 = vpop.f32.mrb[0].mxu0
          %v671 = vadd.f32 %v544, %v670
          %v672 = vpop.f32.mrb[0].mxu0
          %v673 = vadd.f32 %v548, %v672
          %v674 = vpop.f32.mrb[0].mxu0
          %v675 = vadd.f32 %v544, %v674
          %v676 = vpop.f32.mrb[0].mxu0
          %v677 = vadd.f32 %v548, %v676
          %678 = vmatprep.mubr.bf16.mxu0 0
          %679 = vmatmul.mubr.bf16.gmra.mrb[0].mxu0 %v588
          %v680 = vpop.f32.mrb[0].mxu0
          %v681 = vadd.f32 %v544, %v680
          %v682 = vpop.f32.mrb[0].mxu0
          %v683 = vadd.f32 %v548, %v682
          %v684 = vpop.f32.mrb[0].mxu0
          %v685 = vadd.f32 %v544, %v684
          %v686 = vpop.f32.mrb[0].mxu0
          %v687 = vadd.f32 %v548, %v686
          %688 = vmatprep.mubr.bf16.mxu0 0
          %689 = vmatmul.mubr.bf16.gmra.mrb[0].mxu0 %v591
          %v690 = vpop.f32.mrb[0].mxu0
          %v691 = vadd.f32 %v544, %v690
          %v692 = vpop.f32.mrb[0].mxu0
          %v693 = vadd.f32 %v548, %v692
          %v694 = vpop.f32.mrb[0].mxu0
          %v695 = vadd.f32 %v544, %v694
          %v696 = vpop.f32.mrb[0].mxu0
          %v697 = vadd.f32 %v548, %v696
          %698 = vmatprep.mubr.bf16.mxu0 0
          %699 = vmatmul.mubr.bf16.gmra.mrb[0].mxu0 %v594
          %v700 = vpop.f32.mrb[0].mxu0
          %v701 = vadd.f32 %v544, %v700
          %v702 = vpop.f32.mrb[0].mxu0
          %v703 = vadd.f32 %v548, %v702
          %v704 = vpop.f32.mrb[0].mxu0
          %v705 = vadd.f32 %v544, %v704
          %v706 = vpop.f32.mrb[0].mxu0
          %v707 = vadd.f32 %v548, %v706
          %708 = vdwg.mxu0
          %s709 = scalar_lea.vmem [#allocation6], 1
          %v710 = vld [vmem:[%s709] ss:$4 sm:$0x3]
          %s711 = scalar_lea.vmem [#allocation6], 2
          %v712 = vld [vmem:[%s711] ss:$4 sm:$0x3]
          %v713 = vadd.f32 %v631, %v635
          %v714 = vadd.f32 %v713, %v641
          %v715 = vadd.f32 %v714, %v645
          %v716 = vadd.f32 %v715, %v651
          %v717 = vadd.f32 %v716, %v655
          %v718 = vadd.f32 %v717, %v661
          %v719 = vadd.f32 %v718, %v665
          %v720 = vadd.f32 %v719, %v671
          %v721 = vadd.f32 %v720, %v675
          %v722 = vadd.f32 %v721, %v681
          %v723 = vadd.f32 %v722, %v685
          %v724 = vadd.f32 %v723, %v691
          %v725 = vadd.f32 %v724, %v695
          %v726 = vadd.f32 %v725, %v701
          %v727 = vadd.f32 %v726, %v705
          %v728 = vrot.slane %v727, 4
          %v729 = vadd.f32 %v727, %v728
          %v730 = vrot.slane %v729, 2
          %v731 = vadd.f32 %v729, %v730
          %v732 = vrot.slane %v731, 1
          %v733 = vadd.f32 %v731, %v732
          %v734 = vadd.f32 %v633, %v637
          %v735 = vadd.f32 %v734, %v643
          %v736 = vadd.f32 %v735, %v647
          %v737 = vadd.f32 %v736, %v653
          %v738 = vadd.f32 %v737, %v657
          %v739 = vadd.f32 %v738, %v663
          %v740 = vadd.f32 %v739, %v667
          %v741 = vadd.f32 %v740, %v673
          %v742 = vadd.f32 %v741, %v677
          %v743 = vadd.f32 %v742, %v683
          %v744 = vadd.f32 %v743, %v687
          %v745 = vadd.f32 %v744, %v693
          %v746 = vadd.f32 %v745, %v697
          %v747 = vadd.f32 %v746, %v703
          %v748 = vadd.f32 %v747, %v707
          %v749 = vrot.slane %v748, 4
          %v750 = vadd.f32 %v748, %v749
          %v751 = vrot.slane %v750, 2
          %v752 = vadd.f32 %v750, %v751
          %v753 = vrot.slane %v752, 1
          %v754 = vadd.f32 %v752, %v753
          %v755 = vrcp.pop 128.0
          %v756 = vmul.f32 %v733, %v755
          %v757 = vmul.f32 %v754, %v755
          %v758 = vsub.f32 %v631, %v756
          %v759 = vsub.f32 %v633, %v757
          %v760 = vsub.f32 %v635, %v756
          %v761 = vsub.f32 %v637, %v757
          %v762 = vsub.f32 %v641, %v756
          %v763 = vsub.f32 %v643, %v757
          %v764 = vsub.f32 %v645, %v756
          %v765 = vsub.f32 %v647, %v757
          %v766 = vsub.f32 %v651, %v756
          %v767 = vsub.f32 %v653, %v757
          %v768 = vsub.f32 %v655, %v756
          %v769 = vsub.f32 %v657, %v757
          %v770 = vsub.f32 %v661, %v756
          %v771 = vsub.f32 %v663, %v757
          %v772 = vsub.f32 %v665, %v756
          %v773 = vsub.f32 %v667, %v757
          %v774 = vsub.f32 %v671, %v756
          %v775 = vsub.f32 %v673, %v757
          %v776 = vsub.f32 %v675, %v756
          %v777 = vsub.f32 %v677, %v757
          %v778 = vsub.f32 %v681, %v756
          %v779 = vsub.f32 %v683, %v757
          %v780 = vsub.f32 %v685, %v756
          %v781 = vsub.f32 %v687, %v757
          %v782 = vsub.f32 %v691, %v756
          %v783 = vsub.f32 %v693, %v757
          %v784 = vsub.f32 %v695, %v756
          %v785 = vsub.f32 %v697, %v757
          %v786 = vsub.f32 %v701, %v756
          %v787 = vsub.f32 %v703, %v757
          %v788 = vsub.f32 %v705, %v756
          %v789 = vsub.f32 %v707, %v757
          %v790 = vmul.f32 %v758, %v758
          %v791 = vmul.f32 %v759, %v759
          %v792 = vmul.f32 %v760, %v760
          %v793 = vmul.f32 %v761, %v761
          %v794 = vmul.f32 %v762, %v762
          %v795 = vmul.f32 %v763, %v763
          %v796 = vmul.f32 %v764, %v764
          %v797 = vmul.f32 %v765, %v765
          %v798 = vmul.f32 %v766, %v766
          %v799 = vmul.f32 %v767, %v767
          %v800 = vmul.f32 %v768, %v768
          %v801 = vmul.f32 %v769, %v769
          %v802 = vmul.f32 %v770, %v770
          %v803 = vmul.f32 %v771, %v771
          %v804 = vmul.f32 %v772, %v772
          %v805 = vmul.f32 %v773, %v773
          %v806 = vmul.f32 %v774, %v774
          %v807 = vmul.f32 %v775, %v775
          %v808 = vmul.f32 %v776, %v776
          %v809 = vmul.f32 %v777, %v777
          %v810 = vmul.f32 %v778, %v778
          %v811 = vmul.f32 %v779, %v779
          %v812 = vmul.f32 %v780, %v780
          %v813 = vmul.f32 %v781, %v781
          %v814 = vmul.f32 %v782, %v782
          %v815 = vmul.f32 %v783, %v783
          %v816 = vmul.f32 %v784, %v784
          %v817 = vmul.f32 %v785, %v785
          %v818 = vmul.f32 %v786, %v786
          %v819 = vmul.f32 %v787, %v787
          %v820 = vmul.f32 %v788, %v788
          %v821 = vmul.f32 %v789, %v789
          %v822 = vadd.f32 %v790, %v792
          %v823 = vadd.f32 %v822, %v794
          %v824 = vadd.f32 %v823, %v796
          %v825 = vadd.f32 %v824, %v798
          %v826 = vadd.f32 %v825, %v800
          %v827 = vadd.f32 %v826, %v802
          %v828 = vadd.f32 %v827, %v804
          %v829 = vadd.f32 %v828, %v806
          %v830 = vadd.f32 %v829, %v808
          %v831 = vadd.f32 %v830, %v810
          %v832 = vadd.f32 %v831, %v812
          %v833 = vadd.f32 %v832, %v814
          %v834 = vadd.f32 %v833, %v816
          %v835 = vadd.f32 %v834, %v818
          %v836 = vadd.f32 %v835, %v820
          %v837 = vrot.slane %v836, 4
          %v838 = vadd.f32 %v836, %v837
          %v839 = vrot.slane %v838, 2
          %v840 = vadd.f32 %v838, %v839
          %v841 = vrot.slane %v840, 1
          %v842 = vadd.f32 %v840, %v841
          %v843 = vadd.f32 %v791, %v793
          %v844 = vadd.f32 %v843, %v795
          %v845 = vadd.f32 %v844, %v797
          %v846 = vadd.f32 %v845, %v799
          %v847 = vadd.f32 %v846, %v801
          %v848 = vadd.f32 %v847, %v803
          %v849 = vadd.f32 %v848, %v805
          %v850 = vadd.f32 %v849, %v807
          %v851 = vadd.f32 %v850, %v809
          %v852 = vadd.f32 %v851, %v811
          %v853 = vadd.f32 %v852, %v813
          %v854 = vadd.f32 %v853, %v815
          %v855 = vadd.f32 %v854, %v817
          %v856 = vadd.f32 %v855, %v819
          %v857 = vadd.f32 %v856, %v821
          %v858 = vrot.slane %v857, 4
          %v859 = vadd.f32 %v857, %v858
          %v860 = vrot.slane %v859, 2
          %v861 = vadd.f32 %v859, %v860
          %v862 = vrot.slane %v861, 1
          %v863 = vadd.f32 %v861, %v862
          %v864 = vmul.f32 %v842, %v755
          %v865 = vmul.f32 %v863, %v755
          %v866 = vadd.f32 %v864, 1e-05
          %v867 = vadd.f32 %v865, 1e-05
          %v868 = vrsqrt.pop %v866
          %v869 = vrsqrt.pop %v867
          %v870 = vmul.f32 %v758, %v868
          %v871 = vmul.f32 %v759, %v869
          %v872 = vmul.f32 %v760, %v868
          %v873 = vmul.f32 %v761, %v869
          %v874 = vmul.f32 %v762, %v868
          %v875 = vmul.f32 %v763, %v869
          %v876 = vmul.f32 %v764, %v868
          %v877 = vmul.f32 %v765, %v869
          %v878 = vmul.f32 %v766, %v868
          %v879 = vmul.f32 %v767, %v869
          %v880 = vmul.f32 %v768, %v868
          %v881 = vmul.f32 %v769, %v869
          %v882 = vmul.f32 %v770, %v868
          %v883 = vmul.f32 %v771, %v869
          %v884 = vmul.f32 %v772, %v868
          %v885 = vmul.f32 %v773, %v869
          %v886 = vmul.f32 %v774, %v868
          %v887 = vmul.f32 %v775, %v869
          %v888 = vmul.f32 %v776, %v868
          %v889 = vmul.f32 %v777, %v869
          %v890 = vmul.f32 %v778, %v868
          %v891 = vmul.f32 %v779, %v869
          %v892 = vmul.f32 %v780, %v868
          %v893 = vmul.f32 %v781, %v869
          %v894 = vmul.f32 %v782, %v868
          %v895 = vmul.f32 %v783, %v869
          %v896 = vmul.f32 %v784, %v868
          %v897 = vmul.f32 %v785, %v869
          %v898 = vmul.f32 %v786, %v868
          %v899 = vmul.f32 %v787, %v869
          %v900 = vmul.f32 %v788, %v868
          %v901 = vmul.f32 %v789, %v869
          %v903 = vlaneseq
          %v904 = vshrl.u32 %v903, 7
          %v905 = vsub.s32 0, %v904
          %v906 = vrot.slane %v710, %v905
          %v907 = vlaneseq
          %v908 = vshrl.u32 %v907, 7
          %v909 = vsub.s32 1, %v908
          %v910 = vrot.slane %v710, %v909
          %v913 = vmul.f32 %v870, %v906
          %v914 = vmul.f32 %v871, %v910
          %v915 = vmul.f32 %v872, %v906
          %v916 = vmul.f32 %v873, %v910
          %v917 = vmul.f32 %v874, %v906
          %v918 = vmul.f32 %v875, %v910
          %v919 = vmul.f32 %v876, %v906
          %v920 = vmul.f32 %v877, %v910
          %v921 = vmul.f32 %v878, %v906
          %v922 = vmul.f32 %v879, %v910
          %v923 = vmul.f32 %v880, %v906
          %v924 = vmul.f32 %v881, %v910
          %v925 = vmul.f32 %v882, %v906
          %v926 = vmul.f32 %v883, %v910
          %v927 = vmul.f32 %v884, %v906
          %v928 = vmul.f32 %v885, %v910
          %v929 = vmul.f32 %v886, %v906
          %v930 = vmul.f32 %v887, %v910
          %v931 = vmul.f32 %v888, %v906
          %v932 = vmul.f32 %v889, %v910
          %v933 = vmul.f32 %v890, %v906
          %v934 = vmul.f32 %v891, %v910
          %v935 = vmul.f32 %v892, %v906
          %v936 = vmul.f32 %v893, %v910
          %v937 = vmul.f32 %v894, %v906
          %v938 = vmul.f32 %v895, %v910
          %v939 = vmul.f32 %v896, %v906
          %v940 = vmul.f32 %v897, %v910
          %v941 = vmul.f32 %v898, %v906
          %v942 = vmul.f32 %v899, %v910
          %v943 = vmul.f32 %v900, %v906
          %v944 = vmul.f32 %v901, %v910
          %v946 = vlaneseq
          %v947 = vshrl.u32 %v946, 7
          %v948 = vsub.s32 0, %v947
          %v949 = vrot.slane %v712, %v948
          %v950 = vlaneseq
          %v951 = vshrl.u32 %v950, 7
          %v952 = vsub.s32 1, %v951
          %v953 = vrot.slane %v712, %v952
          %v956 = vadd.f32 %v913, %v949
          %v957 = vadd.f32 %v914, %v953
          %v958 = vadd.f32 %v915, %v949
          %v959 = vadd.f32 %v916, %v953
          %v960 = vadd.f32 %v917, %v949
          %v961 = vadd.f32 %v918, %v953
          %v962 = vadd.f32 %v919, %v949
          %v963 = vadd.f32 %v920, %v953
          %v964 = vadd.f32 %v921, %v949
          %v965 = vadd.f32 %v922, %v953
          %v966 = vadd.f32 %v923, %v949
          %v967 = vadd.f32 %v924, %v953
          %v968 = vadd.f32 %v925, %v949
          %v969 = vadd.f32 %v926, %v953
          %v970 = vadd.f32 %v927, %v949
          %v971 = vadd.f32 %v928, %v953
          %v972 = vadd.f32 %v929, %v949
          %v973 = vadd.f32 %v930, %v953
          %v974 = vadd.f32 %v931, %v949
          %v975 = vadd.f32 %v932, %v953
          %v976 = vadd.f32 %v933, %v949
          %v977 = vadd.f32 %v934, %v953
          %v978 = vadd.f32 %v935, %v949
          %v979 = vadd.f32 %v936, %v953
          %v980 = vadd.f32 %v937, %v949
          %v981 = vadd.f32 %v938, %v953
          %v982 = vadd.f32 %v939, %v949
          %v983 = vadd.f32 %v940, %v953
          %v984 = vadd.f32 %v941, %v949
          %v985 = vadd.f32 %v942, %v953
          %v986 = vadd.f32 %v943, %v949
          %v987 = vadd.f32 %v944, %v953
          %v988 = vmax.f32 %v956, 0.0
          %v989 = vmax.f32 %v957, 0.0
          %v990 = vmax.f32 %v958, 0.0
          %v991 = vmax.f32 %v959, 0.0
          %v992 = vmax.f32 %v960, 0.0
          %v993 = vmax.f32 %v961, 0.0
          %v994 = vmax.f32 %v962, 0.0
          %v995 = vmax.f32 %v963, 0.0
          %v996 = vmax.f32 %v964, 0.0
          %v997 = vmax.f32 %v965, 0.0
          %v998 = vmax.f32 %v966, 0.0
          %v999 = vmax.f32 %v967, 0.0
          %v1000 = vmax.f32 %v968, 0.0
          %v1001 = vmax.f32 %v969, 0.0
          %v1002 = vmax.f32 %v970, 0.0
          %v1003 = vmax.f32 %v971, 0.0
          %v1004 = vmax.f32 %v972, 0.0
          %v1005 = vmax.f32 %v973, 0.0
          %v1006 = vmax.f32 %v974, 0.0
          %v1007 = vmax.f32 %v975, 0.0
          %v1008 = vmax.f32 %v976, 0.0
          %v1009 = vmax.f32 %v977, 0.0
          %v1010 = vmax.f32 %v978, 0.0
          %v1011 = vmax.f32 %v979, 0.0
          %v1012 = vmax.f32 %v980, 0.0
          %v1013 = vmax.f32 %v981, 0.0
          %v1014 = vmax.f32 %v982, 0.0
          %v1015 = vmax.f32 %v983, 0.0
          %v1016 = vmax.f32 %v984, 0.0
          %v1017 = vmax.f32 %v985, 0.0
          %v1018 = vmax.f32 %v986, 0.0
          %v1019 = vmax.f32 %v987, 0.0
          %v1020 = vpack.c.bf16 %v990, %v988
          %v1021 = vpack.c.bf16 %v991, %v989
          %v1022 = vpack.c.bf16 %v994, %v992
          %v1023 = vpack.c.bf16 %v995, %v993
          %v1024 = vpack.c.bf16 %v998, %v996
          %v1025 = vpack.c.bf16 %v999, %v997
          %v1026 = vpack.c.bf16 %v1002, %v1000
          %v1027 = vpack.c.bf16 %v1003, %v1001
          %v1028 = vpack.c.bf16 %v1006, %v1004
          %v1029 = vpack.c.bf16 %v1007, %v1005
          %v1030 = vpack.c.bf16 %v1010, %v1008
          %v1031 = vpack.c.bf16 %v1011, %v1009
          %v1032 = vpack.c.bf16 %v1014, %v1012
          %v1033 = vpack.c.bf16 %v1015, %v1013
          %v1034 = vpack.c.bf16 %v1018, %v1016
          %v1035 = vpack.c.bf16 %v1019, %v1017
          %1036 = vst [vmem:[#allocation2] sm:$0xff] %v1020
          %1037 = vst [vmem:[#allocation2 + $0x8] sm:$0xff] %v1021
          %1038 = vst [vmem:[#allocation2 + $0x50] sm:$0xff] %v1022
          %1039 = vst [vmem:[#allocation2 + $0x58] sm:$0xff] %v1023
          %1040 = vst [vmem:[#allocation2 + $0xa0] sm:$0xff] %v1024
          %1041 = vst [vmem:[#allocation2 + $0xa8] sm:$0xff] %v1025
          %1042 = vst [vmem:[#allocation2 + $0xf0] sm:$0xff] %v1026
          %1043 = vst [vmem:[#allocation2 + $0xf8] sm:$0xff] %v1027
          %1044 = vst [vmem:[#allocation2 + $0x140] sm:$0xff] %v1028
          %1045 = vst [vmem:[#allocation2 + $0x148] sm:$0xff] %v1029
          %1046 = vst [vmem:[#allocation2 + $0x190] sm:$0xff] %v1030
          %1047 = vst [vmem:[#allocation2 + $0x198] sm:$0xff] %v1031
          %1048 = vst [vmem:[#allocation2 + $0x1e0] sm:$0xff] %v1032
          %1049 = vst [vmem:[#allocation2 + $0x1e8] sm:$0xff] %v1033
          %1050 = vst [vmem:[#allocation2 + $0x230] sm:$0xff] %v1034
          %1051 = vst [vmem:[#allocation2 + $0x238] sm:$0xff] %v1035
          %v1052 = vld [vmem:[%s1] sm:$0xff]
          %v1053 = vld [vmem:[%s1 + $0x8] sm:$0xff]
          %v1054 = vld [vmem:[%s1 + $0x10] sm:$0xff]
          %v1055 = vld [vmem:[%s1 + $0x18] sm:$0xff]
          %v1056 = vld [vmem:[%s1 + $0x20] sm:$0xff]
          %v1057 = vld [vmem:[%s1 + $0x28] sm:$0xff]
          %v1058 = vld [vmem:[%s1 + $0x30] sm:$0xff]
          %v1059 = vld [vmem:[%s1 + $0x38] sm:$0xff]
          %v1060 = vld [vmem:[%s1 + $0x40] sm:$0xff]
          %v1061 = vld [vmem:[%s1 + $0x48] sm:$0xff]
          %v1062 = vld [vmem:[%s1 + $0x50] sm:$0xff]
          %v1063 = vld [vmem:[%s1 + $0x58] sm:$0xff]
          %v1064 = vld [vmem:[%s1 + $0x60] sm:$0xff]
          %v1065 = vld [vmem:[%s1 + $0x68] sm:$0xff]
          %v1066 = vld [vmem:[%s1 + $0x70] sm:$0xff]
          %v1067 = vld [vmem:[%s1 + $0x78] sm:$0xff]
          %v1068 = vpack.c.bf16 %v1053, %v1052
          %v1069 = vpack.c.bf16 %v1055, %v1054
          %v1070 = vpack.c.bf16 %v1057, %v1056
          %v1071 = vpack.c.bf16 %v1059, %v1058
          %v1072 = vpack.c.bf16 %v1061, %v1060
          %v1073 = vpack.c.bf16 %v1063, %v1062
          %v1074 = vpack.c.bf16 %v1065, %v1064
          %v1075 = vpack.c.bf16 %v1067, %v1066
          %v1076 = vld [vmem:[#allocation8] sm:$0xff]
          %v1077 = vld [vmem:[#allocation8 + $0x8] sm:$0xff]
          %v1078 = vld [vmem:[#allocation8 + $0x10] sm:$0xff]
          %v1079 = vld [vmem:[#allocation8 + $0x18] sm:$0xff]
          %v1080 = vld [vmem:[#allocation8 + $0x20] sm:$0x11]
          %v1081 = vld [vmem:[#allocation8 + $0x28] sm:$0x11]
          %v1082 = vld [vmem:[#allocation8 + $0x30] sm:$0x11]
          %v1083 = vld [vmem:[#allocation8 + $0x38] sm:$0x11]
          %v1084 = vld [vmem:[#allocation9] ss:$4 sm:$0xff]
          %v1086 = vlaneseq
          %v1087 = vshrl.u32 %v1086, 7
          %v1088 = vsub.s32 0, %v1087
          %v1089 = vrot.slane %v1084, %v1088
          %v1090 = vlaneseq
          %v1091 = vshrl.u32 %v1090, 7
          %v1092 = vsub.s32 1, %v1091
          %v1093 = vrot.slane %v1084, %v1092
          %v1094 = vlaneseq
          %v1095 = vshrl.u32 %v1094, 7
          %v1096 = vsub.s32 2, %v1095
          %v1097 = vrot.slane %v1084, %v1096
          %v1098 = vlaneseq
          %v1099 = vshrl.u32 %v1098, 7
          %v1100 = vsub.s32 3, %v1099
          %v1101 = vrot.slane %v1084, %v1100
          %v1102 = vlaneseq
          %v1103 = vshrl.u32 %v1102, 7
          %v1104 = vsub.s32 4, %v1103
          %v1105 = vrot.slane %v1084, %v1104
          %v1106 = vlaneseq
          %v1107 = vshrl.u32 %v1106, 7
          %v1108 = vsub.s32 5, %v1107
          %v1109 = vrot.slane %v1084, %v1108
          %v1110 = vlaneseq
          %v1111 = vshrl.u32 %v1110, 7
          %v1112 = vsub.s32 6, %v1111
          %v1113 = vrot.slane %v1084, %v1112
          %v1114 = vlaneseq
          %v1115 = vshrl.u32 %v1114, 7
          %v1116 = vsub.s32 7, %v1115
          %v1117 = vrot.slane %v1084, %v1116
          %v1134 = vunpack.c.l.b16 %v1076
          %v1135 = vunpack.c.h.b16 %v1076
          %v1136 = vunpack.c.l.b16 %v1077
          %v1137 = vunpack.c.h.b16 %v1077
          %v1138 = vunpack.c.l.b16 %v1078
          %v1139 = vunpack.c.h.b16 %v1078
          %v1140 = vunpack.c.l.b16 %v1079
          %v1141 = vunpack.c.h.b16 %v1079
          %v1142 = vunpack.c.l.b16 %v1080
          %v1143 = vunpack.c.h.b16 %v1080
          %v1144 = vunpack.c.l.b16 %v1081
          %v1145 = vunpack.c.h.b16 %v1081
          %v1146 = vunpack.c.l.b16 %v1082
          %v1147 = vunpack.c.h.b16 %v1082
          %v1148 = vunpack.c.l.b16 %v1083
          %v1149 = vunpack.c.h.b16 %v1083
          %v1150 = vpack.c.b16 %v1142, %v1134
          %v1151 = vpack.c.b16 %v1143, %v1135
          %v1152 = vpack.c.b16 %v1144, %v1136
          %v1153 = vpack.c.b16 %v1145, %v1137
          %v1154 = vpack.c.b16 %v1146, %v1138
          %v1155 = vpack.c.b16 %v1147, %v1139
          %v1156 = vpack.c.b16 %v1148, %v1140
          %v1157 = vpack.c.b16 %v1149, %v1141
          %vm1158 = vcmask 80896
          %v1160 = vsel %vm1158, %v1068, 0
          %v1163 = vsel %vm1158, %v1069, 0
          %v1166 = vsel %vm1158, %v1070, 0
          %v1169 = vsel %vm1158, %v1071, 0
          %v1172 = vsel %vm1158, %v1072, 0
          %v1175 = vsel %vm1158, %v1073, 0
          %v1178 = vsel %vm1158, %v1074, 0
          %v1181 = vsel %vm1158, %v1075, 0
          %vm1183 = vcmask 1044480
          %v1185 = vsel %vm1183, %v1150, 0
          %v1188 = vsel %vm1183, %v1151, 0
          %v1191 = vsel %vm1183, %v1152, 0
          %v1194 = vsel %vm1183, %v1153, 0
          %v1197 = vsel %vm1183, %v1154, 0
          %v1200 = vsel %vm1183, %v1155, 0
          %v1203 = vsel %vm1183, %v1156, 0
          %v1206 = vsel %vm1183, %v1157, 0
          %1208 = vmatprep.subr.bf16.mxu0 %v1188
          %1209 = vmatpush1.bf16.msra.mxu0 %v1185
          %1210 = vmatprep.subr.bf16.mxu0 0
          %1211 = vmatpush1.bf16.msra.mxu0 0
          %1212 = vmatprep.subr.bf16.mxu0 0
          %1213 = vmatpush1.bf16.msra.mxu0 0
          %1214 = vmatprep.subr.bf16.mxu0 0
          %1215 = vmatpush1.bf16.msra.mxu0 0
          %1216 = vmatprep.subr.bf16.mxu0 0
          %1217 = vmatpush1.bf16.msra.mxu0 0
          %1218 = vmatprep.subr.bf16.mxu0 0
          %1219 = vmatpush1.bf16.msra.mxu0 0
          %1220 = vmatprep.subr.bf16.mxu0 0
          %1221 = vmatpush1.bf16.msra.mxu0 0
          %1222 = vmatprep.subr.bf16.mxu0 0
          %1223 = vmatpush1.bf16.msra.mxu0 0
          %1224 = vmatprep.subr.bf16.mxu0 0
          %1225 = vmatpush1.bf16.msra.mxu0 0
          %1226 = vmatprep.subr.bf16.mxu0 0
          %1227 = vmatpush1.bf16.msra.mxu0 0
          %1228 = vmatprep.subr.bf16.mxu0 0
          %1229 = vmatpush1.bf16.msra.mxu0 0
          %1230 = vmatprep.subr.bf16.mxu0 0
          %1231 = vmatpush1.bf16.msra.mxu0 0
          %1232 = vmatprep.subr.bf16.mxu0 0
          %1233 = vmatpush1.bf16.msra.mxu0 0
          %1234 = vmatprep.subr.bf16.mxu0 0
          %1235 = vmatpush1.bf16.msra.mxu0 0
          %1236 = vmatprep.subr.bf16.mxu0 0
          %1237 = vmatpush1.bf16.msra.mxu0 0
          %1238 = vmatprep.subr.bf16.mxu0 0
          %1239 = vmatpush1.bf16.msra.mxu0 0
          %1240 = vmatprep.mubr.bf16.mxu0 0
          %1241 = vmatmul.mubr.bf16.gmra.mrb[0].mxu0 %v1160
          %v1242 = vpop.f32.mrb[0].mxu0
          %v1243 = vadd.f32 %v1089, %v1242
          %v1244 = vpop.f32.mrb[0].mxu0
          %v1245 = vadd.f32 %v1093, %v1244
          %v1246 = vpop.f32.mrb[0].mxu0
          %v1247 = vadd.f32 %v1089, %v1246
          %v1248 = vpop.f32.mrb[0].mxu0
          %v1249 = vadd.f32 %v1093, %v1248
          %1250 = vmatprep.mubr.bf16.mxu0 0
          %1251 = vmatmul.mubr.bf16.gmra.mrb[0].mxu0 %v1163
          %v1252 = vpop.f32.mrb[0].mxu0
          %v1253 = vadd.f32 %v1089, %v1252
          %v1254 = vpop.f32.mrb[0].mxu0
          %v1255 = vadd.f32 %v1093, %v1254
          %v1256 = vpop.f32.mrb[0].mxu0
          %v1257 = vadd.f32 %v1089, %v1256
          %v1258 = vpop.f32.mrb[0].mxu0
          %v1259 = vadd.f32 %v1093, %v1258
          %1260 = vmatprep.mubr.bf16.mxu0 0
          %1261 = vmatmul.mubr.bf16.gmra.mrb[0].mxu0 %v1166
          %v1262 = vpop.f32.mrb[0].mxu0
          %v1263 = vadd.f32 %v1089, %v1262
          %v1264 = vpop.f32.mrb[0].mxu0
          %v1265 = vadd.f32 %v1093, %v1264
          %v1266 = vpop.f32.mrb[0].mxu0
          %v1267 = vadd.f32 %v1089, %v1266
          %v1268 = vpop.f32.mrb[0].mxu0
          %v1269 = vadd.f32 %v1093, %v1268
          %1270 = vmatprep.mubr.bf16.mxu0 0
          %1271 = vmatmul.mubr.bf16.gmra.mrb[0].mxu0 %v1169
          %v1272 = vpop.f32.mrb[0].mxu0
          %v1273 = vadd.f32 %v1089, %v1272
          %v1274 = vpop.f32.mrb[0].mxu0
          %v1275 = vadd.f32 %v1093, %v1274
          %v1276 = vpop.f32.mrb[0].mxu0
          %v1277 = vadd.f32 %v1089, %v1276
          %v1278 = vpop.f32.mrb[0].mxu0
          %v1279 = vadd.f32 %v1093, %v1278
          %1280 = vmatprep.mubr.bf16.mxu0 0
          %1281 = vmatmul.mubr.bf16.gmra.mrb[0].mxu0 %v1172
          %v1282 = vpop.f32.mrb[0].mxu0
          %v1283 = vadd.f32 %v1089, %v1282
          %v1284 = vpop.f32.mrb[0].mxu0
          %v1285 = vadd.f32 %v1093, %v1284
          %v1286 = vpop.f32.mrb[0].mxu0
          %v1287 = vadd.f32 %v1089, %v1286
          %v1288 = vpop.f32.mrb[0].mxu0
          %v1289 = vadd.f32 %v1093, %v1288
          %1290 = vmatprep.mubr.bf16.mxu0 0
          %1291 = vmatmul.mubr.bf16.gmra.mrb[0].mxu0 %v1175
          %v1292 = vpop.f32.mrb[0].mxu0
          %v1293 = vadd.f32 %v1089, %v1292
          %v1294 = vpop.f32.mrb[0].mxu0
          %v1295 = vadd.f32 %v1093, %v1294
          %v1296 = vpop.f32.mrb[0].mxu0
          %v1297 = vadd.f32 %v1089, %v1296
          %v1298 = vpop.f32.mrb[0].mxu0
          %v1299 = vadd.f32 %v1093, %v1298
          %1300 = vmatprep.mubr.bf16.mxu0 0
          %1301 = vmatmul.mubr.bf16.gmra.mrb[0].mxu0 %v1178
          %v1302 = vpop.f32.mrb[0].mxu0
          %v1303 = vadd.f32 %v1089, %v1302
          %v1304 = vpop.f32.mrb[0].mxu0
          %v1305 = vadd.f32 %v1093, %v1304
          %v1306 = vpop.f32.mrb[0].mxu0
          %v1307 = vadd.f32 %v1089, %v1306
          %v1308 = vpop.f32.mrb[0].mxu0
          %v1309 = vadd.f32 %v1093, %v1308
          %1310 = vmatprep.mubr.bf16.mxu0 0
          %1311 = vmatmul.mubr.bf16.gmra.mrb[0].mxu0 %v1181
          %v1312 = vpop.f32.mrb[0].mxu0
          %v1313 = vadd.f32 %v1089, %v1312
          %v1314 = vpop.f32.mrb[0].mxu0
          %v1315 = vadd.f32 %v1093, %v1314
          %v1316 = vpop.f32.mrb[0].mxu0
          %v1317 = vadd.f32 %v1089, %v1316
          %v1318 = vpop.f32.mrb[0].mxu0
          %v1319 = vadd.f32 %v1093, %v1318
          %1320 = vdwg.mxu0
          %1321 = vmatprep.subr.bf16.mxu0 %v1194
          %1322 = vmatpush1.bf16.msra.mxu0 %v1191
          %1323 = vmatprep.subr.bf16.mxu0 0
          %1324 = vmatpush1.bf16.msra.mxu0 0
          %1325 = vmatprep.subr.bf16.mxu0 0
          %1326 = vmatpush1.bf16.msra.mxu0 0
          %1327 = vmatprep.subr.bf16.mxu0 0
          %1328 = vmatpush1.bf16.msra.mxu0 0
          %1329 = vmatprep.subr.bf16.mxu0 0
          %1330 = vmatpush1.bf16.msra.mxu0 0
          %1331 = vmatprep.subr.bf16.mxu0 0
          %1332 = vmatpush1.bf16.msra.mxu0 0
          %1333 = vmatprep.subr.bf16.mxu0 0
          %1334 = vmatpush1.bf16.msra.mxu0 0
          %1335 = vmatprep.subr.bf16.mxu0 0
          %1336 = vmatpush1.bf16.msra.mxu0 0
          %1337 = vmatprep.subr.bf16.mxu0 0
          %1338 = vmatpush1.bf16.msra.mxu0 0
          %1339 = vmatprep.subr.bf16.mxu0 0
          %1340 = vmatpush1.bf16.msra.mxu0 0
          %1341 = vmatprep.subr.bf16.mxu0 0
          %1342 = vmatpush1.bf16.msra.mxu0 0
          %1343 = vmatprep.subr.bf16.mxu0 0
          %1344 = vmatpush1.bf16.msra.mxu0 0
          %1345 = vmatprep.subr.bf16.mxu0 0
          %1346 = vmatpush1.bf16.msra.mxu0 0
          %1347 = vmatprep.subr.bf16.mxu0 0
          %1348 = vmatpush1.bf16.msra.mxu0 0
          %1349 = vmatprep.subr.bf16.mxu0 0
          %1350 = vmatpush1.bf16.msra.mxu0 0
          %1351 = vmatprep.subr.bf16.mxu0 0
          %1352 = vmatpush1.bf16.msra.mxu0 0
          %1353 = vmatprep.mubr.bf16.mxu0 0
          %1354 = vmatmul.mubr.bf16.gmra.mrb[0].mxu0 %v1160
          %v1355 = vpop.f32.mrb[0].mxu0
          %v1356 = vadd.f32 %v1097, %v1355
          %v1357 = vpop.f32.mrb[0].mxu0
          %v1358 = vadd.f32 %v1101, %v1357
          %v1359 = vpop.f32.mrb[0].mxu0
          %v1360 = vadd.f32 %v1097, %v1359
          %v1361 = vpop.f32.mrb[0].mxu0
          %v1362 = vadd.f32 %v1101, %v1361
          %1363 = vmatprep.mubr.bf16.mxu0 0
          %1364 = vmatmul.mubr.bf16.gmra.mrb[0].mxu0 %v1163
          %v1365 = vpop.f32.mrb[0].mxu0
          %v1366 = vadd.f32 %v1097, %v1365
          %v1367 = vpop.f32.mrb[0].mxu0
          %v1368 = vadd.f32 %v1101, %v1367
          %v1369 = vpop.f32.mrb[0].mxu0
          %v1370 = vadd.f32 %v1097, %v1369
          %v1371 = vpop.f32.mrb[0].mxu0
          %v1372 = vadd.f32 %v1101, %v1371
          %1373 = vmatprep.mubr.bf16.mxu0 0
          %1374 = vmatmul.mubr.bf16.gmra.mrb[0].mxu0 %v1166
          %v1375 = vpop.f32.mrb[0].mxu0
          %v1376 = vadd.f32 %v1097, %v1375
          %v1377 = vpop.f32.mrb[0].mxu0
          %v1378 = vadd.f32 %v1101, %v1377
          %v1379 = vpop.f32.mrb[0].mxu0
          %v1380 = vadd.f32 %v1097, %v1379
          %v1381 = vpop.f32.mrb[0].mxu0
          %v1382 = vadd.f32 %v1101, %v1381
          %1383 = vmatprep.mubr.bf16.mxu0 0
          %1384 = vmatmul.mubr.bf16.gmra.mrb[0].mxu0 %v1169
          %v1385 = vpop.f32.mrb[0].mxu0
          %v1386 = vadd.f32 %v1097, %v1385
          %v1387 = vpop.f32.mrb[0].mxu0
          %v1388 = vadd.f32 %v1101, %v1387
          %v1389 = vpop.f32.mrb[0].mxu0
          %v1390 = vadd.f32 %v1097, %v1389
          %v1391 = vpop.f32.mrb[0].mxu0
          %v1392 = vadd.f32 %v1101, %v1391
          %1393 = vmatprep.mubr.bf16.mxu0 0
          %1394 = vmatmul.mubr.bf16.gmra.mrb[0].mxu0 %v1172
          %v1395 = vpop.f32.mrb[0].mxu0
          %v1396 = vadd.f32 %v1097, %v1395
          %v1397 = vpop.f32.mrb[0].mxu0
          %v1398 = vadd.f32 %v1101, %v1397
          %v1399 = vpop.f32.mrb[0].mxu0
          %v1400 = vadd.f32 %v1097, %v1399
          %v1401 = vpop.f32.mrb[0].mxu0
          %v1402 = vadd.f32 %v1101, %v1401
          %1403 = vmatprep.mubr.bf16.mxu0 0
          %1404 = vmatmul.mubr.bf16.gmra.mrb[0].mxu0 %v1175
          %v1405 = vpop.f32.mrb[0].mxu0
          %v1406 = vadd.f32 %v1097, %v1405
          %v1407 = vpop.f32.mrb[0].mxu0
          %v1408 = vadd.f32 %v1101, %v1407
          %v1409 = vpop.f32.mrb[0].mxu0
          %v1410 = vadd.f32 %v1097, %v1409
          %v1411 = vpop.f32.mrb[0].mxu0
          %v1412 = vadd.f32 %v1101, %v1411
          %1413 = vmatprep.mubr.bf16.mxu0 0
          %1414 = vmatmul.mubr.bf16.gmra.mrb[0].mxu0 %v1178
          %v1415 = vpop.f32.mrb[0].mxu0
          %v1416 = vadd.f32 %v1097, %v1415
          %v1417 = vpop.f32.mrb[0].mxu0
          %v1418 = vadd.f32 %v1101, %v1417
          %v1419 = vpop.f32.mrb[0].mxu0
          %v1420 = vadd.f32 %v1097, %v1419
          %v1421 = vpop.f32.mrb[0].mxu0
          %v1422 = vadd.f32 %v1101, %v1421
          %1423 = vmatprep.mubr.bf16.mxu0 0
          %1424 = vmatmul.mubr.bf16.gmra.mrb[0].mxu0 %v1181
          %v1425 = vpop.f32.mrb[0].mxu0
          %v1426 = vadd.f32 %v1097, %v1425
          %v1427 = vpop.f32.mrb[0].mxu0
          %v1428 = vadd.f32 %v1101, %v1427
          %v1429 = vpop.f32.mrb[0].mxu0
          %v1430 = vadd.f32 %v1097, %v1429
          %v1431 = vpop.f32.mrb[0].mxu0
          %v1432 = vadd.f32 %v1101, %v1431
          %1433 = vdwg.mxu0
          %1434 = vmatprep.subr.bf16.mxu0 %v1200
          %1435 = vmatpush1.bf16.msra.mxu0 %v1197
          %1436 = vmatprep.subr.bf16.mxu0 0
          %1437 = vmatpush1.bf16.msra.mxu0 0
          %1438 = vmatprep.subr.bf16.mxu0 0
          %1439 = vmatpush1.bf16.msra.mxu0 0
          %1440 = vmatprep.subr.bf16.mxu0 0
          %1441 = vmatpush1.bf16.msra.mxu0 0
          %1442 = vmatprep.subr.bf16.mxu0 0
          %1443 = vmatpush1.bf16.msra.mxu0 0
          %1444 = vmatprep.subr.bf16.mxu0 0
          %1445 = vmatpush1.bf16.msra.mxu0 0
          %1446 = vmatprep.subr.bf16.mxu0 0
          %1447 = vmatpush1.bf16.msra.mxu0 0
          %1448 = vmatprep.subr.bf16.mxu0 0
          %1449 = vmatpush1.bf16.msra.mxu0 0
          %1450 = vmatprep.subr.bf16.mxu0 0
          %1451 = vmatpush1.bf16.msra.mxu0 0
          %1452 = vmatprep.subr.bf16.mxu0 0
          %1453 = vmatpush1.bf16.msra.mxu0 0
          %1454 = vmatprep.subr.bf16.mxu0 0
          %1455 = vmatpush1.bf16.msra.mxu0 0
          %1456 = vmatprep.subr.bf16.mxu0 0
          %1457 = vmatpush1.bf16.msra.mxu0 0
          %1458 = vmatprep.subr.bf16.mxu0 0
          %1459 = vmatpush1.bf16.msra.mxu0 0
          %1460 = vmatprep.subr.bf16.mxu0 0
          %1461 = vmatpush1.bf16.msra.mxu0 0
          %1462 = vmatprep.subr.bf16.mxu0 0
          %1463 = vmatpush1.bf16.msra.mxu0 0
          %1464 = vmatprep.subr.bf16.mxu0 0
          %1465 = vmatpush1.bf16.msra.mxu0 0
          %1466 = vmatprep.mubr.bf16.mxu0 0
          %1467 = vmatmul.mubr.bf16.gmra.mrb[0].mxu0 %v1160
          %v1468 = vpop.f32.mrb[0].mxu0
          %v1469 = vadd.f32 %v1105, %v1468
          %v1470 = vpop.f32.mrb[0].mxu0
          %v1471 = vadd.f32 %v1109, %v1470
          %v1472 = vpop.f32.mrb[0].mxu0
          %v1473 = vadd.f32 %v1105, %v1472
          %v1474 = vpop.f32.mrb[0].mxu0
          %v1475 = vadd.f32 %v1109, %v1474
          %1476 = vmatprep.mubr.bf16.mxu0 0
          %1477 = vmatmul.mubr.bf16.gmra.mrb[0].mxu0 %v1163
          %v1478 = vpop.f32.mrb[0].mxu0
          %v1479 = vadd.f32 %v1105, %v1478
          %v1480 = vpop.f32.mrb[0].mxu0
          %v1481 = vadd.f32 %v1109, %v1480
          %v1482 = vpop.f32.mrb[0].mxu0
          %v1483 = vadd.f32 %v1105, %v1482
          %v1484 = vpop.f32.mrb[0].mxu0
          %v1485 = vadd.f32 %v1109, %v1484
          %1486 = vmatprep.mubr.bf16.mxu0 0
          %1487 = vmatmul.mubr.bf16.gmra.mrb[0].mxu0 %v1166
          %v1488 = vpop.f32.mrb[0].mxu0
          %v1489 = vadd.f32 %v1105, %v1488
          %v1490 = vpop.f32.mrb[0].mxu0
          %v1491 = vadd.f32 %v1109, %v1490
          %v1492 = vpop.f32.mrb[0].mxu0
          %v1493 = vadd.f32 %v1105, %v1492
          %v1494 = vpop.f32.mrb[0].mxu0
          %v1495 = vadd.f32 %v1109, %v1494
          %1496 = vmatprep.mubr.bf16.mxu0 0
          %1497 = vmatmul.mubr.bf16.gmra.mrb[0].mxu0 %v1169
          %v1498 = vpop.f32.mrb[0].mxu0
          %v1499 = vadd.f32 %v1105, %v1498
          %v1500 = vpop.f32.mrb[0].mxu0
          %v1501 = vadd.f32 %v1109, %v1500
          %v1502 = vpop.f32.mrb[0].mxu0
          %v1503 = vadd.f32 %v1105, %v1502
          %v1504 = vpop.f32.mrb[0].mxu0
          %v1505 = vadd.f32 %v1109, %v1504
          %1506 = vmatprep.mubr.bf16.mxu0 0
          %1507 = vmatmul.mubr.bf16.gmra.mrb[0].mxu0 %v1172
          %v1508 = vpop.f32.mrb[0].mxu0
          %v1509 = vadd.f32 %v1105, %v1508
          %v1510 = vpop.f32.mrb[0].mxu0
          %v1511 = vadd.f32 %v1109, %v1510
          %v1512 = vpop.f32.mrb[0].mxu0
          %v1513 = vadd.f32 %v1105, %v1512
          %v1514 = vpop.f32.mrb[0].mxu0
          %v1515 = vadd.f32 %v1109, %v1514
          %1516 = vmatprep.mubr.bf16.mxu0 0
          %1517 = vmatmul.mubr.bf16.gmra.mrb[0].mxu0 %v1175
          %v1518 = vpop.f32.mrb[0].mxu0
          %v1519 = vadd.f32 %v1105, %v1518
          %v1520 = vpop.f32.mrb[0].mxu0
          %v1521 = vadd.f32 %v1109, %v1520
          %v1522 = vpop.f32.mrb[0].mxu0
          %v1523 = vadd.f32 %v1105, %v1522
          %v1524 = vpop.f32.mrb[0].mxu0
          %v1525 = vadd.f32 %v1109, %v1524
          %1526 = vmatprep.mubr.bf16.mxu0 0
          %1527 = vmatmul.mubr.bf16.gmra.mrb[0].mxu0 %v1178
          %v1528 = vpop.f32.mrb[0].mxu0
          %v1529 = vadd.f32 %v1105, %v1528
          %v1530 = vpop.f32.mrb[0].mxu0
          %v1531 = vadd.f32 %v1109, %v1530
          %v1532 = vpop.f32.mrb[0].mxu0
          %v1533 = vadd.f32 %v1105, %v1532
          %v1534 = vpop.f32.mrb[0].mxu0
          %v1535 = vadd.f32 %v1109, %v1534
          %1536 = vmatprep.mubr.bf16.mxu0 0
          %1537 = vmatmul.mubr.bf16.gmra.mrb[0].mxu0 %v1181
          %v1538 = vpop.f32.mrb[0].mxu0
          %v1539 = vadd.f32 %v1105, %v1538
          %v1540 = vpop.f32.mrb[0].mxu0
          %v1541 = vadd.f32 %v1109, %v1540
          %v1542 = vpop.f32.mrb[0].mxu0
          %v1543 = vadd.f32 %v1105, %v1542
          %v1544 = vpop.f32.mrb[0].mxu0
          %v1545 = vadd.f32 %v1109, %v1544
          %1546 = vdwg.mxu0
          %1547 = vmatprep.subr.bf16.mxu0 %v1206
          %1548 = vmatpush1.bf16.msra.mxu0 %v1203
          %1549 = vmatprep.subr.bf16.mxu0 0
          %1550 = vmatpush1.bf16.msra.mxu0 0
          %1551 = vmatprep.subr.bf16.mxu0 0
          %1552 = vmatpush1.bf16.msra.mxu0 0
          %1553 = vmatprep.subr.bf16.mxu0 0
          %1554 = vmatpush1.bf16.msra.mxu0 0
          %1555 = vmatprep.subr.bf16.mxu0 0
          %1556 = vmatpush1.bf16.msra.mxu0 0
          %1557 = vmatprep.subr.bf16.mxu0 0
          %1558 = vmatpush1.bf16.msra.mxu0 0
          %1559 = vmatprep.subr.bf16.mxu0 0
          %1560 = vmatpush1.bf16.msra.mxu0 0
          %1561 = vmatprep.subr.bf16.mxu0 0
          %1562 = vmatpush1.bf16.msra.mxu0 0
          %1563 = vmatprep.subr.bf16.mxu0 0
          %1564 = vmatpush1.bf16.msra.mxu0 0
          %1565 = vmatprep.subr.bf16.mxu0 0
          %1566 = vmatpush1.bf16.msra.mxu0 0
          %1567 = vmatprep.subr.bf16.mxu0 0
          %1568 = vmatpush1.bf16.msra.mxu0 0
          %1569 = vmatprep.subr.bf16.mxu0 0
          %1570 = vmatpush1.bf16.msra.mxu0 0
          %1571 = vmatprep.subr.bf16.mxu0 0
          %1572 = vmatpush1.bf16.msra.mxu0 0
          %1573 = vmatprep.subr.bf16.mxu0 0
          %1574 = vmatpush1.bf16.msra.mxu0 0
          %1575 = vmatprep.subr.bf16.mxu0 0
          %1576 = vmatpush1.bf16.msra.mxu0 0
          %1577 = vmatprep.subr.bf16.mxu0 0
          %1578 = vmatpush1.bf16.msra.mxu0 0
          %1579 = vmatprep.mubr.bf16.mxu0 0
          %1580 = vmatmul.mubr.bf16.gmra.mrb[0].mxu0 %v1160
          %v1581 = vpop.f32.mrb[0].mxu0
          %v1582 = vadd.f32 %v1113, %v1581
          %v1583 = vpop.f32.mrb[0].mxu0
          %v1584 = vadd.f32 %v1117, %v1583
          %v1585 = vpop.f32.mrb[0].mxu0
          %v1586 = vadd.f32 %v1113, %v1585
          %v1587 = vpop.f32.mrb[0].mxu0
          %v1588 = vadd.f32 %v1117, %v1587
          %1589 = vmatprep.mubr.bf16.mxu0 0
          %1590 = vmatmul.mubr.bf16.gmra.mrb[0].mxu0 %v1163
          %v1591 = vpop.f32.mrb[0].mxu0
          %v1592 = vadd.f32 %v1113, %v1591
          %v1593 = vpop.f32.mrb[0].mxu0
          %v1594 = vadd.f32 %v1117, %v1593
          %v1595 = vpop.f32.mrb[0].mxu0
          %v1596 = vadd.f32 %v1113, %v1595
          %v1597 = vpop.f32.mrb[0].mxu0
          %v1598 = vadd.f32 %v1117, %v1597
          %1599 = vmatprep.mubr.bf16.mxu0 0
          %1600 = vmatmul.mubr.bf16.gmra.mrb[0].mxu0 %v1166
          %v1601 = vpop.f32.mrb[0].mxu0
          %v1602 = vadd.f32 %v1113, %v1601
          %v1603 = vpop.f32.mrb[0].mxu0
          %v1604 = vadd.f32 %v1117, %v1603
          %v1605 = vpop.f32.mrb[0].mxu0
          %v1606 = vadd.f32 %v1113, %v1605
          %v1607 = vpop.f32.mrb[0].mxu0
          %v1608 = vadd.f32 %v1117, %v1607
          %1609 = vmatprep.mubr.bf16.mxu0 0
          %1610 = vmatmul.mubr.bf16.gmra.mrb[0].mxu0 %v1169
          %v1611 = vpop.f32.mrb[0].mxu0
          %v1612 = vadd.f32 %v1113, %v1611
          %v1613 = vpop.f32.mrb[0].mxu0
          %v1614 = vadd.f32 %v1117, %v1613
          %v1615 = vpop.f32.mrb[0].mxu0
          %v1616 = vadd.f32 %v1113, %v1615
          %v1617 = vpop.f32.mrb[0].mxu0
          %v1618 = vadd.f32 %v1117, %v1617
          %1619 = vmatprep.mubr.bf16.mxu0 0
          %1620 = vmatmul.mubr.bf16.gmra.mrb[0].mxu0 %v1172
          %v1621 = vpop.f32.mrb[0].mxu0
          %v1622 = vadd.f32 %v1113, %v1621
          %v1623 = vpop.f32.mrb[0].mxu0
          %v1624 = vadd.f32 %v1117, %v1623
          %v1625 = vpop.f32.mrb[0].mxu0
          %v1626 = vadd.f32 %v1113, %v1625
          %v1627 = vpop.f32.mrb[0].mxu0
          %v1628 = vadd.f32 %v1117, %v1627
          %1629 = vmatprep.mubr.bf16.mxu0 0
          %1630 = vmatmul.mubr.bf16.gmra.mrb[0].mxu0 %v1175
          %v1631 = vpop.f32.mrb[0].mxu0
          %v1632 = vadd.f32 %v1113, %v1631
          %v1633 = vpop.f32.mrb[0].mxu0
          %v1634 = vadd.f32 %v1117, %v1633
          %v1635 = vpop.f32.mrb[0].mxu0
          %v1636 = vadd.f32 %v1113, %v1635
          %v1637 = vpop.f32.mrb[0].mxu0
          %v1638 = vadd.f32 %v1117, %v1637
          %1639 = vmatprep.mubr.bf16.mxu0 0
          %1640 = vmatmul.mubr.bf16.gmra.mrb[0].mxu0 %v1178
          %v1641 = vpop.f32.mrb[0].mxu0
          %v1642 = vadd.f32 %v1113, %v1641
          %v1643 = vpop.f32.mrb[0].mxu0
          %v1644 = vadd.f32 %v1117, %v1643
          %v1645 = vpop.f32.mrb[0].mxu0
          %v1646 = vadd.f32 %v1113, %v1645
          %v1647 = vpop.f32.mrb[0].mxu0
          %v1648 = vadd.f32 %v1117, %v1647
          %1649 = vmatprep.mubr.bf16.mxu0 0
          %1650 = vmatmul.mubr.bf16.gmra.mrb[0].mxu0 %v1181
          %v1651 = vpop.f32.mrb[0].mxu0
          %v1652 = vadd.f32 %v1113, %v1651
          %v1653 = vpop.f32.mrb[0].mxu0
          %v1654 = vadd.f32 %v1117, %v1653
          %v1655 = vpop.f32.mrb[0].mxu0
          %v1656 = vadd.f32 %v1113, %v1655
          %v1657 = vpop.f32.mrb[0].mxu0
          %v1658 = vadd.f32 %v1117, %v1657
          %1659 = vdwg.mxu0
          %s1660 = scalar_lea.vmem [#allocation9], 1
          %v1661 = vld [vmem:[%s1660] ss:$4 sm:$0xff]
          %s1662 = scalar_lea.vmem [#allocation9], 2
          %v1663 = vld [vmem:[%s1662] ss:$4 sm:$0xff]
          %v1664 = vadd.f32 %v1243, %v1247
          %v1665 = vadd.f32 %v1664, %v1253
          %v1666 = vadd.f32 %v1665, %v1257
          %v1667 = vadd.f32 %v1666, %v1263
          %v1668 = vadd.f32 %v1667, %v1267
          %v1669 = vadd.f32 %v1668, %v1273
          %v1670 = vadd.f32 %v1669, %v1277
          %v1671 = vadd.f32 %v1670, %v1283
          %v1672 = vadd.f32 %v1671, %v1287
          %v1673 = vadd.f32 %v1672, %v1293
          %v1674 = vadd.f32 %v1673, %v1297
          %v1675 = vadd.f32 %v1674, %v1303
          %v1676 = vadd.f32 %v1675, %v1307
          %v1677 = vadd.f32 %v1676, %v1313
          %v1678 = vadd.f32 %v1677, %v1317
          %v1679 = vrot.slane %v1678, 4
          %v1680 = vadd.f32 %v1678, %v1679
          %v1681 = vrot.slane %v1680, 2
          %v1682 = vadd.f32 %v1680, %v1681
          %v1683 = vrot.slane %v1682, 1
          %v1684 = vadd.f32 %v1682, %v1683
          %v1685 = vadd.f32 %v1245, %v1249
          %v1686 = vadd.f32 %v1685, %v1255
          %v1687 = vadd.f32 %v1686, %v1259
          %v1688 = vadd.f32 %v1687, %v1265
          %v1689 = vadd.f32 %v1688, %v1269
          %v1690 = vadd.f32 %v1689, %v1275
          %v1691 = vadd.f32 %v1690, %v1279
          %v1692 = vadd.f32 %v1691, %v1285
          %v1693 = vadd.f32 %v1692, %v1289
          %v1694 = vadd.f32 %v1693, %v1295
          %v1695 = vadd.f32 %v1694, %v1299
          %v1696 = vadd.f32 %v1695, %v1305
          %v1697 = vadd.f32 %v1696, %v1309
          %v1698 = vadd.f32 %v1697, %v1315
          %v1699 = vadd.f32 %v1698, %v1319
          %v1700 = vrot.slane %v1699, 4
          %v1701 = vadd.f32 %v1699, %v1700
          %v1702 = vrot.slane %v1701, 2
          %v1703 = vadd.f32 %v1701, %v1702
          %v1704 = vrot.slane %v1703, 1
          %v1705 = vadd.f32 %v1703, %v1704
          %v1706 = vadd.f32 %v1356, %v1360
          %v1707 = vadd.f32 %v1706, %v1366
          %v1708 = vadd.f32 %v1707, %v1370
          %v1709 = vadd.f32 %v1708, %v1376
          %v1710 = vadd.f32 %v1709, %v1380
          %v1711 = vadd.f32 %v1710, %v1386
          %v1712 = vadd.f32 %v1711, %v1390
          %v1713 = vadd.f32 %v1712, %v1396
          %v1714 = vadd.f32 %v1713, %v1400
          %v1715 = vadd.f32 %v1714, %v1406
          %v1716 = vadd.f32 %v1715, %v1410
          %v1717 = vadd.f32 %v1716, %v1416
          %v1718 = vadd.f32 %v1717, %v1420
          %v1719 = vadd.f32 %v1718, %v1426
          %v1720 = vadd.f32 %v1719, %v1430
          %v1721 = vrot.slane %v1720, 4
          %v1722 = vadd.f32 %v1720, %v1721
          %v1723 = vrot.slane %v1722, 2
          %v1724 = vadd.f32 %v1722, %v1723
          %v1725 = vrot.slane %v1724, 1
          %v1726 = vadd.f32 %v1724, %v1725
          %v1727 = vadd.f32 %v1358, %v1362
          %v1728 = vadd.f32 %v1727, %v1368
          %v1729 = vadd.f32 %v1728, %v1372
          %v1730 = vadd.f32 %v1729, %v1378
          %v1731 = vadd.f32 %v1730, %v1382
          %v1732 = vadd.f32 %v1731, %v1388
          %v1733 = vadd.f32 %v1732, %v1392
          %v1734 = vadd.f32 %v1733, %v1398
          %v1735 = vadd.f32 %v1734, %v1402
          %v1736 = vadd.f32 %v1735, %v1408
          %v1737 = vadd.f32 %v1736, %v1412
          %v1738 = vadd.f32 %v1737, %v1418
          %v1739 = vadd.f32 %v1738, %v1422
          %v1740 = vadd.f32 %v1739, %v1428
          %v1741 = vadd.f32 %v1740, %v1432
          %v1742 = vrot.slane %v1741, 4
          %v1743 = vadd.f32 %v1741, %v1742
          %v1744 = vrot.slane %v1743, 2
          %v1745 = vadd.f32 %v1743, %v1744
          %v1746 = vrot.slane %v1745, 1
          %v1747 = vadd.f32 %v1745, %v1746
          %v1748 = vadd.f32 %v1469, %v1473
          %v1749 = vadd.f32 %v1748, %v1479
          %v1750 = vadd.f32 %v1749, %v1483
          %v1751 = vadd.f32 %v1750, %v1489
          %v1752 = vadd.f32 %v1751, %v1493
          %v1753 = vadd.f32 %v1752, %v1499
          %v1754 = vadd.f32 %v1753, %v1503
          %v1755 = vadd.f32 %v1754, %v1509
          %v1756 = vadd.f32 %v1755, %v1513
          %v1757 = vadd.f32 %v1756, %v1519
          %v1758 = vadd.f32 %v1757, %v1523
          %v1759 = vadd.f32 %v1758, %v1529
          %v1760 = vadd.f32 %v1759, %v1533
          %v1761 = vadd.f32 %v1760, %v1539
          %v1762 = vadd.f32 %v1761, %v1543
          %v1763 = vrot.slane %v1762, 4
          %v1764 = vadd.f32 %v1762, %v1763
          %v1765 = vrot.slane %v1764, 2
          %v1766 = vadd.f32 %v1764, %v1765
          %v1767 = vrot.slane %v1766, 1
          %v1768 = vadd.f32 %v1766, %v1767
          %v1769 = vadd.f32 %v1471, %v1475
          %v1770 = vadd.f32 %v1769, %v1481
          %v1771 = vadd.f32 %v1770, %v1485
          %v1772 = vadd.f32 %v1771, %v1491
          %v1773 = vadd.f32 %v1772, %v1495
          %v1774 = vadd.f32 %v1773, %v1501
          %v1775 = vadd.f32 %v1774, %v1505
          %v1776 = vadd.f32 %v1775, %v1511
          %v1777 = vadd.f32 %v1776, %v1515
          %v1778 = vadd.f32 %v1777, %v1521
          %v1779 = vadd.f32 %v1778, %v1525
          %v1780 = vadd.f32 %v1779, %v1531
          %v1781 = vadd.f32 %v1780, %v1535
          %v1782 = vadd.f32 %v1781, %v1541
          %v1783 = vadd.f32 %v1782, %v1545
          %v1784 = vrot.slane %v1783, 4
          %v1785 = vadd.f32 %v1783, %v1784
          %v1786 = vrot.slane %v1785, 2
          %v1787 = vadd.f32 %v1785, %v1786
          %v1788 = vrot.slane %v1787, 1
          %v1789 = vadd.f32 %v1787, %v1788
          %v1790 = vadd.f32 %v1582, %v1586
          %v1791 = vadd.f32 %v1790, %v1592
          %v1792 = vadd.f32 %v1791, %v1596
          %v1793 = vadd.f32 %v1792, %v1602
          %v1794 = vadd.f32 %v1793, %v1606
          %v1795 = vadd.f32 %v1794, %v1612
          %v1796 = vadd.f32 %v1795, %v1616
          %v1797 = vadd.f32 %v1796, %v1622
          %v1798 = vadd.f32 %v1797, %v1626
          %v1799 = vadd.f32 %v1798, %v1632
          %v1800 = vadd.f32 %v1799, %v1636
          %v1801 = vadd.f32 %v1800, %v1642
          %v1802 = vadd.f32 %v1801, %v1646
          %v1803 = vadd.f32 %v1802, %v1652
          %v1804 = vadd.f32 %v1803, %v1656
          %v1805 = vrot.slane %v1804, 4
          %v1806 = vadd.f32 %v1804, %v1805
          %v1807 = vrot.slane %v1806, 2
          %v1808 = vadd.f32 %v1806, %v1807
          %v1809 = vrot.slane %v1808, 1
          %v1810 = vadd.f32 %v1808, %v1809
          %v1811 = vadd.f32 %v1584, %v1588
          %v1812 = vadd.f32 %v1811, %v1594
          %v1813 = vadd.f32 %v1812, %v1598
          %v1814 = vadd.f32 %v1813, %v1604
          %v1815 = vadd.f32 %v1814, %v1608
          %v1816 = vadd.f32 %v1815, %v1614
          %v1817 = vadd.f32 %v1816, %v1618
          %v1818 = vadd.f32 %v1817, %v1624
          %v1819 = vadd.f32 %v1818, %v1628
          %v1820 = vadd.f32 %v1819, %v1634
          %v1821 = vadd.f32 %v1820, %v1638
          %v1822 = vadd.f32 %v1821, %v1644
          %v1823 = vadd.f32 %v1822, %v1648
          %v1824 = vadd.f32 %v1823, %v1654
          %v1825 = vadd.f32 %v1824, %v1658
          %v1826 = vrot.slane %v1825, 4
          %v1827 = vadd.f32 %v1825, %v1826
          %v1828 = vrot.slane %v1827, 2
          %v1829 = vadd.f32 %v1827, %v1828
          %v1830 = vrot.slane %v1829, 1
          %v1831 = vadd.f32 %v1829, %v1830
          %v1832 = vmul.f32 %v1684, %v755
          %v1833 = vmul.f32 %v1705, %v755
          %v1834 = vmul.f32 %v1726, %v755
          %v1835 = vmul.f32 %v1747, %v755
          %v1836 = vmul.f32 %v1768, %v755
          %v1837 = vmul.f32 %v1789, %v755
          %v1838 = vmul.f32 %v1810, %v755
          %v1839 = vmul.f32 %v1831, %v755
          %v1840 = vsub.f32 %v1243, %v1832
          %v1841 = vsub.f32 %v1245, %v1833
          %v1842 = vsub.f32 %v1356, %v1834
          %v1843 = vsub.f32 %v1358, %v1835
          %v1844 = vsub.f32 %v1469, %v1836
          %v1845 = vsub.f32 %v1471, %v1837
          %v1846 = vsub.f32 %v1582, %v1838
          %v1847 = vsub.f32 %v1584, %v1839
          %v1848 = vsub.f32 %v1247, %v1832
          %v1849 = vsub.f32 %v1249, %v1833
          %v1850 = vsub.f32 %v1360, %v1834
          %v1851 = vsub.f32 %v1362, %v1835
          %v1852 = vsub.f32 %v1473, %v1836
          %v1853 = vsub.f32 %v1475, %v1837
          %v1854 = vsub.f32 %v1586, %v1838
          %v1855 = vsub.f32 %v1588, %v1839
          %v1856 = vsub.f32 %v1253, %v1832
          %v1857 = vsub.f32 %v1255, %v1833
          %v1858 = vsub.f32 %v1366, %v1834
          %v1859 = vsub.f32 %v1368, %v1835
          %v1860 = vsub.f32 %v1479, %v1836
          %v1861 = vsub.f32 %v1481, %v1837
          %v1862 = vsub.f32 %v1592, %v1838
          %v1863 = vsub.f32 %v1594, %v1839
          %v1864 = vsub.f32 %v1257, %v1832
          %v1865 = vsub.f32 %v1259, %v1833
          %v1866 = vsub.f32 %v1370, %v1834
          %v1867 = vsub.f32 %v1372, %v1835
          %v1868 = vsub.f32 %v1483, %v1836
          %v1869 = vsub.f32 %v1485, %v1837
          %v1870 = vsub.f32 %v1596, %v1838
          %v1871 = vsub.f32 %v1598, %v1839
          %v1872 = vsub.f32 %v1263, %v1832
          %v1873 = vsub.f32 %v1265, %v1833
          %v1874 = vsub.f32 %v1376, %v1834
          %v1875 = vsub.f32 %v1378, %v1835
          %v1876 = vsub.f32 %v1489, %v1836
          %v1877 = vsub.f32 %v1491, %v1837
          %v1878 = vsub.f32 %v1602, %v1838
          %v1879 = vsub.f32 %v1604, %v1839
          %v1880 = vsub.f32 %v1267, %v1832
          %v1881 = vsub.f32 %v1269, %v1833
          %v1882 = vsub.f32 %v1380, %v1834
          %v1883 = vsub.f32 %v1382, %v1835
          %v1884 = vsub.f32 %v1493, %v1836
          %v1885 = vsub.f32 %v1495, %v1837
          %v1886 = vsub.f32 %v1606, %v1838
          %v1887 = vsub.f32 %v1608, %v1839
          %v1888 = vsub.f32 %v1273, %v1832
          %v1889 = vsub.f32 %v1275, %v1833
          %v1890 = vsub.f32 %v1386, %v1834
          %v1891 = vsub.f32 %v1388, %v1835
          %v1892 = vsub.f32 %v1499, %v1836
          %v1893 = vsub.f32 %v1501, %v1837
          %v1894 = vsub.f32 %v1612, %v1838
          %v1895 = vsub.f32 %v1614, %v1839
          %v1896 = vsub.f32 %v1277, %v1832
          %v1897 = vsub.f32 %v1279, %v1833
          %v1898 = vsub.f32 %v1390, %v1834
          %v1899 = vsub.f32 %v1392, %v1835
          %v1900 = vsub.f32 %v1503, %v1836
          %v1901 = vsub.f32 %v1505, %v1837
          %v1902 = vsub.f32 %v1616, %v1838
          %v1903 = vsub.f32 %v1618, %v1839
          %v1904 = vsub.f32 %v1283, %v1832
          %v1905 = vsub.f32 %v1285, %v1833
          %v1906 = vsub.f32 %v1396, %v1834
          %v1907 = vsub.f32 %v1398, %v1835
          %v1908 = vsub.f32 %v1509, %v1836
          %v1909 = vsub.f32 %v1511, %v1837
          %v1910 = vsub.f32 %v1622, %v1838
          %v1911 = vsub.f32 %v1624, %v1839
          %v1912 = vsub.f32 %v1287, %v1832
          %v1913 = vsub.f32 %v1289, %v1833
          %v1914 = vsub.f32 %v1400, %v1834
          %v1915 = vsub.f32 %v1402, %v1835
          %v1916 = vsub.f32 %v1513, %v1836
          %v1917 = vsub.f32 %v1515, %v1837
          %v1918 = vsub.f32 %v1626, %v1838
          %v1919 = vsub.f32 %v1628, %v1839
          %v1920 = vsub.f32 %v1293, %v1832
          %v1921 = vsub.f32 %v1295, %v1833
          %v1922 = vsub.f32 %v1406, %v1834
          %v1923 = vsub.f32 %v1408, %v1835
          %v1924 = vsub.f32 %v1519, %v1836
          %v1925 = vsub.f32 %v1521, %v1837
          %v1926 = vsub.f32 %v1632, %v1838
          %v1927 = vsub.f32 %v1634, %v1839
          %v1928 = vsub.f32 %v1297, %v1832
          %v1929 = vsub.f32 %v1299, %v1833
          %v1930 = vsub.f32 %v1410, %v1834
          %v1931 = vsub.f32 %v1412, %v1835
          %v1932 = vsub.f32 %v1523, %v1836
          %v1933 = vsub.f32 %v1525, %v1837
          %v1934 = vsub.f32 %v1636, %v1838
          %v1935 = vsub.f32 %v1638, %v1839
          %v1936 = vsub.f32 %v1303, %v1832
          %v1937 = vsub.f32 %v1305, %v1833
          %v1938 = vsub.f32 %v1416, %v1834
          %v1939 = vsub.f32 %v1418, %v1835
          %v1940 = vsub.f32 %v1529, %v1836
          %v1941 = vsub.f32 %v1531, %v1837
          %v1942 = vsub.f32 %v1642, %v1838
          %v1943 = vsub.f32 %v1644, %v1839
          %v1944 = vsub.f32 %v1307, %v1832
          %v1945 = vsub.f32 %v1309, %v1833
          %v1946 = vsub.f32 %v1420, %v1834
          %v1947 = vsub.f32 %v1422, %v1835
          %v1948 = vsub.f32 %v1533, %v1836
          %v1949 = vsub.f32 %v1535, %v1837
          %v1950 = vsub.f32 %v1646, %v1838
          %v1951 = vsub.f32 %v1648, %v1839
          %v1952 = vsub.f32 %v1313, %v1832
          %v1953 = vsub.f32 %v1315, %v1833
          %v1954 = vsub.f32 %v1426, %v1834
          %v1955 = vsub.f32 %v1428, %v1835
          %v1956 = vsub.f32 %v1539, %v1836
          %v1957 = vsub.f32 %v1541, %v1837
          %v1958 = vsub.f32 %v1652, %v1838
          %v1959 = vsub.f32 %v1654, %v1839
          %v1960 = vsub.f32 %v1317, %v1832
          %v1961 = vsub.f32 %v1319, %v1833
          %v1962 = vsub.f32 %v1430, %v1834
          %v1963 = vsub.f32 %v1432, %v1835
          %v1964 = vsub.f32 %v1543, %v1836
          %v1965 = vsub.f32 %v1545, %v1837
          %v1966 = vsub.f32 %v1656, %v1838
          %v1967 = vsub.f32 %v1658, %v1839
          %v1968 = vmul.f32 %v1840, %v1840
          %v1969 = vmul.f32 %v1841, %v1841
          %v1970 = vmul.f32 %v1842, %v1842
          %v1971 = vmul.f32 %v1843, %v1843
          %v1972 = vmul.f32 %v1844, %v1844
          %v1973 = vmul.f32 %v1845, %v1845
          %v1974 = vmul.f32 %v1846, %v1846
          %v1975 = vmul.f32 %v1847, %v1847
          %v1976 = vmul.f32 %v1848, %v1848
          %v1977 = vmul.f32 %v1849, %v1849
          %v1978 = vmul.f32 %v1850, %v1850
          %v1979 = vmul.f32 %v1851, %v1851
          %v1980 = vmul.f32 %v1852, %v1852
          %v1981 = vmul.f32 %v1853, %v1853
          %v1982 = vmul.f32 %v1854, %v1854
          %v1983 = vmul.f32 %v1855, %v1855
          %v1984 = vmul.f32 %v1856, %v1856
          %v1985 = vmul.f32 %v1857, %v1857
          %v1986 = vmul.f32 %v1858, %v1858
          %v1987 = vmul.f32 %v1859, %v1859
          %v1988 = vmul.f32 %v1860, %v1860
          %v1989 = vmul.f32 %v1861, %v1861
          %v1990 = vmul.f32 %v1862, %v1862
          %v1991 = vmul.f32 %v1863, %v1863
          %v1992 = vmul.f32 %v1864, %v1864
          %v1993 = vmul.f32 %v1865, %v1865
          %v1994 = vmul.f32 %v1866, %v1866
          %v1995 = vmul.f32 %v1867, %v1867
          %v1996 = vmul.f32 %v1868, %v1868
          %v1997 = vmul.f32 %v1869, %v1869
          %v1998 = vmul.f32 %v1870, %v1870
          %v1999 = vmul.f32 %v1871, %v1871
          %v2000 = vmul.f32 %v1872, %v1872
          %v2001 = vmul.f32 %v1873, %v1873
          %v2002 = vmul.f32 %v1874, %v1874
          %v2003 = vmul.f32 %v1875, %v1875
          %v2004 = vmul.f32 %v1876, %v1876
          %v2005 = vmul.f32 %v1877, %v1877
          %v2006 = vmul.f32 %v1878, %v1878
          %v2007 = vmul.f32 %v1879, %v1879
          %v2008 = vmul.f32 %v1880, %v1880
          %v2009 = vmul.f32 %v1881, %v1881
          %v2010 = vmul.f32 %v1882, %v1882
          %v2011 = vmul.f32 %v1883, %v1883
          %v2012 = vmul.f32 %v1884, %v1884
          %v2013 = vmul.f32 %v1885, %v1885
          %v2014 = vmul.f32 %v1886, %v1886
          %v2015 = vmul.f32 %v1887, %v1887
          %v2016 = vmul.f32 %v1888, %v1888
          %v2017 = vmul.f32 %v1889, %v1889
          %v2018 = vmul.f32 %v1890, %v1890
          %v2019 = vmul.f32 %v1891, %v1891
          %v2020 = vmul.f32 %v1892, %v1892
          %v2021 = vmul.f32 %v1893, %v1893
          %v2022 = vmul.f32 %v1894, %v1894
          %v2023 = vmul.f32 %v1895, %v1895
          %v2024 = vmul.f32 %v1896, %v1896
          %v2025 = vmul.f32 %v1897, %v1897
          %v2026 = vmul.f32 %v1898, %v1898
          %v2027 = vmul.f32 %v1899, %v1899
          %v2028 = vmul.f32 %v1900, %v1900
          %v2029 = vmul.f32 %v1901, %v1901
          %v2030 = vmul.f32 %v1902, %v1902
          %v2031 = vmul.f32 %v1903, %v1903
          %v2032 = vmul.f32 %v1904, %v1904
          %v2033 = vmul.f32 %v1905, %v1905
          %v2034 = vmul.f32 %v1906, %v1906
          %v2035 = vmul.f32 %v1907, %v1907
          %v2036 = vmul.f32 %v1908, %v1908
          %v2037 = vmul.f32 %v1909, %v1909
          %v2038 = vmul.f32 %v1910, %v1910
          %v2039 = vmul.f32 %v1911, %v1911
          %v2040 = vmul.f32 %v1912, %v1912
          %v2041 = vmul.f32 %v1913, %v1913
          %v2042 = vmul.f32 %v1914, %v1914
          %v2043 = vmul.f32 %v1915, %v1915
          %v2044 = vmul.f32 %v1916, %v1916
          %v2045 = vmul.f32 %v1917, %v1917
          %v2046 = vmul.f32 %v1918, %v1918
          %v2047 = vmul.f32 %v1919, %v1919
          %v2048 = vmul.f32 %v1920, %v1920
          %v2049 = vmul.f32 %v1921, %v1921
          %v2050 = vmul.f32 %v1922, %v1922
          %v2051 = vmul.f32 %v1923, %v1923
          %v2052 = vmul.f32 %v1924, %v1924
          %v2053 = vmul.f32 %v1925, %v1925
          %v2054 = vmul.f32 %v1926, %v1926
          %v2055 = vmul.f32 %v1927, %v1927
          %v2056 = vmul.f32 %v1928, %v1928
          %v2057 = vmul.f32 %v1929, %v1929
          %v2058 = vmul.f32 %v1930, %v1930
          %v2059 = vmul.f32 %v1931, %v1931
          %v2060 = vmul.f32 %v1932, %v1932
          %v2061 = vmul.f32 %v1933, %v1933
          %v2062 = vmul.f32 %v1934, %v1934
          %v2063 = vmul.f32 %v1935, %v1935
          %v2064 = vmul.f32 %v1936, %v1936
          %v2065 = vmul.f32 %v1937, %v1937
          %v2066 = vmul.f32 %v1938, %v1938
          %v2067 = vmul.f32 %v1939, %v1939
          %v2068 = vmul.f32 %v1940, %v1940
          %v2069 = vmul.f32 %v1941, %v1941
          %v2070 = vmul.f32 %v1942, %v1942
          %v2071 = vmul.f32 %v1943, %v1943
          %v2072 = vmul.f32 %v1944, %v1944
          %v2073 = vmul.f32 %v1945, %v1945
          %v2074 = vmul.f32 %v1946, %v1946
          %v2075 = vmul.f32 %v1947, %v1947
          %v2076 = vmul.f32 %v1948, %v1948
          %v2077 = vmul.f32 %v1949, %v1949
          %v2078 = vmul.f32 %v1950, %v1950
          %v2079 = vmul.f32 %v1951, %v1951
          %v2080 = vmul.f32 %v1952, %v1952
          %v2081 = vmul.f32 %v1953, %v1953
          %v2082 = vmul.f32 %v1954, %v1954
          %v2083 = vmul.f32 %v1955, %v1955
          %v2084 = vmul.f32 %v1956, %v1956
          %v2085 = vmul.f32 %v1957, %v1957
          %v2086 = vmul.f32 %v1958, %v1958
          %v2087 = vmul.f32 %v1959, %v1959
          %v2088 = vmul.f32 %v1960, %v1960
          %v2089 = vmul.f32 %v1961, %v1961
          %v2090 = vmul.f32 %v1962, %v1962
          %v2091 = vmul.f32 %v1963, %v1963
          %v2092 = vmul.f32 %v1964, %v1964
          %v2093 = vmul.f32 %v1965, %v1965
          %v2094 = vmul.f32 %v1966, %v1966
          %v2095 = vmul.f32 %v1967, %v1967
          %v2096 = vadd.f32 %v1968, %v1976
          %v2097 = vadd.f32 %v2096, %v1984
          %v2098 = vadd.f32 %v2097, %v1992
          %v2099 = vadd.f32 %v2098, %v2000
          %v2100 = vadd.f32 %v2099, %v2008
          %v2101 = vadd.f32 %v2100, %v2016
          %v2102 = vadd.f32 %v2101, %v2024
          %v2103 = vadd.f32 %v2102, %v2032
          %v2104 = vadd.f32 %v2103, %v2040
          %v2105 = vadd.f32 %v2104, %v2048
          %v2106 = vadd.f32 %v2105, %v2056
          %v2107 = vadd.f32 %v2106, %v2064
          %v2108 = vadd.f32 %v2107, %v2072
          %v2109 = vadd.f32 %v2108, %v2080
          %v2110 = vadd.f32 %v2109, %v2088
          %v2111 = vrot.slane %v2110, 4
          %v2112 = vadd.f32 %v2110, %v2111
          %v2113 = vrot.slane %v2112, 2
          %v2114 = vadd.f32 %v2112, %v2113
          %v2115 = vrot.slane %v2114, 1
          %v2116 = vadd.f32 %v2114, %v2115
          %v2117 = vadd.f32 %v1969, %v1977
          %v2118 = vadd.f32 %v2117, %v1985
          %v2119 = vadd.f32 %v2118, %v1993
          %v2120 = vadd.f32 %v2119, %v2001
          %v2121 = vadd.f32 %v2120, %v2009
          %v2122 = vadd.f32 %v2121, %v2017
          %v2123 = vadd.f32 %v2122, %v2025
          %v2124 = vadd.f32 %v2123, %v2033
          %v2125 = vadd.f32 %v2124, %v2041
          %v2126 = vadd.f32 %v2125, %v2049
          %v2127 = vadd.f32 %v2126, %v2057
          %v2128 = vadd.f32 %v2127, %v2065
          %v2129 = vadd.f32 %v2128, %v2073
          %v2130 = vadd.f32 %v2129, %v2081
          %v2131 = vadd.f32 %v2130, %v2089
          %v2132 = vrot.slane %v2131, 4
          %v2133 = vadd.f32 %v2131, %v2132
          %v2134 = vrot.slane %v2133, 2
          %v2135 = vadd.f32 %v2133, %v2134
          %v2136 = vrot.slane %v2135, 1
          %v2137 = vadd.f32 %v2135, %v2136
          %v2138 = vadd.f32 %v1970, %v1978
          %v2139 = vadd.f32 %v2138, %v1986
          %v2140 = vadd.f32 %v2139, %v1994
          %v2141 = vadd.f32 %v2140, %v2002
          %v2142 = vadd.f32 %v2141, %v2010
          %v2143 = vadd.f32 %v2142, %v2018
          %v2144 = vadd.f32 %v2143, %v2026
          %v2145 = vadd.f32 %v2144, %v2034
          %v2146 = vadd.f32 %v2145, %v2042
          %v2147 = vadd.f32 %v2146, %v2050
          %v2148 = vadd.f32 %v2147, %v2058
          %v2149 = vadd.f32 %v2148, %v2066
          %v2150 = vadd.f32 %v2149, %v2074
          %v2151 = vadd.f32 %v2150, %v2082
          %v2152 = vadd.f32 %v2151, %v2090
          %v2153 = vrot.slane %v2152, 4
          %v2154 = vadd.f32 %v2152, %v2153
          %v2155 = vrot.slane %v2154, 2
          %v2156 = vadd.f32 %v2154, %v2155
          %v2157 = vrot.slane %v2156, 1
          %v2158 = vadd.f32 %v2156, %v2157
          %v2159 = vadd.f32 %v1971, %v1979
          %v2160 = vadd.f32 %v2159, %v1987
          %v2161 = vadd.f32 %v2160, %v1995
          %v2162 = vadd.f32 %v2161, %v2003
          %v2163 = vadd.f32 %v2162, %v2011
          %v2164 = vadd.f32 %v2163, %v2019
          %v2165 = vadd.f32 %v2164, %v2027
          %v2166 = vadd.f32 %v2165, %v2035
          %v2167 = vadd.f32 %v2166, %v2043
          %v2168 = vadd.f32 %v2167, %v2051
          %v2169 = vadd.f32 %v2168, %v2059
          %v2170 = vadd.f32 %v2169, %v2067
          %v2171 = vadd.f32 %v2170, %v2075
          %v2172 = vadd.f32 %v2171, %v2083
          %v2173 = vadd.f32 %v2172, %v2091
          %v2174 = vrot.slane %v2173, 4
          %v2175 = vadd.f32 %v2173, %v2174
          %v2176 = vrot.slane %v2175, 2
          %v2177 = vadd.f32 %v2175, %v2176
          %v2178 = vrot.slane %v2177, 1
          %v2179 = vadd.f32 %v2177, %v2178
          %v2180 = vadd.f32 %v1972, %v1980
          %v2181 = vadd.f32 %v2180, %v1988
          %v2182 = vadd.f32 %v2181, %v1996
          %v2183 = vadd.f32 %v2182, %v2004
          %v2184 = vadd.f32 %v2183, %v2012
          %v2185 = vadd.f32 %v2184, %v2020
          %v2186 = vadd.f32 %v2185, %v2028
          %v2187 = vadd.f32 %v2186, %v2036
          %v2188 = vadd.f32 %v2187, %v2044
          %v2189 = vadd.f32 %v2188, %v2052
          %v2190 = vadd.f32 %v2189, %v2060
          %v2191 = vadd.f32 %v2190, %v2068
          %v2192 = vadd.f32 %v2191, %v2076
          %v2193 = vadd.f32 %v2192, %v2084
          %v2194 = vadd.f32 %v2193, %v2092
          %v2195 = vrot.slane %v2194, 4
          %v2196 = vadd.f32 %v2194, %v2195
          %v2197 = vrot.slane %v2196, 2
          %v2198 = vadd.f32 %v2196, %v2197
          %v2199 = vrot.slane %v2198, 1
          %v2200 = vadd.f32 %v2198, %v2199
          %v2201 = vadd.f32 %v1973, %v1981
          %v2202 = vadd.f32 %v2201, %v1989
          %v2203 = vadd.f32 %v2202, %v1997
          %v2204 = vadd.f32 %v2203, %v2005
          %v2205 = vadd.f32 %v2204, %v2013
          %v2206 = vadd.f32 %v2205, %v2021
          %v2207 = vadd.f32 %v2206, %v2029
          %v2208 = vadd.f32 %v2207, %v2037
          %v2209 = vadd.f32 %v2208, %v2045
          %v2210 = vadd.f32 %v2209, %v2053
          %v2211 = vadd.f32 %v2210, %v2061
          %v2212 = vadd.f32 %v2211, %v2069
          %v2213 = vadd.f32 %v2212, %v2077
          %v2214 = vadd.f32 %v2213, %v2085
          %v2215 = vadd.f32 %v2214, %v2093
          %v2216 = vrot.slane %v2215, 4
          %v2217 = vadd.f32 %v2215, %v2216
          %v2218 = vrot.slane %v2217, 2
          %v2219 = vadd.f32 %v2217, %v2218
          %v2220 = vrot.slane %v2219, 1
          %v2221 = vadd.f32 %v2219, %v2220
          %v2222 = vadd.f32 %v1974, %v1982
          %v2223 = vadd.f32 %v2222, %v1990
          %v2224 = vadd.f32 %v2223, %v1998
          %v2225 = vadd.f32 %v2224, %v2006
          %v2226 = vadd.f32 %v2225, %v2014
          %v2227 = vadd.f32 %v2226, %v2022
          %v2228 = vadd.f32 %v2227, %v2030
          %v2229 = vadd.f32 %v2228, %v2038
          %v2230 = vadd.f32 %v2229, %v2046
          %v2231 = vadd.f32 %v2230, %v2054
          %v2232 = vadd.f32 %v2231, %v2062
          %v2233 = vadd.f32 %v2232, %v2070
          %v2234 = vadd.f32 %v2233, %v2078
          %v2235 = vadd.f32 %v2234, %v2086
          %v2236 = vadd.f32 %v2235, %v2094
          %v2237 = vrot.slane %v2236, 4
          %v2238 = vadd.f32 %v2236, %v2237
          %v2239 = vrot.slane %v2238, 2
          %v2240 = vadd.f32 %v2238, %v2239
          %v2241 = vrot.slane %v2240, 1
          %v2242 = vadd.f32 %v2240, %v2241
          %v2243 = vadd.f32 %v1975, %v1983
          %v2244 = vadd.f32 %v2243, %v1991
          %v2245 = vadd.f32 %v2244, %v1999
          %v2246 = vadd.f32 %v2245, %v2007
          %v2247 = vadd.f32 %v2246, %v2015
          %v2248 = vadd.f32 %v2247, %v2023
          %v2249 = vadd.f32 %v2248, %v2031
          %v2250 = vadd.f32 %v2249, %v2039
          %v2251 = vadd.f32 %v2250, %v2047
          %v2252 = vadd.f32 %v2251, %v2055
          %v2253 = vadd.f32 %v2252, %v2063
          %v2254 = vadd.f32 %v2253, %v2071
          %v2255 = vadd.f32 %v2254, %v2079
          %v2256 = vadd.f32 %v2255, %v2087
          %v2257 = vadd.f32 %v2256, %v2095
          %v2258 = vrot.slane %v2257, 4
          %v2259 = vadd.f32 %v2257, %v2258
          %v2260 = vrot.slane %v2259, 2
          %v2261 = vadd.f32 %v2259, %v2260
          %v2262 = vrot.slane %v2261, 1
          %v2263 = vadd.f32 %v2261, %v2262
          %v2264 = vmul.f32 %v2116, %v755
          %v2265 = vmul.f32 %v2137, %v755
          %v2266 = vmul.f32 %v2158, %v755
          %v2267 = vmul.f32 %v2179, %v755
          %v2268 = vmul.f32 %v2200, %v755
          %v2269 = vmul.f32 %v2221, %v755
          %v2270 = vmul.f32 %v2242, %v755
          %v2271 = vmul.f32 %v2263, %v755
          %v2272 = vadd.f32 %v2264, 1e-05
          %v2273 = vadd.f32 %v2265, 1e-05
          %v2274 = vadd.f32 %v2266, 1e-05
          %v2275 = vadd.f32 %v2267, 1e-05
          %v2276 = vadd.f32 %v2268, 1e-05
          %v2277 = vadd.f32 %v2269, 1e-05
          %v2278 = vadd.f32 %v2270, 1e-05
          %v2279 = vadd.f32 %v2271, 1e-05
          %v2280 = vrsqrt.pop %v2272
          %v2281 = vrsqrt.pop %v2273
          %v2282 = vrsqrt.pop %v2274
          %v2283 = vrsqrt.pop %v2275
          %v2284 = vrsqrt.pop %v2276
          %v2285 = vrsqrt.pop %v2277
          %v2286 = vrsqrt.pop %v2278
          %v2287 = vrsqrt.pop %v2279
          %v2288 = vmul.f32 %v1840, %v2280
          %v2289 = vmul.f32 %v1841, %v2281
          %v2290 = vmul.f32 %v1842, %v2282
          %v2291 = vmul.f32 %v1843, %v2283
          %v2292 = vmul.f32 %v1844, %v2284
          %v2293 = vmul.f32 %v1845, %v2285
          %v2294 = vmul.f32 %v1846, %v2286
          %v2295 = vmul.f32 %v1847, %v2287
          %v2296 = vmul.f32 %v1848, %v2280
          %v2297 = vmul.f32 %v1849, %v2281
          %v2298 = vmul.f32 %v1850, %v2282
          %v2299 = vmul.f32 %v1851, %v2283
          %v2300 = vmul.f32 %v1852, %v2284
          %v2301 = vmul.f32 %v1853, %v2285
          %v2302 = vmul.f32 %v1854, %v2286
          %v2303 = vmul.f32 %v1855, %v2287
          %v2304 = vmul.f32 %v1856, %v2280
          %v2305 = vmul.f32 %v1857, %v2281
          %v2306 = vmul.f32 %v1858, %v2282
          %v2307 = vmul.f32 %v1859, %v2283
          %v2308 = vmul.f32 %v1860, %v2284
          %v2309 = vmul.f32 %v1861, %v2285
          %v2310 = vmul.f32 %v1862, %v2286
          %v2311 = vmul.f32 %v1863, %v2287
          %v2312 = vmul.f32 %v1864, %v2280
          %v2313 = vmul.f32 %v1865, %v2281
          %v2314 = vmul.f32 %v1866, %v2282
          %v2315 = vmul.f32 %v1867, %v2283
          %v2316 = vmul.f32 %v1868, %v2284
          %v2317 = vmul.f32 %v1869, %v2285
          %v2318 = vmul.f32 %v1870, %v2286
          %v2319 = vmul.f32 %v1871, %v2287
          %v2320 = vmul.f32 %v1872, %v2280
          %v2321 = vmul.f32 %v1873, %v2281
          %v2322 = vmul.f32 %v1874, %v2282
          %v2323 = vmul.f32 %v1875, %v2283
          %v2324 = vmul.f32 %v1876, %v2284
          %v2325 = vmul.f32 %v1877, %v2285
          %v2326 = vmul.f32 %v1878, %v2286
          %v2327 = vmul.f32 %v1879, %v2287
          %v2328 = vmul.f32 %v1880, %v2280
          %v2329 = vmul.f32 %v1881, %v2281
          %v2330 = vmul.f32 %v1882, %v2282
          %v2331 = vmul.f32 %v1883, %v2283
          %v2332 = vmul.f32 %v1884, %v2284
          %v2333 = vmul.f32 %v1885, %v2285
          %v2334 = vmul.f32 %v1886, %v2286
          %v2335 = vmul.f32 %v1887, %v2287
          %v2336 = vmul.f32 %v1888, %v2280
          %v2337 = vmul.f32 %v1889, %v2281
          %v2338 = vmul.f32 %v1890, %v2282
          %v2339 = vmul.f32 %v1891, %v2283
          %v2340 = vmul.f32 %v1892, %v2284
          %v2341 = vmul.f32 %v1893, %v2285
          %v2342 = vmul.f32 %v1894, %v2286
          %v2343 = vmul.f32 %v1895, %v2287
          %v2344 = vmul.f32 %v1896, %v2280
          %v2345 = vmul.f32 %v1897, %v2281
          %v2346 = vmul.f32 %v1898, %v2282
          %v2347 = vmul.f32 %v1899, %v2283
          %v2348 = vmul.f32 %v1900, %v2284
          %v2349 = vmul.f32 %v1901, %v2285
          %v2350 = vmul.f32 %v1902, %v2286
          %v2351 = vmul.f32 %v1903, %v2287
          %v2352 = vmul.f32 %v1904, %v2280
          %v2353 = vmul.f32 %v1905, %v2281
          %v2354 = vmul.f32 %v1906, %v2282
          %v2355 = vmul.f32 %v1907, %v2283
          %v2356 = vmul.f32 %v1908, %v2284
          %v2357 = vmul.f32 %v1909, %v2285
          %v2358 = vmul.f32 %v1910, %v2286
          %v2359 = vmul.f32 %v1911, %v2287
          %v2360 = vmul.f32 %v1912, %v2280
          %v2361 = vmul.f32 %v1913, %v2281
          %v2362 = vmul.f32 %v1914, %v2282
          %v2363 = vmul.f32 %v1915, %v2283
          %v2364 = vmul.f32 %v1916, %v2284
          %v2365 = vmul.f32 %v1917, %v2285
          %v2366 = vmul.f32 %v1918, %v2286
          %v2367 = vmul.f32 %v1919, %v2287
          %v2368 = vmul.f32 %v1920, %v2280
          %v2369 = vmul.f32 %v1921, %v2281
          %v2370 = vmul.f32 %v1922, %v2282
          %v2371 = vmul.f32 %v1923, %v2283
          %v2372 = vmul.f32 %v1924, %v2284
          %v2373 = vmul.f32 %v1925, %v2285
          %v2374 = vmul.f32 %v1926, %v2286
          %v2375 = vmul.f32 %v1927, %v2287
          %v2376 = vmul.f32 %v1928, %v2280
          %v2377 = vmul.f32 %v1929, %v2281
          %v2378 = vmul.f32 %v1930, %v2282
          %v2379 = vmul.f32 %v1931, %v2283
          %v2380 = vmul.f32 %v1932, %v2284
          %v2381 = vmul.f32 %v1933, %v2285
          %v2382 = vmul.f32 %v1934, %v2286
          %v2383 = vmul.f32 %v1935, %v2287
          %v2384 = vmul.f32 %v1936, %v2280
          %v2385 = vmul.f32 %v1937, %v2281
          %v2386 = vmul.f32 %v1938, %v2282
          %v2387 = vmul.f32 %v1939, %v2283
          %v2388 = vmul.f32 %v1940, %v2284
          %v2389 = vmul.f32 %v1941, %v2285
          %v2390 = vmul.f32 %v1942, %v2286
          %v2391 = vmul.f32 %v1943, %v2287
          %v2392 = vmul.f32 %v1944, %v2280
          %v2393 = vmul.f32 %v1945, %v2281
          %v2394 = vmul.f32 %v1946, %v2282
          %v2395 = vmul.f32 %v1947, %v2283
          %v2396 = vmul.f32 %v1948, %v2284
          %v2397 = vmul.f32 %v1949, %v2285
          %v2398 = vmul.f32 %v1950, %v2286
          %v2399 = vmul.f32 %v1951, %v2287
          %v2400 = vmul.f32 %v1952, %v2280
          %v2401 = vmul.f32 %v1953, %v2281
          %v2402 = vmul.f32 %v1954, %v2282
          %v2403 = vmul.f32 %v1955, %v2283
          %v2404 = vmul.f32 %v1956, %v2284
          %v2405 = vmul.f32 %v1957, %v2285
          %v2406 = vmul.f32 %v1958, %v2286
          %v2407 = vmul.f32 %v1959, %v2287
          %v2408 = vmul.f32 %v1960, %v2280
          %v2409 = vmul.f32 %v1961, %v2281
          %v2410 = vmul.f32 %v1962, %v2282
          %v2411 = vmul.f32 %v1963, %v2283
          %v2412 = vmul.f32 %v1964, %v2284
          %v2413 = vmul.f32 %v1965, %v2285
          %v2414 = vmul.f32 %v1966, %v2286
          %v2415 = vmul.f32 %v1967, %v2287
          %v2417 = vlaneseq
          %v2418 = vshrl.u32 %v2417, 7
          %v2419 = vsub.s32 0, %v2418
          %v2420 = vrot.slane %v1661, %v2419
          %v2421 = vlaneseq
          %v2422 = vshrl.u32 %v2421, 7
          %v2423 = vsub.s32 1, %v2422
          %v2424 = vrot.slane %v1661, %v2423
          %v2425 = vlaneseq
          %v2426 = vshrl.u32 %v2425, 7
          %v2427 = vsub.s32 2, %v2426
          %v2428 = vrot.slane %v1661, %v2427
          %v2429 = vlaneseq
          %v2430 = vshrl.u32 %v2429, 7
          %v2431 = vsub.s32 3, %v2430
          %v2432 = vrot.slane %v1661, %v2431
          %v2433 = vlaneseq
          %v2434 = vshrl.u32 %v2433, 7
          %v2435 = vsub.s32 4, %v2434
          %v2436 = vrot.slane %v1661, %v2435
          %v2437 = vlaneseq
          %v2438 = vshrl.u32 %v2437, 7
          %v2439 = vsub.s32 5, %v2438
          %v2440 = vrot.slane %v1661, %v2439
          %v2441 = vlaneseq
          %v2442 = vshrl.u32 %v2441, 7
          %v2443 = vsub.s32 6, %v2442
          %v2444 = vrot.slane %v1661, %v2443
          %v2445 = vlaneseq
          %v2446 = vshrl.u32 %v2445, 7
          %v2447 = vsub.s32 7, %v2446
          %v2448 = vrot.slane %v1661, %v2447
          %v2457 = vmul.f32 %v2288, %v2420
          %v2458 = vmul.f32 %v2289, %v2424
          %v2459 = vmul.f32 %v2290, %v2428
          %v2460 = vmul.f32 %v2291, %v2432
          %v2461 = vmul.f32 %v2292, %v2436
          %v2462 = vmul.f32 %v2293, %v2440
          %v2463 = vmul.f32 %v2294, %v2444
          %v2464 = vmul.f32 %v2295, %v2448
          %v2465 = vmul.f32 %v2296, %v2420
          %v2466 = vmul.f32 %v2297, %v2424
          %v2467 = vmul.f32 %v2298, %v2428
          %v2468 = vmul.f32 %v2299, %v2432
          %v2469 = vmul.f32 %v2300, %v2436
          %v2470 = vmul.f32 %v2301, %v2440
          %v2471 = vmul.f32 %v2302, %v2444
          %v2472 = vmul.f32 %v2303, %v2448
          %v2473 = vmul.f32 %v2304, %v2420
          %v2474 = vmul.f32 %v2305, %v2424
          %v2475 = vmul.f32 %v2306, %v2428
          %v2476 = vmul.f32 %v2307, %v2432
          %v2477 = vmul.f32 %v2308, %v2436
          %v2478 = vmul.f32 %v2309, %v2440
          %v2479 = vmul.f32 %v2310, %v2444
          %v2480 = vmul.f32 %v2311, %v2448
          %v2481 = vmul.f32 %v2312, %v2420
          %v2482 = vmul.f32 %v2313, %v2424
          %v2483 = vmul.f32 %v2314, %v2428
          %v2484 = vmul.f32 %v2315, %v2432
          %v2485 = vmul.f32 %v2316, %v2436
          %v2486 = vmul.f32 %v2317, %v2440
          %v2487 = vmul.f32 %v2318, %v2444
          %v2488 = vmul.f32 %v2319, %v2448
          %v2489 = vmul.f32 %v2320, %v2420
          %v2490 = vmul.f32 %v2321, %v2424
          %v2491 = vmul.f32 %v2322, %v2428
          %v2492 = vmul.f32 %v2323, %v2432
          %v2493 = vmul.f32 %v2324, %v2436
          %v2494 = vmul.f32 %v2325, %v2440
          %v2495 = vmul.f32 %v2326, %v2444
          %v2496 = vmul.f32 %v2327, %v2448
          %v2497 = vmul.f32 %v2328, %v2420
          %v2498 = vmul.f32 %v2329, %v2424
          %v2499 = vmul.f32 %v2330, %v2428
          %v2500 = vmul.f32 %v2331, %v2432
          %v2501 = vmul.f32 %v2332, %v2436
          %v2502 = vmul.f32 %v2333, %v2440
          %v2503 = vmul.f32 %v2334, %v2444
          %v2504 = vmul.f32 %v2335, %v2448
          %v2505 = vmul.f32 %v2336, %v2420
          %v2506 = vmul.f32 %v2337, %v2424
          %v2507 = vmul.f32 %v2338, %v2428
          %v2508 = vmul.f32 %v2339, %v2432
          %v2509 = vmul.f32 %v2340, %v2436
          %v2510 = vmul.f32 %v2341, %v2440
          %v2511 = vmul.f32 %v2342, %v2444
          %v2512 = vmul.f32 %v2343, %v2448
          %v2513 = vmul.f32 %v2344, %v2420
          %v2514 = vmul.f32 %v2345, %v2424
          %v2515 = vmul.f32 %v2346, %v2428
          %v2516 = vmul.f32 %v2347, %v2432
          %v2517 = vmul.f32 %v2348, %v2436
          %v2518 = vmul.f32 %v2349, %v2440
          %v2519 = vmul.f32 %v2350, %v2444
          %v2520 = vmul.f32 %v2351, %v2448
          %v2521 = vmul.f32 %v2352, %v2420
          %v2522 = vmul.f32 %v2353, %v2424
          %v2523 = vmul.f32 %v2354, %v2428
          %v2524 = vmul.f32 %v2355, %v2432
          %v2525 = vmul.f32 %v2356, %v2436
          %v2526 = vmul.f32 %v2357, %v2440
          %v2527 = vmul.f32 %v2358, %v2444
          %v2528 = vmul.f32 %v2359, %v2448
          %v2529 = vmul.f32 %v2360, %v2420
          %v2530 = vmul.f32 %v2361, %v2424
          %v2531 = vmul.f32 %v2362, %v2428
          %v2532 = vmul.f32 %v2363, %v2432
          %v2533 = vmul.f32 %v2364, %v2436
          %v2534 = vmul.f32 %v2365, %v2440
          %v2535 = vmul.f32 %v2366, %v2444
          %v2536 = vmul.f32 %v2367, %v2448
          %v2537 = vmul.f32 %v2368, %v2420
          %v2538 = vmul.f32 %v2369, %v2424
          %v2539 = vmul.f32 %v2370, %v2428
          %v2540 = vmul.f32 %v2371, %v2432
          %v2541 = vmul.f32 %v2372, %v2436
          %v2542 = vmul.f32 %v2373, %v2440
          %v2543 = vmul.f32 %v2374, %v2444
          %v2544 = vmul.f32 %v2375, %v2448
          %v2545 = vmul.f32 %v2376, %v2420
          %v2546 = vmul.f32 %v2377, %v2424
          %v2547 = vmul.f32 %v2378, %v2428
          %v2548 = vmul.f32 %v2379, %v2432
          %v2549 = vmul.f32 %v2380, %v2436
          %v2550 = vmul.f32 %v2381, %v2440
          %v2551 = vmul.f32 %v2382, %v2444
          %v2552 = vmul.f32 %v2383, %v2448
          %v2553 = vmul.f32 %v2384, %v2420
          %v2554 = vmul.f32 %v2385, %v2424
          %v2555 = vmul.f32 %v2386, %v2428
          %v2556 = vmul.f32 %v2387, %v2432
          %v2557 = vmul.f32 %v2388, %v2436
          %v2558 = vmul.f32 %v2389, %v2440
          %v2559 = vmul.f32 %v2390, %v2444
          %v2560 = vmul.f32 %v2391, %v2448
          %v2561 = vmul.f32 %v2392, %v2420
          %v2562 = vmul.f32 %v2393, %v2424
          %v2563 = vmul.f32 %v2394, %v2428
          %v2564 = vmul.f32 %v2395, %v2432
          %v2565 = vmul.f32 %v2396, %v2436
          %v2566 = vmul.f32 %v2397, %v2440
          %v2567 = vmul.f32 %v2398, %v2444
          %v2568 = vmul.f32 %v2399, %v2448
          %v2569 = vmul.f32 %v2400, %v2420
          %v2570 = vmul.f32 %v2401, %v2424
          %v2571 = vmul.f32 %v2402, %v2428
          %v2572 = vmul.f32 %v2403, %v2432
          %v2573 = vmul.f32 %v2404, %v2436
          %v2574 = vmul.f32 %v2405, %v2440
          %v2575 = vmul.f32 %v2406, %v2444
          %v2576 = vmul.f32 %v2407, %v2448
          %v2577 = vmul.f32 %v2408, %v2420
          %v2578 = vmul.f32 %v2409, %v2424
          %v2579 = vmul.f32 %v2410, %v2428
          %v2580 = vmul.f32 %v2411, %v2432
          %v2581 = vmul.f32 %v2412, %v2436
          %v2582 = vmul.f32 %v2413, %v2440
          %v2583 = vmul.f32 %v2414, %v2444
          %v2584 = vmul.f32 %v2415, %v2448
          %v2586 = vlaneseq
          %v2587 = vshrl.u32 %v2586, 7
          %v2588 = vsub.s32 0, %v2587
          %v2589 = vrot.slane %v1663, %v2588
          %v2590 = vlaneseq
          %v2591 = vshrl.u32 %v2590, 7
          %v2592 = vsub.s32 1, %v2591
          %v2593 = vrot.slane %v1663, %v2592
          %v2594 = vlaneseq
          %v2595 = vshrl.u32 %v2594, 7
          %v2596 = vsub.s32 2, %v2595
          %v2597 = vrot.slane %v1663, %v2596
          %v2598 = vlaneseq
          %v2599 = vshrl.u32 %v2598, 7
          %v2600 = vsub.s32 3, %v2599
          %v2601 = vrot.slane %v1663, %v2600
          %v2602 = vlaneseq
          %v2603 = vshrl.u32 %v2602, 7
          %v2604 = vsub.s32 4, %v2603
          %v2605 = vrot.slane %v1663, %v2604
          %v2606 = vlaneseq
          %v2607 = vshrl.u32 %v2606, 7
          %v2608 = vsub.s32 5, %v2607
          %v2609 = vrot.slane %v1663, %v2608
          %v2610 = vlaneseq
          %v2611 = vshrl.u32 %v2610, 7
          %v2612 = vsub.s32 6, %v2611
          %v2613 = vrot.slane %v1663, %v2612
          %v2614 = vlaneseq
          %v2615 = vshrl.u32 %v2614, 7
          %v2616 = vsub.s32 7, %v2615
          %v2617 = vrot.slane %v1663, %v2616
          %v2626 = vadd.f32 %v2457, %v2589
          %v2627 = vadd.f32 %v2458, %v2593
          %v2628 = vadd.f32 %v2459, %v2597
          %v2629 = vadd.f32 %v2460, %v2601
          %v2630 = vadd.f32 %v2461, %v2605
          %v2631 = vadd.f32 %v2462, %v2609
          %v2632 = vadd.f32 %v2463, %v2613
          %v2633 = vadd.f32 %v2464, %v2617
          %v2634 = vadd.f32 %v2465, %v2589
          %v2635 = vadd.f32 %v2466, %v2593
          %v2636 = vadd.f32 %v2467, %v2597
          %v2637 = vadd.f32 %v2468, %v2601
          %v2638 = vadd.f32 %v2469, %v2605
          %v2639 = vadd.f32 %v2470, %v2609
          %v2640 = vadd.f32 %v2471, %v2613
          %v2641 = vadd.f32 %v2472, %v2617
          %v2642 = vadd.f32 %v2473, %v2589
          %v2643 = vadd.f32 %v2474, %v2593
          %v2644 = vadd.f32 %v2475, %v2597
          %v2645 = vadd.f32 %v2476, %v2601
          %v2646 = vadd.f32 %v2477, %v2605
          %v2647 = vadd.f32 %v2478, %v2609
          %v2648 = vadd.f32 %v2479, %v2613
          %v2649 = vadd.f32 %v2480, %v2617
          %v2650 = vadd.f32 %v2481, %v2589
          %v2651 = vadd.f32 %v2482, %v2593
          %v2652 = vadd.f32 %v2483, %v2597
          %v2653 = vadd.f32 %v2484, %v2601
          %v2654 = vadd.f32 %v2485, %v2605
          %v2655 = vadd.f32 %v2486, %v2609
          %v2656 = vadd.f32 %v2487, %v2613
          %v2657 = vadd.f32 %v2488, %v2617
          %v2658 = vadd.f32 %v2489, %v2589
          %v2659 = vadd.f32 %v2490, %v2593
          %v2660 = vadd.f32 %v2491, %v2597
          %v2661 = vadd.f32 %v2492, %v2601
          %v2662 = vadd.f32 %v2493, %v2605
          %v2663 = vadd.f32 %v2494, %v2609
          %v2664 = vadd.f32 %v2495, %v2613
          %v2665 = vadd.f32 %v2496, %v2617
          %v2666 = vadd.f32 %v2497, %v2589
          %v2667 = vadd.f32 %v2498, %v2593
          %v2668 = vadd.f32 %v2499, %v2597
          %v2669 = vadd.f32 %v2500, %v2601
          %v2670 = vadd.f32 %v2501, %v2605
          %v2671 = vadd.f32 %v2502, %v2609
          %v2672 = vadd.f32 %v2503, %v2613
          %v2673 = vadd.f32 %v2504, %v2617
          %v2674 = vadd.f32 %v2505, %v2589
          %v2675 = vadd.f32 %v2506, %v2593
          %v2676 = vadd.f32 %v2507, %v2597
          %v2677 = vadd.f32 %v2508, %v2601
          %v2678 = vadd.f32 %v2509, %v2605
          %v2679 = vadd.f32 %v2510, %v2609
          %v2680 = vadd.f32 %v2511, %v2613
          %v2681 = vadd.f32 %v2512, %v2617
          %v2682 = vadd.f32 %v2513, %v2589
          %v2683 = vadd.f32 %v2514, %v2593
          %v2684 = vadd.f32 %v2515, %v2597
          %v2685 = vadd.f32 %v2516, %v2601
          %v2686 = vadd.f32 %v2517, %v2605
          %v2687 = vadd.f32 %v2518, %v2609
          %v2688 = vadd.f32 %v2519, %v2613
          %v2689 = vadd.f32 %v2520, %v2617
          %v2690 = vadd.f32 %v2521, %v2589
          %v2691 = vadd.f32 %v2522, %v2593
          %v2692 = vadd.f32 %v2523, %v2597
          %v2693 = vadd.f32 %v2524, %v2601
          %v2694 = vadd.f32 %v2525, %v2605
          %v2695 = vadd.f32 %v2526, %v2609
          %v2696 = vadd.f32 %v2527, %v2613
          %v2697 = vadd.f32 %v2528, %v2617
          %v2698 = vadd.f32 %v2529, %v2589
          %v2699 = vadd.f32 %v2530, %v2593
          %v2700 = vadd.f32 %v2531, %v2597
          %v2701 = vadd.f32 %v2532, %v2601
          %v2702 = vadd.f32 %v2533, %v2605
          %v2703 = vadd.f32 %v2534, %v2609
          %v2704 = vadd.f32 %v2535, %v2613
          %v2705 = vadd.f32 %v2536, %v2617
          %v2706 = vadd.f32 %v2537, %v2589
          %v2707 = vadd.f32 %v2538, %v2593
          %v2708 = vadd.f32 %v2539, %v2597
          %v2709 = vadd.f32 %v2540, %v2601
          %v2710 = vadd.f32 %v2541, %v2605
          %v2711 = vadd.f32 %v2542, %v2609
          %v2712 = vadd.f32 %v2543, %v2613
          %v2713 = vadd.f32 %v2544, %v2617
          %v2714 = vadd.f32 %v2545, %v2589
          %v2715 = vadd.f32 %v2546, %v2593
          %v2716 = vadd.f32 %v2547, %v2597
          %v2717 = vadd.f32 %v2548, %v2601
          %v2718 = vadd.f32 %v2549, %v2605
          %v2719 = vadd.f32 %v2550, %v2609
          %v2720 = vadd.f32 %v2551, %v2613
          %v2721 = vadd.f32 %v2552, %v2617
          %v2722 = vadd.f32 %v2553, %v2589
          %v2723 = vadd.f32 %v2554, %v2593
          %v2724 = vadd.f32 %v2555, %v2597
          %v2725 = vadd.f32 %v2556, %v2601
          %v2726 = vadd.f32 %v2557, %v2605
          %v2727 = vadd.f32 %v2558, %v2609
          %v2728 = vadd.f32 %v2559, %v2613
          %v2729 = vadd.f32 %v2560, %v2617
          %v2730 = vadd.f32 %v2561, %v2589
          %v2731 = vadd.f32 %v2562, %v2593
          %v2732 = vadd.f32 %v2563, %v2597
          %v2733 = vadd.f32 %v2564, %v2601
          %v2734 = vadd.f32 %v2565, %v2605
          %v2735 = vadd.f32 %v2566, %v2609
          %v2736 = vadd.f32 %v2567, %v2613
          %v2737 = vadd.f32 %v2568, %v2617
          %v2738 = vadd.f32 %v2569, %v2589
          %v2739 = vadd.f32 %v2570, %v2593
          %v2740 = vadd.f32 %v2571, %v2597
          %v2741 = vadd.f32 %v2572, %v2601
          %v2742 = vadd.f32 %v2573, %v2605
          %v2743 = vadd.f32 %v2574, %v2609
          %v2744 = vadd.f32 %v2575, %v2613
          %v2745 = vadd.f32 %v2576, %v2617
          %v2746 = vadd.f32 %v2577, %v2589
          %v2747 = vadd.f32 %v2578, %v2593
          %v2748 = vadd.f32 %v2579, %v2597
          %v2749 = vadd.f32 %v2580, %v2601
          %v2750 = vadd.f32 %v2581, %v2605
          %v2751 = vadd.f32 %v2582, %v2609
          %v2752 = vadd.f32 %v2583, %v2613
          %v2753 = vadd.f32 %v2584, %v2617
          %v2754 = vmax.f32 %v2626, 0.0
          %v2755 = vmax.f32 %v2627, 0.0
          %v2756 = vmax.f32 %v2628, 0.0
          %v2757 = vmax.f32 %v2629, 0.0
          %v2758 = vmax.f32 %v2630, 0.0
          %v2759 = vmax.f32 %v2631, 0.0
          %v2760 = vmax.f32 %v2632, 0.0
          %v2761 = vmax.f32 %v2633, 0.0
          %v2762 = vmax.f32 %v2634, 0.0
          %v2763 = vmax.f32 %v2635, 0.0
          %v2764 = vmax.f32 %v2636, 0.0
          %v2765 = vmax.f32 %v2637, 0.0
          %v2766 = vmax.f32 %v2638, 0.0
          %v2767 = vmax.f32 %v2639, 0.0
          %v2768 = vmax.f32 %v2640, 0.0
          %v2769 = vmax.f32 %v2641, 0.0
          %v2770 = vmax.f32 %v2642, 0.0
          %v2771 = vmax.f32 %v2643, 0.0
          %v2772 = vmax.f32 %v2644, 0.0
          %v2773 = vmax.f32 %v2645, 0.0
          %v2774 = vmax.f32 %v2646, 0.0
          %v2775 = vmax.f32 %v2647, 0.0
          %v2776 = vmax.f32 %v2648, 0.0
          %v2777 = vmax.f32 %v2649, 0.0
          %v2778 = vmax.f32 %v2650, 0.0
          %v2779 = vmax.f32 %v2651, 0.0
          %v2780 = vmax.f32 %v2652, 0.0
          %v2781 = vmax.f32 %v2653, 0.0
          %v2782 = vmax.f32 %v2654, 0.0
          %v2783 = vmax.f32 %v2655, 0.0
          %v2784 = vmax.f32 %v2656, 0.0
          %v2785 = vmax.f32 %v2657, 0.0
          %v2786 = vmax.f32 %v2658, 0.0
          %v2787 = vmax.f32 %v2659, 0.0
          %v2788 = vmax.f32 %v2660, 0.0
          %v2789 = vmax.f32 %v2661, 0.0
          %v2790 = vmax.f32 %v2662, 0.0
          %v2791 = vmax.f32 %v2663, 0.0
          %v2792 = vmax.f32 %v2664, 0.0
          %v2793 = vmax.f32 %v2665, 0.0
          %v2794 = vmax.f32 %v2666, 0.0
          %v2795 = vmax.f32 %v2667, 0.0
          %v2796 = vmax.f32 %v2668, 0.0
          %v2797 = vmax.f32 %v2669, 0.0
          %v2798 = vmax.f32 %v2670, 0.0
          %v2799 = vmax.f32 %v2671, 0.0
          %v2800 = vmax.f32 %v2672, 0.0
          %v2801 = vmax.f32 %v2673, 0.0
          %v2802 = vmax.f32 %v2674, 0.0
          %v2803 = vmax.f32 %v2675, 0.0
          %v2804 = vmax.f32 %v2676, 0.0
          %v2805 = vmax.f32 %v2677, 0.0
          %v2806 = vmax.f32 %v2678, 0.0
          %v2807 = vmax.f32 %v2679, 0.0
          %v2808 = vmax.f32 %v2680, 0.0
          %v2809 = vmax.f32 %v2681, 0.0
          %v2810 = vmax.f32 %v2682, 0.0
          %v2811 = vmax.f32 %v2683, 0.0
          %v2812 = vmax.f32 %v2684, 0.0
          %v2813 = vmax.f32 %v2685, 0.0
          %v2814 = vmax.f32 %v2686, 0.0
          %v2815 = vmax.f32 %v2687, 0.0
          %v2816 = vmax.f32 %v2688, 0.0
          %v2817 = vmax.f32 %v2689, 0.0
          %v2818 = vmax.f32 %v2690, 0.0
          %v2819 = vmax.f32 %v2691, 0.0
          %v2820 = vmax.f32 %v2692, 0.0
          %v2821 = vmax.f32 %v2693, 0.0
          %v2822 = vmax.f32 %v2694, 0.0
          %v2823 = vmax.f32 %v2695, 0.0
          %v2824 = vmax.f32 %v2696, 0.0
          %v2825 = vmax.f32 %v2697, 0.0
          %v2826 = vmax.f32 %v2698, 0.0
          %v2827 = vmax.f32 %v2699, 0.0
          %v2828 = vmax.f32 %v2700, 0.0
          %v2829 = vmax.f32 %v2701, 0.0
          %v2830 = vmax.f32 %v2702, 0.0
          %v2831 = vmax.f32 %v2703, 0.0
          %v2832 = vmax.f32 %v2704, 0.0
          %v2833 = vmax.f32 %v2705, 0.0
          %v2834 = vmax.f32 %v2706, 0.0
          %v2835 = vmax.f32 %v2707, 0.0
          %v2836 = vmax.f32 %v2708, 0.0
          %v2837 = vmax.f32 %v2709, 0.0
          %v2838 = vmax.f32 %v2710, 0.0
          %v2839 = vmax.f32 %v2711, 0.0
          %v2840 = vmax.f32 %v2712, 0.0
          %v2841 = vmax.f32 %v2713, 0.0
          %v2842 = vmax.f32 %v2714, 0.0
          %v2843 = vmax.f32 %v2715, 0.0
          %v2844 = vmax.f32 %v2716, 0.0
          %v2845 = vmax.f32 %v2717, 0.0
          %v2846 = vmax.f32 %v2718, 0.0
          %v2847 = vmax.f32 %v2719, 0.0
          %v2848 = vmax.f32 %v2720, 0.0
          %v2849 = vmax.f32 %v2721, 0.0
          %v2850 = vmax.f32 %v2722, 0.0
          %v2851 = vmax.f32 %v2723, 0.0
          %v2852 = vmax.f32 %v2724, 0.0
          %v2853 = vmax.f32 %v2725, 0.0
          %v2854 = vmax.f32 %v2726, 0.0
          %v2855 = vmax.f32 %v2727, 0.0
          %v2856 = vmax.f32 %v2728, 0.0
          %v2857 = vmax.f32 %v2729, 0.0
          %v2858 = vmax.f32 %v2730, 0.0
          %v2859 = vmax.f32 %v2731, 0.0
          %v2860 = vmax.f32 %v2732, 0.0
          %v2861 = vmax.f32 %v2733, 0.0
          %v2862 = vmax.f32 %v2734, 0.0
          %v2863 = vmax.f32 %v2735, 0.0
          %v2864 = vmax.f32 %v2736, 0.0
          %v2865 = vmax.f32 %v2737, 0.0
          %v2866 = vmax.f32 %v2738, 0.0
          %v2867 = vmax.f32 %v2739, 0.0
          %v2868 = vmax.f32 %v2740, 0.0
          %v2869 = vmax.f32 %v2741, 0.0
          %v2870 = vmax.f32 %v2742, 0.0
          %v2871 = vmax.f32 %v2743, 0.0
          %v2872 = vmax.f32 %v2744, 0.0
          %v2873 = vmax.f32 %v2745, 0.0
          %v2874 = vmax.f32 %v2746, 0.0
          %v2875 = vmax.f32 %v2747, 0.0
          %v2876 = vmax.f32 %v2748, 0.0
          %v2877 = vmax.f32 %v2749, 0.0
          %v2878 = vmax.f32 %v2750, 0.0
          %v2879 = vmax.f32 %v2751, 0.0
          %v2880 = vmax.f32 %v2752, 0.0
          %v2881 = vmax.f32 %v2753, 0.0
          %v2882 = vpack.c.bf16 %v2762, %v2754
          %v2883 = vpack.c.bf16 %v2763, %v2755
          %v2884 = vpack.c.bf16 %v2764, %v2756
          %v2885 = vpack.c.bf16 %v2765, %v2757
          %v2886 = vpack.c.bf16 %v2766, %v2758
          %v2887 = vpack.c.bf16 %v2767, %v2759
          %v2888 = vpack.c.bf16 %v2768, %v2760
          %v2889 = vpack.c.bf16 %v2769, %v2761
          %v2890 = vpack.c.bf16 %v2778, %v2770
          %v2891 = vpack.c.bf16 %v2779, %v2771
          %v2892 = vpack.c.bf16 %v2780, %v2772
          %v2893 = vpack.c.bf16 %v2781, %v2773
          %v2894 = vpack.c.bf16 %v2782, %v2774
          %v2895 = vpack.c.bf16 %v2783, %v2775
          %v2896 = vpack.c.bf16 %v2784, %v2776
          %v2897 = vpack.c.bf16 %v2785, %v2777
          %v2898 = vpack.c.bf16 %v2794, %v2786
          %v2899 = vpack.c.bf16 %v2795, %v2787
          %v2900 = vpack.c.bf16 %v2796, %v2788
          %v2901 = vpack.c.bf16 %v2797, %v2789
          %v2902 = vpack.c.bf16 %v2798, %v2790
          %v2903 = vpack.c.bf16 %v2799, %v2791
          %v2904 = vpack.c.bf16 %v2800, %v2792
          %v2905 = vpack.c.bf16 %v2801, %v2793
          %v2906 = vpack.c.bf16 %v2810, %v2802
          %v2907 = vpack.c.bf16 %v2811, %v2803
          %v2908 = vpack.c.bf16 %v2812, %v2804
          %v2909 = vpack.c.bf16 %v2813, %v2805
          %v2910 = vpack.c.bf16 %v2814, %v2806
          %v2911 = vpack.c.bf16 %v2815, %v2807
          %v2912 = vpack.c.bf16 %v2816, %v2808
          %v2913 = vpack.c.bf16 %v2817, %v2809
          %v2914 = vpack.c.bf16 %v2826, %v2818
          %v2915 = vpack.c.bf16 %v2827, %v2819
          %v2916 = vpack.c.bf16 %v2828, %v2820
          %v2917 = vpack.c.bf16 %v2829, %v2821
          %v2918 = vpack.c.bf16 %v2830, %v2822
          %v2919 = vpack.c.bf16 %v2831, %v2823
          %v2920 = vpack.c.bf16 %v2832, %v2824
          %v2921 = vpack.c.bf16 %v2833, %v2825
          %v2922 = vpack.c.bf16 %v2842, %v2834
          %v2923 = vpack.c.bf16 %v2843, %v2835
          %v2924 = vpack.c.bf16 %v2844, %v2836
          %v2925 = vpack.c.bf16 %v2845, %v2837
          %v2926 = vpack.c.bf16 %v2846, %v2838
          %v2927 = vpack.c.bf16 %v2847, %v2839
          %v2928 = vpack.c.bf16 %v2848, %v2840
          %v2929 = vpack.c.bf16 %v2849, %v2841
          %v2930 = vpack.c.bf16 %v2858, %v2850
          %v2931 = vpack.c.bf16 %v2859, %v2851
          %v2932 = vpack.c.bf16 %v2860, %v2852
          %v2933 = vpack.c.bf16 %v2861, %v2853
          %v2934 = vpack.c.bf16 %v2862, %v2854
          %v2935 = vpack.c.bf16 %v2863, %v2855
          %v2936 = vpack.c.bf16 %v2864, %v2856
          %v2937 = vpack.c.bf16 %v2865, %v2857
          %v2938 = vpack.c.bf16 %v2874, %v2866
          %v2939 = vpack.c.bf16 %v2875, %v2867
          %v2940 = vpack.c.bf16 %v2876, %v2868
          %v2941 = vpack.c.bf16 %v2877, %v2869
          %v2942 = vpack.c.bf16 %v2878, %v2870
          %v2943 = vpack.c.bf16 %v2879, %v2871
          %v2944 = vpack.c.bf16 %v2880, %v2872
          %v2945 = vpack.c.bf16 %v2881, %v2873
          %2946 = vst [vmem:[#allocation2 + $0x10] sm:$0xff] %v2882
          %2947 = vst [vmem:[#allocation2 + $0x18] sm:$0xff] %v2883
          %2948 = vst [vmem:[#allocation2 + $0x20] sm:$0xff] %v2884
          %2949 = vst [vmem:[#allocation2 + $0x28] sm:$0xff] %v2885
          %2950 = vst [vmem:[#allocation2 + $0x30] sm:$0xff] %v2886
          %2951 = vst [vmem:[#allocation2 + $0x38] sm:$0xff] %v2887
          %2952 = vst [vmem:[#allocation2 + $0x40] sm:$0xff] %v2888
          %2953 = vst [vmem:[#allocation2 + $0x48] sm:$0xff] %v2889
          %2954 = vst [vmem:[#allocation2 + $0x60] sm:$0xff] %v2890
          %2955 = vst [vmem:[#allocation2 + $0x68] sm:$0xff] %v2891
          %2956 = vst [vmem:[#allocation2 + $0x70] sm:$0xff] %v2892
          %2957 = vst [vmem:[#allocation2 + $0x78] sm:$0xff] %v2893
          %2958 = vst [vmem:[#allocation2 + $0x80] sm:$0xff] %v2894
          %2959 = vst [vmem:[#allocation2 + $0x88] sm:$0xff] %v2895
          %2960 = vst [vmem:[#allocation2 + $0x90] sm:$0xff] %v2896
          %2961 = vst [vmem:[#allocation2 + $0x98] sm:$0xff] %v2897
          %2962 = vst [vmem:[#allocation2 + $0xb0] sm:$0xff] %v2898
          %2963 = vst [vmem:[#allocation2 + $0xb8] sm:$0xff] %v2899
          %2964 = vst [vmem:[#allocation2 + $0xc0] sm:$0xff] %v2900
          %2965 = vst [vmem:[#allocation2 + $0xc8] sm:$0xff] %v2901
          %2966 = vst [vmem:[#allocation2 + $0xd0] sm:$0xff] %v2902
          %2967 = vst [vmem:[#allocation2 + $0xd8] sm:$0xff] %v2903
          %2968 = vst [vmem:[#allocation2 + $0xe0] sm:$0xff] %v2904
          %2969 = vst [vmem:[#allocation2 + $0xe8] sm:$0xff] %v2905
          %2970 = vst [vmem:[#allocation2 + $0x100] sm:$0xff] %v2906
          %2971 = vst [vmem:[#allocation2 + $0x108] sm:$0xff] %v2907
          %2972 = vst [vmem:[#allocation2 + $0x110] sm:$0xff] %v2908
          %2973 = vst [vmem:[#allocation2 + $0x118] sm:$0xff] %v2909
          %2974 = vst [vmem:[#allocation2 + $0x120] sm:$0xff] %v2910
          %2975 = vst [vmem:[#allocation2 + $0x128] sm:$0xff] %v2911
          %2976 = vst [vmem:[#allocation2 + $0x130] sm:$0xff] %v2912
          %2977 = vst [vmem:[#allocation2 + $0x138] sm:$0xff] %v2913
          %2978 = vst [vmem:[#allocation2 + $0x150] sm:$0xff] %v2914
          %2979 = vst [vmem:[#allocation2 + $0x158] sm:$0xff] %v2915
          %2980 = vst [vmem:[#allocation2 + $0x160] sm:$0xff] %v2916
          %2981 = vst [vmem:[#allocation2 + $0x168] sm:$0xff] %v2917
          %2982 = vst [vmem:[#allocation2 + $0x170] sm:$0xff] %v2918
          %2983 = vst [vmem:[#allocation2 + $0x178] sm:$0xff] %v2919
          %2984 = vst [vmem:[#allocation2 + $0x180] sm:$0xff] %v2920
          %2985 = vst [vmem:[#allocation2 + $0x188] sm:$0xff] %v2921
          %2986 = vst [vmem:[#allocation2 + $0x1a0] sm:$0xff] %v2922
          %2987 = vst [vmem:[#allocation2 + $0x1a8] sm:$0xff] %v2923
          %2988 = vst [vmem:[#allocation2 + $0x1b0] sm:$0xff] %v2924
          %2989 = vst [vmem:[#allocation2 + $0x1b8] sm:$0xff] %v2925
          %2990 = vst [vmem:[#allocation2 + $0x1c0] sm:$0xff] %v2926
          %2991 = vst [vmem:[#allocation2 + $0x1c8] sm:$0xff] %v2927
          %2992 = vst [vmem:[#allocation2 + $0x1d0] sm:$0xff] %v2928
          %2993 = vst [vmem:[#allocation2 + $0x1d8] sm:$0xff] %v2929
          %2994 = vst [vmem:[#allocation2 + $0x1f0] sm:$0xff] %v2930
          %2995 = vst [vmem:[#allocation2 + $0x1f8] sm:$0xff] %v2931
          %2996 = vst [vmem:[#allocation2 + $0x200] sm:$0xff] %v2932
          %2997 = vst [vmem:[#allocation2 + $0x208] sm:$0xff] %v2933
          %2998 = vst [vmem:[#allocation2 + $0x210] sm:$0xff] %v2934
          %2999 = vst [vmem:[#allocation2 + $0x218] sm:$0xff] %v2935
          %3000 = vst [vmem:[#allocation2 + $0x220] sm:$0xff] %v2936
          %3001 = vst [vmem:[#allocation2 + $0x228] sm:$0xff] %v2937
          %3002 = vst [vmem:[#allocation2 + $0x240] sm:$0xff] %v2938
          %3003 = vst [vmem:[#allocation2 + $0x248] sm:$0xff] %v2939
          %3004 = vst [vmem:[#allocation2 + $0x250] sm:$0xff] %v2940
          %3005 = vst [vmem:[#allocation2 + $0x258] sm:$0xff] %v2941
          %3006 = vst [vmem:[#allocation2 + $0x260] sm:$0xff] %v2942
          %3007 = vst [vmem:[#allocation2 + $0x268] sm:$0xff] %v2943
          %3008 = vst [vmem:[#allocation2 + $0x270] sm:$0xff] %v2944
          %3009 = vst [vmem:[#allocation2 + $0x278] sm:$0xff] %v2945
          %3010 = vst [vmem:[#allocation15] sm:$0xff] 0.0
          %3011 = vst [vmem:[#allocation15 + $0x8] sm:$0xff] 0.0
          %3012 = vst [vmem:[#allocation15 + $0x10] sm:$0xff] 0.0
          %3013 = vst [vmem:[#allocation15 + $0x18] sm:$0xff] 0.0
          %3014 = vst [vmem:[#allocation15 + $0x20] sm:$0xff] 0.0
          %3015 = vst [vmem:[#allocation15 + $0x28] sm:$0xff] 0.0
          %3016 = vst [vmem:[#allocation15 + $0x30] sm:$0xff] 0.0
          %3017 = vst [vmem:[#allocation15 + $0x38] sm:$0xff] 0.0
          %3018 = vst [vmem:[#allocation15 + $0x40] sm:$0xff] 0.0
          %3019 = vst [vmem:[#allocation15 + $0x48] sm:$0xff] 0.0
          %3020 = vst [vmem:[#allocation15 + $0x50] sm:$0xff] 0.0
          %3021 = vst [vmem:[#allocation15 + $0x58] sm:$0xff] 0.0
          %3022 = vst [vmem:[#allocation15 + $0x60] sm:$0xff] 0.0
          %3023 = vst [vmem:[#allocation15 + $0x68] sm:$0xff] 0.0
          %3024 = vst [vmem:[#allocation15 + $0x70] sm:$0xff] 0.0
          %3025 = vst [vmem:[#allocation15 + $0x78] sm:$0xff] 0.0
          %3026 = vst [vmem:[#allocation15 + $0x80] sm:$0xff] 0.0
          %3027 = vst [vmem:[#allocation15 + $0x88] sm:$0xff] 0.0
          %3028 = vst [vmem:[#allocation15 + $0x90] sm:$0xff] 0.0
          %3029 = vst [vmem:[#allocation15 + $0x98] sm:$0xff] 0.0
          %3030 = vst [vmem:[#allocation15 + $0xa0] sm:$0xff] 0.0
          %3031 = vst [vmem:[#allocation15 + $0xa8] sm:$0xff] 0.0
          %3032 = vst [vmem:[#allocation15 + $0xb0] sm:$0xff] 0.0
          %3033 = vst [vmem:[#allocation15 + $0xb8] sm:$0xff] 0.0
          %3034 = vst [vmem:[#allocation15 + $0xc0] sm:$0xff] 0.0
          %3035 = vst [vmem:[#allocation15 + $0xc8] sm:$0xff] 0.0
          %3036 = vst [vmem:[#allocation15 + $0xd0] sm:$0xff] 0.0
          %3037 = vst [vmem:[#allocation15 + $0xd8] sm:$0xff] 0.0
          %3038 = vst [vmem:[#allocation15 + $0xe0] sm:$0xff] 0.0
          %3039 = vst [vmem:[#allocation15 + $0xe8] sm:$0xff] 0.0
          %3040 = vst [vmem:[#allocation15 + $0xf0] sm:$0xff] 0.0
          %3041 = vst [vmem:[#allocation15 + $0xf8] sm:$0xff] 0.0
        $region96: #{tpu_custom_call.1} parent=59 // pred_fallthru
          _
        %v3042 = vld [vmem:[#allocation2] sm:$0xff]
        %v3043 = vld [vmem:[#allocation2 + $0x8] sm:$0xff]
        %v3044 = vld [vmem:[#allocation2 + $0x10] sm:$0xff]
        %v3045 = vld [vmem:[#allocation2 + $0x18] sm:$0xff]
        %v3046 = vld [vmem:[#allocation2 + $0x20] sm:$0xff]
        %v3047 = vld [vmem:[#allocation2 + $0x28] sm:$0xff]
        %v3048 = vld [vmem:[#allocation2 + $0x30] sm:$0xff]
        %v3049 = vld [vmem:[#allocation2 + $0x38] sm:$0xff]
        %v3050 = vld [vmem:[#allocation2 + $0x40] sm:$0xff]
        %v3051 = vld [vmem:[#allocation2 + $0x48] sm:$0xff]
        %v3052 = vld [vmem:[#allocation2 + $0x50] sm:$0xff]
        %v3053 = vld [vmem:[#allocation2 + $0x58] sm:$0xff]
        %v3054 = vld [vmem:[#allocation2 + $0x60] sm:$0xff]
        %v3055 = vld [vmem:[#allocation2 + $0x68] sm:$0xff]
        %v3056 = vld [vmem:[#allocation2 + $0x70] sm:$0xff]
        %v3057 = vld [vmem:[#allocation2 + $0x78] sm:$0xff]
        %v3058 = vld [vmem:[#allocation2 + $0x80] sm:$0xff]
        %v3059 = vld [vmem:[#allocation2 + $0x88] sm:$0xff]
        %v3060 = vld [vmem:[#allocation2 + $0x90] sm:$0xff]
        %v3061 = vld [vmem:[#allocation2 + $0x98] sm:$0xff]
        %v3062 = vld [vmem:[#allocation2 + $0xa0] sm:$0xff]
        %v3063 = vld [vmem:[#allocation2 + $0xa8] sm:$0xff]
        %v3064 = vld [vmem:[#allocation2 + $0xb0] sm:$0xff]
        %v3065 = vld [vmem:[#allocation2 + $0xb8] sm:$0xff]
        %v3066 = vld [vmem:[#allocation2 + $0xc0] sm:$0xff]
        %v3067 = vld [vmem:[#allocation2 + $0xc8] sm:$0xff]
        %v3068 = vld [vmem:[#allocation2 + $0xd0] sm:$0xff]
        %v3069 = vld [vmem:[#allocation2 + $0xd8] sm:$0xff]
        %v3070 = vld [vmem:[#allocation2 + $0xe0] sm:$0xff]
        %v3071 = vld [vmem:[#allocation2 + $0xe8] sm:$0xff]
        %v3072 = vld [vmem:[#allocation2 + $0xf0] sm:$0xff]
        %v3073 = vld [vmem:[#allocation2 + $0xf8] sm:$0xff]
        %v3074 = vld [vmem:[#allocation2 + $0x100] sm:$0xff]
        %v3075 = vld [vmem:[#allocation2 + $0x108] sm:$0xff]
        %v3076 = vld [vmem:[#allocation2 + $0x110] sm:$0xff]
        %v3077 = vld [vmem:[#allocation2 + $0x118] sm:$0xff]
        %v3078 = vld [vmem:[#allocation2 + $0x120] sm:$0xff]
        %v3079 = vld [vmem:[#allocation2 + $0x128] sm:$0xff]
        %v3080 = vld [vmem:[#allocation2 + $0x130] sm:$0xff]
        %v3081 = vld [vmem:[#allocation2 + $0x138] sm:$0xff]
        %v3082 = vld [vmem:[#allocation2 + $0x140] sm:$0xff]
        %v3083 = vld [vmem:[#allocation2 + $0x148] sm:$0xff]
        %v3084 = vld [vmem:[#allocation2 + $0x150] sm:$0xff]
        %v3085 = vld [vmem:[#allocation2 + $0x158] sm:$0xff]
        %v3086 = vld [vmem:[#allocation2 + $0x160] sm:$0xff]
        %v3087 = vld [vmem:[#allocation2 + $0x168] sm:$0xff]
        %v3088 = vld [vmem:[#allocation2 + $0x170] sm:$0xff]
        %v3089 = vld [vmem:[#allocation2 + $0x178] sm:$0xff]
        %v3090 = vld [vmem:[#allocation2 + $0x180] sm:$0xff]
        %v3091 = vld [vmem:[#allocation2 + $0x188] sm:$0xff]
        %v3092 = vld [vmem:[#allocation2 + $0x190] sm:$0xff]
        %v3093 = vld [vmem:[#allocation2 + $0x198] sm:$0xff]
        %v3094 = vld [vmem:[#allocation2 + $0x1a0] sm:$0xff]
        %v3095 = vld [vmem:[#allocation2 + $0x1a8] sm:$0xff]
        %v3096 = vld [vmem:[#allocation2 + $0x1b0] sm:$0xff]
        %v3097 = vld [vmem:[#allocation2 + $0x1b8] sm:$0xff]
        %v3098 = vld [vmem:[#allocation2 + $0x1c0] sm:$0xff]
        %v3099 = vld [vmem:[#allocation2 + $0x1c8] sm:$0xff]
        %v3100 = vld [vmem:[#allocation2 + $0x1d0] sm:$0xff]
        %v3101 = vld [vmem:[#allocation2 + $0x1d8] sm:$0xff]
        %v3102 = vld [vmem:[#allocation2 + $0x1e0] sm:$0xff]
        %v3103 = vld [vmem:[#allocation2 + $0x1e8] sm:$0xff]
        %v3104 = vld [vmem:[#allocation2 + $0x1f0] sm:$0xff]
        %v3105 = vld [vmem:[#allocation2 + $0x1f8] sm:$0xff]
        %v3106 = vld [vmem:[#allocation2 + $0x200] sm:$0xff]
        %v3107 = vld [vmem:[#allocation2 + $0x208] sm:$0xff]
        %v3108 = vld [vmem:[#allocation2 + $0x210] sm:$0xff]
        %v3109 = vld [vmem:[#allocation2 + $0x218] sm:$0xff]
        %v3110 = vld [vmem:[#allocation2 + $0x220] sm:$0xff]
        %v3111 = vld [vmem:[#allocation2 + $0x228] sm:$0xff]
        %v3112 = vld [vmem:[#allocation2 + $0x230] sm:$0xff]
        %v3113 = vld [vmem:[#allocation2 + $0x238] sm:$0xff]
        %v3114 = vld [vmem:[#allocation2 + $0x240] sm:$0xff]
        %v3115 = vld [vmem:[#allocation2 + $0x248] sm:$0xff]
        %v3116 = vld [vmem:[#allocation2 + $0x250] sm:$0xff]
        %v3117 = vld [vmem:[#allocation2 + $0x258] sm:$0xff]
        %v3118 = vld [vmem:[#allocation2 + $0x260] sm:$0xff]
        %v3119 = vld [vmem:[#allocation2 + $0x268] sm:$0xff]
        %v3120 = vld [vmem:[#allocation2 + $0x270] sm:$0xff]
        %v3121 = vld [vmem:[#allocation2 + $0x278] sm:$0xff]
        %v3122 = vld [vmem:[%s439] sm:$0xff]
        %v3123 = vld [vmem:[%s439 + $0x8] sm:$0xff]
        %v3124 = vld [vmem:[%s439 + $0x10] sm:$0xf]
        %v3125 = vld [vmem:[%s439 + $0x14] sm:$0xff]
        %v3126 = vld [vmem:[%s439 + $0x1c] sm:$0xff]
        %v3127 = vld [vmem:[%s439 + $0x24] sm:$0xf]
        %v3128 = vld [vmem:[%s439 + $0x28] sm:$0xff]
        %v3129 = vld [vmem:[%s439 + $0x30] sm:$0xff]
        %v3130 = vld [vmem:[%s439 + $0x38] sm:$0xf]
        %v3131 = vld [vmem:[%s439 + $0x3c] sm:$0xff]
        %v3132 = vld [vmem:[%s439 + $0x44] sm:$0xff]
        %v3133 = vld [vmem:[%s439 + $0x4c] sm:$0xf]
        %v3134 = vld [vmem:[%s439 + $0x50] sm:$0xff]
        %v3135 = vld [vmem:[%s439 + $0x58] sm:$0xff]
        %v3136 = vld [vmem:[%s439 + $0x60] sm:$0xf]
        %v3137 = vld [vmem:[%s439 + $0x64] sm:$0xff]
        %v3138 = vld [vmem:[%s439 + $0x6c] sm:$0xff]
        %v3139 = vld [vmem:[%s439 + $0x74] sm:$0xf]
        %v3140 = vld [vmem:[%s439 + $0x78] sm:$0xff]
        %v3141 = vld [vmem:[%s439 + $0x80] sm:$0xff]
        %v3142 = vld [vmem:[%s439 + $0x88] sm:$0xf]
        %v3143 = vld [vmem:[%s439 + $0x8c] sm:$0xff]
        %v3144 = vld [vmem:[%s439 + $0x94] sm:$0xff]
        %v3145 = vld [vmem:[%s439 + $0x9c] sm:$0xf]
        %v3146 = vld [vmem:[%s439 + $0xa0] sm:$0xff]
        %v3147 = vld [vmem:[%s439 + $0xa8] sm:$0xff]
        %v3148 = vld [vmem:[%s439 + $0xb0] sm:$0xf]
        %v3149 = vld [vmem:[%s439 + $0xb4] sm:$0xff]
        %v3150 = vld [vmem:[%s439 + $0xbc] sm:$0xff]
        %v3151 = vld [vmem:[%s439 + $0xc4] sm:$0xf]
        %v3152 = vld [vmem:[%s439 + $0xc8] sm:$0xff]
        %v3153 = vld [vmem:[%s439 + $0xd0] sm:$0xff]
        %v3154 = vld [vmem:[%s439 + $0xd8] sm:$0xf]
        %v3155 = vld [vmem:[%s439 + $0xdc] sm:$0xff]
        %v3156 = vld [vmem:[%s439 + $0xe4] sm:$0xff]
        %v3157 = vld [vmem:[%s439 + $0xec] sm:$0xf]
        %v3158 = vld [vmem:[%s439 + $0xf0] sm:$0xff]
        %v3159 = vld [vmem:[%s439 + $0xf8] sm:$0xff]
        %v3160 = vld [vmem:[%s439 + $0x100] sm:$0xf]
        %v3161 = vld [vmem:[%s439 + $0x104] sm:$0xff]
        %v3162 = vld [vmem:[%s439 + $0x10c] sm:$0xff]
        %v3163 = vld [vmem:[%s439 + $0x114] sm:$0xf]
        %v3164 = vld [vmem:[%s439 + $0x118] sm:$0xff]
        %v3165 = vld [vmem:[%s439 + $0x120] sm:$0xff]
        %v3166 = vld [vmem:[%s439 + $0x128] sm:$0xf]
        %v3167 = vld [vmem:[%s439 + $0x12c] sm:$0xff]
        %v3168 = vld [vmem:[%s439 + $0x134] sm:$0xff]
        %v3169 = vld [vmem:[%s439 + $0x13c] sm:$0xf]
        %v3170 = vld [vmem:[%s439 + $0x140] sm:$0xff]
        %v3171 = vld [vmem:[%s439 + $0x148] sm:$0xff]
        %v3172 = vld [vmem:[%s439 + $0x150] sm:$0xf]
        %v3173 = vld [vmem:[%s439 + $0x154] sm:$0xff]
        %v3174 = vld [vmem:[%s439 + $0x15c] sm:$0xff]
        %v3175 = vld [vmem:[%s439 + $0x164] sm:$0xf]
        %v3176 = vld [vmem:[%s439 + $0x168] sm:$0xff]
        %v3177 = vld [vmem:[%s439 + $0x170] sm:$0xff]
        %v3178 = vld [vmem:[%s439 + $0x178] sm:$0xf]
        %v3179 = vld [vmem:[%s439 + $0x17c] sm:$0xff]
        %v3180 = vld [vmem:[%s439 + $0x184] sm:$0xff]
        %v3181 = vld [vmem:[%s439 + $0x18c] sm:$0xf]
        %v3182 = vld [vmem:[%s439 + $0x190] sm:$0xff]
        %v3183 = vld [vmem:[%s439 + $0x198] sm:$0xff]
        %v3184 = vld [vmem:[%s439 + $0x1a0] sm:$0xf]
        %v3185 = vld [vmem:[%s439 + $0x1a4] sm:$0xff]
        %v3186 = vld [vmem:[%s439 + $0x1ac] sm:$0xff]
        %v3187 = vld [vmem:[%s439 + $0x1b4] sm:$0xf]
        %v3188 = vld [vmem:[%s439 + $0x1b8] sm:$0xff]
        %v3189 = vld [vmem:[%s439 + $0x1c0] sm:$0xff]
        %v3190 = vld [vmem:[%s439 + $0x1c8] sm:$0xf]
        %v3191 = vld [vmem:[%s439 + $0x1cc] sm:$0xff]
        %v3192 = vld [vmem:[%s439 + $0x1d4] sm:$0xff]
        %v3193 = vld [vmem:[%s439 + $0x1dc] sm:$0xf]
        %v3194 = vld [vmem:[%s439 + $0x1e0] sm:$0xff]
        %v3195 = vld [vmem:[%s439 + $0x1e8] sm:$0xff]
        %v3196 = vld [vmem:[%s439 + $0x1f0] sm:$0xf]
        %v3197 = vld [vmem:[%s439 + $0x1f4] sm:$0xff]
        %v3198 = vld [vmem:[%s439 + $0x1fc] sm:$0xff]
        %v3199 = vld [vmem:[%s439 + $0x204] sm:$0xf]
        %v3200 = vld [vmem:[%s439 + $0x208] sm:$0xff]
        %v3201 = vld [vmem:[%s439 + $0x210] sm:$0xff]
        %v3202 = vld [vmem:[%s439 + $0x218] sm:$0xf]
        %v3203 = vld [vmem:[%s439 + $0x21c] sm:$0xff]
        %v3204 = vld [vmem:[%s439 + $0x224] sm:$0xff]
        %v3205 = vld [vmem:[%s439 + $0x22c] sm:$0xf]
        %v3206 = vld [vmem:[%s439 + $0x230] sm:$0xff]
        %v3207 = vld [vmem:[%s439 + $0x238] sm:$0xff]
        %v3208 = vld [vmem:[%s439 + $0x240] sm:$0xf]
        %v3209 = vld [vmem:[%s439 + $0x244] sm:$0xff]
        %v3210 = vld [vmem:[%s439 + $0x24c] sm:$0xff]
        %v3211 = vld [vmem:[%s439 + $0x254] sm:$0xf]
        %v3212 = vld [vmem:[%s439 + $0x258] sm:$0xff]
        %v3213 = vld [vmem:[%s439 + $0x260] sm:$0xff]
        %v3214 = vld [vmem:[%s439 + $0x268] sm:$0xf]
        %v3215 = vld [vmem:[%s439 + $0x26c] sm:$0xff]
        %v3216 = vld [vmem:[%s439 + $0x274] sm:$0xff]
        %v3217 = vld [vmem:[%s439 + $0x27c] sm:$0xf]
        %v3218 = vld [vmem:[%s439 + $0x280] sm:$0xff]
        %v3219 = vld [vmem:[%s439 + $0x288] sm:$0xff]
        %v3220 = vld [vmem:[%s439 + $0x290] sm:$0xf]
        %v3221 = vld [vmem:[%s439 + $0x294] sm:$0xff]
        %v3222 = vld [vmem:[%s439 + $0x29c] sm:$0xff]
        %v3223 = vld [vmem:[%s439 + $0x2a4] sm:$0xf]
        %v3224 = vld [vmem:[%s439 + $0x2a8] sm:$0xff]
        %v3225 = vld [vmem:[%s439 + $0x2b0] sm:$0xff]
        %v3226 = vld [vmem:[%s439 + $0x2b8] sm:$0xf]
        %v3227 = vld [vmem:[%s439 + $0x2bc] sm:$0xff]
        %v3228 = vld [vmem:[%s439 + $0x2c4] sm:$0xff]
        %v3229 = vld [vmem:[%s439 + $0x2cc] sm:$0xf]
        %v3230 = vld [vmem:[%s439 + $0x2d0] sm:$0xff]
        %v3231 = vld [vmem:[%s439 + $0x2d8] sm:$0xff]
        %v3232 = vld [vmem:[%s439 + $0x2e0] sm:$0xf]
        %v3233 = vld [vmem:[%s439 + $0x2e4] sm:$0xff]
        %v3234 = vld [vmem:[%s439 + $0x2ec] sm:$0xff]
        %v3235 = vld [vmem:[%s439 + $0x2f4] sm:$0xf]
        %v3236 = vld [vmem:[%s439 + $0x2f8] sm:$0xff]
        %v3237 = vld [vmem:[%s439 + $0x300] sm:$0xff]
        %v3238 = vld [vmem:[%s439 + $0x308] sm:$0xf]
        %v3239 = vld [vmem:[%s439 + $0x30c] sm:$0xff]
        %v3240 = vld [vmem:[%s439 + $0x314] sm:$0xff]
        %v3241 = vld [vmem:[%s439 + $0x31c] sm:$0xf]
        %v3242 = vld [vmem:[%s439 + $0x320] sm:$0xff]
        %v3243 = vld [vmem:[%s439 + $0x328] sm:$0xff]
        %v3244 = vld [vmem:[%s439 + $0x330] sm:$0xf]
        %v3245 = vld [vmem:[%s439 + $0x334] sm:$0xff]
        %v3246 = vld [vmem:[%s439 + $0x33c] sm:$0xff]
        %v3247 = vld [vmem:[%s439 + $0x344] sm:$0xf]
        %v3248 = vld [vmem:[%s439 + $0x348] sm:$0xff]
        %v3249 = vld [vmem:[%s439 + $0x350] sm:$0xff]
        %v3250 = vld [vmem:[%s439 + $0x358] sm:$0xf]
        %v3251 = vld [vmem:[%s439 + $0x35c] sm:$0xff]
        %v3252 = vld [vmem:[%s439 + $0x364] sm:$0xff]
        %v3253 = vld [vmem:[%s439 + $0x36c] sm:$0xf]
        %v3254 = vld [vmem:[%s439 + $0x370] sm:$0xff]
        %v3255 = vld [vmem:[%s439 + $0x378] sm:$0xff]
        %v3256 = vld [vmem:[%s439 + $0x380] sm:$0xf]
        %v3257 = vld [vmem:[%s439 + $0x384] sm:$0xff]
        %v3258 = vld [vmem:[%s439 + $0x38c] sm:$0xff]
        %v3259 = vld [vmem:[%s439 + $0x394] sm:$0xf]
        %v3260 = vld [vmem:[%s439 + $0x398] sm:$0xff]
        %v3261 = vld [vmem:[%s439 + $0x3a0] sm:$0xff]
        %v3262 = vld [vmem:[%s439 + $0x3a8] sm:$0xf]
        %v3263 = vld [vmem:[%s439 + $0x3ac] sm:$0xff]
        %v3264 = vld [vmem:[%s439 + $0x3b4] sm:$0xff]
        %v3265 = vld [vmem:[%s439 + $0x3bc] sm:$0xf]
        %v3266 = vld [vmem:[%s439 + $0x3c0] sm:$0xff]
        %v3267 = vld [vmem:[%s439 + $0x3c8] sm:$0xff]
        %v3268 = vld [vmem:[%s439 + $0x3d0] sm:$0xf]
        %v3269 = vld [vmem:[%s439 + $0x3d4] sm:$0xff]
        %v3270 = vld [vmem:[%s439 + $0x3dc] sm:$0xff]
        %v3271 = vld [vmem:[%s439 + $0x3e4] sm:$0xf]
        %v3272 = vld [vmem:[%s439 + $0x3e8] sm:$0xff]
        %v3273 = vld [vmem:[%s439 + $0x3f0] sm:$0xff]
        %v3274 = vld [vmem:[%s439 + $0x3f8] sm:$0xf]
        %v3275 = vld [vmem:[%s439 + $0x3fc] sm:$0xff]
        %v3276 = vld [vmem:[%s439 + $0x404] sm:$0xff]
        %v3277 = vld [vmem:[%s439 + $0x40c] sm:$0xf]
        %v3278 = vld [vmem:[%s439 + $0x410] sm:$0xff]
        %v3279 = vld [vmem:[%s439 + $0x418] sm:$0xff]
        %v3280 = vld [vmem:[%s439 + $0x420] sm:$0xf]
        %v3281 = vld [vmem:[%s439 + $0x424] sm:$0xff]
        %v3282 = vld [vmem:[%s439 + $0x42c] sm:$0xff]
        %v3283 = vld [vmem:[%s439 + $0x434] sm:$0xf]
        %v3284 = vld [vmem:[%s439 + $0x438] sm:$0xff]
        %v3285 = vld [vmem:[%s439 + $0x440] sm:$0xff]
        %v3286 = vld [vmem:[%s439 + $0x448] sm:$0xf]
        %v3287 = vld [vmem:[%s439 + $0x44c] sm:$0xff]
        %v3288 = vld [vmem:[%s439 + $0x454] sm:$0xff]
        %v3289 = vld [vmem:[%s439 + $0x45c] sm:$0xf]
        %v3290 = vld [vmem:[%s439 + $0x460] sm:$0xff]
        %v3291 = vld [vmem:[%s439 + $0x468] sm:$0xff]
        %v3292 = vld [vmem:[%s439 + $0x470] sm:$0xf]
        %v3293 = vld [vmem:[%s439 + $0x474] sm:$0xff]
        %v3294 = vld [vmem:[%s439 + $0x47c] sm:$0xff]
        %v3295 = vld [vmem:[%s439 + $0x484] sm:$0xf]
        %v3296 = vld [vmem:[%s439 + $0x488] sm:$0xff]
        %v3297 = vld [vmem:[%s439 + $0x490] sm:$0xff]
        %v3298 = vld [vmem:[%s439 + $0x498] sm:$0xf]
        %v3299 = vld [vmem:[%s439 + $0x49c] sm:$0xff]
        %v3300 = vld [vmem:[%s439 + $0x4a4] sm:$0xff]
        %v3301 = vld [vmem:[%s439 + $0x4ac] sm:$0xf]
        %v3302 = vld [vmem:[%s439 + $0x4b0] sm:$0xff]
        %v3303 = vld [vmem:[%s439 + $0x4b8] sm:$0xff]
        %v3304 = vld [vmem:[%s439 + $0x4c0] sm:$0xf]
        %v3305 = vld [vmem:[%s439 + $0x4c4] sm:$0xff]
        %v3306 = vld [vmem:[%s439 + $0x4cc] sm:$0xff]
        %v3307 = vld [vmem:[%s439 + $0x4d4] sm:$0xf]
        %v3308 = vld [vmem:[%s439 + $0x4d8] sm:$0xff]
        %v3309 = vld [vmem:[%s439 + $0x4e0] sm:$0xff]
        %v3310 = vld [vmem:[%s439 + $0x4e8] sm:$0xf]
        %v3311 = vld [vmem:[%s439 + $0x4ec] sm:$0xff]
        %v3312 = vld [vmem:[%s439 + $0x4f4] sm:$0xff]
        %v3313 = vld [vmem:[%s439 + $0x4fc] sm:$0xf]
        %v3314 = vld [vmem:[%s439 + $0x500] sm:$0xff]
        %v3315 = vld [vmem:[%s439 + $0x508] sm:$0xff]
        %v3316 = vld [vmem:[%s439 + $0x510] sm:$0xf]
        %v3317 = vld [vmem:[%s439 + $0x514] sm:$0xff]
        %v3318 = vld [vmem:[%s439 + $0x51c] sm:$0xff]
        %v3319 = vld [vmem:[%s439 + $0x524] sm:$0xf]
        %v3320 = vld [vmem:[%s439 + $0x528] sm:$0xff]
        %v3321 = vld [vmem:[%s439 + $0x530] sm:$0xff]
        %v3322 = vld [vmem:[%s439 + $0x538] sm:$0xf]
        %v3323 = vld [vmem:[%s439 + $0x53c] sm:$0xff]
        %v3324 = vld [vmem:[%s439 + $0x544] sm:$0xff]
        %v3325 = vld [vmem:[%s439 + $0x54c] sm:$0xf]
        %v3326 = vld [vmem:[%s439 + $0x550] sm:$0xff]
        %v3327 = vld [vmem:[%s439 + $0x558] sm:$0xff]
        %v3328 = vld [vmem:[%s439 + $0x560] sm:$0xf]
        %v3329 = vld [vmem:[%s439 + $0x564] sm:$0xff]
        %v3330 = vld [vmem:[%s439 + $0x56c] sm:$0xff]
        %v3331 = vld [vmem:[%s439 + $0x574] sm:$0xf]
        %v3332 = vld [vmem:[%s439 + $0x578] sm:$0xff]
        %v3333 = vld [vmem:[%s439 + $0x580] sm:$0xff]
        %v3334 = vld [vmem:[%s439 + $0x588] sm:$0xf]
        %v3335 = vld [vmem:[%s439 + $0x58c] sm:$0xff]
        %v3336 = vld [vmem:[%s439 + $0x594] sm:$0xff]
        %v3337 = vld [vmem:[%s439 + $0x59c] sm:$0xf]
        %v3338 = vld [vmem:[%s439 + $0x5a0] sm:$0xff]
        %v3339 = vld [vmem:[%s439 + $0x5a8] sm:$0xff]
        %v3340 = vld [vmem:[%s439 + $0x5b0] sm:$0xf]
        %v3341 = vld [vmem:[%s439 + $0x5b4] sm:$0xff]
        %v3342 = vld [vmem:[%s439 + $0x5bc] sm:$0xff]
        %v3343 = vld [vmem:[%s439 + $0x5c4] sm:$0xf]
        %v3344 = vld [vmem:[%s439 + $0x5c8] sm:$0xff]
        %v3345 = vld [vmem:[%s439 + $0x5d0] sm:$0xff]
        %v3346 = vld [vmem:[%s439 + $0x5d8] sm:$0xf]
        %v3347 = vld [vmem:[%s439 + $0x5dc] sm:$0xff]
        %v3348 = vld [vmem:[%s439 + $0x5e4] sm:$0xff]
        %v3349 = vld [vmem:[%s439 + $0x5ec] sm:$0xf]
        %v3350 = vld [vmem:[%s439 + $0x5f0] sm:$0xff]
        %v3351 = vld [vmem:[%s439 + $0x5f8] sm:$0xff]
        %v3352 = vld [vmem:[%s439 + $0x600] sm:$0xf]
        %v3353 = vld [vmem:[%s439 + $0x604] sm:$0xff]
        %v3354 = vld [vmem:[%s439 + $0x60c] sm:$0xff]
        %v3355 = vld [vmem:[%s439 + $0x614] sm:$0xf]
        %v3356 = vld [vmem:[%s439 + $0x618] sm:$0xff]
        %v3357 = vld [vmem:[%s439 + $0x620] sm:$0xff]
        %v3358 = vld [vmem:[%s439 + $0x628] sm:$0xf]
        %v3359 = vld [vmem:[%s439 + $0x62c] sm:$0xff]
        %v3360 = vld [vmem:[%s439 + $0x634] sm:$0xff]
        %v3361 = vld [vmem:[%s439 + $0x63c] sm:$0xf]
        %v3362 = vld [vmem:[%s439 + $0x640] sm:$0xff]
        %v3363 = vld [vmem:[%s439 + $0x648] sm:$0xff]
        %v3364 = vld [vmem:[%s439 + $0x650] sm:$0xf]
        %v3365 = vld [vmem:[%s439 + $0x654] sm:$0xff]
        %v3366 = vld [vmem:[%s439 + $0x65c] sm:$0xff]
        %v3367 = vld [vmem:[%s439 + $0x664] sm:$0xf]
        %v3368 = vld [vmem:[%s439 + $0x668] sm:$0xff]
        %v3369 = vld [vmem:[%s439 + $0x670] sm:$0xff]
        %v3370 = vld [vmem:[%s439 + $0x678] sm:$0xf]
        %v3371 = vld [vmem:[%s439 + $0x67c] sm:$0xff]
        %v3372 = vld [vmem:[%s439 + $0x684] sm:$0xff]
        %v3373 = vld [vmem:[%s439 + $0x68c] sm:$0xf]
        %v3374 = vld [vmem:[%s439 + $0x690] sm:$0xff]
        %v3375 = vld [vmem:[%s439 + $0x698] sm:$0xff]
        %v3376 = vld [vmem:[%s439 + $0x6a0] sm:$0xf]
        %v3377 = vld [vmem:[%s439 + $0x6a4] sm:$0xff]
        %v3378 = vld [vmem:[%s439 + $0x6ac] sm:$0xff]
        %v3379 = vld [vmem:[%s439 + $0x6b4] sm:$0xf]
        %v3380 = vld [vmem:[%s439 + $0x6b8] sm:$0xff]
        %v3381 = vld [vmem:[%s439 + $0x6c0] sm:$0xff]
        %v3382 = vld [vmem:[%s439 + $0x6c8] sm:$0xf]
        %v3383 = vld [vmem:[%s439 + $0x6cc] sm:$0xff]
        %v3384 = vld [vmem:[%s439 + $0x6d4] sm:$0xff]
        %v3385 = vld [vmem:[%s439 + $0x6dc] sm:$0xf]
        %v3386 = vld [vmem:[%s439 + $0x6e0] sm:$0xff]
        %v3387 = vld [vmem:[%s439 + $0x6e8] sm:$0xff]
        %v3388 = vld [vmem:[%s439 + $0x6f0] sm:$0xf]
        %v3389 = vld [vmem:[%s439 + $0x6f4] sm:$0xff]
        %v3390 = vld [vmem:[%s439 + $0x6fc] sm:$0xff]
        %v3391 = vld [vmem:[%s439 + $0x704] sm:$0xf]
        %v3392 = vld [vmem:[%s439 + $0x708] sm:$0xff]
        %v3393 = vld [vmem:[%s439 + $0x710] sm:$0xff]
        %v3394 = vld [vmem:[%s439 + $0x718] sm:$0xf]
        %v3395 = vld [vmem:[%s439 + $0x71c] sm:$0xff]
        %v3396 = vld [vmem:[%s439 + $0x724] sm:$0xff]
        %v3397 = vld [vmem:[%s439 + $0x72c] sm:$0xf]
        %v3398 = vld [vmem:[%s439 + $0x730] sm:$0xff]
        %v3399 = vld [vmem:[%s439 + $0x738] sm:$0xff]
        %v3400 = vld [vmem:[%s439 + $0x740] sm:$0xf]
        %v3401 = vld [vmem:[%s439 + $0x744] sm:$0xff]
        %v3402 = vld [vmem:[%s439 + $0x74c] sm:$0xff]
        %v3403 = vld [vmem:[%s439 + $0x754] sm:$0xf]
        %v3404 = vld [vmem:[%s439 + $0x758] sm:$0xff]
        %v3405 = vld [vmem:[%s439 + $0x760] sm:$0xff]
        %v3406 = vld [vmem:[%s439 + $0x768] sm:$0xf]
        %v3407 = vld [vmem:[%s439 + $0x76c] sm:$0xff]
        %v3408 = vld [vmem:[%s439 + $0x774] sm:$0xff]
        %v3409 = vld [vmem:[%s439 + $0x77c] sm:$0xf]
        %v3410 = vld [vmem:[%s439 + $0x780] sm:$0xff]
        %v3411 = vld [vmem:[%s439 + $0x788] sm:$0xff]
        %v3412 = vld [vmem:[%s439 + $0x790] sm:$0xf]
        %v3413 = vld [vmem:[%s439 + $0x794] sm:$0xff]
        %v3414 = vld [vmem:[%s439 + $0x79c] sm:$0xff]
        %v3415 = vld [vmem:[%s439 + $0x7a4] sm:$0xf]
        %v3416 = vld [vmem:[%s439 + $0x7a8] sm:$0xff]
        %v3417 = vld [vmem:[%s439 + $0x7b0] sm:$0xff]
        %v3418 = vld [vmem:[%s439 + $0x7b8] sm:$0xf]
        %v3419 = vld [vmem:[%s439 + $0x7bc] sm:$0xff]
        %v3420 = vld [vmem:[%s439 + $0x7c4] sm:$0xff]
        %v3421 = vld [vmem:[%s439 + $0x7cc] sm:$0xf]
        %v3422 = vld [vmem:[%s439 + $0x7d0] sm:$0xff]
        %v3423 = vld [vmem:[%s439 + $0x7d8] sm:$0xff]
        %v3424 = vld [vmem:[%s439 + $0x7e0] sm:$0xf]
        %v3425 = vld [vmem:[%s439 + $0x7e4] sm:$0xff]
        %v3426 = vld [vmem:[%s439 + $0x7ec] sm:$0xff]
        %v3427 = vld [vmem:[%s439 + $0x7f4] sm:$0xf]
        %v3428 = vld [vmem:[%s439 + $0x7f8] sm:$0xff]
        %v3429 = vld [vmem:[%s439 + $0x800] sm:$0xff]
        %v3430 = vld [vmem:[%s439 + $0x808] sm:$0xf]
        %v3431 = vld [vmem:[%s439 + $0x80c] sm:$0xff]
        %v3432 = vld [vmem:[%s439 + $0x814] sm:$0xff]
        %v3433 = vld [vmem:[%s439 + $0x81c] sm:$0xf]
        %v3434 = vld [vmem:[%s439 + $0x820] sm:$0xff]
        %v3435 = vld [vmem:[%s439 + $0x828] sm:$0xff]
        %v3436 = vld [vmem:[%s439 + $0x830] sm:$0xf]
        %v3437 = vld [vmem:[%s439 + $0x834] sm:$0xff]
        %v3438 = vld [vmem:[%s439 + $0x83c] sm:$0xff]
        %v3439 = vld [vmem:[%s439 + $0x844] sm:$0xf]
        %v3440 = vld [vmem:[%s439 + $0x848] sm:$0xff]
        %v3441 = vld [vmem:[%s439 + $0x850] sm:$0xff]
        %v3442 = vld [vmem:[%s439 + $0x858] sm:$0xf]
        %v3443 = vld [vmem:[%s439 + $0x85c] sm:$0xff]
        %v3444 = vld [vmem:[%s439 + $0x864] sm:$0xff]
        %v3445 = vld [vmem:[%s439 + $0x86c] sm:$0xf]
        %v3446 = vld [vmem:[%s439 + $0x870] sm:$0xff]
        %v3447 = vld [vmem:[%s439 + $0x878] sm:$0xff]
        %v3448 = vld [vmem:[%s439 + $0x880] sm:$0xf]
        %v3449 = vld [vmem:[%s439 + $0x884] sm:$0xff]
        %v3450 = vld [vmem:[%s439 + $0x88c] sm:$0xff]
        %v3451 = vld [vmem:[%s439 + $0x894] sm:$0xf]
        %v3452 = vld [vmem:[%s439 + $0x898] sm:$0xff]
        %v3453 = vld [vmem:[%s439 + $0x8a0] sm:$0xff]
        %v3454 = vld [vmem:[%s439 + $0x8a8] sm:$0xf]
        %v3455 = vld [vmem:[%s439 + $0x8ac] sm:$0xff]
        %v3456 = vld [vmem:[%s439 + $0x8b4] sm:$0xff]
        %v3457 = vld [vmem:[%s439 + $0x8bc] sm:$0xf]
        %v3458 = vld [vmem:[%s439 + $0x8c0] sm:$0xff]
        %v3459 = vld [vmem:[%s439 + $0x8c8] sm:$0xff]
        %v3460 = vld [vmem:[%s439 + $0x8d0] sm:$0xf]
        %v3461 = vld [vmem:[%s439 + $0x8d4] sm:$0xff]
        %v3462 = vld [vmem:[%s439 + $0x8dc] sm:$0xff]
        %v3463 = vld [vmem:[%s439 + $0x8e4] sm:$0xf]
        %v3464 = vld [vmem:[%s439 + $0x8e8] sm:$0xff]
        %v3465 = vld [vmem:[%s439 + $0x8f0] sm:$0xff]
        %v3466 = vld [vmem:[%s439 + $0x8f8] sm:$0xf]
        %v3467 = vld [vmem:[%s439 + $0x8fc] sm:$0xff]
        %v3468 = vld [vmem:[%s439 + $0x904] sm:$0xff]
        %v3469 = vld [vmem:[%s439 + $0x90c] sm:$0xf]
        %v3470 = vld [vmem:[%s439 + $0x910] sm:$0xff]
        %v3471 = vld [vmem:[%s439 + $0x918] sm:$0xff]
        %v3472 = vld [vmem:[%s439 + $0x920] sm:$0xf]
        %v3473 = vld [vmem:[%s439 + $0x924] sm:$0xff]
        %v3474 = vld [vmem:[%s439 + $0x92c] sm:$0xff]
        %v3475 = vld [vmem:[%s439 + $0x934] sm:$0xf]
        %v3476 = vld [vmem:[%s439 + $0x938] sm:$0xff]
        %v3477 = vld [vmem:[%s439 + $0x940] sm:$0xff]
        %v3478 = vld [vmem:[%s439 + $0x948] sm:$0xf]
        %v3479 = vld [vmem:[%s439 + $0x94c] sm:$0xff]
        %v3480 = vld [vmem:[%s439 + $0x954] sm:$0xff]
        %v3481 = vld [vmem:[%s439 + $0x95c] sm:$0xf]
        %v3482 = vld [vmem:[%s439 + $0x960] sm:$0xff]
        %v3483 = vld [vmem:[%s439 + $0x968] sm:$0xff]
        %v3484 = vld [vmem:[%s439 + $0x970] sm:$0xf]
        %v3485 = vld [vmem:[%s439 + $0x974] sm:$0xff]
        %v3486 = vld [vmem:[%s439 + $0x97c] sm:$0xff]
        %v3487 = vld [vmem:[%s439 + $0x984] sm:$0xf]
        %v3488 = vld [vmem:[%s439 + $0x988] sm:$0xff]
        %v3489 = vld [vmem:[%s439 + $0x990] sm:$0xff]
        %v3490 = vld [vmem:[%s439 + $0x998] sm:$0xf]
        %v3491 = vld [vmem:[%s439 + $0x99c] sm:$0xff]
        %v3492 = vld [vmem:[%s439 + $0x9a4] sm:$0xff]
        %v3493 = vld [vmem:[%s439 + $0x9ac] sm:$0xf]
        %v3494 = vld [vmem:[%s439 + $0x9b0] sm:$0xff]
        %v3495 = vld [vmem:[%s439 + $0x9b8] sm:$0xff]
        %v3496 = vld [vmem:[%s439 + $0x9c0] sm:$0xf]
        %v3497 = vld [vmem:[%s439 + $0x9c4] sm:$0xff]
        %v3498 = vld [vmem:[%s439 + $0x9cc] sm:$0xff]
        %v3499 = vld [vmem:[%s439 + $0x9d4] sm:$0xf]
        %v3500 = vld [vmem:[%s439 + $0x9d8] sm:$0xff]
        %v3501 = vld [vmem:[%s439 + $0x9e0] sm:$0xff]
        %v3502 = vld [vmem:[%s439 + $0x9e8] sm:$0xf]
        %v3503 = vld [vmem:[%s439 + $0x9ec] sm:$0xff]
        %v3504 = vld [vmem:[%s439 + $0x9f4] sm:$0xff]
        %v3505 = vld [vmem:[%s439 + $0x9fc] sm:$0xf]
        %v3506 = vld [vmem:[%s439 + $0xa00] sm:$0xff]
        %v3507 = vld [vmem:[%s439 + $0xa08] sm:$0xff]
        %v3508 = vld [vmem:[%s439 + $0xa10] sm:$0xf]
        %v3509 = vld [vmem:[%s439 + $0xa14] sm:$0xff]
        %v3510 = vld [vmem:[%s439 + $0xa1c] sm:$0xff]
        %v3511 = vld [vmem:[%s439 + $0xa24] sm:$0xf]
        %v3512 = vld [vmem:[%s439 + $0xa28] sm:$0xff]
        %v3513 = vld [vmem:[%s439 + $0xa30] sm:$0xff]
        %v3514 = vld [vmem:[%s439 + $0xa38] sm:$0xf]
        %v3515 = vld [vmem:[%s439 + $0xa3c] sm:$0xff]
        %v3516 = vld [vmem:[%s439 + $0xa44] sm:$0xff]
        %v3517 = vld [vmem:[%s439 + $0xa4c] sm:$0xf]
        %v3518 = vld [vmem:[%s439 + $0xa50] sm:$0xff]
        %v3519 = vld [vmem:[%s439 + $0xa58] sm:$0xff]
        %v3520 = vld [vmem:[%s439 + $0xa60] sm:$0xf]
        %v3521 = vld [vmem:[%s439 + $0xa64] sm:$0xff]
        %v3522 = vld [vmem:[%s439 + $0xa6c] sm:$0xff]
        %v3523 = vld [vmem:[%s439 + $0xa74] sm:$0xf]
        %v3524 = vld [vmem:[%s439 + $0xa78] sm:$0xff]
        %v3525 = vld [vmem:[%s439 + $0xa80] sm:$0xff]
        %v3526 = vld [vmem:[%s439 + $0xa88] sm:$0xf]
        %v3527 = vld [vmem:[%s439 + $0xa8c] sm:$0xff]
        %v3528 = vld [vmem:[%s439 + $0xa94] sm:$0xff]
        %v3529 = vld [vmem:[%s439 + $0xa9c] sm:$0xf]
        %v3530 = vld [vmem:[%s439 + $0xaa0] sm:$0xff]
        %v3531 = vld [vmem:[%s439 + $0xaa8] sm:$0xff]
        %v3532 = vld [vmem:[%s439 + $0xab0] sm:$0xf]
        %v3533 = vld [vmem:[%s439 + $0xab4] sm:$0xff]
        %v3534 = vld [vmem:[%s439 + $0xabc] sm:$0xff]
        %v3535 = vld [vmem:[%s439 + $0xac4] sm:$0xf]
        %v3536 = vld [vmem:[%s439 + $0xac8] sm:$0xff]
        %v3537 = vld [vmem:[%s439 + $0xad0] sm:$0xff]
        %v3538 = vld [vmem:[%s439 + $0xad8] sm:$0xf]
        %v3539 = vld [vmem:[%s439 + $0xadc] sm:$0xff]
        %v3540 = vld [vmem:[%s439 + $0xae4] sm:$0xff]
        %v3541 = vld [vmem:[%s439 + $0xaec] sm:$0xf]
        %v3542 = vld [vmem:[%s439 + $0xaf0] sm:$0xff]
        %v3543 = vld [vmem:[%s439 + $0xaf8] sm:$0xff]
        %v3544 = vld [vmem:[%s439 + $0xb00] sm:$0xf]
        %v3545 = vld [vmem:[%s439 + $0xb04] sm:$0xff]
        %v3546 = vld [vmem:[%s439 + $0xb0c] sm:$0xff]
        %v3547 = vld [vmem:[%s439 + $0xb14] sm:$0xf]
        %v3548 = vld [vmem:[%s439 + $0xb18] sm:$0xff]
        %v3549 = vld [vmem:[%s439 + $0xb20] sm:$0xff]
        %v3550 = vld [vmem:[%s439 + $0xb28] sm:$0xf]
        %v3551 = vld [vmem:[%s439 + $0xb2c] sm:$0xff]
        %v3552 = vld [vmem:[%s439 + $0xb34] sm:$0xff]
        %v3553 = vld [vmem:[%s439 + $0xb3c] sm:$0xf]
        %v3554 = vld [vmem:[%s439 + $0xb40] sm:$0xff]
        %v3555 = vld [vmem:[%s439 + $0xb48] sm:$0xff]
        %v3556 = vld [vmem:[%s439 + $0xb50] sm:$0xf]
        %v3557 = vld [vmem:[%s439 + $0xb54] sm:$0xff]
        %v3558 = vld [vmem:[%s439 + $0xb5c] sm:$0xff]
        %v3559 = vld [vmem:[%s439 + $0xb64] sm:$0xf]
        %v3560 = vld [vmem:[%s439 + $0xb68] sm:$0xff]
        %v3561 = vld [vmem:[%s439 + $0xb70] sm:$0xff]
        %v3562 = vld [vmem:[%s439 + $0xb78] sm:$0xf]
        %v3563 = vld [vmem:[%s439 + $0xb7c] sm:$0xff]
        %v3564 = vld [vmem:[%s439 + $0xb84] sm:$0xff]
        %v3565 = vld [vmem:[%s439 + $0xb8c] sm:$0xf]
        %v3566 = vld [vmem:[%s439 + $0xb90] sm:$0xff]
        %v3567 = vld [vmem:[%s439 + $0xb98] sm:$0xff]
        %v3568 = vld [vmem:[%s439 + $0xba0] sm:$0xf]
        %v3569 = vld [vmem:[%s439 + $0xba4] sm:$0xff]
        %v3570 = vld [vmem:[%s439 + $0xbac] sm:$0xff]
        %v3571 = vld [vmem:[%s439 + $0xbb4] sm:$0xf]
        %v3572 = vld [vmem:[%s439 + $0xbb8] sm:$0xff]
        %v3573 = vld [vmem:[%s439 + $0xbc0] sm:$0xff]
        %v3574 = vld [vmem:[%s439 + $0xbc8] sm:$0xf]
        %v3575 = vld [vmem:[%s439 + $0xbcc] sm:$0xff]
        %v3576 = vld [vmem:[%s439 + $0xbd4] sm:$0xff]
        %v3577 = vld [vmem:[%s439 + $0xbdc] sm:$0xf]
        %v3578 = vld [vmem:[%s439 + $0xbe0] sm:$0xff]
        %v3579 = vld [vmem:[%s439 + $0xbe8] sm:$0xff]
        %v3580 = vld [vmem:[%s439 + $0xbf0] sm:$0xf]
        %v3581 = vld [vmem:[%s439 + $0xbf4] sm:$0xff]
        %v3582 = vld [vmem:[%s439 + $0xbfc] sm:$0xff]
        %v3583 = vld [vmem:[%s439 + $0xc04] sm:$0xf]
        %v3584 = vld [vmem:[%s439 + $0xc08] sm:$0xff]
        %v3585 = vld [vmem:[%s439 + $0xc10] sm:$0xff]
        %v3586 = vld [vmem:[%s439 + $0xc18] sm:$0xf]
        %v3587 = vld [vmem:[%s439 + $0xc1c] sm:$0xff]
        %v3588 = vld [vmem:[%s439 + $0xc24] sm:$0xff]
        %v3589 = vld [vmem:[%s439 + $0xc2c] sm:$0xf]
        %v3590 = vld [vmem:[%s439 + $0xc30] sm:$0xff]
        %v3591 = vld [vmem:[%s439 + $0xc38] sm:$0xff]
        %v3592 = vld [vmem:[%s439 + $0xc40] sm:$0xf]
        %v3593 = vld [vmem:[%s439 + $0xc44] sm:$0xff]
        %v3594 = vld [vmem:[%s439 + $0xc4c] sm:$0xff]
        %v3595 = vld [vmem:[%s439 + $0xc54] sm:$0xf]
        %v3596 = vld [vmem:[%s439 + $0xc58] sm:$0xff]
        %v3597 = vld [vmem:[%s439 + $0xc60] sm:$0xff]
        %v3598 = vld [vmem:[%s439 + $0xc68] sm:$0xf]
        %v3599 = vld [vmem:[%s439 + $0xc6c] sm:$0xff]
        %v3600 = vld [vmem:[%s439 + $0xc74] sm:$0xff]
        %v3601 = vld [vmem:[%s439 + $0xc7c] sm:$0xf]
        %v3602 = vld [vmem:[%s448] ss:$4 sm:$0x1f]
        %v3604 = vlaneseq
        %v3605 = vshrl.u32 %v3604, 7
        %v3606 = vsub.s32 0, %v3605
        %v3607 = vrot.slane %v3602, %v3606
        %v3608 = vlaneseq
        %v3609 = vshrl.u32 %v3608, 7
        %v3610 = vsub.s32 1, %v3609
        %v3611 = vrot.slane %v3602, %v3610
        %v3612 = vlaneseq
        %v3613 = vshrl.u32 %v3612, 7
        %v3614 = vsub.s32 2, %v3613
        %v3615 = vrot.slane %v3602, %v3614
        %v3616 = vlaneseq
        %v3617 = vshrl.u32 %v3616, 7
        %v3618 = vsub.s32 3, %v3617
        %v3619 = vrot.slane %v3602, %v3618
        %v3620 = vlaneseq
        %v3621 = vshrl.u32 %v3620, 7
        %v3622 = vsub.s32 4, %v3621
        %v3623 = vrot.slane %v3602, %v3622
        %v4109 = vunpack.c.l.b16 %v3122
        %v4110 = vunpack.c.h.b16 %v3122
        %v4111 = vunpack.c.l.b16 %v3123
        %v4112 = vunpack.c.h.b16 %v3123
        %v4113 = vunpack.c.l.b16 %v3124
        %v4114 = vunpack.c.l.b16 %v3125
        %v4115 = vunpack.c.h.b16 %v3125
        %v4116 = vunpack.c.l.b16 %v3126
        %v4117 = vunpack.c.h.b16 %v3126
        %v4118 = vunpack.c.l.b16 %v3127
        %v4119 = vunpack.c.l.b16 %v3128
        %v4120 = vunpack.c.h.b16 %v3128
        %v4121 = vunpack.c.l.b16 %v3129
        %v4122 = vunpack.c.h.b16 %v3129
        %v4123 = vunpack.c.l.b16 %v3130
        %v4124 = vunpack.c.l.b16 %v3131
        %v4125 = vunpack.c.h.b16 %v3131
        %v4126 = vunpack.c.l.b16 %v3132
        %v4127 = vunpack.c.h.b16 %v3132
        %v4128 = vunpack.c.l.b16 %v3133
        %v4129 = vunpack.c.l.b16 %v3134
        %v4130 = vunpack.c.h.b16 %v3134
        %v4131 = vunpack.c.l.b16 %v3135
        %v4132 = vunpack.c.h.b16 %v3135
        %v4133 = vunpack.c.l.b16 %v3136
        %v4134 = vunpack.c.l.b16 %v3137
        %v4135 = vunpack.c.h.b16 %v3137
        %v4136 = vunpack.c.l.b16 %v3138
        %v4137 = vunpack.c.h.b16 %v3138
        %v4138 = vunpack.c.l.b16 %v3139
        %v4139 = vunpack.c.l.b16 %v3140
        %v4140 = vunpack.c.h.b16 %v3140
        %v4141 = vunpack.c.l.b16 %v3141
        %v4142 = vunpack.c.h.b16 %v3141
        %v4143 = vunpack.c.l.b16 %v3142
        %v4144 = vunpack.c.l.b16 %v3143
        %v4145 = vunpack.c.h.b16 %v3143
        %v4146 = vunpack.c.l.b16 %v3144
        %v4147 = vunpack.c.h.b16 %v3144
        %v4148 = vunpack.c.l.b16 %v3145
        %v4149 = vunpack.c.l.b16 %v3146
        %v4150 = vunpack.c.h.b16 %v3146
        %v4151 = vunpack.c.l.b16 %v3147
        %v4152 = vunpack.c.h.b16 %v3147
        %v4153 = vunpack.c.l.b16 %v3148
        %v4154 = vunpack.c.l.b16 %v3149
        %v4155 = vunpack.c.h.b16 %v3149
        %v4156 = vunpack.c.l.b16 %v3150
        %v4157 = vunpack.c.h.b16 %v3150
        %v4158 = vunpack.c.l.b16 %v3151
        %v4159 = vunpack.c.l.b16 %v3152
        %v4160 = vunpack.c.h.b16 %v3152
        %v4161 = vunpack.c.l.b16 %v3153
        %v4162 = vunpack.c.h.b16 %v3153
        %v4163 = vunpack.c.l.b16 %v3154
        %v4164 = vunpack.c.l.b16 %v3155
        %v4165 = vunpack.c.h.b16 %v3155
        %v4166 = vunpack.c.l.b16 %v3156
        %v4167 = vunpack.c.h.b16 %v3156
        %v4168 = vunpack.c.l.b16 %v3157
        %v4169 = vunpack.c.l.b16 %v3158
        %v4170 = vunpack.c.h.b16 %v3158
        %v4171 = vunpack.c.l.b16 %v3159
        %v4172 = vunpack.c.h.b16 %v3159
        %v4173 = vunpack.c.l.b16 %v3160
        %v4174 = vunpack.c.l.b16 %v3161
        %v4175 = vunpack.c.h.b16 %v3161
        %v4176 = vunpack.c.l.b16 %v3162
        %v4177 = vunpack.c.h.b16 %v3162
        %v4178 = vunpack.c.l.b16 %v3163
        %v4179 = vunpack.c.l.b16 %v3164
        %v4180 = vunpack.c.h.b16 %v3164
        %v4181 = vunpack.c.l.b16 %v3165
        %v4182 = vunpack.c.h.b16 %v3165
        %v4183 = vunpack.c.l.b16 %v3166
        %v4184 = vunpack.c.l.b16 %v3167
        %v4185 = vunpack.c.h.b16 %v3167
        %v4186 = vunpack.c.l.b16 %v3168
        %v4187 = vunpack.c.h.b16 %v3168
        %v4188 = vunpack.c.l.b16 %v3169
        %v4189 = vunpack.c.l.b16 %v3170
        %v4190 = vunpack.c.h.b16 %v3170
        %v4191 = vunpack.c.l.b16 %v3171
        %v4192 = vunpack.c.h.b16 %v3171
        %v4193 = vunpack.c.l.b16 %v3172
        %v4194 = vunpack.c.l.b16 %v3173
        %v4195 = vunpack.c.h.b16 %v3173
        %v4196 = vunpack.c.l.b16 %v3174
        %v4197 = vunpack.c.h.b16 %v3174
        %v4198 = vunpack.c.l.b16 %v3175
        %v4199 = vunpack.c.l.b16 %v3176
        %v4200 = vunpack.c.h.b16 %v3176
        %v4201 = vunpack.c.l.b16 %v3177
        %v4202 = vunpack.c.h.b16 %v3177
        %v4203 = vunpack.c.l.b16 %v3178
        %v4204 = vunpack.c.l.b16 %v3179
        %v4205 = vunpack.c.h.b16 %v3179
        %v4206 = vunpack.c.l.b16 %v3180
        %v4207 = vunpack.c.h.b16 %v3180
        %v4208 = vunpack.c.l.b16 %v3181
        %v4209 = vunpack.c.l.b16 %v3182
        %v4210 = vunpack.c.h.b16 %v3182
        %v4211 = vunpack.c.l.b16 %v3183
        %v4212 = vunpack.c.h.b16 %v3183
        %v4213 = vunpack.c.l.b16 %v3184
        %v4214 = vunpack.c.l.b16 %v3185
        %v4215 = vunpack.c.h.b16 %v3185
        %v4216 = vunpack.c.l.b16 %v3186
        %v4217 = vunpack.c.h.b16 %v3186
        %v4218 = vunpack.c.l.b16 %v3187
        %v4219 = vunpack.c.l.b16 %v3188
        %v4220 = vunpack.c.h.b16 %v3188
        %v4221 = vunpack.c.l.b16 %v3189
        %v4222 = vunpack.c.h.b16 %v3189
        %v4223 = vunpack.c.l.b16 %v3190
        %v4224 = vunpack.c.l.b16 %v3191
        %v4225 = vunpack.c.h.b16 %v3191
        %v4226 = vunpack.c.l.b16 %v3192
        %v4227 = vunpack.c.h.b16 %v3192
        %v4228 = vunpack.c.l.b16 %v3193
        %v4229 = vunpack.c.l.b16 %v3194
        %v4230 = vunpack.c.h.b16 %v3194
        %v4231 = vunpack.c.l.b16 %v3195
        %v4232 = vunpack.c.h.b16 %v3195
        %v4233 = vunpack.c.l.b16 %v3196
        %v4234 = vunpack.c.l.b16 %v3197
        %v4235 = vunpack.c.h.b16 %v3197
        %v4236 = vunpack.c.l.b16 %v3198
        %v4237 = vunpack.c.h.b16 %v3198
        %v4238 = vunpack.c.l.b16 %v3199
        %v4239 = vunpack.c.l.b16 %v3200
        %v4240 = vunpack.c.h.b16 %v3200
        %v4241 = vunpack.c.l.b16 %v3201
        %v4242 = vunpack.c.h.b16 %v3201
        %v4243 = vunpack.c.l.b16 %v3202
        %v4244 = vunpack.c.l.b16 %v3203
        %v4245 = vunpack.c.h.b16 %v3203
        %v4246 = vunpack.c.l.b16 %v3204
        %v4247 = vunpack.c.h.b16 %v3204
        %v4248 = vunpack.c.l.b16 %v3205
        %v4249 = vunpack.c.l.b16 %v3206
        %v4250 = vunpack.c.h.b16 %v3206
        %v4251 = vunpack.c.l.b16 %v3207
        %v4252 = vunpack.c.h.b16 %v3207
        %v4253 = vunpack.c.l.b16 %v3208
        %v4254 = vunpack.c.l.b16 %v3209
        %v4255 = vunpack.c.h.b16 %v3209
        %v4256 = vunpack.c.l.b16 %v3210
        %v4257 = vunpack.c.h.b16 %v3210
        %v4258 = vunpack.c.l.b16 %v3211
        %v4259 = vunpack.c.l.b16 %v3212
        %v4260 = vunpack.c.h.b16 %v3212
        %v4261 = vunpack.c.l.b16 %v3213
        %v4262 = vunpack.c.h.b16 %v3213
        %v4263 = vunpack.c.l.b16 %v3214
        %v4264 = vunpack.c.l.b16 %v3215
        %v4265 = vunpack.c.h.b16 %v3215
        %v4266 = vunpack.c.l.b16 %v3216
        %v4267 = vunpack.c.h.b16 %v3216
        %v4268 = vunpack.c.l.b16 %v3217
        %v4269 = vunpack.c.l.b16 %v3218
        %v4270 = vunpack.c.h.b16 %v3218
        %v4271 = vunpack.c.l.b16 %v3219
        %v4272 = vunpack.c.h.b16 %v3219
        %v4273 = vunpack.c.l.b16 %v3220
        %v4274 = vunpack.c.l.b16 %v3221
        %v4275 = vunpack.c.h.b16 %v3221
        %v4276 = vunpack.c.l.b16 %v3222
        %v4277 = vunpack.c.h.b16 %v3222
        %v4278 = vunpack.c.l.b16 %v3223
        %v4279 = vunpack.c.l.b16 %v3224
        %v4280 = vunpack.c.h.b16 %v3224
        %v4281 = vunpack.c.l.b16 %v3225
        %v4282 = vunpack.c.h.b16 %v3225
        %v4283 = vunpack.c.l.b16 %v3226
        %v4284 = vunpack.c.l.b16 %v3227
        %v4285 = vunpack.c.h.b16 %v3227
        %v4286 = vunpack.c.l.b16 %v3228
        %v4287 = vunpack.c.h.b16 %v3228
        %v4288 = vunpack.c.l.b16 %v3229
        %v4289 = vunpack.c.l.b16 %v3230
        %v4290 = vunpack.c.h.b16 %v3230
        %v4291 = vunpack.c.l.b16 %v3231
        %v4292 = vunpack.c.h.b16 %v3231
        %v4293 = vunpack.c.l.b16 %v3232
        %v4294 = vunpack.c.l.b16 %v3233
        %v4295 = vunpack.c.h.b16 %v3233
        %v4296 = vunpack.c.l.b16 %v3234
        %v4297 = vunpack.c.h.b16 %v3234
        %v4298 = vunpack.c.l.b16 %v3235
        %v4299 = vunpack.c.l.b16 %v3236
        %v4300 = vunpack.c.h.b16 %v3236
        %v4301 = vunpack.c.l.b16 %v3237
        %v4302 = vunpack.c.h.b16 %v3237
        %v4303 = vunpack.c.l.b16 %v3238
        %v4304 = vunpack.c.l.b16 %v3239
        %v4305 = vunpack.c.h.b16 %v3239
        %v4306 = vunpack.c.l.b16 %v3240
        %v4307 = vunpack.c.h.b16 %v3240
        %v4308 = vunpack.c.l.b16 %v3241
        %v4309 = vunpack.c.l.b16 %v3242
        %v4310 = vunpack.c.h.b16 %v3242
        %v4311 = vunpack.c.l.b16 %v3243
        %v4312 = vunpack.c.h.b16 %v3243
        %v4313 = vunpack.c.l.b16 %v3244
        %v4314 = vunpack.c.l.b16 %v3245
        %v4315 = vunpack.c.h.b16 %v3245
        %v4316 = vunpack.c.l.b16 %v3246
        %v4317 = vunpack.c.h.b16 %v3246
        %v4318 = vunpack.c.l.b16 %v3247
        %v4319 = vunpack.c.l.b16 %v3248
        %v4320 = vunpack.c.h.b16 %v3248
        %v4321 = vunpack.c.l.b16 %v3249
        %v4322 = vunpack.c.h.b16 %v3249
        %v4323 = vunpack.c.l.b16 %v3250
        %v4324 = vunpack.c.l.b16 %v3251
        %v4325 = vunpack.c.h.b16 %v3251
        %v4326 = vunpack.c.l.b16 %v3252
        %v4327 = vunpack.c.h.b16 %v3252
        %v4328 = vunpack.c.l.b16 %v3253
        %v4329 = vunpack.c.l.b16 %v3254
        %v4330 = vunpack.c.h.b16 %v3254
        %v4331 = vunpack.c.l.b16 %v3255
        %v4332 = vunpack.c.h.b16 %v3255
        %v4333 = vunpack.c.l.b16 %v3256
        %v4334 = vunpack.c.l.b16 %v3257
        %v4335 = vunpack.c.h.b16 %v3257
        %v4336 = vunpack.c.l.b16 %v3258
        %v4337 = vunpack.c.h.b16 %v3258
        %v4338 = vunpack.c.l.b16 %v3259
        %v4339 = vunpack.c.l.b16 %v3260
        %v4340 = vunpack.c.h.b16 %v3260
        %v4341 = vunpack.c.l.b16 %v3261
        %v4342 = vunpack.c.h.b16 %v3261
        %v4343 = vunpack.c.l.b16 %v3262
        %v4344 = vunpack.c.l.b16 %v3263
        %v4345 = vunpack.c.h.b16 %v3263
        %v4346 = vunpack.c.l.b16 %v3264
        %v4347 = vunpack.c.h.b16 %v3264
        %v4348 = vunpack.c.l.b16 %v3265
        %v4349 = vunpack.c.l.b16 %v3266
        %v4350 = vunpack.c.h.b16 %v3266
        %v4351 = vunpack.c.l.b16 %v3267
        %v4352 = vunpack.c.h.b16 %v3267
        %v4353 = vunpack.c.l.b16 %v3268
        %v4354 = vunpack.c.l.b16 %v3269
        %v4355 = vunpack.c.h.b16 %v3269
        %v4356 = vunpack.c.l.b16 %v3270
        %v4357 = vunpack.c.h.b16 %v3270
        %v4358 = vunpack.c.l.b16 %v3271
        %v4359 = vunpack.c.l.b16 %v3272
        %v4360 = vunpack.c.h.b16 %v3272
        %v4361 = vunpack.c.l.b16 %v3273
        %v4362 = vunpack.c.h.b16 %v3273
        %v4363 = vunpack.c.l.b16 %v3274
        %v4364 = vunpack.c.l.b16 %v3275
        %v4365 = vunpack.c.h.b16 %v3275
        %v4366 = vunpack.c.l.b16 %v3276
        %v4367 = vunpack.c.h.b16 %v3276
        %v4368 = vunpack.c.l.b16 %v3277
        %v4369 = vunpack.c.l.b16 %v3278
        %v4370 = vunpack.c.h.b16 %v3278
        %v4371 = vunpack.c.l.b16 %v3279
        %v4372 = vunpack.c.h.b16 %v3279
        %v4373 = vunpack.c.l.b16 %v3280
        %v4374 = vunpack.c.l.b16 %v3281
        %v4375 = vunpack.c.h.b16 %v3281
        %v4376 = vunpack.c.l.b16 %v3282
        %v4377 = vunpack.c.h.b16 %v3282
        %v4378 = vunpack.c.l.b16 %v3283
        %v4379 = vunpack.c.l.b16 %v3284
        %v4380 = vunpack.c.h.b16 %v3284
        %v4381 = vunpack.c.l.b16 %v3285
        %v4382 = vunpack.c.h.b16 %v3285
        %v4383 = vunpack.c.l.b16 %v3286
        %v4384 = vunpack.c.l.b16 %v3287
        %v4385 = vunpack.c.h.b16 %v3287
        %v4386 = vunpack.c.l.b16 %v3288
        %v4387 = vunpack.c.h.b16 %v3288
        %v4388 = vunpack.c.l.b16 %v3289
        %v4389 = vunpack.c.l.b16 %v3290
        %v4390 = vunpack.c.h.b16 %v3290
        %v4391 = vunpack.c.l.b16 %v3291
        %v4392 = vunpack.c.h.b16 %v3291
        %v4393 = vunpack.c.l.b16 %v3292
        %v4394 = vunpack.c.l.b16 %v3293
        %v4395 = vunpack.c.h.b16 %v3293
        %v4396 = vunpack.c.l.b16 %v3294
        %v4397 = vunpack.c.h.b16 %v3294
        %v4398 = vunpack.c.l.b16 %v3295
        %v4399 = vunpack.c.l.b16 %v3296
        %v4400 = vunpack.c.h.b16 %v3296
        %v4401 = vunpack.c.l.b16 %v3297
        %v4402 = vunpack.c.h.b16 %v3297
        %v4403 = vunpack.c.l.b16 %v3298
        %v4404 = vunpack.c.l.b16 %v3299
        %v4405 = vunpack.c.h.b16 %v3299
        %v4406 = vunpack.c.l.b16 %v3300
        %v4407 = vunpack.c.h.b16 %v3300
        %v4408 = vunpack.c.l.b16 %v3301
        %v4409 = vunpack.c.l.b16 %v3302
        %v4410 = vunpack.c.h.b16 %v3302
        %v4411 = vunpack.c.l.b16 %v3303
        %v4412 = vunpack.c.h.b16 %v3303
        %v4413 = vunpack.c.l.b16 %v3304
        %v4414 = vunpack.c.l.b16 %v3305
        %v4415 = vunpack.c.h.b16 %v3305
        %v4416 = vunpack.c.l.b16 %v3306
        %v4417 = vunpack.c.h.b16 %v3306
        %v4418 = vunpack.c.l.b16 %v3307
        %v4419 = vunpack.c.l.b16 %v3308
        %v4420 = vunpack.c.h.b16 %v3308
        %v4421 = vunpack.c.l.b16 %v3309
        %v4422 = vunpack.c.h.b16 %v3309
        %v4423 = vunpack.c.l.b16 %v3310
        %v4424 = vunpack.c.l.b16 %v3311
        %v4425 = vunpack.c.h.b16 %v3311
        %v4426 = vunpack.c.l.b16 %v3312
        %v4427 = vunpack.c.h.b16 %v3312
        %v4428 = vunpack.c.l.b16 %v3313
        %v4429 = vunpack.c.l.b16 %v3314
        %v4430 = vunpack.c.h.b16 %v3314
        %v4431 = vunpack.c.l.b16 %v3315
        %v4432 = vunpack.c.h.b16 %v3315
        %v4433 = vunpack.c.l.b16 %v3316
        %v4434 = vunpack.c.l.b16 %v3317
        %v4435 = vunpack.c.h.b16 %v3317
        %v4436 = vunpack.c.l.b16 %v3318
        %v4437 = vunpack.c.h.b16 %v3318
        %v4438 = vunpack.c.l.b16 %v3319
        %v4439 = vunpack.c.l.b16 %v3320
        %v4440 = vunpack.c.h.b16 %v3320
        %v4441 = vunpack.c.l.b16 %v3321
        %v4442 = vunpack.c.h.b16 %v3321
        %v4443 = vunpack.c.l.b16 %v3322
        %v4444 = vunpack.c.l.b16 %v3323
        %v4445 = vunpack.c.h.b16 %v3323
        %v4446 = vunpack.c.l.b16 %v3324
        %v4447 = vunpack.c.h.b16 %v3324
        %v4448 = vunpack.c.l.b16 %v3325
        %v4449 = vunpack.c.l.b16 %v3326
        %v4450 = vunpack.c.h.b16 %v3326
        %v4451 = vunpack.c.l.b16 %v3327
        %v4452 = vunpack.c.h.b16 %v3327
        %v4453 = vunpack.c.l.b16 %v3328
        %v4454 = vunpack.c.l.b16 %v3329
        %v4455 = vunpack.c.h.b16 %v3329
        %v4456 = vunpack.c.l.b16 %v3330
        %v4457 = vunpack.c.h.b16 %v3330
        %v4458 = vunpack.c.l.b16 %v3331
        %v4459 = vunpack.c.l.b16 %v3332
        %v4460 = vunpack.c.h.b16 %v3332
        %v4461 = vunpack.c.l.b16 %v3333
        %v4462 = vunpack.c.h.b16 %v3333
        %v4463 = vunpack.c.l.b16 %v3334
        %v4464 = vunpack.c.l.b16 %v3335
        %v4465 = vunpack.c.h.b16 %v3335
        %v4466 = vunpack.c.l.b16 %v3336
        %v4467 = vunpack.c.h.b16 %v3336
        %v4468 = vunpack.c.l.b16 %v3337
        %v4469 = vunpack.c.l.b16 %v3338
        %v4470 = vunpack.c.h.b16 %v3338
        %v4471 = vunpack.c.l.b16 %v3339
        %v4472 = vunpack.c.h.b16 %v3339
        %v4473 = vunpack.c.l.b16 %v3340
        %v4474 = vunpack.c.l.b16 %v3341
        %v4475 = vunpack.c.h.b16 %v3341
        %v4476 = vunpack.c.l.b16 %v3342
        %v4477 = vunpack.c.h.b16 %v3342
        %v4478 = vunpack.c.l.b16 %v3343
        %v4479 = vunpack.c.l.b16 %v3344
        %v4480 = vunpack.c.h.b16 %v3344
        %v4481 = vunpack.c.l.b16 %v3345
        %v4482 = vunpack.c.h.b16 %v3345
        %v4483 = vunpack.c.l.b16 %v3346
        %v4484 = vunpack.c.l.b16 %v3347
        %v4485 = vunpack.c.h.b16 %v3347
        %v4486 = vunpack.c.l.b16 %v3348
        %v4487 = vunpack.c.h.b16 %v3348
        %v4488 = vunpack.c.l.b16 %v3349
        %v4489 = vunpack.c.l.b16 %v3350
        %v4490 = vunpack.c.h.b16 %v3350
        %v4491 = vunpack.c.l.b16 %v3351
        %v4492 = vunpack.c.h.b16 %v3351
        %v4493 = vunpack.c.l.b16 %v3352
        %v4494 = vunpack.c.l.b16 %v3353
        %v4495 = vunpack.c.h.b16 %v3353
        %v4496 = vunpack.c.l.b16 %v3354
        %v4497 = vunpack.c.h.b16 %v3354
        %v4498 = vunpack.c.l.b16 %v3355
        %v4499 = vunpack.c.l.b16 %v3356
        %v4500 = vunpack.c.h.b16 %v3356
        %v4501 = vunpack.c.l.b16 %v3357
        %v4502 = vunpack.c.h.b16 %v3357
        %v4503 = vunpack.c.l.b16 %v3358
        %v4504 = vunpack.c.l.b16 %v3359
        %v4505 = vunpack.c.h.b16 %v3359
        %v4506 = vunpack.c.l.b16 %v3360
        %v4507 = vunpack.c.h.b16 %v3360
        %v4508 = vunpack.c.l.b16 %v3361
        %v4509 = vunpack.c.l.b16 %v3362
        %v4510 = vunpack.c.h.b16 %v3362
        %v4511 = vunpack.c.l.b16 %v3363
        %v4512 = vunpack.c.h.b16 %v3363
        %v4513 = vunpack.c.l.b16 %v3364
        %v4514 = vunpack.c.l.b16 %v3365
        %v4515 = vunpack.c.h.b16 %v3365
        %v4516 = vunpack.c.l.b16 %v3366
        %v4517 = vunpack.c.h.b16 %v3366
        %v4518 = vunpack.c.l.b16 %v3367
        %v4519 = vunpack.c.l.b16 %v3368
        %v4520 = vunpack.c.h.b16 %v3368
        %v4521 = vunpack.c.l.b16 %v3369
        %v4522 = vunpack.c.h.b16 %v3369
        %v4523 = vunpack.c.l.b16 %v3370
        %v4524 = vunpack.c.l.b16 %v3371
        %v4525 = vunpack.c.h.b16 %v3371
        %v4526 = vunpack.c.l.b16 %v3372
        %v4527 = vunpack.c.h.b16 %v3372
        %v4528 = vunpack.c.l.b16 %v3373
        %v4529 = vunpack.c.l.b16 %v3374
        %v4530 = vunpack.c.h.b16 %v3374
        %v4531 = vunpack.c.l.b16 %v3375
        %v4532 = vunpack.c.h.b16 %v3375
        %v4533 = vunpack.c.l.b16 %v3376
        %v4534 = vunpack.c.l.b16 %v3377
        %v4535 = vunpack.c.h.b16 %v3377
        %v4536 = vunpack.c.l.b16 %v3378
        %v4537 = vunpack.c.h.b16 %v3378
        %v4538 = vunpack.c.l.b16 %v3379
        %v4539 = vunpack.c.l.b16 %v3380
        %v4540 = vunpack.c.h.b16 %v3380
        %v4541 = vunpack.c.l.b16 %v3381
        %v4542 = vunpack.c.h.b16 %v3381
        %v4543 = vunpack.c.l.b16 %v3382
        %v4544 = vunpack.c.l.b16 %v3383
        %v4545 = vunpack.c.h.b16 %v3383
        %v4546 = vunpack.c.l.b16 %v3384
        %v4547 = vunpack.c.h.b16 %v3384
        %v4548 = vunpack.c.l.b16 %v3385
        %v4549 = vunpack.c.l.b16 %v3386
        %v4550 = vunpack.c.h.b16 %v3386
        %v4551 = vunpack.c.l.b16 %v3387
        %v4552 = vunpack.c.h.b16 %v3387
        %v4553 = vunpack.c.l.b16 %v3388
        %v4554 = vunpack.c.l.b16 %v3389
        %v4555 = vunpack.c.h.b16 %v3389
        %v4556 = vunpack.c.l.b16 %v3390
        %v4557 = vunpack.c.h.b16 %v3390
        %v4558 = vunpack.c.l.b16 %v3391
        %v4559 = vunpack.c.l.b16 %v3392
        %v4560 = vunpack.c.h.b16 %v3392
        %v4561 = vunpack.c.l.b16 %v3393
        %v4562 = vunpack.c.h.b16 %v3393
        %v4563 = vunpack.c.l.b16 %v3394
        %v4564 = vunpack.c.l.b16 %v3395
        %v4565 = vunpack.c.h.b16 %v3395
        %v4566 = vunpack.c.l.b16 %v3396
        %v4567 = vunpack.c.h.b16 %v3396
        %v4568 = vunpack.c.l.b16 %v3397
        %v4569 = vunpack.c.l.b16 %v3398
        %v4570 = vunpack.c.h.b16 %v3398
        %v4571 = vunpack.c.l.b16 %v3399
        %v4572 = vunpack.c.h.b16 %v3399
        %v4573 = vunpack.c.l.b16 %v3400
        %v4574 = vunpack.c.l.b16 %v3401
        %v4575 = vunpack.c.h.b16 %v3401
        %v4576 = vunpack.c.l.b16 %v3402
        %v4577 = vunpack.c.h.b16 %v3402
        %v4578 = vunpack.c.l.b16 %v3403
        %v4579 = vunpack.c.l.b16 %v3404
        %v4580 = vunpack.c.h.b16 %v3404
        %v4581 = vunpack.c.l.b16 %v3405
        %v4582 = vunpack.c.h.b16 %v3405
        %v4583 = vunpack.c.l.b16 %v3406
        %v4584 = vunpack.c.l.b16 %v3407
        %v4585 = vunpack.c.h.b16 %v3407
        %v4586 = vunpack.c.l.b16 %v3408
        %v4587 = vunpack.c.h.b16 %v3408
        %v4588 = vunpack.c.l.b16 %v3409
        %v4589 = vunpack.c.l.b16 %v3410
        %v4590 = vunpack.c.h.b16 %v3410
        %v4591 = vunpack.c.l.b16 %v3411
        %v4592 = vunpack.c.h.b16 %v3411
        %v4593 = vunpack.c.l.b16 %v3412
        %v4594 = vunpack.c.l.b16 %v3413
        %v4595 = vunpack.c.h.b16 %v3413
        %v4596 = vunpack.c.l.b16 %v3414
        %v4597 = vunpack.c.h.b16 %v3414
        %v4598 = vunpack.c.l.b16 %v3415
        %v4599 = vunpack.c.l.b16 %v3416
        %v4600 = vunpack.c.h.b16 %v3416
        %v4601 = vunpack.c.l.b16 %v3417
        %v4602 = vunpack.c.h.b16 %v3417
        %v4603 = vunpack.c.l.b16 %v3418
        %v4604 = vunpack.c.l.b16 %v3419
        %v4605 = vunpack.c.h.b16 %v3419
        %v4606 = vunpack.c.l.b16 %v3420
        %v4607 = vunpack.c.h.b16 %v3420
        %v4608 = vunpack.c.l.b16 %v3421
        %v4609 = vunpack.c.l.b16 %v3422
        %v4610 = vunpack.c.h.b16 %v3422
        %v4611 = vunpack.c.l.b16 %v3423
        %v4612 = vunpack.c.h.b16 %v3423
        %v4613 = vunpack.c.l.b16 %v3424
        %v4614 = vunpack.c.l.b16 %v3425
        %v4615 = vunpack.c.h.b16 %v3425
        %v4616 = vunpack.c.l.b16 %v3426
        %v4617 = vunpack.c.h.b16 %v3426
        %v4618 = vunpack.c.l.b16 %v3427
        %v4619 = vunpack.c.l.b16 %v3428
        %v4620 = vunpack.c.h.b16 %v3428
        %v4621 = vunpack.c.l.b16 %v3429
        %v4622 = vunpack.c.h.b16 %v3429
        %v4623 = vunpack.c.l.b16 %v3430
        %v4624 = vunpack.c.l.b16 %v3431
        %v4625 = vunpack.c.h.b16 %v3431
        %v4626 = vunpack.c.l.b16 %v3432
        %v4627 = vunpack.c.h.b16 %v3432
        %v4628 = vunpack.c.l.b16 %v3433
        %v4629 = vunpack.c.l.b16 %v3434
        %v4630 = vunpack.c.h.b16 %v3434
        %v4631 = vunpack.c.l.b16 %v3435
        %v4632 = vunpack.c.h.b16 %v3435
        %v4633 = vunpack.c.l.b16 %v3436
        %v4634 = vunpack.c.l.b16 %v3437
        %v4635 = vunpack.c.h.b16 %v3437
        %v4636 = vunpack.c.l.b16 %v3438
        %v4637 = vunpack.c.h.b16 %v3438
        %v4638 = vunpack.c.l.b16 %v3439
        %v4639 = vunpack.c.l.b16 %v3440
        %v4640 = vunpack.c.h.b16 %v3440
        %v4641 = vunpack.c.l.b16 %v3441
        %v4642 = vunpack.c.h.b16 %v3441
        %v4643 = vunpack.c.l.b16 %v3442
        %v4644 = vunpack.c.l.b16 %v3443
        %v4645 = vunpack.c.h.b16 %v3443
        %v4646 = vunpack.c.l.b16 %v3444
        %v4647 = vunpack.c.h.b16 %v3444
        %v4648 = vunpack.c.l.b16 %v3445
        %v4649 = vunpack.c.l.b16 %v3446
        %v4650 = vunpack.c.h.b16 %v3446
        %v4651 = vunpack.c.l.b16 %v3447
        %v4652 = vunpack.c.h.b16 %v3447
        %v4653 = vunpack.c.l.b16 %v3448
        %v4654 = vunpack.c.l.b16 %v3449
        %v4655 = vunpack.c.h.b16 %v3449
        %v4656 = vunpack.c.l.b16 %v3450
        %v4657 = vunpack.c.h.b16 %v3450
        %v4658 = vunpack.c.l.b16 %v3451
        %v4659 = vunpack.c.l.b16 %v3452
        %v4660 = vunpack.c.h.b16 %v3452
        %v4661 = vunpack.c.l.b16 %v3453
        %v4662 = vunpack.c.h.b16 %v3453
        %v4663 = vunpack.c.l.b16 %v3454
        %v4664 = vunpack.c.l.b16 %v3455
        %v4665 = vunpack.c.h.b16 %v3455
        %v4666 = vunpack.c.l.b16 %v3456
        %v4667 = vunpack.c.h.b16 %v3456
        %v4668 = vunpack.c.l.b16 %v3457
        %v4669 = vunpack.c.l.b16 %v3458
        %v4670 = vunpack.c.h.b16 %v3458
        %v4671 = vunpack.c.l.b16 %v3459
        %v4672 = vunpack.c.h.b16 %v3459
        %v4673 = vunpack.c.l.b16 %v3460
        %v4674 = vunpack.c.l.b16 %v3461
        %v4675 = vunpack.c.h.b16 %v3461
        %v4676 = vunpack.c.l.b16 %v3462
        %v4677 = vunpack.c.h.b16 %v3462
        %v4678 = vunpack.c.l.b16 %v3463
        %v4679 = vunpack.c.l.b16 %v3464
        %v4680 = vunpack.c.h.b16 %v3464
        %v4681 = vunpack.c.l.b16 %v3465
        %v4682 = vunpack.c.h.b16 %v3465
        %v4683 = vunpack.c.l.b16 %v3466
        %v4684 = vunpack.c.l.b16 %v3467
        %v4685 = vunpack.c.h.b16 %v3467
        %v4686 = vunpack.c.l.b16 %v3468
        %v4687 = vunpack.c.h.b16 %v3468
        %v4688 = vunpack.c.l.b16 %v3469
        %v4689 = vunpack.c.l.b16 %v3470
        %v4690 = vunpack.c.h.b16 %v3470
        %v4691 = vunpack.c.l.b16 %v3471
        %v4692 = vunpack.c.h.b16 %v3471
        %v4693 = vunpack.c.l.b16 %v3472
        %v4694 = vunpack.c.l.b16 %v3473
        %v4695 = vunpack.c.h.b16 %v3473
        %v4696 = vunpack.c.l.b16 %v3474
        %v4697 = vunpack.c.h.b16 %v3474
        %v4698 = vunpack.c.l.b16 %v3475
        %v4699 = vunpack.c.l.b16 %v3476
        %v4700 = vunpack.c.h.b16 %v3476
        %v4701 = vunpack.c.l.b16 %v3477
        %v4702 = vunpack.c.h.b16 %v3477
        %v4703 = vunpack.c.l.b16 %v3478
        %v4704 = vunpack.c.l.b16 %v3479
        %v4705 = vunpack.c.h.b16 %v3479
        %v4706 = vunpack.c.l.b16 %v3480
        %v4707 = vunpack.c.h.b16 %v3480
        %v4708 = vunpack.c.l.b16 %v3481
        %v4709 = vunpack.c.l.b16 %v3482
        %v4710 = vunpack.c.h.b16 %v3482
        %v4711 = vunpack.c.l.b16 %v3483
        %v4712 = vunpack.c.h.b16 %v3483
        %v4713 = vunpack.c.l.b16 %v3484
        %v4714 = vunpack.c.l.b16 %v3485
        %v4715 = vunpack.c.h.b16 %v3485
        %v4716 = vunpack.c.l.b16 %v3486
        %v4717 = vunpack.c.h.b16 %v3486
        %v4718 = vunpack.c.l.b16 %v3487
        %v4719 = vunpack.c.l.b16 %v3488
        %v4720 = vunpack.c.h.b16 %v3488
        %v4721 = vunpack.c.l.b16 %v3489
        %v4722 = vunpack.c.h.b16 %v3489
        %v4723 = vunpack.c.l.b16 %v3490
        %v4724 = vunpack.c.l.b16 %v3491
        %v4725 = vunpack.c.h.b16 %v3491
        %v4726 = vunpack.c.l.b16 %v3492
        %v4727 = vunpack.c.h.b16 %v3492
        %v4728 = vunpack.c.l.b16 %v3493
        %v4729 = vunpack.c.l.b16 %v3494
        %v4730 = vunpack.c.h.b16 %v3494
        %v4731 = vunpack.c.l.b16 %v3495
        %v4732 = vunpack.c.h.b16 %v3495
        %v4733 = vunpack.c.l.b16 %v3496
        %v4734 = vunpack.c.l.b16 %v3497
        %v4735 = vunpack.c.h.b16 %v3497
        %v4736 = vunpack.c.l.b16 %v3498
        %v4737 = vunpack.c.h.b16 %v3498
        %v4738 = vunpack.c.l.b16 %v3499
        %v4739 = vunpack.c.l.b16 %v3500
        %v4740 = vunpack.c.h.b16 %v3500
        %v4741 = vunpack.c.l.b16 %v3501
        %v4742 = vunpack.c.h.b16 %v3501
        %v4743 = vunpack.c.l.b16 %v3502
        %v4744 = vunpack.c.l.b16 %v3503
        %v4745 = vunpack.c.h.b16 %v3503
        %v4746 = vunpack.c.l.b16 %v3504
        %v4747 = vunpack.c.h.b16 %v3504
        %v4748 = vunpack.c.l.b16 %v3505
        %v4749 = vunpack.c.l.b16 %v3506
        %v4750 = vunpack.c.h.b16 %v3506
        %v4751 = vunpack.c.l.b16 %v3507
        %v4752 = vunpack.c.h.b16 %v3507
        %v4753 = vunpack.c.l.b16 %v3508
        %v4754 = vunpack.c.l.b16 %v3509
        %v4755 = vunpack.c.h.b16 %v3509
        %v4756 = vunpack.c.l.b16 %v3510
        %v4757 = vunpack.c.h.b16 %v3510
        %v4758 = vunpack.c.l.b16 %v3511
        %v4759 = vunpack.c.l.b16 %v3512
        %v4760 = vunpack.c.h.b16 %v3512
        %v4761 = vunpack.c.l.b16 %v3513
        %v4762 = vunpack.c.h.b16 %v3513
        %v4763 = vunpack.c.l.b16 %v3514
        %v4764 = vunpack.c.l.b16 %v3515
        %v4765 = vunpack.c.h.b16 %v3515
        %v4766 = vunpack.c.l.b16 %v3516
        %v4767 = vunpack.c.h.b16 %v3516
        %v4768 = vunpack.c.l.b16 %v3517
        %v4769 = vunpack.c.l.b16 %v3518
        %v4770 = vunpack.c.h.b16 %v3518
        %v4771 = vunpack.c.l.b16 %v3519
        %v4772 = vunpack.c.h.b16 %v3519
        %v4773 = vunpack.c.l.b16 %v3520
        %v4774 = vunpack.c.l.b16 %v3521
        %v4775 = vunpack.c.h.b16 %v3521
        %v4776 = vunpack.c.l.b16 %v3522
        %v4777 = vunpack.c.h.b16 %v3522
        %v4778 = vunpack.c.l.b16 %v3523
        %v4779 = vunpack.c.l.b16 %v3524
        %v4780 = vunpack.c.h.b16 %v3524
        %v4781 = vunpack.c.l.b16 %v3525
        %v4782 = vunpack.c.h.b16 %v3525
        %v4783 = vunpack.c.l.b16 %v3526
        %v4784 = vunpack.c.l.b16 %v3527
        %v4785 = vunpack.c.h.b16 %v3527
        %v4786 = vunpack.c.l.b16 %v3528
        %v4787 = vunpack.c.h.b16 %v3528
        %v4788 = vunpack.c.l.b16 %v3529
        %v4789 = vunpack.c.l.b16 %v3530
        %v4790 = vunpack.c.h.b16 %v3530
        %v4791 = vunpack.c.l.b16 %v3531
        %v4792 = vunpack.c.h.b16 %v3531
        %v4793 = vunpack.c.l.b16 %v3532
        %v4794 = vunpack.c.l.b16 %v3533
        %v4795 = vunpack.c.h.b16 %v3533
        %v4796 = vunpack.c.l.b16 %v3534
        %v4797 = vunpack.c.h.b16 %v3534
        %v4798 = vunpack.c.l.b16 %v3535
        %v4799 = vunpack.c.l.b16 %v3536
        %v4800 = vunpack.c.h.b16 %v3536
        %v4801 = vunpack.c.l.b16 %v3537
        %v4802 = vunpack.c.h.b16 %v3537
        %v4803 = vunpack.c.l.b16 %v3538
        %v4804 = vunpack.c.l.b16 %v3539
        %v4805 = vunpack.c.h.b16 %v3539
        %v4806 = vunpack.c.l.b16 %v3540
        %v4807 = vunpack.c.h.b16 %v3540
        %v4808 = vunpack.c.l.b16 %v3541
        %v4809 = vunpack.c.l.b16 %v3542
        %v4810 = vunpack.c.h.b16 %v3542
        %v4811 = vunpack.c.l.b16 %v3543
        %v4812 = vunpack.c.h.b16 %v3543
        %v4813 = vunpack.c.l.b16 %v3544
        %v4814 = vunpack.c.l.b16 %v3545
        %v4815 = vunpack.c.h.b16 %v3545
        %v4816 = vunpack.c.l.b16 %v3546
        %v4817 = vunpack.c.h.b16 %v3546
        %v4818 = vunpack.c.l.b16 %v3547
        %v4819 = vunpack.c.l.b16 %v3548
        %v4820 = vunpack.c.h.b16 %v3548
        %v4821 = vunpack.c.l.b16 %v3549
        %v4822 = vunpack.c.h.b16 %v3549
        %v4823 = vunpack.c.l.b16 %v3550
        %v4824 = vunpack.c.l.b16 %v3551
        %v4825 = vunpack.c.h.b16 %v3551
        %v4826 = vunpack.c.l.b16 %v3552
        %v4827 = vunpack.c.h.b16 %v3552
        %v4828 = vunpack.c.l.b16 %v3553
        %v4829 = vunpack.c.l.b16 %v3554
        %v4830 = vunpack.c.h.b16 %v3554
        %v4831 = vunpack.c.l.b16 %v3555
        %v4832 = vunpack.c.h.b16 %v3555
        %v4833 = vunpack.c.l.b16 %v3556
        %v4834 = vunpack.c.l.b16 %v3557
        %v4835 = vunpack.c.h.b16 %v3557
        %v4836 = vunpack.c.l.b16 %v3558
        %v4837 = vunpack.c.h.b16 %v3558
        %v4838 = vunpack.c.l.b16 %v3559
        %v4839 = vunpack.c.l.b16 %v3560
        %v4840 = vunpack.c.h.b16 %v3560
        %v4841 = vunpack.c.l.b16 %v3561
        %v4842 = vunpack.c.h.b16 %v3561
        %v4843 = vunpack.c.l.b16 %v3562
        %v4844 = vunpack.c.l.b16 %v3563
        %v4845 = vunpack.c.h.b16 %v3563
        %v4846 = vunpack.c.l.b16 %v3564
        %v4847 = vunpack.c.h.b16 %v3564
        %v4848 = vunpack.c.l.b16 %v3565
        %v4849 = vunpack.c.l.b16 %v3566
        %v4850 = vunpack.c.h.b16 %v3566
        %v4851 = vunpack.c.l.b16 %v3567
        %v4852 = vunpack.c.h.b16 %v3567
        %v4853 = vunpack.c.l.b16 %v3568
        %v4854 = vunpack.c.l.b16 %v3569
        %v4855 = vunpack.c.h.b16 %v3569
        %v4856 = vunpack.c.l.b16 %v3570
        %v4857 = vunpack.c.h.b16 %v3570
        %v4858 = vunpack.c.l.b16 %v3571
        %v4859 = vunpack.c.l.b16 %v3572
        %v4860 = vunpack.c.h.b16 %v3572
        %v4861 = vunpack.c.l.b16 %v3573
        %v4862 = vunpack.c.h.b16 %v3573
        %v4863 = vunpack.c.l.b16 %v3574
        %v4864 = vunpack.c.l.b16 %v3575
        %v4865 = vunpack.c.h.b16 %v3575
        %v4866 = vunpack.c.l.b16 %v3576
        %v4867 = vunpack.c.h.b16 %v3576
        %v4868 = vunpack.c.l.b16 %v3577
        %v4869 = vunpack.c.l.b16 %v3578
        %v4870 = vunpack.c.h.b16 %v3578
        %v4871 = vunpack.c.l.b16 %v3579
        %v4872 = vunpack.c.h.b16 %v3579
        %v4873 = vunpack.c.l.b16 %v3580
        %v4874 = vunpack.c.l.b16 %v3581
        %v4875 = vunpack.c.h.b16 %v3581
        %v4876 = vunpack.c.l.b16 %v3582
        %v4877 = vunpack.c.h.b16 %v3582
        %v4878 = vunpack.c.l.b16 %v3583
        %v4879 = vunpack.c.l.b16 %v3584
        %v4880 = vunpack.c.h.b16 %v3584
        %v4881 = vunpack.c.l.b16 %v3585
        %v4882 = vunpack.c.h.b16 %v3585
        %v4883 = vunpack.c.l.b16 %v3586
        %v4884 = vunpack.c.l.b16 %v3587
        %v4885 = vunpack.c.h.b16 %v3587
        %v4886 = vunpack.c.l.b16 %v3588
        %v4887 = vunpack.c.h.b16 %v3588
        %v4888 = vunpack.c.l.b16 %v3589
        %v4889 = vunpack.c.l.b16 %v3590
        %v4890 = vunpack.c.h.b16 %v3590
        %v4891 = vunpack.c.l.b16 %v3591
        %v4892 = vunpack.c.h.b16 %v3591
        %v4893 = vunpack.c.l.b16 %v3592
        %v4894 = vunpack.c.l.b16 %v3593
        %v4895 = vunpack.c.h.b16 %v3593
        %v4896 = vunpack.c.l.b16 %v3594
        %v4897 = vunpack.c.h.b16 %v3594
        %v4898 = vunpack.c.l.b16 %v3595
        %v4899 = vunpack.c.l.b16 %v3596
        %v4900 = vunpack.c.h.b16 %v3596
        %v4901 = vunpack.c.l.b16 %v3597
        %v4902 = vunpack.c.h.b16 %v3597
        %v4903 = vunpack.c.l.b16 %v3598
        %v4904 = vunpack.c.l.b16 %v3599
        %v4905 = vunpack.c.h.b16 %v3599
        %v4906 = vunpack.c.l.b16 %v3600
        %v4907 = vunpack.c.h.b16 %v3600
        %v4908 = vunpack.c.l.b16 %v3601
        %v4909 = vpack.c.b16 %v4114, %v4109
        %v4910 = vpack.c.b16 %v4115, %v4110
        %v4911 = vpack.c.b16 %v4116, %v4111
        %v4912 = vpack.c.b16 %v4117, %v4112
        %v4913 = vpack.c.b16 %v4118, %v4113
        %v4914 = vpack.c.b16 %v4124, %v4119
        %v4915 = vpack.c.b16 %v4125, %v4120
        %v4916 = vpack.c.b16 %v4126, %v4121
        %v4917 = vpack.c.b16 %v4127, %v4122
        %v4918 = vpack.c.b16 %v4128, %v4123
        %v4919 = vpack.c.b16 %v4134, %v4129
        %v4920 = vpack.c.b16 %v4135, %v4130
        %v4921 = vpack.c.b16 %v4136, %v4131
        %v4922 = vpack.c.b16 %v4137, %v4132
        %v4923 = vpack.c.b16 %v4138, %v4133
        %v4924 = vpack.c.b16 %v4144, %v4139
        %v4925 = vpack.c.b16 %v4145, %v4140
        %v4926 = vpack.c.b16 %v4146, %v4141
        %v4927 = vpack.c.b16 %v4147, %v4142
        %v4928 = vpack.c.b16 %v4148, %v4143
        %v4929 = vpack.c.b16 %v4154, %v4149
        %v4930 = vpack.c.b16 %v4155, %v4150
        %v4931 = vpack.c.b16 %v4156, %v4151
        %v4932 = vpack.c.b16 %v4157, %v4152
        %v4933 = vpack.c.b16 %v4158, %v4153
        %v4934 = vpack.c.b16 %v4164, %v4159
        %v4935 = vpack.c.b16 %v4165, %v4160
        %v4936 = vpack.c.b16 %v4166, %v4161
        %v4937 = vpack.c.b16 %v4167, %v4162
        %v4938 = vpack.c.b16 %v4168, %v4163
        %v4939 = vpack.c.b16 %v4174, %v4169
        %v4940 = vpack.c.b16 %v4175, %v4170
        %v4941 = vpack.c.b16 %v4176, %v4171
        %v4942 = vpack.c.b16 %v4177, %v4172
        %v4943 = vpack.c.b16 %v4178, %v4173
        %v4944 = vpack.c.b16 %v4184, %v4179
        %v4945 = vpack.c.b16 %v4185, %v4180
        %v4946 = vpack.c.b16 %v4186, %v4181
        %v4947 = vpack.c.b16 %v4187, %v4182
        %v4948 = vpack.c.b16 %v4188, %v4183
        %v4949 = vpack.c.b16 %v4194, %v4189
        %v4950 = vpack.c.b16 %v4195, %v4190
        %v4951 = vpack.c.b16 %v4196, %v4191
        %v4952 = vpack.c.b16 %v4197, %v4192
        %v4953 = vpack.c.b16 %v4198, %v4193
        %v4954 = vpack.c.b16 %v4204, %v4199
        %v4955 = vpack.c.b16 %v4205, %v4200
        %v4956 = vpack.c.b16 %v4206, %v4201
        %v4957 = vpack.c.b16 %v4207, %v4202
        %v4958 = vpack.c.b16 %v4208, %v4203
        %v4959 = vpack.c.b16 %v4214, %v4209
        %v4960 = vpack.c.b16 %v4215, %v4210
        %v4961 = vpack.c.b16 %v4216, %v4211
        %v4962 = vpack.c.b16 %v4217, %v4212
        %v4963 = vpack.c.b16 %v4218, %v4213
        %v4964 = vpack.c.b16 %v4224, %v4219
        %v4965 = vpack.c.b16 %v4225, %v4220
        %v4966 = vpack.c.b16 %v4226, %v4221
        %v4967 = vpack.c.b16 %v4227, %v4222
        %v4968 = vpack.c.b16 %v4228, %v4223
        %v4969 = vpack.c.b16 %v4234, %v4229
        %v4970 = vpack.c.b16 %v4235, %v4230
        %v4971 = vpack.c.b16 %v4236, %v4231
        %v4972 = vpack.c.b16 %v4237, %v4232
        %v4973 = vpack.c.b16 %v4238, %v4233
        %v4974 = vpack.c.b16 %v4244, %v4239
        %v4975 = vpack.c.b16 %v4245, %v4240
        %v4976 = vpack.c.b16 %v4246, %v4241
        %v4977 = vpack.c.b16 %v4247, %v4242
        %v4978 = vpack.c.b16 %v4248, %v4243
        %v4979 = vpack.c.b16 %v4254, %v4249
        %v4980 = vpack.c.b16 %v4255, %v4250
        %v4981 = vpack.c.b16 %v4256, %v4251
        %v4982 = vpack.c.b16 %v4257, %v4252
        %v4983 = vpack.c.b16 %v4258, %v4253
        %v4984 = vpack.c.b16 %v4264, %v4259
        %v4985 = vpack.c.b16 %v4265, %v4260
        %v4986 = vpack.c.b16 %v4266, %v4261
        %v4987 = vpack.c.b16 %v4267, %v4262
        %v4988 = vpack.c.b16 %v4268, %v4263
        %v4989 = vpack.c.b16 %v4274, %v4269
        %v4990 = vpack.c.b16 %v4275, %v4270
        %v4991 = vpack.c.b16 %v4276, %v4271
        %v4992 = vpack.c.b16 %v4277, %v4272
        %v4993 = vpack.c.b16 %v4278, %v4273
        %v4994 = vpack.c.b16 %v4284, %v4279
        %v4995 = vpack.c.b16 %v4285, %v4280
        %v4996 = vpack.c.b16 %v4286, %v4281
        %v4997 = vpack.c.b16 %v4287, %v4282
        %v4998 = vpack.c.b16 %v4288, %v4283
        %v4999 = vpack.c.b16 %v4294, %v4289
        %v5000 = vpack.c.b16 %v4295, %v4290
        %v5001 = vpack.c.b16 %v4296, %v4291
        %v5002 = vpack.c.b16 %v4297, %v4292
        %v5003 = vpack.c.b16 %v4298, %v4293
        %v5004 = vpack.c.b16 %v4304, %v4299
        %v5005 = vpack.c.b16 %v4305, %v4300
        %v5006 = vpack.c.b16 %v4306, %v4301
        %v5007 = vpack.c.b16 %v4307, %v4302
        %v5008 = vpack.c.b16 %v4308, %v4303
        %v5009 = vpack.c.b16 %v4314, %v4309
        %v5010 = vpack.c.b16 %v4315, %v4310
        %v5011 = vpack.c.b16 %v4316, %v4311
        %v5012 = vpack.c.b16 %v4317, %v4312
        %v5013 = vpack.c.b16 %v4318, %v4313
        %v5014 = vpack.c.b16 %v4324, %v4319
        %v5015 = vpack.c.b16 %v4325, %v4320
        %v5016 = vpack.c.b16 %v4326, %v4321
        %v5017 = vpack.c.b16 %v4327, %v4322
        %v5018 = vpack.c.b16 %v4328, %v4323
        %v5019 = vpack.c.b16 %v4334, %v4329
        %v5020 = vpack.c.b16 %v4335, %v4330
        %v5021 = vpack.c.b16 %v4336, %v4331
        %v5022 = vpack.c.b16 %v4337, %v4332
        %v5023 = vpack.c.b16 %v4338, %v4333
        %v5024 = vpack.c.b16 %v4344, %v4339
        %v5025 = vpack.c.b16 %v4345, %v4340
        %v5026 = vpack.c.b16 %v4346, %v4341
        %v5027 = vpack.c.b16 %v4347, %v4342
        %v5028 = vpack.c.b16 %v4348, %v4343
        %v5029 = vpack.c.b16 %v4354, %v4349
        %v5030 = vpack.c.b16 %v4355, %v4350
        %v5031 = vpack.c.b16 %v4356, %v4351
        %v5032 = vpack.c.b16 %v4357, %v4352
        %v5033 = vpack.c.b16 %v4358, %v4353
        %v5034 = vpack.c.b16 %v4364, %v4359
        %v5035 = vpack.c.b16 %v4365, %v4360
        %v5036 = vpack.c.b16 %v4366, %v4361
        %v5037 = vpack.c.b16 %v4367, %v4362
        %v5038 = vpack.c.b16 %v4368, %v4363
        %v5039 = vpack.c.b16 %v4374, %v4369
        %v5040 = vpack.c.b16 %v4375, %v4370
        %v5041 = vpack.c.b16 %v4376, %v4371
        %v5042 = vpack.c.b16 %v4377, %v4372
        %v5043 = vpack.c.b16 %v4378, %v4373
        %v5044 = vpack.c.b16 %v4384, %v4379
        %v5045 = vpack.c.b16 %v4385, %v4380
        %v5046 = vpack.c.b16 %v4386, %v4381
        %v5047 = vpack.c.b16 %v4387, %v4382
        %v5048 = vpack.c.b16 %v4388, %v4383
        %v5049 = vpack.c.b16 %v4394, %v4389
        %v5050 = vpack.c.b16 %v4395, %v4390
        %v5051 = vpack.c.b16 %v4396, %v4391
        %v5052 = vpack.c.b16 %v4397, %v4392
        %v5053 = vpack.c.b16 %v4398, %v4393
        %v5054 = vpack.c.b16 %v4404, %v4399
        %v5055 = vpack.c.b16 %v4405, %v4400
        %v5056 = vpack.c.b16 %v4406, %v4401
        %v5057 = vpack.c.b16 %v4407, %v4402
        %v5058 = vpack.c.b16 %v4408, %v4403
        %v5059 = vpack.c.b16 %v4414, %v4409
        %v5060 = vpack.c.b16 %v4415, %v4410
        %v5061 = vpack.c.b16 %v4416, %v4411
        %v5062 = vpack.c.b16 %v4417, %v4412
        %v5063 = vpack.c.b16 %v4418, %v4413
        %v5064 = vpack.c.b16 %v4424, %v4419
        %v5065 = vpack.c.b16 %v4425, %v4420
        %v5066 = vpack.c.b16 %v4426, %v4421
        %v5067 = vpack.c.b16 %v4427, %v4422
        %v5068 = vpack.c.b16 %v4428, %v4423
        %v5069 = vpack.c.b16 %v4434, %v4429
        %v5070 = vpack.c.b16 %v4435, %v4430
        %v5071 = vpack.c.b16 %v4436, %v4431
        %v5072 = vpack.c.b16 %v4437, %v4432
        %v5073 = vpack.c.b16 %v4438, %v4433
        %v5074 = vpack.c.b16 %v4444, %v4439
        %v5075 = vpack.c.b16 %v4445, %v4440
        %v5076 = vpack.c.b16 %v4446, %v4441
        %v5077 = vpack.c.b16 %v4447, %v4442
        %v5078 = vpack.c.b16 %v4448, %v4443
        %v5079 = vpack.c.b16 %v4454, %v4449
        %v5080 = vpack.c.b16 %v4455, %v4450
        %v5081 = vpack.c.b16 %v4456, %v4451
        %v5082 = vpack.c.b16 %v4457, %v4452
        %v5083 = vpack.c.b16 %v4458, %v4453
        %v5084 = vpack.c.b16 %v4464, %v4459
        %v5085 = vpack.c.b16 %v4465, %v4460
        %v5086 = vpack.c.b16 %v4466, %v4461
        %v5087 = vpack.c.b16 %v4467, %v4462
        %v5088 = vpack.c.b16 %v4468, %v4463
        %v5089 = vpack.c.b16 %v4474, %v4469
        %v5090 = vpack.c.b16 %v4475, %v4470
        %v5091 = vpack.c.b16 %v4476, %v4471
        %v5092 = vpack.c.b16 %v4477, %v4472
        %v5093 = vpack.c.b16 %v4478, %v4473
        %v5094 = vpack.c.b16 %v4484, %v4479
        %v5095 = vpack.c.b16 %v4485, %v4480
        %v5096 = vpack.c.b16 %v4486, %v4481
        %v5097 = vpack.c.b16 %v4487, %v4482
        %v5098 = vpack.c.b16 %v4488, %v4483
        %v5099 = vpack.c.b16 %v4494, %v4489
        %v5100 = vpack.c.b16 %v4495, %v4490
        %v5101 = vpack.c.b16 %v4496, %v4491
        %v5102 = vpack.c.b16 %v4497, %v4492
        %v5103 = vpack.c.b16 %v4498, %v4493
        %v5104 = vpack.c.b16 %v4504, %v4499
        %v5105 = vpack.c.b16 %v4505, %v4500
        %v5106 = vpack.c.b16 %v4506, %v4501
        %v5107 = vpack.c.b16 %v4507, %v4502
        %v5108 = vpack.c.b16 %v4508, %v4503
        %v5109 = vpack.c.b16 %v4514, %v4509
        %v5110 = vpack.c.b16 %v4515, %v4510
        %v5111 = vpack.c.b16 %v4516, %v4511
        %v5112 = vpack.c.b16 %v4517, %v4512
        %v5113 = vpack.c.b16 %v4518, %v4513
        %v5114 = vpack.c.b16 %v4524, %v4519
        %v5115 = vpack.c.b16 %v4525, %v4520
        %v5116 = vpack.c.b16 %v4526, %v4521
        %v5117 = vpack.c.b16 %v4527, %v4522
        %v5118 = vpack.c.b16 %v4528, %v4523
        %v5119 = vpack.c.b16 %v4534, %v4529
        %v5120 = vpack.c.b16 %v4535, %v4530
        %v5121 = vpack.c.b16 %v4536, %v4531
        %v5122 = vpack.c.b16 %v4537, %v4532
        %v5123 = vpack.c.b16 %v4538, %v4533
        %v5124 = vpack.c.b16 %v4544, %v4539
        %v5125 = vpack.c.b16 %v4545, %v4540
        %v5126 = vpack.c.b16 %v4546, %v4541
        %v5127 = vpack.c.b16 %v4547, %v4542
        %v5128 = vpack.c.b16 %v4548, %v4543
        %v5129 = vpack.c.b16 %v4554, %v4549
        %v5130 = vpack.c.b16 %v4555, %v4550
        %v5131 = vpack.c.b16 %v4556, %v4551
        %v5132 = vpack.c.b16 %v4557, %v4552
        %v5133 = vpack.c.b16 %v4558, %v4553
        %v5134 = vpack.c.b16 %v4564, %v4559
        %v5135 = vpack.c.b16 %v4565, %v4560
        %v5136 = vpack.c.b16 %v4566, %v4561
        %v5137 = vpack.c.b16 %v4567, %v4562
        %v5138 = vpack.c.b16 %v4568, %v4563
        %v5139 = vpack.c.b16 %v4574, %v4569
        %v5140 = vpack.c.b16 %v4575, %v4570
        %v5141 = vpack.c.b16 %v4576, %v4571
        %v5142 = vpack.c.b16 %v4577, %v4572
        %v5143 = vpack.c.b16 %v4578, %v4573
        %v5144 = vpack.c.b16 %v4584, %v4579
        %v5145 = vpack.c.b16 %v4585, %v4580
        %v5146 = vpack.c.b16 %v4586, %v4581
        %v5147 = vpack.c.b16 %v4587, %v4582
        %v5148 = vpack.c.b16 %v4588, %v4583
        %v5149 = vpack.c.b16 %v4594, %v4589
        %v5150 = vpack.c.b16 %v4595, %v4590
        %v5151 = vpack.c.b16 %v4596, %v4591
        %v5152 = vpack.c.b16 %v4597, %v4592
        %v5153 = vpack.c.b16 %v4598, %v4593
        %v5154 = vpack.c.b16 %v4604, %v4599
        %v5155 = vpack.c.b16 %v4605, %v4600
        %v5156 = vpack.c.b16 %v4606, %v4601
        %v5157 = vpack.c.b16 %v4607, %v4602
        %v5158 = vpack.c.b16 %v4608, %v4603
        %v5159 = vpack.c.b16 %v4614, %v4609
        %v5160 = vpack.c.b16 %v4615, %v4610
        %v5161 = vpack.c.b16 %v4616, %v4611
        %v5162 = vpack.c.b16 %v4617, %v4612
        %v5163 = vpack.c.b16 %v4618, %v4613
        %v5164 = vpack.c.b16 %v4624, %v4619
        %v5165 = vpack.c.b16 %v4625, %v4620
        %v5166 = vpack.c.b16 %v4626, %v4621
        %v5167 = vpack.c.b16 %v4627, %v4622
        %v5168 = vpack.c.b16 %v4628, %v4623
        %v5169 = vpack.c.b16 %v4634, %v4629
        %v5170 = vpack.c.b16 %v4635, %v4630
        %v5171 = vpack.c.b16 %v4636, %v4631
        %v5172 = vpack.c.b16 %v4637, %v4632
        %v5173 = vpack.c.b16 %v4638, %v4633
        %v5174 = vpack.c.b16 %v4644, %v4639
        %v5175 = vpack.c.b16 %v4645, %v4640
        %v5176 = vpack.c.b16 %v4646, %v4641
        %v5177 = vpack.c.b16 %v4647, %v4642
        %v5178 = vpack.c.b16 %v4648, %v4643
        %v5179 = vpack.c.b16 %v4654, %v4649
        %v5180 = vpack.c.b16 %v4655, %v4650
        %v5181 = vpack.c.b16 %v4656, %v4651
        %v5182 = vpack.c.b16 %v4657, %v4652
        %v5183 = vpack.c.b16 %v4658, %v4653
        %v5184 = vpack.c.b16 %v4664, %v4659
        %v5185 = vpack.c.b16 %v4665, %v4660
        %v5186 = vpack.c.b16 %v4666, %v4661
        %v5187 = vpack.c.b16 %v4667, %v4662
        %v5188 = vpack.c.b16 %v4668, %v4663
        %v5189 = vpack.c.b16 %v4674, %v4669
        %v5190 = vpack.c.b16 %v4675, %v4670
        %v5191 = vpack.c.b16 %v4676, %v4671
        %v5192 = vpack.c.b16 %v4677, %v4672
        %v5193 = vpack.c.b16 %v4678, %v4673
        %v5194 = vpack.c.b16 %v4684, %v4679
        %v5195 = vpack.c.b16 %v4685, %v4680
        %v5196 = vpack.c.b16 %v4686, %v4681
        %v5197 = vpack.c.b16 %v4687, %v4682
        %v5198 = vpack.c.b16 %v4688, %v4683
        %v5199 = vpack.c.b16 %v4694, %v4689
        %v5200 = vpack.c.b16 %v4695, %v4690
        %v5201 = vpack.c.b16 %v4696, %v4691
        %v5202 = vpack.c.b16 %v4697, %v4692
        %v5203 = vpack.c.b16 %v4698, %v4693
        %v5204 = vpack.c.b16 %v4704, %v4699
        %v5205 = vpack.c.b16 %v4705, %v4700
        %v5206 = vpack.c.b16 %v4706, %v4701
        %v5207 = vpack.c.b16 %v4707, %v4702
        %v5208 = vpack.c.b16 %v4708, %v4703
        %v5209 = vpack.c.b16 %v4714, %v4709
        %v5210 = vpack.c.b16 %v4715, %v4710
        %v5211 = vpack.c.b16 %v4716, %v4711
        %v5212 = vpack.c.b16 %v4717, %v4712
        %v5213 = vpack.c.b16 %v4718, %v4713
        %v5214 = vpack.c.b16 %v4724, %v4719
        %v5215 = vpack.c.b16 %v4725, %v4720
        %v5216 = vpack.c.b16 %v4726, %v4721
        %v5217 = vpack.c.b16 %v4727, %v4722
        %v5218 = vpack.c.b16 %v4728, %v4723
        %v5219 = vpack.c.b16 %v4734, %v4729
        %v5220 = vpack.c.b16 %v4735, %v4730
        %v5221 = vpack.c.b16 %v4736, %v4731
        %v5222 = vpack.c.b16 %v4737, %v4732
        %v5223 = vpack.c.b16 %v4738, %v4733
        %v5224 = vpack.c.b16 %v4744, %v4739
        %v5225 = vpack.c.b16 %v4745, %v4740
        %v5226 = vpack.c.b16 %v4746, %v4741
        %v5227 = vpack.c.b16 %v4747, %v4742
        %v5228 = vpack.c.b16 %v4748, %v4743
        %v5229 = vpack.c.b16 %v4754, %v4749
        %v5230 = vpack.c.b16 %v4755, %v4750
        %v5231 = vpack.c.b16 %v4756, %v4751
        %v5232 = vpack.c.b16 %v4757, %v4752
        %v5233 = vpack.c.b16 %v4758, %v4753
        %v5234 = vpack.c.b16 %v4764, %v4759
        %v5235 = vpack.c.b16 %v4765, %v4760
        %v5236 = vpack.c.b16 %v4766, %v4761
        %v5237 = vpack.c.b16 %v4767, %v4762
        %v5238 = vpack.c.b16 %v4768, %v4763
        %v5239 = vpack.c.b16 %v4774, %v4769
        %v5240 = vpack.c.b16 %v4775, %v4770
        %v5241 = vpack.c.b16 %v4776, %v4771
        %v5242 = vpack.c.b16 %v4777, %v4772
        %v5243 = vpack.c.b16 %v4778, %v4773
        %v5244 = vpack.c.b16 %v4784, %v4779
        %v5245 = vpack.c.b16 %v4785, %v4780
        %v5246 = vpack.c.b16 %v4786, %v4781
        %v5247 = vpack.c.b16 %v4787, %v4782
        %v5248 = vpack.c.b16 %v4788, %v4783
        %v5249 = vpack.c.b16 %v4794, %v4789
        %v5250 = vpack.c.b16 %v4795, %v4790
        %v5251 = vpack.c.b16 %v4796, %v4791
        %v5252 = vpack.c.b16 %v4797, %v4792
        %v5253 = vpack.c.b16 %v4798, %v4793
        %v5254 = vpack.c.b16 %v4804, %v4799
        %v5255 = vpack.c.b16 %v4805, %v4800
        %v5256 = vpack.c.b16 %v4806, %v4801
        %v5257 = vpack.c.b16 %v4807, %v4802
        %v5258 = vpack.c.b16 %v4808, %v4803
        %v5259 = vpack.c.b16 %v4814, %v4809
        %v5260 = vpack.c.b16 %v4815, %v4810
        %v5261 = vpack.c.b16 %v4816, %v4811
        %v5262 = vpack.c.b16 %v4817, %v4812
        %v5263 = vpack.c.b16 %v4818, %v4813
        %v5264 = vpack.c.b16 %v4824, %v4819
        %v5265 = vpack.c.b16 %v4825, %v4820
        %v5266 = vpack.c.b16 %v4826, %v4821
        %v5267 = vpack.c.b16 %v4827, %v4822
        %v5268 = vpack.c.b16 %v4828, %v4823
        %v5269 = vpack.c.b16 %v4834, %v4829
        %v5270 = vpack.c.b16 %v4835, %v4830
        %v5271 = vpack.c.b16 %v4836, %v4831
        %v5272 = vpack.c.b16 %v4837, %v4832
        %v5273 = vpack.c.b16 %v4838, %v4833
        %v5274 = vpack.c.b16 %v4844, %v4839
        %v5275 = vpack.c.b16 %v4845, %v4840
        %v5276 = vpack.c.b16 %v4846, %v4841
        %v5277 = vpack.c.b16 %v4847, %v4842
        %v5278 = vpack.c.b16 %v4848, %v4843
        %v5279 = vpack.c.b16 %v4854, %v4849
        %v5280 = vpack.c.b16 %v4855, %v4850
        %v5281 = vpack.c.b16 %v4856, %v4851
        %v5282 = vpack.c.b16 %v4857, %v4852
        %v5283 = vpack.c.b16 %v4858, %v4853
        %v5284 = vpack.c.b16 %v4864, %v4859
        %v5285 = vpack.c.b16 %v4865, %v4860
        %v5286 = vpack.c.b16 %v4866, %v4861
        %v5287 = vpack.c.b16 %v4867, %v4862
        %v5288 = vpack.c.b16 %v4868, %v4863
        %v5289 = vpack.c.b16 %v4874, %v4869
        %v5290 = vpack.c.b16 %v4875, %v4870
        %v5291 = vpack.c.b16 %v4876, %v4871
        %v5292 = vpack.c.b16 %v4877, %v4872
        %v5293 = vpack.c.b16 %v4878, %v4873
        %v5294 = vpack.c.b16 %v4884, %v4879
        %v5295 = vpack.c.b16 %v4885, %v4880
        %v5296 = vpack.c.b16 %v4886, %v4881
        %v5297 = vpack.c.b16 %v4887, %v4882
        %v5298 = vpack.c.b16 %v4888, %v4883
        %v5299 = vpack.c.b16 %v4894, %v4889
        %v5300 = vpack.c.b16 %v4895, %v4890
        %v5301 = vpack.c.b16 %v4896, %v4891
        %v5302 = vpack.c.b16 %v4897, %v4892
        %v5303 = vpack.c.b16 %v4898, %v4893
        %v5304 = vpack.c.b16 %v4904, %v4899
        %v5305 = vpack.c.b16 %v4905, %v4900
        %v5306 = vpack.c.b16 %v4906, %v4901
        %v5307 = vpack.c.b16 %v4907, %v4902
        %v5308 = vpack.c.b16 %v4908, %v4903
        %5709 = vmatprep.subr.bf16.mxu0 %v4910
        %5710 = vmatpush1.bf16.msra.mxu0 %v4909
        %5711 = vmatprep.subr.bf16.mxu0 %v4915
        %5712 = vmatpush1.bf16.msra.mxu0 %v4914
        %5713 = vmatprep.subr.bf16.mxu0 %v4920
        %5714 = vmatpush1.bf16.msra.mxu0 %v4919
        %5715 = vmatprep.subr.bf16.mxu0 %v4925
        %5716 = vmatpush1.bf16.msra.mxu0 %v4924
        %5717 = vmatprep.subr.bf16.mxu0 %v4930
        %5718 = vmatpush1.bf16.msra.mxu0 %v4929
        %5719 = vmatprep.subr.bf16.mxu0 %v4935
        %5720 = vmatpush1.bf16.msra.mxu0 %v4934
        %5721 = vmatprep.subr.bf16.mxu0 %v4940
        %5722 = vmatpush1.bf16.msra.mxu0 %v4939
        %5723 = vmatprep.subr.bf16.mxu0 %v4945
        %5724 = vmatpush1.bf16.msra.mxu0 %v4944
        %5725 = vmatprep.subr.bf16.mxu0 %v4950
        %5726 = vmatpush1.bf16.msra.mxu0 %v4949
        %5727 = vmatprep.subr.bf16.mxu0 %v4955
        %5728 = vmatpush1.bf16.msra.mxu0 %v4954
        %5729 = vmatprep.subr.bf16.mxu0 %v4960
        %5730 = vmatpush1.bf16.msra.mxu0 %v4959
        %5731 = vmatprep.subr.bf16.mxu0 %v4965
        %5732 = vmatpush1.bf16.msra.mxu0 %v4964
        %5733 = vmatprep.subr.bf16.mxu0 %v4970
        %5734 = vmatpush1.bf16.msra.mxu0 %v4969
        %5735 = vmatprep.subr.bf16.mxu0 %v4975
        %5736 = vmatpush1.bf16.msra.mxu0 %v4974
        %5737 = vmatprep.subr.bf16.mxu0 %v4980
        %5738 = vmatpush1.bf16.msra.mxu0 %v4979
        %5739 = vmatprep.subr.bf16.mxu0 %v4985
        %5740 = vmatpush1.bf16.msra.mxu0 %v4984
        %5741 = vmatprep.mubr.bf16.mxu0 %v3043
        %5742 = vmatmul.mubr.bf16.gmra.mrb[0].mxu0 %v3042
        %v5743 = vpop.f32.mrb[0].mxu0
        %v5744 = vadd.f32 %v3607, %v5743
        %v5745 = vpop.f32.mrb[0].mxu0
        %v5746 = vadd.f32 %v3611, %v5745
        %v5747 = vpop.f32.mrb[0].mxu0
        %v5748 = vadd.f32 %v3607, %v5747
        %v5749 = vpop.f32.mrb[0].mxu0
        %v5750 = vadd.f32 %v3611, %v5749
        %5751 = vmatprep.mubr.bf16.mxu0 %v3053
        %5752 = vmatmul.mubr.bf16.gmra.mrb[0].mxu0 %v3052
        %v5753 = vpop.f32.mrb[0].mxu0
        %v5754 = vadd.f32 %v3607, %v5753
        %v5755 = vpop.f32.mrb[0].mxu0
        %v5756 = vadd.f32 %v3611, %v5755
        %v5757 = vpop.f32.mrb[0].mxu0
        %v5758 = vadd.f32 %v3607, %v5757
        %v5759 = vpop.f32.mrb[0].mxu0
        %v5760 = vadd.f32 %v3611, %v5759
        %5761 = vmatprep.mubr.bf16.mxu0 %v3063
        %5762 = vmatmul.mubr.bf16.gmra.mrb[0].mxu0 %v3062
        %v5763 = vpop.f32.mrb[0].mxu0
        %v5764 = vadd.f32 %v3607, %v5763
        %v5765 = vpop.f32.mrb[0].mxu0
        %v5766 = vadd.f32 %v3611, %v5765
        %v5767 = vpop.f32.mrb[0].mxu0
        %v5768 = vadd.f32 %v3607, %v5767
        %v5769 = vpop.f32.mrb[0].mxu0
        %v5770 = vadd.f32 %v3611, %v5769
        %5771 = vmatprep.mubr.bf16.mxu0 %v3073
        %5772 = vmatmul.mubr.bf16.gmra.mrb[0].mxu0 %v3072
        %v5773 = vpop.f32.mrb[0].mxu0
        %v5774 = vadd.f32 %v3607, %v5773
        %v5775 = vpop.f32.mrb[0].mxu0
        %v5776 = vadd.f32 %v3611, %v5775
        %v5777 = vpop.f32.mrb[0].mxu0
        %v5778 = vadd.f32 %v3607, %v5777
        %v5779 = vpop.f32.mrb[0].mxu0
        %v5780 = vadd.f32 %v3611, %v5779
        %5781 = vmatprep.mubr.bf16.mxu0 %v3083
        %5782 = vmatmul.mubr.bf16.gmra.mrb[0].mxu0 %v3082
        %v5783 = vpop.f32.mrb[0].mxu0
        %v5784 = vadd.f32 %v3607, %v5783
        %v5785 = vpop.f32.mrb[0].mxu0
        %v5786 = vadd.f32 %v3611, %v5785
        %v5787 = vpop.f32.mrb[0].mxu0
        %v5788 = vadd.f32 %v3607, %v5787
        %v5789 = vpop.f32.mrb[0].mxu0
        %v5790 = vadd.f32 %v3611, %v5789
        %5791 = vmatprep.mubr.bf16.mxu0 %v3093
        %5792 = vmatmul.mubr.bf16.gmra.mrb[0].mxu0 %v3092
        %v5793 = vpop.f32.mrb[0].mxu0
        %v5794 = vadd.f32 %v3607, %v5793
        %v5795 = vpop.f32.mrb[0].mxu0
        %v5796 = vadd.f32 %v3611, %v5795
        %v5797 = vpop.f32.mrb[0].mxu0
        %v5798 = vadd.f32 %v3607, %v5797
        %v5799 = vpop.f32.mrb[0].mxu0
        %v5800 = vadd.f32 %v3611, %v5799
        %5801 = vmatprep.mubr.bf16.mxu0 %v3103
        %5802 = vmatmul.mubr.bf16.gmra.mrb[0].mxu0 %v3102
        %v5803 = vpop.f32.mrb[0].mxu0
        %v5804 = vadd.f32 %v3607, %v5803
        %v5805 = vpop.f32.mrb[0].mxu0
        %v5806 = vadd.f32 %v3611, %v5805
        %v5807 = vpop.f32.mrb[0].mxu0
        %v5808 = vadd.f32 %v3607, %v5807
        %v5809 = vpop.f32.mrb[0].mxu0
        %v5810 = vadd.f32 %v3611, %v5809
        %5811 = vmatprep.mubr.bf16.mxu0 %v3113
        %5812 = vmatmul.mubr.bf16.gmra.mrb[0].mxu0 %v3112
        %v5813 = vpop.f32.mrb[0].mxu0
        %v5814 = vadd.f32 %v3607, %v5813
        %v5815 = vpop.f32.mrb[0].mxu0
        %v5816 = vadd.f32 %v3611, %v5815
        %v5817 = vpop.f32.mrb[0].mxu0
        %v5818 = vadd.f32 %v3607, %v5817
        %v5819 = vpop.f32.mrb[0].mxu0
        %v5820 = vadd.f32 %v3611, %v5819
        %5821 = vdwg.mxu0
        %5822 = vmatprep.subr.bf16.mxu0 %v4990
        %5823 = vmatpush1.bf16.msra.mxu0 %v4989
        %5824 = vmatprep.subr.bf16.mxu0 %v4995
        %5825 = vmatpush1.bf16.msra.mxu0 %v4994
        %5826 = vmatprep.subr.bf16.mxu0 %v5000
        %5827 = vmatpush1.bf16.msra.mxu0 %v4999
        %5828 = vmatprep.subr.bf16.mxu0 %v5005
        %5829 = vmatpush1.bf16.msra.mxu0 %v5004
        %5830 = vmatprep.subr.bf16.mxu0 %v5010
        %5831 = vmatpush1.bf16.msra.mxu0 %v5009
        %5832 = vmatprep.subr.bf16.mxu0 %v5015
        %5833 = vmatpush1.bf16.msra.mxu0 %v5014
        %5834 = vmatprep.subr.bf16.mxu0 %v5020
        %5835 = vmatpush1.bf16.msra.mxu0 %v5019
        %5836 = vmatprep.subr.bf16.mxu0 %v5025
        %5837 = vmatpush1.bf16.msra.mxu0 %v5024
        %5838 = vmatprep.subr.bf16.mxu0 %v5030
        %5839 = vmatpush1.bf16.msra.mxu0 %v5029
        %5840 = vmatprep.subr.bf16.mxu0 %v5035
        %5841 = vmatpush1.bf16.msra.mxu0 %v5034
        %5842 = vmatprep.subr.bf16.mxu0 %v5040
        %5843 = vmatpush1.bf16.msra.mxu0 %v5039
        %5844 = vmatprep.subr.bf16.mxu0 %v5045
        %5845 = vmatpush1.bf16.msra.mxu0 %v5044
        %5846 = vmatprep.subr.bf16.mxu0 %v5050
        %5847 = vmatpush1.bf16.msra.mxu0 %v5049
        %5848 = vmatprep.subr.bf16.mxu0 %v5055
        %5849 = vmatpush1.bf16.msra.mxu0 %v5054
        %5850 = vmatprep.subr.bf16.mxu0 %v5060
        %5851 = vmatpush1.bf16.msra.mxu0 %v5059
        %5852 = vmatprep.subr.bf16.mxu0 %v5065
        %5853 = vmatpush1.bf16.msra.mxu0 %v5064
        %5854 = vmatprep.mubr.bf16.mxu0 %v3045
        %5855 = vmatmul.mubr.bf16.gmra.mrb[0].mxu0 %v3044
        %v5856 = vpop.f32.mrb[0].mxu0
        %v5857 = vadd.f32 %v5744, %v5856
        %v5858 = vpop.f32.mrb[0].mxu0
        %v5859 = vadd.f32 %v5746, %v5858
        %v5860 = vpop.f32.mrb[0].mxu0
        %v5861 = vadd.f32 %v5748, %v5860
        %v5862 = vpop.f32.mrb[0].mxu0
        %v5863 = vadd.f32 %v5750, %v5862
        %5864 = vmatprep.mubr.bf16.mxu0 %v3055
        %5865 = vmatmul.mubr.bf16.gmra.mrb[0].mxu0 %v3054
        %v5866 = vpop.f32.mrb[0].mxu0
        %v5867 = vadd.f32 %v5754, %v5866
        %v5868 = vpop.f32.mrb[0].mxu0
        %v5869 = vadd.f32 %v5756, %v5868
        %v5870 = vpop.f32.mrb[0].mxu0
        %v5871 = vadd.f32 %v5758, %v5870
        %v5872 = vpop.f32.mrb[0].mxu0
        %v5873 = vadd.f32 %v5760, %v5872
        %5874 = vmatprep.mubr.bf16.mxu0 %v3065
        %5875 = vmatmul.mubr.bf16.gmra.mrb[0].mxu0 %v3064
        %v5876 = vpop.f32.mrb[0].mxu0
        %v5877 = vadd.f32 %v5764, %v5876
        %v5878 = vpop.f32.mrb[0].mxu0
        %v5879 = vadd.f32 %v5766, %v5878
        %v5880 = vpop.f32.mrb[0].mxu0
        %v5881 = vadd.f32 %v5768, %v5880
        %v5882 = vpop.f32.mrb[0].mxu0
        %v5883 = vadd.f32 %v5770, %v5882
        %5884 = vmatprep.mubr.bf16.mxu0 %v3075
        %5885 = vmatmul.mubr.bf16.gmra.mrb[0].mxu0 %v3074
        %v5886 = vpop.f32.mrb[0].mxu0
        %v5887 = vadd.f32 %v5774, %v5886
        %v5888 = vpop.f32.mrb[0].mxu0
        %v5889 = vadd.f32 %v5776, %v5888
        %v5890 = vpop.f32.mrb[0].mxu0
        %v5891 = vadd.f32 %v5778, %v5890
        %v5892 = vpop.f32.mrb[0].mxu0
        %v5893 = vadd.f32 %v5780, %v5892
        %5894 = vmatprep.mubr.bf16.mxu0 %v3085
        %5895 = vmatmul.mubr.bf16.gmra.mrb[0].mxu0 %v3084
        %v5896 = vpop.f32.mrb[0].mxu0
        %v5897 = vadd.f32 %v5784, %v5896
        %v5898 = vpop.f32.mrb[0].mxu0
        %v5899 = vadd.f32 %v5786, %v5898
        %v5900 = vpop.f32.mrb[0].mxu0
        %v5901 = vadd.f32 %v5788, %v5900
        %v5902 = vpop.f32.mrb[0].mxu0
        %v5903 = vadd.f32 %v5790, %v5902
        %5904 = vmatprep.mubr.bf16.mxu0 %v3095
        %5905 = vmatmul.mubr.bf16.gmra.mrb[0].mxu0 %v3094
        %v5906 = vpop.f32.mrb[0].mxu0
        %v5907 = vadd.f32 %v5794, %v5906
        %v5908 = vpop.f32.mrb[0].mxu0
        %v5909 = vadd.f32 %v5796, %v5908
        %v5910 = vpop.f32.mrb[0].mxu0
        %v5911 = vadd.f32 %v5798, %v5910
        %v5912 = vpop.f32.mrb[0].mxu0
        %v5913 = vadd.f32 %v5800, %v5912
        %5914 = vmatprep.mubr.bf16.mxu0 %v3105
        %5915 = vmatmul.mubr.bf16.gmra.mrb[0].mxu0 %v3104
        %v5916 = vpop.f32.mrb[0].mxu0
        %v5917 = vadd.f32 %v5804, %v5916
        %v5918 = vpop.f32.mrb[0].mxu0
        %v5919 = vadd.f32 %v5806, %v5918
        %v5920 = vpop.f32.mrb[0].mxu0
        %v5921 = vadd.f32 %v5808, %v5920
        %v5922 = vpop.f32.mrb[0].mxu0
        %v5923 = vadd.f32 %v5810, %v5922
        %5924 = vmatprep.mubr.bf16.mxu0 %v3115
        %5925 = vmatmul.mubr.bf16.gmra.mrb[0].mxu0 %v3114
        %v5926 = vpop.f32.mrb[0].mxu0
        %v5927 = vadd.f32 %v5814, %v5926
        %v5928 = vpop.f32.mrb[0].mxu0
        %v5929 = vadd.f32 %v5816, %v5928
        %v5930 = vpop.f32.mrb[0].mxu0
        %v5931 = vadd.f32 %v5818, %v5930
        %v5932 = vpop.f32.mrb[0].mxu0
        %v5933 = vadd.f32 %v5820, %v5932
        %5934 = vdwg.mxu0
        %5935 = vmatprep.subr.bf16.mxu0 %v5070
        %5936 = vmatpush1.bf16.msra.mxu0 %v5069
        %5937 = vmatprep.subr.bf16.mxu0 %v5075
        %5938 = vmatpush1.bf16.msra.mxu0 %v5074
        %5939 = vmatprep.subr.bf16.mxu0 %v5080
        %5940 = vmatpush1.bf16.msra.mxu0 %v5079
        %5941 = vmatprep.subr.bf16.mxu0 %v5085
        %5942 = vmatpush1.bf16.msra.mxu0 %v5084
        %5943 = vmatprep.subr.bf16.mxu0 %v5090
        %5944 = vmatpush1.bf16.msra.mxu0 %v5089
        %5945 = vmatprep.subr.bf16.mxu0 %v5095
        %5946 = vmatpush1.bf16.msra.mxu0 %v5094
        %5947 = vmatprep.subr.bf16.mxu0 %v5100
        %5948 = vmatpush1.bf16.msra.mxu0 %v5099
        %5949 = vmatprep.subr.bf16.mxu0 %v5105
        %5950 = vmatpush1.bf16.msra.mxu0 %v5104
        %5951 = vmatprep.subr.bf16.mxu0 %v5110
        %5952 = vmatpush1.bf16.msra.mxu0 %v5109
        %5953 = vmatprep.subr.bf16.mxu0 %v5115
        %5954 = vmatpush1.bf16.msra.mxu0 %v5114
        %5955 = vmatprep.subr.bf16.mxu0 %v5120
        %5956 = vmatpush1.bf16.msra.mxu0 %v5119
        %5957 = vmatprep.subr.bf16.mxu0 %v5125
        %5958 = vmatpush1.bf16.msra.mxu0 %v5124
        %5959 = vmatprep.subr.bf16.mxu0 %v5130
        %5960 = vmatpush1.bf16.msra.mxu0 %v5129
        %5961 = vmatprep.subr.bf16.mxu0 %v5135
        %5962 = vmatpush1.bf16.msra.mxu0 %v5134
        %5963 = vmatprep.subr.bf16.mxu0 %v5140
        %5964 = vmatpush1.bf16.msra.mxu0 %v5139
        %5965 = vmatprep.subr.bf16.mxu0 %v5145
        %5966 = vmatpush1.bf16.msra.mxu0 %v5144
        %5967 = vmatprep.mubr.bf16.mxu0 %v3047
        %5968 = vmatmul.mubr.bf16.gmra.mrb[0].mxu0 %v3046
        %v5969 = vpop.f32.mrb[0].mxu0
        %v5970 = vadd.f32 %v5857, %v5969
        %v5971 = vpop.f32.mrb[0].mxu0
        %v5972 = vadd.f32 %v5859, %v5971
        %v5973 = vpop.f32.mrb[0].mxu0
        %v5974 = vadd.f32 %v5861, %v5973
        %v5975 = vpop.f32.mrb[0].mxu0
        %v5976 = vadd.f32 %v5863, %v5975
        %5977 = vmatprep.mubr.bf16.mxu0 %v3057
        %5978 = vmatmul.mubr.bf16.gmra.mrb[0].mxu0 %v3056
        %v5979 = vpop.f32.mrb[0].mxu0
        %v5980 = vadd.f32 %v5867, %v5979
        %v5981 = vpop.f32.mrb[0].mxu0
        %v5982 = vadd.f32 %v5869, %v5981
        %v5983 = vpop.f32.mrb[0].mxu0
        %v5984 = vadd.f32 %v5871, %v5983
        %v5985 = vpop.f32.mrb[0].mxu0
        %v5986 = vadd.f32 %v5873, %v5985
        %5987 = vmatprep.mubr.bf16.mxu0 %v3067
        %5988 = vmatmul.mubr.bf16.gmra.mrb[0].mxu0 %v3066
        %v5989 = vpop.f32.mrb[0].mxu0
        %v5990 = vadd.f32 %v5877, %v5989
        %v5991 = vpop.f32.mrb[0].mxu0
        %v5992 = vadd.f32 %v5879, %v5991
        %v5993 = vpop.f32.mrb[0].mxu0
        %v5994 = vadd.f32 %v5881, %v5993
        %v5995 = vpop.f32.mrb[0].mxu0
        %v5996 = vadd.f32 %v5883, %v5995
        %5997 = vmatprep.mubr.bf16.mxu0 %v3077
        %5998 = vmatmul.mubr.bf16.gmra.mrb[0].mxu0 %v3076
        %v5999 = vpop.f32.mrb[0].mxu0
        %v6000 = vadd.f32 %v5887, %v5999
        %v6001 = vpop.f32.mrb[0].mxu0
        %v6002 = vadd.f32 %v5889, %v6001
        %v6003 = vpop.f32.mrb[0].mxu0
        %v6004 = vadd.f32 %v5891, %v6003
        %v6005 = vpop.f32.mrb[0].mxu0
        %v6006 = vadd.f32 %v5893, %v6005
        %6007 = vmatprep.mubr.bf16.mxu0 %v3087
        %6008 = vmatmul.mubr.bf16.gmra.mrb[0].mxu0 %v3086
        %v6009 = vpop.f32.mrb[0].mxu0
        %v6010 = vadd.f32 %v5897, %v6009
        %v6011 = vpop.f32.mrb[0].mxu0
        %v6012 = vadd.f32 %v5899, %v6011
        %v6013 = vpop.f32.mrb[0].mxu0
        %v6014 = vadd.f32 %v5901, %v6013
        %v6015 = vpop.f32.mrb[0].mxu0
        %v6016 = vadd.f32 %v5903, %v6015
        %6017 = vmatprep.mubr.bf16.mxu0 %v3097
        %6018 = vmatmul.mubr.bf16.gmra.mrb[0].mxu0 %v3096
        %v6019 = vpop.f32.mrb[0].mxu0
        %v6020 = vadd.f32 %v5907, %v6019
        %v6021 = vpop.f32.mrb[0].mxu0
        %v6022 = vadd.f32 %v5909, %v6021
        %v6023 = vpop.f32.mrb[0].mxu0
        %v6024 = vadd.f32 %v5911, %v6023
        %v6025 = vpop.f32.mrb[0].mxu0
        %v6026 = vadd.f32 %v5913, %v6025
        %6027 = vmatprep.mubr.bf16.mxu0 %v3107
        %6028 = vmatmul.mubr.bf16.gmra.mrb[0].mxu0 %v3106
        %v6029 = vpop.f32.mrb[0].mxu0
        %v6030 = vadd.f32 %v5917, %v6029
        %v6031 = vpop.f32.mrb[0].mxu0
        %v6032 = vadd.f32 %v5919, %v6031
        %v6033 = vpop.f32.mrb[0].mxu0
        %v6034 = vadd.f32 %v5921, %v6033
        %v6035 = vpop.f32.mrb[0].mxu0
        %v6036 = vadd.f32 %v5923, %v6035
        %6037 = vmatprep.mubr.bf16.mxu0 %v3117
        %6038 = vmatmul.mubr.bf16.gmra.mrb[0].mxu0 %v3116
        %v6039 = vpop.f32.mrb[0].mxu0
        %v6040 = vadd.f32 %v5927, %v6039
        %v6041 = vpop.f32.mrb[0].mxu0
        %v6042 = vadd.f32 %v5929, %v6041
        %v6043 = vpop.f32.mrb[0].mxu0
        %v6044 = vadd.f32 %v5931, %v6043
        %v6045 = vpop.f32.mrb[0].mxu0
        %v6046 = vadd.f32 %v5933, %v6045
        %6047 = vdwg.mxu0
        %6048 = vmatprep.subr.bf16.mxu0 %v5150
        %6049 = vmatpush1.bf16.msra.mxu0 %v5149
        %6050 = vmatprep.subr.bf16.mxu0 %v5155
        %6051 = vmatpush1.bf16.msra.mxu0 %v5154
        %6052 = vmatprep.subr.bf16.mxu0 %v5160
        %6053 = vmatpush1.bf16.msra.mxu0 %v5159
        %6054 = vmatprep.subr.bf16.mxu0 %v5165
        %6055 = vmatpush1.bf16.msra.mxu0 %v5164
        %6056 = vmatprep.subr.bf16.mxu0 %v5170
        %6057 = vmatpush1.bf16.msra.mxu0 %v5169
        %6058 = vmatprep.subr.bf16.mxu0 %v5175
        %6059 = vmatpush1.bf16.msra.mxu0 %v5174
        %6060 = vmatprep.subr.bf16.mxu0 %v5180
        %6061 = vmatpush1.bf16.msra.mxu0 %v5179
        %6062 = vmatprep.subr.bf16.mxu0 %v5185
        %6063 = vmatpush1.bf16.msra.mxu0 %v5184
        %6064 = vmatprep.subr.bf16.mxu0 %v5190
        %6065 = vmatpush1.bf16.msra.mxu0 %v5189
        %6066 = vmatprep.subr.bf16.mxu0 %v5195
        %6067 = vmatpush1.bf16.msra.mxu0 %v5194
        %6068 = vmatprep.subr.bf16.mxu0 %v5200
        %6069 = vmatpush1.bf16.msra.mxu0 %v5199
        %6070 = vmatprep.subr.bf16.mxu0 %v5205
        %6071 = vmatpush1.bf16.msra.mxu0 %v5204
        %6072 = vmatprep.subr.bf16.mxu0 %v5210
        %6073 = vmatpush1.bf16.msra.mxu0 %v5209
        %6074 = vmatprep.subr.bf16.mxu0 %v5215
        %6075 = vmatpush1.bf16.msra.mxu0 %v5214
        %6076 = vmatprep.subr.bf16.mxu0 %v5220
        %6077 = vmatpush1.bf16.msra.mxu0 %v5219
        %6078 = vmatprep.subr.bf16.mxu0 %v5225
        %6079 = vmatpush1.bf16.msra.mxu0 %v5224
        %6080 = vmatprep.mubr.bf16.mxu0 %v3049
        %6081 = vmatmul.mubr.bf16.gmra.mrb[0].mxu0 %v3048
        %v6082 = vpop.f32.mrb[0].mxu0
        %v6083 = vadd.f32 %v5970, %v6082
        %v6084 = vpop.f32.mrb[0].mxu0
        %v6085 = vadd.f32 %v5972, %v6084
        %v6086 = vpop.f32.mrb[0].mxu0
        %v6087 = vadd.f32 %v5974, %v6086
        %v6088 = vpop.f32.mrb[0].mxu0
        %v6089 = vadd.f32 %v5976, %v6088
        %6090 = vmatprep.mubr.bf16.mxu0 %v3059
        %6091 = vmatmul.mubr.bf16.gmra.mrb[0].mxu0 %v3058
        %v6092 = vpop.f32.mrb[0].mxu0
        %v6093 = vadd.f32 %v5980, %v6092
        %v6094 = vpop.f32.mrb[0].mxu0
        %v6095 = vadd.f32 %v5982, %v6094
        %v6096 = vpop.f32.mrb[0].mxu0
        %v6097 = vadd.f32 %v5984, %v6096
        %v6098 = vpop.f32.mrb[0].mxu0
        %v6099 = vadd.f32 %v5986, %v6098
        %6100 = vmatprep.mubr.bf16.mxu0 %v3069
        %6101 = vmatmul.mubr.bf16.gmra.mrb[0].mxu0 %v3068
        %v6102 = vpop.f32.mrb[0].mxu0
        %v6103 = vadd.f32 %v5990, %v6102
        %v6104 = vpop.f32.mrb[0].mxu0
        %v6105 = vadd.f32 %v5992, %v6104
        %v6106 = vpop.f32.mrb[0].mxu0
        %v6107 = vadd.f32 %v5994, %v6106
        %v6108 = vpop.f32.mrb[0].mxu0
        %v6109 = vadd.f32 %v5996, %v6108
        %6110 = vmatprep.mubr.bf16.mxu0 %v3079
        %6111 = vmatmul.mubr.bf16.gmra.mrb[0].mxu0 %v3078
        %v6112 = vpop.f32.mrb[0].mxu0
        %v6113 = vadd.f32 %v6000, %v6112
        %v6114 = vpop.f32.mrb[0].mxu0
        %v6115 = vadd.f32 %v6002, %v6114
        %v6116 = vpop.f32.mrb[0].mxu0
        %v6117 = vadd.f32 %v6004, %v6116
        %v6118 = vpop.f32.mrb[0].mxu0
        %v6119 = vadd.f32 %v6006, %v6118
        %6120 = vmatprep.mubr.bf16.mxu0 %v3089
        %6121 = vmatmul.mubr.bf16.gmra.mrb[0].mxu0 %v3088
        %v6122 = vpop.f32.mrb[0].mxu0
        %v6123 = vadd.f32 %v6010, %v6122
        %v6124 = vpop.f32.mrb[0].mxu0
        %v6125 = vadd.f32 %v6012, %v6124
        %v6126 = vpop.f32.mrb[0].mxu0
        %v6127 = vadd.f32 %v6014, %v6126
        %v6128 = vpop.f32.mrb[0].mxu0
        %v6129 = vadd.f32 %v6016, %v6128
        %6130 = vmatprep.mubr.bf16.mxu0 %v3099
        %6131 = vmatmul.mubr.bf16.gmra.mrb[0].mxu0 %v3098
        %v6132 = vpop.f32.mrb[0].mxu0
        %v6133 = vadd.f32 %v6020, %v6132
        %v6134 = vpop.f32.mrb[0].mxu0
        %v6135 = vadd.f32 %v6022, %v6134
        %v6136 = vpop.f32.mrb[0].mxu0
        %v6137 = vadd.f32 %v6024, %v6136
        %v6138 = vpop.f32.mrb[0].mxu0
        %v6139 = vadd.f32 %v6026, %v6138
        %6140 = vmatprep.mubr.bf16.mxu0 %v3109
        %6141 = vmatmul.mubr.bf16.gmra.mrb[0].mxu0 %v3108
        %v6142 = vpop.f32.mrb[0].mxu0
        %v6143 = vadd.f32 %v6030, %v6142
        %v6144 = vpop.f32.mrb[0].mxu0
        %v6145 = vadd.f32 %v6032, %v6144
        %v6146 = vpop.f32.mrb[0].mxu0
        %v6147 = vadd.f32 %v6034, %v6146
        %v6148 = vpop.f32.mrb[0].mxu0
        %v6149 = vadd.f32 %v6036, %v6148
        %6150 = vmatprep.mubr.bf16.mxu0 %v3119
        %6151 = vmatmul.mubr.bf16.gmra.mrb[0].mxu0 %v3118
        %v6152 = vpop.f32.mrb[0].mxu0
        %v6153 = vadd.f32 %v6040, %v6152
        %v6154 = vpop.f32.mrb[0].mxu0
        %v6155 = vadd.f32 %v6042, %v6154
        %v6156 = vpop.f32.mrb[0].mxu0
        %v6157 = vadd.f32 %v6044, %v6156
        %v6158 = vpop.f32.mrb[0].mxu0
        %v6159 = vadd.f32 %v6046, %v6158
        %6160 = vdwg.mxu0
        %6161 = vmatprep.subr.bf16.mxu0 %v5230
        %6162 = vmatpush1.bf16.msra.mxu0 %v5229
        %6163 = vmatprep.subr.bf16.mxu0 %v5235
        %6164 = vmatpush1.bf16.msra.mxu0 %v5234
        %6165 = vmatprep.subr.bf16.mxu0 %v5240
        %6166 = vmatpush1.bf16.msra.mxu0 %v5239
        %6167 = vmatprep.subr.bf16.mxu0 %v5245
        %6168 = vmatpush1.bf16.msra.mxu0 %v5244
        %6169 = vmatprep.subr.bf16.mxu0 %v5250
        %6170 = vmatpush1.bf16.msra.mxu0 %v5249
        %6171 = vmatprep.subr.bf16.mxu0 %v5255
        %6172 = vmatpush1.bf16.msra.mxu0 %v5254
        %6173 = vmatprep.subr.bf16.mxu0 %v5260
        %6174 = vmatpush1.bf16.msra.mxu0 %v5259
        %6175 = vmatprep.subr.bf16.mxu0 %v5265
        %6176 = vmatpush1.bf16.msra.mxu0 %v5264
        %6177 = vmatprep.subr.bf16.mxu0 %v5270
        %6178 = vmatpush1.bf16.msra.mxu0 %v5269
        %6179 = vmatprep.subr.bf16.mxu0 %v5275
        %6180 = vmatpush1.bf16.msra.mxu0 %v5274
        %6181 = vmatprep.subr.bf16.mxu0 %v5280
        %6182 = vmatpush1.bf16.msra.mxu0 %v5279
        %6183 = vmatprep.subr.bf16.mxu0 %v5285
        %6184 = vmatpush1.bf16.msra.mxu0 %v5284
        %6185 = vmatprep.subr.bf16.mxu0 %v5290
        %6186 = vmatpush1.bf16.msra.mxu0 %v5289
        %6187 = vmatprep.subr.bf16.mxu0 %v5295
        %6188 = vmatpush1.bf16.msra.mxu0 %v5294
        %6189 = vmatprep.subr.bf16.mxu0 %v5300
        %6190 = vmatpush1.bf16.msra.mxu0 %v5299
        %6191 = vmatprep.subr.bf16.mxu0 %v5305
        %6192 = vmatpush1.bf16.msra.mxu0 %v5304
        %6193 = vmatprep.mubr.bf16.mxu0 %v3051
        %6194 = vmatmul.mubr.bf16.gmra.mrb[0].mxu0 %v3050
        %v6195 = vpop.f32.mrb[0].mxu0
        %v6196 = vadd.f32 %v6083, %v6195
        %v6197 = vpop.f32.mrb[0].mxu0
        %v6198 = vadd.f32 %v6085, %v6197
        %v6199 = vpop.f32.mrb[0].mxu0
        %v6200 = vadd.f32 %v6087, %v6199
        %v6201 = vpop.f32.mrb[0].mxu0
        %v6202 = vadd.f32 %v6089, %v6201
        %6203 = vmatprep.mubr.bf16.mxu0 %v3061
        %6204 = vmatmul.mubr.bf16.gmra.mrb[0].mxu0 %v3060
        %v6205 = vpop.f32.mrb[0].mxu0
        %v6206 = vadd.f32 %v6093, %v6205
        %v6207 = vpop.f32.mrb[0].mxu0
        %v6208 = vadd.f32 %v6095, %v6207
        %v6209 = vpop.f32.mrb[0].mxu0
        %v6210 = vadd.f32 %v6097, %v6209
        %v6211 = vpop.f32.mrb[0].mxu0
        %v6212 = vadd.f32 %v6099, %v6211
        %6213 = vmatprep.mubr.bf16.mxu0 %v3071
        %6214 = vmatmul.mubr.bf16.gmra.mrb[0].mxu0 %v3070
        %v6215 = vpop.f32.mrb[0].mxu0
        %v6216 = vadd.f32 %v6103, %v6215
        %v6217 = vpop.f32.mrb[0].mxu0
        %v6218 = vadd.f32 %v6105, %v6217
        %v6219 = vpop.f32.mrb[0].mxu0
        %v6220 = vadd.f32 %v6107, %v6219
        %v6221 = vpop.f32.mrb[0].mxu0
        %v6222 = vadd.f32 %v6109, %v6221
        %6223 = vmatprep.mubr.bf16.mxu0 %v3081
        %6224 = vmatmul.mubr.bf16.gmra.mrb[0].mxu0 %v3080
        %v6225 = vpop.f32.mrb[0].mxu0
        %v6226 = vadd.f32 %v6113, %v6225
        %v6227 = vpop.f32.mrb[0].mxu0
        %v6228 = vadd.f32 %v6115, %v6227
        %v6229 = vpop.f32.mrb[0].mxu0
        %v6230 = vadd.f32 %v6117, %v6229
        %v6231 = vpop.f32.mrb[0].mxu0
        %v6232 = vadd.f32 %v6119, %v6231
        %6233 = vmatprep.mubr.bf16.mxu0 %v3091
        %6234 = vmatmul.mubr.bf16.gmra.mrb[0].mxu0 %v3090
        %v6235 = vpop.f32.mrb[0].mxu0
        %v6236 = vadd.f32 %v6123, %v6235
        %v6237 = vpop.f32.mrb[0].mxu0
        %v6238 = vadd.f32 %v6125, %v6237
        %v6239 = vpop.f32.mrb[0].mxu0
        %v6240 = vadd.f32 %v6127, %v6239
        %v6241 = vpop.f32.mrb[0].mxu0
        %v6242 = vadd.f32 %v6129, %v6241
        %6243 = vmatprep.mubr.bf16.mxu0 %v3101
        %6244 = vmatmul.mubr.bf16.gmra.mrb[0].mxu0 %v3100
        %v6245 = vpop.f32.mrb[0].mxu0
        %v6246 = vadd.f32 %v6133, %v6245
        %v6247 = vpop.f32.mrb[0].mxu0
        %v6248 = vadd.f32 %v6135, %v6247
        %v6249 = vpop.f32.mrb[0].mxu0
        %v6250 = vadd.f32 %v6137, %v6249
        %v6251 = vpop.f32.mrb[0].mxu0
        %v6252 = vadd.f32 %v6139, %v6251
        %6253 = vmatprep.mubr.bf16.mxu0 %v3111
        %6254 = vmatmul.mubr.bf16.gmra.mrb[0].mxu0 %v3110
        %v6255 = vpop.f32.mrb[0].mxu0
        %v6256 = vadd.f32 %v6143, %v6255
        %v6257 = vpop.f32.mrb[0].mxu0
        %v6258 = vadd.f32 %v6145, %v6257
        %v6259 = vpop.f32.mrb[0].mxu0
        %v6260 = vadd.f32 %v6147, %v6259
        %v6261 = vpop.f32.mrb[0].mxu0
        %v6262 = vadd.f32 %v6149, %v6261
        %6263 = vmatprep.mubr.bf16.mxu0 %v3121
        %6264 = vmatmul.mubr.bf16.gmra.mrb[0].mxu0 %v3120
        %v6265 = vpop.f32.mrb[0].mxu0
        %v6266 = vadd.f32 %v6153, %v6265
        %v6267 = vpop.f32.mrb[0].mxu0
        %v6268 = vadd.f32 %v6155, %v6267
        %v6269 = vpop.f32.mrb[0].mxu0
        %v6270 = vadd.f32 %v6157, %v6269
        %v6271 = vpop.f32.mrb[0].mxu0
        %v6272 = vadd.f32 %v6159, %v6271
        %6273 = vdwg.mxu0
        %6274 = vmatprep.subr.bf16.mxu0 %v4912
        %6275 = vmatpush1.bf16.msra.mxu0 %v4911
        %6276 = vmatprep.subr.bf16.mxu0 %v4917
        %6277 = vmatpush1.bf16.msra.mxu0 %v4916
        %6278 = vmatprep.subr.bf16.mxu0 %v4922
        %6279 = vmatpush1.bf16.msra.mxu0 %v4921
        %6280 = vmatprep.subr.bf16.mxu0 %v4927
        %6281 = vmatpush1.bf16.msra.mxu0 %v4926
        %6282 = vmatprep.subr.bf16.mxu0 %v4932
        %6283 = vmatpush1.bf16.msra.mxu0 %v4931
        %6284 = vmatprep.subr.bf16.mxu0 %v4937
        %6285 = vmatpush1.bf16.msra.mxu0 %v4936
        %6286 = vmatprep.subr.bf16.mxu0 %v4942
        %6287 = vmatpush1.bf16.msra.mxu0 %v4941
        %6288 = vmatprep.subr.bf16.mxu0 %v4947
        %6289 = vmatpush1.bf16.msra.mxu0 %v4946
        %6290 = vmatprep.subr.bf16.mxu0 %v4952
        %6291 = vmatpush1.bf16.msra.mxu0 %v4951
        %6292 = vmatprep.subr.bf16.mxu0 %v4957
        %6293 = vmatpush1.bf16.msra.mxu0 %v4956
        %6294 = vmatprep.subr.bf16.mxu0 %v4962
        %6295 = vmatpush1.bf16.msra.mxu0 %v4961
        %6296 = vmatprep.subr.bf16.mxu0 %v4967
        %6297 = vmatpush1.bf16.msra.mxu0 %v4966
        %6298 = vmatprep.subr.bf16.mxu0 %v4972
        %6299 = vmatpush1.bf16.msra.mxu0 %v4971
        %6300 = vmatprep.subr.bf16.mxu0 %v4977
        %6301 = vmatpush1.bf16.msra.mxu0 %v4976
        %6302 = vmatprep.subr.bf16.mxu0 %v4982
        %6303 = vmatpush1.bf16.msra.mxu0 %v4981
        %6304 = vmatprep.subr.bf16.mxu0 %v4987
        %6305 = vmatpush1.bf16.msra.mxu0 %v4986
        %6306 = vmatprep.mubr.bf16.mxu0 %v3043
        %6307 = vmatmul.mubr.bf16.gmra.mrb[0].mxu0 %v3042
        %v6308 = vpop.f32.mrb[0].mxu0
        %v6309 = vadd.f32 %v3615, %v6308
        %v6310 = vpop.f32.mrb[0].mxu0
        %v6311 = vadd.f32 %v3619, %v6310
        %v6312 = vpop.f32.mrb[0].mxu0
        %v6313 = vadd.f32 %v3615, %v6312
        %v6314 = vpop.f32.mrb[0].mxu0
        %v6315 = vadd.f32 %v3619, %v6314
        %6316 = vmatprep.mubr.bf16.mxu0 %v3053
        %6317 = vmatmul.mubr.bf16.gmra.mrb[0].mxu0 %v3052
        %v6318 = vpop.f32.mrb[0].mxu0
        %v6319 = vadd.f32 %v3615, %v6318
        %v6320 = vpop.f32.mrb[0].mxu0
        %v6321 = vadd.f32 %v3619, %v6320
        %v6322 = vpop.f32.mrb[0].mxu0
        %v6323 = vadd.f32 %v3615, %v6322
        %v6324 = vpop.f32.mrb[0].mxu0
        %v6325 = vadd.f32 %v3619, %v6324
        %6326 = vmatprep.mubr.bf16.mxu0 %v3063
        %6327 = vmatmul.mubr.bf16.gmra.mrb[0].mxu0 %v3062
        %v6328 = vpop.f32.mrb[0].mxu0
        %v6329 = vadd.f32 %v3615, %v6328
        %v6330 = vpop.f32.mrb[0].mxu0
        %v6331 = vadd.f32 %v3619, %v6330
        %v6332 = vpop.f32.mrb[0].mxu0
        %v6333 = vadd.f32 %v3615, %v6332
        %v6334 = vpop.f32.mrb[0].mxu0
        %v6335 = vadd.f32 %v3619, %v6334
        %6336 = vmatprep.mubr.bf16.mxu0 %v3073
        %6337 = vmatmul.mubr.bf16.gmra.mrb[0].mxu0 %v3072
        %v6338 = vpop.f32.mrb[0].mxu0
        %v6339 = vadd.f32 %v3615, %v6338
        %v6340 = vpop.f32.mrb[0].mxu0
        %v6341 = vadd.f32 %v3619, %v6340
        %v6342 = vpop.f32.mrb[0].mxu0
        %v6343 = vadd.f32 %v3615, %v6342
        %v6344 = vpop.f32.mrb[0].mxu0
        %v6345 = vadd.f32 %v3619, %v6344
        %6346 = vmatprep.mubr.bf16.mxu0 %v3083
        %6347 = vmatmul.mubr.bf16.gmra.mrb[0].mxu0 %v3082
        %v6348 = vpop.f32.mrb[0].mxu0
        %v6349 = vadd.f32 %v3615, %v6348
        %v6350 = vpop.f32.mrb[0].mxu0
        %v6351 = vadd.f32 %v3619, %v6350
        %v6352 = vpop.f32.mrb[0].mxu0
        %v6353 = vadd.f32 %v3615, %v6352
        %v6354 = vpop.f32.mrb[0].mxu0
        %v6355 = vadd.f32 %v3619, %v6354
        %6356 = vmatprep.mubr.bf16.mxu0 %v3093
        %6357 = vmatmul.mubr.bf16.gmra.mrb[0].mxu0 %v3092
        %v6358 = vpop.f32.mrb[0].mxu0
        %v6359 = vadd.f32 %v3615, %v6358
        %v6360 = vpop.f32.mrb[0].mxu0
        %v6361 = vadd.f32 %v3619, %v6360
        %v6362 = vpop.f32.mrb[0].mxu0
        %v6363 = vadd.f32 %v3615, %v6362
        %v6364 = vpop.f32.mrb[0].mxu0
        %v6365 = vadd.f32 %v3619, %v6364
        %6366 = vmatprep.mubr.bf16.mxu0 %v3103
        %6367 = vmatmul.mubr.bf16.gmra.mrb[0].mxu0 %v3102
        %v6368 = vpop.f32.mrb[0].mxu0
        %v6369 = vadd.f32 %v3615, %v6368
        %v6370 = vpop.f32.mrb[0].mxu0
        %v6371 = vadd.f32 %v3619, %v6370
        %v6372 = vpop.f32.mrb[0].mxu0
        %v6373 = vadd.f32 %v3615, %v6372
        %v6374 = vpop.f32.mrb[0].mxu0
        %v6375 = vadd.f32 %v3619, %v6374
        %6376 = vmatprep.mubr.bf16.mxu0 %v3113
        %6377 = vmatmul.mubr.bf16.gmra.mrb[0].mxu0 %v3112
        %v6378 = vpop.f32.mrb[0].mxu0
        %v6379 = vadd.f32 %v3615, %v6378
        %v6380 = vpop.f32.mrb[0].mxu0
        %v6381 = vadd.f32 %v3619, %v6380
        %v6382 = vpop.f32.mrb[0].mxu0
        %v6383 = vadd.f32 %v3615, %v6382
        %v6384 = vpop.f32.mrb[0].mxu0
        %v6385 = vadd.f32 %v3619, %v6384
        %6386 = vdwg.mxu0
        %6387 = vmatprep.subr.bf16.mxu0 %v4992
        %6388 = vmatpush1.bf16.msra.mxu0 %v4991
        %6389 = vmatprep.subr.bf16.mxu0 %v4997
        %6390 = vmatpush1.bf16.msra.mxu0 %v4996
        %6391 = vmatprep.subr.bf16.mxu0 %v5002
        %6392 = vmatpush1.bf16.msra.mxu0 %v5001
        %6393 = vmatprep.subr.bf16.mxu0 %v5007
        %6394 = vmatpush1.bf16.msra.mxu0 %v5006
        %6395 = vmatprep.subr.bf16.mxu0 %v5012
        %6396 = vmatpush1.bf16.msra.mxu0 %v5011
        %6397 = vmatprep.subr.bf16.mxu0 %v5017
        %6398 = vmatpush1.bf16.msra.mxu0 %v5016
        %6399 = vmatprep.subr.bf16.mxu0 %v5022
        %6400 = vmatpush1.bf16.msra.mxu0 %v5021
        %6401 = vmatprep.subr.bf16.mxu0 %v5027
        %6402 = vmatpush1.bf16.msra.mxu0 %v5026
        %6403 = vmatprep.subr.bf16.mxu0 %v5032
        %6404 = vmatpush1.bf16.msra.mxu0 %v5031
        %6405 = vmatprep.subr.bf16.mxu0 %v5037
        %6406 = vmatpush1.bf16.msra.mxu0 %v5036
        %6407 = vmatprep.subr.bf16.mxu0 %v5042
        %6408 = vmatpush1.bf16.msra.mxu0 %v5041
        %6409 = vmatprep.subr.bf16.mxu0 %v5047
        %6410 = vmatpush1.bf16.msra.mxu0 %v5046
        %6411 = vmatprep.subr.bf16.mxu0 %v5052
        %6412 = vmatpush1.bf16.msra.mxu0 %v5051
        %6413 = vmatprep.subr.bf16.mxu0 %v5057
        %6414 = vmatpush1.bf16.msra.mxu0 %v5056
        %6415 = vmatprep.subr.bf16.mxu0 %v5062
        %6416 = vmatpush1.bf16.msra.mxu0 %v5061
        %6417 = vmatprep.subr.bf16.mxu0 %v5067
        %6418 = vmatpush1.bf16.msra.mxu0 %v5066
        %6419 = vmatprep.mubr.bf16.mxu0 %v3045
        %6420 = vmatmul.mubr.bf16.gmra.mrb[0].mxu0 %v3044
        %v6421 = vpop.f32.mrb[0].mxu0
        %v6422 = vadd.f32 %v6309, %v6421
        %v6423 = vpop.f32.mrb[0].mxu0
        %v6424 = vadd.f32 %v6311, %v6423
        %v6425 = vpop.f32.mrb[0].mxu0
        %v6426 = vadd.f32 %v6313, %v6425
        %v6427 = vpop.f32.mrb[0].mxu0
        %v6428 = vadd.f32 %v6315, %v6427
        %6429 = vmatprep.mubr.bf16.mxu0 %v3055
        %6430 = vmatmul.mubr.bf16.gmra.mrb[0].mxu0 %v3054
        %v6431 = vpop.f32.mrb[0].mxu0
        %v6432 = vadd.f32 %v6319, %v6431
        %v6433 = vpop.f32.mrb[0].mxu0
        %v6434 = vadd.f32 %v6321, %v6433
        %v6435 = vpop.f32.mrb[0].mxu0
        %v6436 = vadd.f32 %v6323, %v6435
        %v6437 = vpop.f32.mrb[0].mxu0
        %v6438 = vadd.f32 %v6325, %v6437
        %6439 = vmatprep.mubr.bf16.mxu0 %v3065
        %6440 = vmatmul.mubr.bf16.gmra.mrb[0].mxu0 %v3064
        %v6441 = vpop.f32.mrb[0].mxu0
        %v6442 = vadd.f32 %v6329, %v6441
        %v6443 = vpop.f32.mrb[0].mxu0
        %v6444 = vadd.f32 %v6331, %v6443
        %v6445 = vpop.f32.mrb[0].mxu0
        %v6446 = vadd.f32 %v6333, %v6445
        %v6447 = vpop.f32.mrb[0].mxu0
        %v6448 = vadd.f32 %v6335, %v6447
        %6449 = vmatprep.mubr.bf16.mxu0 %v3075
        %6450 = vmatmul.mubr.bf16.gmra.mrb[0].mxu0 %v3074
        %v6451 = vpop.f32.mrb[0].mxu0
        %v6452 = vadd.f32 %v6339, %v6451
        %v6453 = vpop.f32.mrb[0].mxu0
        %v6454 = vadd.f32 %v6341, %v6453
        %v6455 = vpop.f32.mrb[0].mxu0
        %v6456 = vadd.f32 %v6343, %v6455
        %v6457 = vpop.f32.mrb[0].mxu0
        %v6458 = vadd.f32 %v6345, %v6457
        %6459 = vmatprep.mubr.bf16.mxu0 %v3085
        %6460 = vmatmul.mubr.bf16.gmra.mrb[0].mxu0 %v3084
        %v6461 = vpop.f32.mrb[0].mxu0
        %v6462 = vadd.f32 %v6349, %v6461
        %v6463 = vpop.f32.mrb[0].mxu0
        %v6464 = vadd.f32 %v6351, %v6463
        %v6465 = vpop.f32.mrb[0].mxu0
        %v6466 = vadd.f32 %v6353, %v6465
        %v6467 = vpop.f32.mrb[0].mxu0
        %v6468 = vadd.f32 %v6355, %v6467
        %6469 = vmatprep.mubr.bf16.mxu0 %v3095
        %6470 = vmatmul.mubr.bf16.gmra.mrb[0].mxu0 %v3094
        %v6471 = vpop.f32.mrb[0].mxu0
        %v6472 = vadd.f32 %v6359, %v6471
        %v6473 = vpop.f32.mrb[0].mxu0
        %v6474 = vadd.f32 %v6361, %v6473
        %v6475 = vpop.f32.mrb[0].mxu0
        %v6476 = vadd.f32 %v6363, %v6475
        %v6477 = vpop.f32.mrb[0].mxu0
        %v6478 = vadd.f32 %v6365, %v6477
        %6479 = vmatprep.mubr.bf16.mxu0 %v3105
        %6480 = vmatmul.mubr.bf16.gmra.mrb[0].mxu0 %v3104
        %v6481 = vpop.f32.mrb[0].mxu0
        %v6482 = vadd.f32 %v6369, %v6481
        %v6483 = vpop.f32.mrb[0].mxu0
        %v6484 = vadd.f32 %v6371, %v6483
        %v6485 = vpop.f32.mrb[0].mxu0
        %v6486 = vadd.f32 %v6373, %v6485
        %v6487 = vpop.f32.mrb[0].mxu0
        %v6488 = vadd.f32 %v6375, %v6487
        %6489 = vmatprep.mubr.bf16.mxu0 %v3115
        %6490 = vmatmul.mubr.bf16.gmra.mrb[0].mxu0 %v3114
        %v6491 = vpop.f32.mrb[0].mxu0
        %v6492 = vadd.f32 %v6379, %v6491
        %v6493 = vpop.f32.mrb[0].mxu0
        %v6494 = vadd.f32 %v6381, %v6493
        %v6495 = vpop.f32.mrb[0].mxu0
        %v6496 = vadd.f32 %v6383, %v6495
        %v6497 = vpop.f32.mrb[0].mxu0
        %v6498 = vadd.f32 %v6385, %v6497
        %6499 = vdwg.mxu0
        %6500 = vmatprep.subr.bf16.mxu0 %v5072
        %6501 = vmatpush1.bf16.msra.mxu0 %v5071
        %6502 = vmatprep.subr.bf16.mxu0 %v5077
        %6503 = vmatpush1.bf16.msra.mxu0 %v5076
        %6504 = vmatprep.subr.bf16.mxu0 %v5082
        %6505 = vmatpush1.bf16.msra.mxu0 %v5081
        %6506 = vmatprep.subr.bf16.mxu0 %v5087
        %6507 = vmatpush1.bf16.msra.mxu0 %v5086
        %6508 = vmatprep.subr.bf16.mxu0 %v5092
        %6509 = vmatpush1.bf16.msra.mxu0 %v5091
        %6510 = vmatprep.subr.bf16.mxu0 %v5097
        %6511 = vmatpush1.bf16.msra.mxu0 %v5096
        %6512 = vmatprep.subr.bf16.mxu0 %v5102
        %6513 = vmatpush1.bf16.msra.mxu0 %v5101
        %6514 = vmatprep.subr.bf16.mxu0 %v5107
        %6515 = vmatpush1.bf16.msra.mxu0 %v5106
        %6516 = vmatprep.subr.bf16.mxu0 %v5112
        %6517 = vmatpush1.bf16.msra.mxu0 %v5111
        %6518 = vmatprep.subr.bf16.mxu0 %v5117
        %6519 = vmatpush1.bf16.msra.mxu0 %v5116
        %6520 = vmatprep.subr.bf16.mxu0 %v5122
        %6521 = vmatpush1.bf16.msra.mxu0 %v5121
        %6522 = vmatprep.subr.bf16.mxu0 %v5127
        %6523 = vmatpush1.bf16.msra.mxu0 %v5126
        %6524 = vmatprep.subr.bf16.mxu0 %v5132
        %6525 = vmatpush1.bf16.msra.mxu0 %v5131
        %6526 = vmatprep.subr.bf16.mxu0 %v5137
        %6527 = vmatpush1.bf16.msra.mxu0 %v5136
        %6528 = vmatprep.subr.bf16.mxu0 %v5142
        %6529 = vmatpush1.bf16.msra.mxu0 %v5141
        %6530 = vmatprep.subr.bf16.mxu0 %v5147
        %6531 = vmatpush1.bf16.msra.mxu0 %v5146
        %6532 = vmatprep.mubr.bf16.mxu0 %v3047
        %6533 = vmatmul.mubr.bf16.gmra.mrb[0].mxu0 %v3046
        %v6534 = vpop.f32.mrb[0].mxu0
        %v6535 = vadd.f32 %v6422, %v6534
        %v6536 = vpop.f32.mrb[0].mxu0
        %v6537 = vadd.f32 %v6424, %v6536
        %v6538 = vpop.f32.mrb[0].mxu0
        %v6539 = vadd.f32 %v6426, %v6538
        %v6540 = vpop.f32.mrb[0].mxu0
        %v6541 = vadd.f32 %v6428, %v6540
        %6542 = vmatprep.mubr.bf16.mxu0 %v3057
        %6543 = vmatmul.mubr.bf16.gmra.mrb[0].mxu0 %v3056
        %v6544 = vpop.f32.mrb[0].mxu0
        %v6545 = vadd.f32 %v6432, %v6544
        %v6546 = vpop.f32.mrb[0].mxu0
        %v6547 = vadd.f32 %v6434, %v6546
        %v6548 = vpop.f32.mrb[0].mxu0
        %v6549 = vadd.f32 %v6436, %v6548
        %v6550 = vpop.f32.mrb[0].mxu0
        %v6551 = vadd.f32 %v6438, %v6550
        %6552 = vmatprep.mubr.bf16.mxu0 %v3067
        %6553 = vmatmul.mubr.bf16.gmra.mrb[0].mxu0 %v3066
        %v6554 = vpop.f32.mrb[0].mxu0
        %v6555 = vadd.f32 %v6442, %v6554
        %v6556 = vpop.f32.mrb[0].mxu0
        %v6557 = vadd.f32 %v6444, %v6556
        %v6558 = vpop.f32.mrb[0].mxu0
        %v6559 = vadd.f32 %v6446, %v6558
        %v6560 = vpop.f32.mrb[0].mxu0
        %v6561 = vadd.f32 %v6448, %v6560
        %6562 = vmatprep.mubr.bf16.mxu0 %v3077
        %6563 = vmatmul.mubr.bf16.gmra.mrb[0].mxu0 %v3076
        %v6564 = vpop.f32.mrb[0].mxu0
        %v6565 = vadd.f32 %v6452, %v6564
        %v6566 = vpop.f32.mrb[0].mxu0
        %v6567 = vadd.f32 %v6454, %v6566
        %v6568 = vpop.f32.mrb[0].mxu0
        %v6569 = vadd.f32 %v6456, %v6568
        %v6570 = vpop.f32.mrb[0].mxu0
        %v6571 = vadd.f32 %v6458, %v6570
        %6572 = vmatprep.mubr.bf16.mxu0 %v3087
        %6573 = vmatmul.mubr.bf16.gmra.mrb[0].mxu0 %v3086
        %v6574 = vpop.f32.mrb[0].mxu0
        %v6575 = vadd.f32 %v6462, %v6574
        %v6576 = vpop.f32.mrb[0].mxu0
        %v6577 = vadd.f32 %v6464, %v6576
        %v6578 = vpop.f32.mrb[0].mxu0
        %v6579 = vadd.f32 %v6466, %v6578
        %v6580 = vpop.f32.mrb[0].mxu0
        %v6581 = vadd.f32 %v6468, %v6580
        %6582 = vmatprep.mubr.bf16.mxu0 %v3097
        %6583 = vmatmul.mubr.bf16.gmra.mrb[0].mxu0 %v3096
        %v6584 = vpop.f32.mrb[0].mxu0
        %v6585 = vadd.f32 %v6472, %v6584
        %v6586 = vpop.f32.mrb[0].mxu0
        %v6587 = vadd.f32 %v6474, %v6586
        %v6588 = vpop.f32.mrb[0].mxu0
        %v6589 = vadd.f32 %v6476, %v6588
        %v6590 = vpop.f32.mrb[0].mxu0
        %v6591 = vadd.f32 %v6478, %v6590
        %6592 = vmatprep.mubr.bf16.mxu0 %v3107
        %6593 = vmatmul.mubr.bf16.gmra.mrb[0].mxu0 %v3106
        %v6594 = vpop.f32.mrb[0].mxu0
        %v6595 = vadd.f32 %v6482, %v6594
        %v6596 = vpop.f32.mrb[0].mxu0
        %v6597 = vadd.f32 %v6484, %v6596
        %v6598 = vpop.f32.mrb[0].mxu0
        %v6599 = vadd.f32 %v6486, %v6598
        %v6600 = vpop.f32.mrb[0].mxu0
        %v6601 = vadd.f32 %v6488, %v6600
        %6602 = vmatprep.mubr.bf16.mxu0 %v3117
        %6603 = vmatmul.mubr.bf16.gmra.mrb[0].mxu0 %v3116
        %v6604 = vpop.f32.mrb[0].mxu0
        %v6605 = vadd.f32 %v6492, %v6604
        %v6606 = vpop.f32.mrb[0].mxu0
        %v6607 = vadd.f32 %v6494, %v6606
        %v6608 = vpop.f32.mrb[0].mxu0
        %v6609 = vadd.f32 %v6496, %v6608
        %v6610 = vpop.f32.mrb[0].mxu0
        %v6611 = vadd.f32 %v6498, %v6610
        %6612 = vdwg.mxu0
        %6613 = vmatprep.subr.bf16.mxu0 %v5152
        %6614 = vmatpush1.bf16.msra.mxu0 %v5151
        %6615 = vmatprep.subr.bf16.mxu0 %v5157
        %6616 = vmatpush1.bf16.msra.mxu0 %v5156
        %6617 = vmatprep.subr.bf16.mxu0 %v5162
        %6618 = vmatpush1.bf16.msra.mxu0 %v5161
        %6619 = vmatprep.subr.bf16.mxu0 %v5167
        %6620 = vmatpush1.bf16.msra.mxu0 %v5166
        %6621 = vmatprep.subr.bf16.mxu0 %v5172
        %6622 = vmatpush1.bf16.msra.mxu0 %v5171
        %6623 = vmatprep.subr.bf16.mxu0 %v5177
        %6624 = vmatpush1.bf16.msra.mxu0 %v5176
        %6625 = vmatprep.subr.bf16.mxu0 %v5182
        %6626 = vmatpush1.bf16.msra.mxu0 %v5181
        %6627 = vmatprep.subr.bf16.mxu0 %v5187
        %6628 = vmatpush1.bf16.msra.mxu0 %v5186
        %6629 = vmatprep.subr.bf16.mxu0 %v5192
        %6630 = vmatpush1.bf16.msra.mxu0 %v5191
        %6631 = vmatprep.subr.bf16.mxu0 %v5197
        %6632 = vmatpush1.bf16.msra.mxu0 %v5196
        %6633 = vmatprep.subr.bf16.mxu0 %v5202
        %6634 = vmatpush1.bf16.msra.mxu0 %v5201
        %6635 = vmatprep.subr.bf16.mxu0 %v5207
        %6636 = vmatpush1.bf16.msra.mxu0 %v5206
        %6637 = vmatprep.subr.bf16.mxu0 %v5212
        %6638 = vmatpush1.bf16.msra.mxu0 %v5211
        %6639 = vmatprep.subr.bf16.mxu0 %v5217
        %6640 = vmatpush1.bf16.msra.mxu0 %v5216
        %6641 = vmatprep.subr.bf16.mxu0 %v5222
        %6642 = vmatpush1.bf16.msra.mxu0 %v5221
        %6643 = vmatprep.subr.bf16.mxu0 %v5227
        %6644 = vmatpush1.bf16.msra.mxu0 %v5226
        %6645 = vmatprep.mubr.bf16.mxu0 %v3049
        %6646 = vmatmul.mubr.bf16.gmra.mrb[0].mxu0 %v3048
        %v6647 = vpop.f32.mrb[0].mxu0
        %v6648 = vadd.f32 %v6535, %v6647
        %v6649 = vpop.f32.mrb[0].mxu0
        %v6650 = vadd.f32 %v6537, %v6649
        %v6651 = vpop.f32.mrb[0].mxu0
        %v6652 = vadd.f32 %v6539, %v6651
        %v6653 = vpop.f32.mrb[0].mxu0
        %v6654 = vadd.f32 %v6541, %v6653
        %6655 = vmatprep.mubr.bf16.mxu0 %v3059
        %6656 = vmatmul.mubr.bf16.gmra.mrb[0].mxu0 %v3058
        %v6657 = vpop.f32.mrb[0].mxu0
        %v6658 = vadd.f32 %v6545, %v6657
        %v6659 = vpop.f32.mrb[0].mxu0
        %v6660 = vadd.f32 %v6547, %v6659
        %v6661 = vpop.f32.mrb[0].mxu0
        %v6662 = vadd.f32 %v6549, %v6661
        %v6663 = vpop.f32.mrb[0].mxu0
        %v6664 = vadd.f32 %v6551, %v6663
        %6665 = vmatprep.mubr.bf16.mxu0 %v3069
        %6666 = vmatmul.mubr.bf16.gmra.mrb[0].mxu0 %v3068
        %v6667 = vpop.f32.mrb[0].mxu0
        %v6668 = vadd.f32 %v6555, %v6667
        %v6669 = vpop.f32.mrb[0].mxu0
        %v6670 = vadd.f32 %v6557, %v6669
        %v6671 = vpop.f32.mrb[0].mxu0
        %v6672 = vadd.f32 %v6559, %v6671
        %v6673 = vpop.f32.mrb[0].mxu0
        %v6674 = vadd.f32 %v6561, %v6673
        %6675 = vmatprep.mubr.bf16.mxu0 %v3079
        %6676 = vmatmul.mubr.bf16.gmra.mrb[0].mxu0 %v3078
        %v6677 = vpop.f32.mrb[0].mxu0
        %v6678 = vadd.f32 %v6565, %v6677
        %v6679 = vpop.f32.mrb[0].mxu0
        %v6680 = vadd.f32 %v6567, %v6679
        %v6681 = vpop.f32.mrb[0].mxu0
        %v6682 = vadd.f32 %v6569, %v6681
        %v6683 = vpop.f32.mrb[0].mxu0
        %v6684 = vadd.f32 %v6571, %v6683
        %6685 = vmatprep.mubr.bf16.mxu0 %v3089
        %6686 = vmatmul.mubr.bf16.gmra.mrb[0].mxu0 %v3088
        %v6687 = vpop.f32.mrb[0].mxu0
        %v6688 = vadd.f32 %v6575, %v6687
        %v6689 = vpop.f32.mrb[0].mxu0
        %v6690 = vadd.f32 %v6577, %v6689
        %v6691 = vpop.f32.mrb[0].mxu0
        %v6692 = vadd.f32 %v6579, %v6691
        %v6693 = vpop.f32.mrb[0].mxu0
        %v6694 = vadd.f32 %v6581, %v6693
        %6695 = vmatprep.mubr.bf16.mxu0 %v3099
        %6696 = vmatmul.mubr.bf16.gmra.mrb[0].mxu0 %v3098
        %v6697 = vpop.f32.mrb[0].mxu0
        %v6698 = vadd.f32 %v6585, %v6697
        %v6699 = vpop.f32.mrb[0].mxu0
        %v6700 = vadd.f32 %v6587, %v6699
        %v6701 = vpop.f32.mrb[0].mxu0
        %v6702 = vadd.f32 %v6589, %v6701
        %v6703 = vpop.f32.mrb[0].mxu0
        %v6704 = vadd.f32 %v6591, %v6703
        %6705 = vmatprep.mubr.bf16.mxu0 %v3109
        %6706 = vmatmul.mubr.bf16.gmra.mrb[0].mxu0 %v3108
        %v6707 = vpop.f32.mrb[0].mxu0
        %v6708 = vadd.f32 %v6595, %v6707
        %v6709 = vpop.f32.mrb[0].mxu0
        %v6710 = vadd.f32 %v6597, %v6709
        %v6711 = vpop.f32.mrb[0].mxu0
        %v6712 = vadd.f32 %v6599, %v6711
        %v6713 = vpop.f32.mrb[0].mxu0
        %v6714 = vadd.f32 %v6601, %v6713
        %6715 = vmatprep.mubr.bf16.mxu0 %v3119
        %6716 = vmatmul.mubr.bf16.gmra.mrb[0].mxu0 %v3118
        %v6717 = vpop.f32.mrb[0].mxu0
        %v6718 = vadd.f32 %v6605, %v6717
        %v6719 = vpop.f32.mrb[0].mxu0
        %v6720 = vadd.f32 %v6607, %v6719
        %v6721 = vpop.f32.mrb[0].mxu0
        %v6722 = vadd.f32 %v6609, %v6721
        %v6723 = vpop.f32.mrb[0].mxu0
        %v6724 = vadd.f32 %v6611, %v6723
        %6725 = vdwg.mxu0
        %6726 = vmatprep.subr.bf16.mxu0 %v5232
        %6727 = vmatpush1.bf16.msra.mxu0 %v5231
        %6728 = vmatprep.subr.bf16.mxu0 %v5237
        %6729 = vmatpush1.bf16.msra.mxu0 %v5236
        %6730 = vmatprep.subr.bf16.mxu0 %v5242
        %6731 = vmatpush1.bf16.msra.mxu0 %v5241
        %6732 = vmatprep.subr.bf16.mxu0 %v5247
        %6733 = vmatpush1.bf16.msra.mxu0 %v5246
        %6734 = vmatprep.subr.bf16.mxu0 %v5252
        %6735 = vmatpush1.bf16.msra.mxu0 %v5251
        %6736 = vmatprep.subr.bf16.mxu0 %v5257
        %6737 = vmatpush1.bf16.msra.mxu0 %v5256
        %6738 = vmatprep.subr.bf16.mxu0 %v5262
        %6739 = vmatpush1.bf16.msra.mxu0 %v5261
        %6740 = vmatprep.subr.bf16.mxu0 %v5267
        %6741 = vmatpush1.bf16.msra.mxu0 %v5266
        %6742 = vmatprep.subr.bf16.mxu0 %v5272
        %6743 = vmatpush1.bf16.msra.mxu0 %v5271
        %6744 = vmatprep.subr.bf16.mxu0 %v5277
        %6745 = vmatpush1.bf16.msra.mxu0 %v5276
        %6746 = vmatprep.subr.bf16.mxu0 %v5282
        %6747 = vmatpush1.bf16.msra.mxu0 %v5281
        %6748 = vmatprep.subr.bf16.mxu0 %v5287
        %6749 = vmatpush1.bf16.msra.mxu0 %v5286
        %6750 = vmatprep.subr.bf16.mxu0 %v5292
        %6751 = vmatpush1.bf16.msra.mxu0 %v5291
        %6752 = vmatprep.subr.bf16.mxu0 %v5297
        %6753 = vmatpush1.bf16.msra.mxu0 %v5296
        %6754 = vmatprep.subr.bf16.mxu0 %v5302
        %6755 = vmatpush1.bf16.msra.mxu0 %v5301
        %6756 = vmatprep.subr.bf16.mxu0 %v5307
        %6757 = vmatpush1.bf16.msra.mxu0 %v5306
        %6758 = vmatprep.mubr.bf16.mxu0 %v3051
        %6759 = vmatmul.mubr.bf16.gmra.mrb[0].mxu0 %v3050
        %v6760 = vpop.f32.mrb[0].mxu0
        %v6761 = vadd.f32 %v6648, %v6760
        %v6762 = vpop.f32.mrb[0].mxu0
        %v6763 = vadd.f32 %v6650, %v6762
        %v6764 = vpop.f32.mrb[0].mxu0
        %v6765 = vadd.f32 %v6652, %v6764
        %v6766 = vpop.f32.mrb[0].mxu0
        %v6767 = vadd.f32 %v6654, %v6766
        %6768 = vmatprep.mubr.bf16.mxu0 %v3061
        %6769 = vmatmul.mubr.bf16.gmra.mrb[0].mxu0 %v3060
        %v6770 = vpop.f32.mrb[0].mxu0
        %v6771 = vadd.f32 %v6658, %v6770
        %v6772 = vpop.f32.mrb[0].mxu0
        %v6773 = vadd.f32 %v6660, %v6772
        %v6774 = vpop.f32.mrb[0].mxu0
        %v6775 = vadd.f32 %v6662, %v6774
        %v6776 = vpop.f32.mrb[0].mxu0
        %v6777 = vadd.f32 %v6664, %v6776
        %6778 = vmatprep.mubr.bf16.mxu0 %v3071
        %6779 = vmatmul.mubr.bf16.gmra.mrb[0].mxu0 %v3070
        %v6780 = vpop.f32.mrb[0].mxu0
        %v6781 = vadd.f32 %v6668, %v6780
        %v6782 = vpop.f32.mrb[0].mxu0
        %v6783 = vadd.f32 %v6670, %v6782
        %v6784 = vpop.f32.mrb[0].mxu0
        %v6785 = vadd.f32 %v6672, %v6784
        %v6786 = vpop.f32.mrb[0].mxu0
        %v6787 = vadd.f32 %v6674, %v6786
        %6788 = vmatprep.mubr.bf16.mxu0 %v3081
        %6789 = vmatmul.mubr.bf16.gmra.mrb[0].mxu0 %v3080
        %v6790 = vpop.f32.mrb[0].mxu0
        %v6791 = vadd.f32 %v6678, %v6790
        %v6792 = vpop.f32.mrb[0].mxu0
        %v6793 = vadd.f32 %v6680, %v6792
        %v6794 = vpop.f32.mrb[0].mxu0
        %v6795 = vadd.f32 %v6682, %v6794
        %v6796 = vpop.f32.mrb[0].mxu0
        %v6797 = vadd.f32 %v6684, %v6796
        %6798 = vmatprep.mubr.bf16.mxu0 %v3091
        %6799 = vmatmul.mubr.bf16.gmra.mrb[0].mxu0 %v3090
        %v6800 = vpop.f32.mrb[0].mxu0
        %v6801 = vadd.f32 %v6688, %v6800
        %v6802 = vpop.f32.mrb[0].mxu0
        %v6803 = vadd.f32 %v6690, %v6802
        %v6804 = vpop.f32.mrb[0].mxu0
        %v6805 = vadd.f32 %v6692, %v6804
        %v6806 = vpop.f32.mrb[0].mxu0
        %v6807 = vadd.f32 %v6694, %v6806
        %6808 = vmatprep.mubr.bf16.mxu0 %v3101
        %6809 = vmatmul.mubr.bf16.gmra.mrb[0].mxu0 %v3100
        %v6810 = vpop.f32.mrb[0].mxu0
        %v6811 = vadd.f32 %v6698, %v6810
        %v6812 = vpop.f32.mrb[0].mxu0
        %v6813 = vadd.f32 %v6700, %v6812
        %v6814 = vpop.f32.mrb[0].mxu0
        %v6815 = vadd.f32 %v6702, %v6814
        %v6816 = vpop.f32.mrb[0].mxu0
        %v6817 = vadd.f32 %v6704, %v6816
        %6818 = vmatprep.mubr.bf16.mxu0 %v3111
        %6819 = vmatmul.mubr.bf16.gmra.mrb[0].mxu0 %v3110
        %v6820 = vpop.f32.mrb[0].mxu0
        %v6821 = vadd.f32 %v6708, %v6820
        %v6822 = vpop.f32.mrb[0].mxu0
        %v6823 = vadd.f32 %v6710, %v6822
        %v6824 = vpop.f32.mrb[0].mxu0
        %v6825 = vadd.f32 %v6712, %v6824
        %v6826 = vpop.f32.mrb[0].mxu0
        %v6827 = vadd.f32 %v6714, %v6826
        %6828 = vmatprep.mubr.bf16.mxu0 %v3121
        %6829 = vmatmul.mubr.bf16.gmra.mrb[0].mxu0 %v3120
        %v6830 = vpop.f32.mrb[0].mxu0
        %v6831 = vadd.f32 %v6718, %v6830
        %v6832 = vpop.f32.mrb[0].mxu0
        %v6833 = vadd.f32 %v6720, %v6832
        %v6834 = vpop.f32.mrb[0].mxu0
        %v6835 = vadd.f32 %v6722, %v6834
        %v6836 = vpop.f32.mrb[0].mxu0
        %v6837 = vadd.f32 %v6724, %v6836
        %6838 = vdwg.mxu0
        %6839 = vmatprep.subr.bf16.mxu0 0
        %6840 = vmatpush1.bf16.msra.mxu0 %v4913
        %6841 = vmatprep.subr.bf16.mxu0 0
        %6842 = vmatpush1.bf16.msra.mxu0 %v4918
        %6843 = vmatprep.subr.bf16.mxu0 0
        %6844 = vmatpush1.bf16.msra.mxu0 %v4923
        %6845 = vmatprep.subr.bf16.mxu0 0
        %6846 = vmatpush1.bf16.msra.mxu0 %v4928
        %6847 = vmatprep.subr.bf16.mxu0 0
        %6848 = vmatpush1.bf16.msra.mxu0 %v4933
        %6849 = vmatprep.subr.bf16.mxu0 0
        %6850 = vmatpush1.bf16.msra.mxu0 %v4938
        %6851 = vmatprep.subr.bf16.mxu0 0
        %6852 = vmatpush1.bf16.msra.mxu0 %v4943
        %6853 = vmatprep.subr.bf16.mxu0 0
        %6854 = vmatpush1.bf16.msra.mxu0 %v4948
        %6855 = vmatprep.subr.bf16.mxu0 0
        %6856 = vmatpush1.bf16.msra.mxu0 %v4953
        %6857 = vmatprep.subr.bf16.mxu0 0
        %6858 = vmatpush1.bf16.msra.mxu0 %v4958
        %6859 = vmatprep.subr.bf16.mxu0 0
        %6860 = vmatpush1.bf16.msra.mxu0 %v4963
        %6861 = vmatprep.subr.bf16.mxu0 0
        %6862 = vmatpush1.bf16.msra.mxu0 %v4968
        %6863 = vmatprep.subr.bf16.mxu0 0
        %6864 = vmatpush1.bf16.msra.mxu0 %v4973
        %6865 = vmatprep.subr.bf16.mxu0 0
        %6866 = vmatpush1.bf16.msra.mxu0 %v4978
        %6867 = vmatprep.subr.bf16.mxu0 0
        %6868 = vmatpush1.bf16.msra.mxu0 %v4983
        %6869 = vmatprep.subr.bf16.mxu0 0
        %6870 = vmatpush1.bf16.msra.mxu0 %v4988
        %6871 = vmatprep.mubr.bf16.mxu0 %v3043
        %6872 = vmatmul.mubr.bf16.gmra.mrb[0].mxu0 %v3042
        %v6873 = vpop.f32.mrb[0].mxu0
        %v6874 = vadd.f32 %v3623, %v6873
        %v6875 = vpop.f32.mrb[0].mxu0
        %v6876 = vpop.f32.mrb[0].mxu0
        %v6877 = vadd.f32 %v3623, %v6876
        %v6878 = vpop.f32.mrb[0].mxu0
        %6879 = vmatprep.mubr.bf16.mxu0 %v3053
        %6880 = vmatmul.mubr.bf16.gmra.mrb[0].mxu0 %v3052
        %v6881 = vpop.f32.mrb[0].mxu0
        %v6882 = vadd.f32 %v3623, %v6881
        %v6883 = vpop.f32.mrb[0].mxu0
        %v6884 = vpop.f32.mrb[0].mxu0
        %v6885 = vadd.f32 %v3623, %v6884
        %v6886 = vpop.f32.mrb[0].mxu0
        %6887 = vmatprep.mubr.bf16.mxu0 %v3063
        %6888 = vmatmul.mubr.bf16.gmra.mrb[0].mxu0 %v3062
        %v6889 = vpop.f32.mrb[0].mxu0
        %v6890 = vadd.f32 %v3623, %v6889
        %v6891 = vpop.f32.mrb[0].mxu0
        %v6892 = vpop.f32.mrb[0].mxu0
        %v6893 = vadd.f32 %v3623, %v6892
        %v6894 = vpop.f32.mrb[0].mxu0
        %6895 = vmatprep.mubr.bf16.mxu0 %v3073
        %6896 = vmatmul.mubr.bf16.gmra.mrb[0].mxu0 %v3072
        %v6897 = vpop.f32.mrb[0].mxu0
        %v6898 = vadd.f32 %v3623, %v6897
        %v6899 = vpop.f32.mrb[0].mxu0
        %v6900 = vpop.f32.mrb[0].mxu0
        %v6901 = vadd.f32 %v3623, %v6900
        %v6902 = vpop.f32.mrb[0].mxu0
        %6903 = vmatprep.mubr.bf16.mxu0 %v3083
        %6904 = vmatmul.mubr.bf16.gmra.mrb[0].mxu0 %v3082
        %v6905 = vpop.f32.mrb[0].mxu0
        %v6906 = vadd.f32 %v3623, %v6905
        %v6907 = vpop.f32.mrb[0].mxu0
        %v6908 = vpop.f32.mrb[0].mxu0
        %v6909 = vadd.f32 %v3623, %v6908
        %v6910 = vpop.f32.mrb[0].mxu0
        %6911 = vmatprep.mubr.bf16.mxu0 %v3093
        %6912 = vmatmul.mubr.bf16.gmra.mrb[0].mxu0 %v3092
        %v6913 = vpop.f32.mrb[0].mxu0
        %v6914 = vadd.f32 %v3623, %v6913
        %v6915 = vpop.f32.mrb[0].mxu0
        %v6916 = vpop.f32.mrb[0].mxu0
        %v6917 = vadd.f32 %v3623, %v6916
        %v6918 = vpop.f32.mrb[0].mxu0
        %6919 = vmatprep.mubr.bf16.mxu0 %v3103
        %6920 = vmatmul.mubr.bf16.gmra.mrb[0].mxu0 %v3102
        %v6921 = vpop.f32.mrb[0].mxu0
        %v6922 = vadd.f32 %v3623, %v6921
        %v6923 = vpop.f32.mrb[0].mxu0
        %v6924 = vpop.f32.mrb[0].mxu0
        %v6925 = vadd.f32 %v3623, %v6924
        %v6926 = vpop.f32.mrb[0].mxu0
        %6927 = vmatprep.mubr.bf16.mxu0 %v3113
        %6928 = vmatmul.mubr.bf16.gmra.mrb[0].mxu0 %v3112
        %v6929 = vpop.f32.mrb[0].mxu0
        %v6930 = vadd.f32 %v3623, %v6929
        %v6931 = vpop.f32.mrb[0].mxu0
        %v6932 = vpop.f32.mrb[0].mxu0
        %v6933 = vadd.f32 %v3623, %v6932
        %v6934 = vpop.f32.mrb[0].mxu0
        %6935 = vdwg.mxu0
        %6936 = vmatprep.subr.bf16.mxu0 0
        %6937 = vmatpush1.bf16.msra.mxu0 %v4993
        %6938 = vmatprep.subr.bf16.mxu0 0
        %6939 = vmatpush1.bf16.msra.mxu0 %v4998
        %6940 = vmatprep.subr.bf16.mxu0 0
        %6941 = vmatpush1.bf16.msra.mxu0 %v5003
        %6942 = vmatprep.subr.bf16.mxu0 0
        %6943 = vmatpush1.bf16.msra.mxu0 %v5008
        %6944 = vmatprep.subr.bf16.mxu0 0
        %6945 = vmatpush1.bf16.msra.mxu0 %v5013
        %6946 = vmatprep.subr.bf16.mxu0 0
        %6947 = vmatpush1.bf16.msra.mxu0 %v5018
        %6948 = vmatprep.subr.bf16.mxu0 0
        %6949 = vmatpush1.bf16.msra.mxu0 %v5023
        %6950 = vmatprep.subr.bf16.mxu0 0
        %6951 = vmatpush1.bf16.msra.mxu0 %v5028
        %6952 = vmatprep.subr.bf16.mxu0 0
        %6953 = vmatpush1.bf16.msra.mxu0 %v5033
        %6954 = vmatprep.subr.bf16.mxu0 0
        %6955 = vmatpush1.bf16.msra.mxu0 %v5038
        %6956 = vmatprep.subr.bf16.mxu0 0
        %6957 = vmatpush1.bf16.msra.mxu0 %v5043
        %6958 = vmatprep.subr.bf16.mxu0 0
        %6959 = vmatpush1.bf16.msra.mxu0 %v5048
        %6960 = vmatprep.subr.bf16.mxu0 0
        %6961 = vmatpush1.bf16.msra.mxu0 %v5053
        %6962 = vmatprep.subr.bf16.mxu0 0
        %6963 = vmatpush1.bf16.msra.mxu0 %v5058
        %6964 = vmatprep.subr.bf16.mxu0 0
        %6965 = vmatpush1.bf16.msra.mxu0 %v5063
        %6966 = vmatprep.subr.bf16.mxu0 0
        %6967 = vmatpush1.bf16.msra.mxu0 %v5068
        %6968 = vmatprep.mubr.bf16.mxu0 %v3045
        %6969 = vmatmul.mubr.bf16.gmra.mrb[0].mxu0 %v3044
        %v6970 = vpop.f32.mrb[0].mxu0
        %v6971 = vadd.f32 %v6874, %v6970
        %v6972 = vpop.f32.mrb[0].mxu0
        %v6973 = vpop.f32.mrb[0].mxu0
        %v6974 = vadd.f32 %v6877, %v6973
        %v6975 = vpop.f32.mrb[0].mxu0
        %6976 = vmatprep.mubr.bf16.mxu0 %v3055
        %6977 = vmatmul.mubr.bf16.gmra.mrb[0].mxu0 %v3054
        %v6978 = vpop.f32.mrb[0].mxu0
        %v6979 = vadd.f32 %v6882, %v6978
        %v6980 = vpop.f32.mrb[0].mxu0
        %v6981 = vpop.f32.mrb[0].mxu0
        %v6982 = vadd.f32 %v6885, %v6981
        %v6983 = vpop.f32.mrb[0].mxu0
        %6984 = vmatprep.mubr.bf16.mxu0 %v3065
        %6985 = vmatmul.mubr.bf16.gmra.mrb[0].mxu0 %v3064
        %v6986 = vpop.f32.mrb[0].mxu0
        %v6987 = vadd.f32 %v6890, %v6986
        %v6988 = vpop.f32.mrb[0].mxu0
        %v6989 = vpop.f32.mrb[0].mxu0
        %v6990 = vadd.f32 %v6893, %v6989
        %v6991 = vpop.f32.mrb[0].mxu0
        %6992 = vmatprep.mubr.bf16.mxu0 %v3075
        %6993 = vmatmul.mubr.bf16.gmra.mrb[0].mxu0 %v3074
        %v6994 = vpop.f32.mrb[0].mxu0
        %v6995 = vadd.f32 %v6898, %v6994
        %v6996 = vpop.f32.mrb[0].mxu0
        %v6997 = vpop.f32.mrb[0].mxu0
        %v6998 = vadd.f32 %v6901, %v6997
        %v6999 = vpop.f32.mrb[0].mxu0
        %7000 = vmatprep.mubr.bf16.mxu0 %v3085
        %7001 = vmatmul.mubr.bf16.gmra.mrb[0].mxu0 %v3084
        %v7002 = vpop.f32.mrb[0].mxu0
        %v7003 = vadd.f32 %v6906, %v7002
        %v7004 = vpop.f32.mrb[0].mxu0
        %v7005 = vpop.f32.mrb[0].mxu0
        %v7006 = vadd.f32 %v6909, %v7005
        %v7007 = vpop.f32.mrb[0].mxu0
        %7008 = vmatprep.mubr.bf16.mxu0 %v3095
        %7009 = vmatmul.mubr.bf16.gmra.mrb[0].mxu0 %v3094
        %v7010 = vpop.f32.mrb[0].mxu0
        %v7011 = vadd.f32 %v6914, %v7010
        %v7012 = vpop.f32.mrb[0].mxu0
        %v7013 = vpop.f32.mrb[0].mxu0
        %v7014 = vadd.f32 %v6917, %v7013
        %v7015 = vpop.f32.mrb[0].mxu0
        %7016 = vmatprep.mubr.bf16.mxu0 %v3105
        %7017 = vmatmul.mubr.bf16.gmra.mrb[0].mxu0 %v3104
        %v7018 = vpop.f32.mrb[0].mxu0
        %v7019 = vadd.f32 %v6922, %v7018
        %v7020 = vpop.f32.mrb[0].mxu0
        %v7021 = vpop.f32.mrb[0].mxu0
        %v7022 = vadd.f32 %v6925, %v7021
        %v7023 = vpop.f32.mrb[0].mxu0
        %7024 = vmatprep.mubr.bf16.mxu0 %v3115
        %7025 = vmatmul.mubr.bf16.gmra.mrb[0].mxu0 %v3114
        %v7026 = vpop.f32.mrb[0].mxu0
        %v7027 = vadd.f32 %v6930, %v7026
        %v7028 = vpop.f32.mrb[0].mxu0
        %v7029 = vpop.f32.mrb[0].mxu0
        %v7030 = vadd.f32 %v6933, %v7029
        %v7031 = vpop.f32.mrb[0].mxu0
        %7032 = vdwg.mxu0
        %7033 = vmatprep.subr.bf16.mxu0 0
        %7034 = vmatpush1.bf16.msra.mxu0 %v5073
        %7035 = vmatprep.subr.bf16.mxu0 0
        %7036 = vmatpush1.bf16.msra.mxu0 %v5078
        %7037 = vmatprep.subr.bf16.mxu0 0
        %7038 = vmatpush1.bf16.msra.mxu0 %v5083
        %7039 = vmatprep.subr.bf16.mxu0 0
        %7040 = vmatpush1.bf16.msra.mxu0 %v5088
        %7041 = vmatprep.subr.bf16.mxu0 0
        %7042 = vmatpush1.bf16.msra.mxu0 %v5093
        %7043 = vmatprep.subr.bf16.mxu0 0
        %7044 = vmatpush1.bf16.msra.mxu0 %v5098
        %7045 = vmatprep.subr.bf16.mxu0 0
        %7046 = vmatpush1.bf16.msra.mxu0 %v5103
        %7047 = vmatprep.subr.bf16.mxu0 0
        %7048 = vmatpush1.bf16.msra.mxu0 %v5108
        %7049 = vmatprep.subr.bf16.mxu0 0
        %7050 = vmatpush1.bf16.msra.mxu0 %v5113
        %7051 = vmatprep.subr.bf16.mxu0 0
        %7052 = vmatpush1.bf16.msra.mxu0 %v5118
        %7053 = vmatprep.subr.bf16.mxu0 0
        %7054 = vmatpush1.bf16.msra.mxu0 %v5123
        %7055 = vmatprep.subr.bf16.mxu0 0
        %7056 = vmatpush1.bf16.msra.mxu0 %v5128
        %7057 = vmatprep.subr.bf16.mxu0 0
        %7058 = vmatpush1.bf16.msra.mxu0 %v5133
        %7059 = vmatprep.subr.bf16.mxu0 0
        %7060 = vmatpush1.bf16.msra.mxu0 %v5138
        %7061 = vmatprep.subr.bf16.mxu0 0
        %7062 = vmatpush1.bf16.msra.mxu0 %v5143
        %7063 = vmatprep.subr.bf16.mxu0 0
        %7064 = vmatpush1.bf16.msra.mxu0 %v5148
        %7065 = vmatprep.mubr.bf16.mxu0 %v3047
        %7066 = vmatmul.mubr.bf16.gmra.mrb[0].mxu0 %v3046
        %v7067 = vpop.f32.mrb[0].mxu0
        %v7068 = vadd.f32 %v6971, %v7067
        %v7069 = vpop.f32.mrb[0].mxu0
        %v7070 = vpop.f32.mrb[0].mxu0
        %v7071 = vadd.f32 %v6974, %v7070
        %v7072 = vpop.f32.mrb[0].mxu0
        %7073 = vmatprep.mubr.bf16.mxu0 %v3057
        %7074 = vmatmul.mubr.bf16.gmra.mrb[0].mxu0 %v3056
        %v7075 = vpop.f32.mrb[0].mxu0
        %v7076 = vadd.f32 %v6979, %v7075
        %v7077 = vpop.f32.mrb[0].mxu0
        %v7078 = vpop.f32.mrb[0].mxu0
        %v7079 = vadd.f32 %v6982, %v7078
        %v7080 = vpop.f32.mrb[0].mxu0
        %7081 = vmatprep.mubr.bf16.mxu0 %v3067
        %7082 = vmatmul.mubr.bf16.gmra.mrb[0].mxu0 %v3066
        %v7083 = vpop.f32.mrb[0].mxu0
        %v7084 = vadd.f32 %v6987, %v7083
        %v7085 = vpop.f32.mrb[0].mxu0
        %v7086 = vpop.f32.mrb[0].mxu0
        %v7087 = vadd.f32 %v6990, %v7086
        %v7088 = vpop.f32.mrb[0].mxu0
        %7089 = vmatprep.mubr.bf16.mxu0 %v3077
        %7090 = vmatmul.mubr.bf16.gmra.mrb[0].mxu0 %v3076
        %v7091 = vpop.f32.mrb[0].mxu0
        %v7092 = vadd.f32 %v6995, %v7091
        %v7093 = vpop.f32.mrb[0].mxu0
        %v7094 = vpop.f32.mrb[0].mxu0
        %v7095 = vadd.f32 %v6998, %v7094
        %v7096 = vpop.f32.mrb[0].mxu0
        %7097 = vmatprep.mubr.bf16.mxu0 %v3087
        %7098 = vmatmul.mubr.bf16.gmra.mrb[0].mxu0 %v3086
        %v7099 = vpop.f32.mrb[0].mxu0
        %v7100 = vadd.f32 %v7003, %v7099
        %v7101 = vpop.f32.mrb[0].mxu0
        %v7102 = vpop.f32.mrb[0].mxu0
        %v7103 = vadd.f32 %v7006, %v7102
        %v7104 = vpop.f32.mrb[0].mxu0
        %7105 = vmatprep.mubr.bf16.mxu0 %v3097
        %7106 = vmatmul.mubr.bf16.gmra.mrb[0].mxu0 %v3096
        %v7107 = vpop.f32.mrb[0].mxu0
        %v7108 = vadd.f32 %v7011, %v7107
        %v7109 = vpop.f32.mrb[0].mxu0
        %v7110 = vpop.f32.mrb[0].mxu0
        %v7111 = vadd.f32 %v7014, %v7110
        %v7112 = vpop.f32.mrb[0].mxu0
        %7113 = vmatprep.mubr.bf16.mxu0 %v3107
        %7114 = vmatmul.mubr.bf16.gmra.mrb[0].mxu0 %v3106
        %v7115 = vpop.f32.mrb[0].mxu0
        %v7116 = vadd.f32 %v7019, %v7115
        %v7117 = vpop.f32.mrb[0].mxu0
        %v7118 = vpop.f32.mrb[0].mxu0
        %v7119 = vadd.f32 %v7022, %v7118
        %v7120 = vpop.f32.mrb[0].mxu0
        %7121 = vmatprep.mubr.bf16.mxu0 %v3117
        %7122 = vmatmul.mubr.bf16.gmra.mrb[0].mxu0 %v3116
        %v7123 = vpop.f32.mrb[0].mxu0
        %v7124 = vadd.f32 %v7027, %v7123
        %v7125 = vpop.f32.mrb[0].mxu0
        %v7126 = vpop.f32.mrb[0].mxu0
        %v7127 = vadd.f32 %v7030, %v7126
        %v7128 = vpop.f32.mrb[0].mxu0
        %7129 = vdwg.mxu0
        %7130 = vmatprep.subr.bf16.mxu0 0
        %7131 = vmatpush1.bf16.msra.mxu0 %v5153
        %7132 = vmatprep.subr.bf16.mxu0 0
        %7133 = vmatpush1.bf16.msra.mxu0 %v5158
        %7134 = vmatprep.subr.bf16.mxu0 0
        %7135 = vmatpush1.bf16.msra.mxu0 %v5163
        %7136 = vmatprep.subr.bf16.mxu0 0
        %7137 = vmatpush1.bf16.msra.mxu0 %v5168
        %7138 = vmatprep.subr.bf16.mxu0 0
        %7139 = vmatpush1.bf16.msra.mxu0 %v5173
        %7140 = vmatprep.subr.bf16.mxu0 0
        %7141 = vmatpush1.bf16.msra.mxu0 %v5178
        %7142 = vmatprep.subr.bf16.mxu0 0
        %7143 = vmatpush1.bf16.msra.mxu0 %v5183
        %7144 = vmatprep.subr.bf16.mxu0 0
        %7145 = vmatpush1.bf16.msra.mxu0 %v5188
        %7146 = vmatprep.subr.bf16.mxu0 0
        %7147 = vmatpush1.bf16.msra.mxu0 %v5193
        %7148 = vmatprep.subr.bf16.mxu0 0
        %7149 = vmatpush1.bf16.msra.mxu0 %v5198
        %7150 = vmatprep.subr.bf16.mxu0 0
        %7151 = vmatpush1.bf16.msra.mxu0 %v5203
        %7152 = vmatprep.subr.bf16.mxu0 0
        %7153 = vmatpush1.bf16.msra.mxu0 %v5208
        %7154 = vmatprep.subr.bf16.mxu0 0
        %7155 = vmatpush1.bf16.msra.mxu0 %v5213
        %7156 = vmatprep.subr.bf16.mxu0 0
        %7157 = vmatpush1.bf16.msra.mxu0 %v5218
        %7158 = vmatprep.subr.bf16.mxu0 0
        %7159 = vmatpush1.bf16.msra.mxu0 %v5223
        %7160 = vmatprep.subr.bf16.mxu0 0
        %7161 = vmatpush1.bf16.msra.mxu0 %v5228
        %7162 = vmatprep.mubr.bf16.mxu0 %v3049
        %7163 = vmatmul.mubr.bf16.gmra.mrb[0].mxu0 %v3048
        %v7164 = vpop.f32.mrb[0].mxu0
        %v7165 = vadd.f32 %v7068, %v7164
        %v7166 = vpop.f32.mrb[0].mxu0
        %v7167 = vpop.f32.mrb[0].mxu0
        %v7168 = vadd.f32 %v7071, %v7167
        %v7169 = vpop.f32.mrb[0].mxu0
        %7170 = vmatprep.mubr.bf16.mxu0 %v3059
        %7171 = vmatmul.mubr.bf16.gmra.mrb[0].mxu0 %v3058
        %v7172 = vpop.f32.mrb[0].mxu0
        %v7173 = vadd.f32 %v7076, %v7172
        %v7174 = vpop.f32.mrb[0].mxu0
        %v7175 = vpop.f32.mrb[0].mxu0
        %v7176 = vadd.f32 %v7079, %v7175
        %v7177 = vpop.f32.mrb[0].mxu0
        %7178 = vmatprep.mubr.bf16.mxu0 %v3069
        %7179 = vmatmul.mubr.bf16.gmra.mrb[0].mxu0 %v3068
        %v7180 = vpop.f32.mrb[0].mxu0
        %v7181 = vadd.f32 %v7084, %v7180
        %v7182 = vpop.f32.mrb[0].mxu0
        %v7183 = vpop.f32.mrb[0].mxu0
        %v7184 = vadd.f32 %v7087, %v7183
        %v7185 = vpop.f32.mrb[0].mxu0
        %7186 = vmatprep.mubr.bf16.mxu0 %v3079
        %7187 = vmatmul.mubr.bf16.gmra.mrb[0].mxu0 %v3078
        %v7188 = vpop.f32.mrb[0].mxu0
        %v7189 = vadd.f32 %v7092, %v7188
        %v7190 = vpop.f32.mrb[0].mxu0
        %v7191 = vpop.f32.mrb[0].mxu0
        %v7192 = vadd.f32 %v7095, %v7191
        %v7193 = vpop.f32.mrb[0].mxu0
        %7194 = vmatprep.mubr.bf16.mxu0 %v3089
        %7195 = vmatmul.mubr.bf16.gmra.mrb[0].mxu0 %v3088
        %v7196 = vpop.f32.mrb[0].mxu0
        %v7197 = vadd.f32 %v7100, %v7196
        %v7198 = vpop.f32.mrb[0].mxu0
        %v7199 = vpop.f32.mrb[0].mxu0
        %v7200 = vadd.f32 %v7103, %v7199
        %v7201 = vpop.f32.mrb[0].mxu0
        %7202 = vmatprep.mubr.bf16.mxu0 %v3099
        %7203 = vmatmul.mubr.bf16.gmra.mrb[0].mxu0 %v3098
        %v7204 = vpop.f32.mrb[0].mxu0
        %v7205 = vadd.f32 %v7108, %v7204
        %v7206 = vpop.f32.mrb[0].mxu0
        %v7207 = vpop.f32.mrb[0].mxu0
        %v7208 = vadd.f32 %v7111, %v7207
        %v7209 = vpop.f32.mrb[0].mxu0
        %7210 = vmatprep.mubr.bf16.mxu0 %v3109
        %7211 = vmatmul.mubr.bf16.gmra.mrb[0].mxu0 %v3108
        %v7212 = vpop.f32.mrb[0].mxu0
        %v7213 = vadd.f32 %v7116, %v7212
        %v7214 = vpop.f32.mrb[0].mxu0
        %v7215 = vpop.f32.mrb[0].mxu0
        %v7216 = vadd.f32 %v7119, %v7215
        %v7217 = vpop.f32.mrb[0].mxu0
        %7218 = vmatprep.mubr.bf16.mxu0 %v3119
        %7219 = vmatmul.mubr.bf16.gmra.mrb[0].mxu0 %v3118
        %v7220 = vpop.f32.mrb[0].mxu0
        %v7221 = vadd.f32 %v7124, %v7220
        %v7222 = vpop.f32.mrb[0].mxu0
        %v7223 = vpop.f32.mrb[0].mxu0
        %v7224 = vadd.f32 %v7127, %v7223
        %v7225 = vpop.f32.mrb[0].mxu0
        %7226 = vdwg.mxu0
        %7227 = vmatprep.subr.bf16.mxu0 0
        %7228 = vmatpush1.bf16.msra.mxu0 %v5233
        %7229 = vmatprep.subr.bf16.mxu0 0
        %7230 = vmatpush1.bf16.msra.mxu0 %v5238
        %7231 = vmatprep.subr.bf16.mxu0 0
        %7232 = vmatpush1.bf16.msra.mxu0 %v5243
        %7233 = vmatprep.subr.bf16.mxu0 0
        %7234 = vmatpush1.bf16.msra.mxu0 %v5248
        %7235 = vmatprep.subr.bf16.mxu0 0
        %7236 = vmatpush1.bf16.msra.mxu0 %v5253
        %7237 = vmatprep.subr.bf16.mxu0 0
        %7238 = vmatpush1.bf16.msra.mxu0 %v5258
        %7239 = vmatprep.subr.bf16.mxu0 0
        %7240 = vmatpush1.bf16.msra.mxu0 %v5263
        %7241 = vmatprep.subr.bf16.mxu0 0
        %7242 = vmatpush1.bf16.msra.mxu0 %v5268
        %7243 = vmatprep.subr.bf16.mxu0 0
        %7244 = vmatpush1.bf16.msra.mxu0 %v5273
        %7245 = vmatprep.subr.bf16.mxu0 0
        %7246 = vmatpush1.bf16.msra.mxu0 %v5278
        %7247 = vmatprep.subr.bf16.mxu0 0
        %7248 = vmatpush1.bf16.msra.mxu0 %v5283
        %7249 = vmatprep.subr.bf16.mxu0 0
        %7250 = vmatpush1.bf16.msra.mxu0 %v5288
        %7251 = vmatprep.subr.bf16.mxu0 0
        %7252 = vmatpush1.bf16.msra.mxu0 %v5293
        %7253 = vmatprep.subr.bf16.mxu0 0
        %7254 = vmatpush1.bf16.msra.mxu0 %v5298
        %7255 = vmatprep.subr.bf16.mxu0 0
        %7256 = vmatpush1.bf16.msra.mxu0 %v5303
        %7257 = vmatprep.subr.bf16.mxu0 0
        %7258 = vmatpush1.bf16.msra.mxu0 %v5308
        %7259 = vmatprep.mubr.bf16.mxu0 %v3051
        %7260 = vmatmul.mubr.bf16.gmra.mrb[0].mxu0 %v3050
        %v7261 = vpop.f32.mrb[0].mxu0
        %v7262 = vadd.f32 %v7165, %v7261
        %v7263 = vpop.f32.mrb[0].mxu0
        %v7264 = vpop.f32.mrb[0].mxu0
        %v7265 = vadd.f32 %v7168, %v7264
        %v7266 = vpop.f32.mrb[0].mxu0
        %7267 = vmatprep.mubr.bf16.mxu0 %v3061
        %7268 = vmatmul.mubr.bf16.gmra.mrb[0].mxu0 %v3060
        %v7269 = vpop.f32.mrb[0].mxu0
        %v7270 = vadd.f32 %v7173, %v7269
        %v7271 = vpop.f32.mrb[0].mxu0
        %v7272 = vpop.f32.mrb[0].mxu0
        %v7273 = vadd.f32 %v7176, %v7272
        %v7274 = vpop.f32.mrb[0].mxu0
        %7275 = vmatprep.mubr.bf16.mxu0 %v3071
        %7276 = vmatmul.mubr.bf16.gmra.mrb[0].mxu0 %v3070
        %v7277 = vpop.f32.mrb[0].mxu0
        %v7278 = vadd.f32 %v7181, %v7277
        %v7279 = vpop.f32.mrb[0].mxu0
        %v7280 = vpop.f32.mrb[0].mxu0
        %v7281 = vadd.f32 %v7184, %v7280
        %v7282 = vpop.f32.mrb[0].mxu0
        %7283 = vmatprep.mubr.bf16.mxu0 %v3081
        %7284 = vmatmul.mubr.bf16.gmra.mrb[0].mxu0 %v3080
        %v7285 = vpop.f32.mrb[0].mxu0
        %v7286 = vadd.f32 %v7189, %v7285
        %v7287 = vpop.f32.mrb[0].mxu0
        %v7288 = vpop.f32.mrb[0].mxu0
        %v7289 = vadd.f32 %v7192, %v7288
        %v7290 = vpop.f32.mrb[0].mxu0
        %7291 = vmatprep.mubr.bf16.mxu0 %v3091
        %7292 = vmatmul.mubr.bf16.gmra.mrb[0].mxu0 %v3090
        %v7293 = vpop.f32.mrb[0].mxu0
        %v7294 = vadd.f32 %v7197, %v7293
        %v7295 = vpop.f32.mrb[0].mxu0
        %v7296 = vpop.f32.mrb[0].mxu0
        %v7297 = vadd.f32 %v7200, %v7296
        %v7298 = vpop.f32.mrb[0].mxu0
        %7299 = vmatprep.mubr.bf16.mxu0 %v3101
        %7300 = vmatmul.mubr.bf16.gmra.mrb[0].mxu0 %v3100
        %v7301 = vpop.f32.mrb[0].mxu0
        %v7302 = vadd.f32 %v7205, %v7301
        %v7303 = vpop.f32.mrb[0].mxu0
        %v7304 = vpop.f32.mrb[0].mxu0
        %v7305 = vadd.f32 %v7208, %v7304
        %v7306 = vpop.f32.mrb[0].mxu0
        %7307 = vmatprep.mubr.bf16.mxu0 %v3111
        %7308 = vmatmul.mubr.bf16.gmra.mrb[0].mxu0 %v3110
        %v7309 = vpop.f32.mrb[0].mxu0
        %v7310 = vadd.f32 %v7213, %v7309
        %v7311 = vpop.f32.mrb[0].mxu0
        %v7312 = vpop.f32.mrb[0].mxu0
        %v7313 = vadd.f32 %v7216, %v7312
        %v7314 = vpop.f32.mrb[0].mxu0
        %7315 = vmatprep.mubr.bf16.mxu0 %v3121
        %7316 = vmatmul.mubr.bf16.gmra.mrb[0].mxu0 %v3120
        %v7317 = vpop.f32.mrb[0].mxu0
        %v7318 = vadd.f32 %v7221, %v7317
        %v7319 = vpop.f32.mrb[0].mxu0
        %v7320 = vpop.f32.mrb[0].mxu0
        %v7321 = vadd.f32 %v7224, %v7320
        %v7322 = vpop.f32.mrb[0].mxu0
        %7323 = vdwg.mxu0
        %s7324 = scalar_lea.vmem %s448, 1 [#allocation12]
        %v7325 = vld [vmem:[%s7324] ss:$4 sm:$0x1f]
        %s7326 = scalar_lea.vmem %s448, 2 [#allocation12]
        %v7327 = vld [vmem:[%s7326] ss:$4 sm:$0x1f]
        %v7328 = vadd.f32 %v6196, %v6200
        %v7329 = vadd.f32 %v7328, %v6206
        %v7330 = vadd.f32 %v7329, %v6210
        %v7331 = vadd.f32 %v7330, %v6216
        %v7332 = vadd.f32 %v7331, %v6220
        %v7333 = vadd.f32 %v7332, %v6226
        %v7334 = vadd.f32 %v7333, %v6230
        %v7335 = vadd.f32 %v7334, %v6236
        %v7336 = vadd.f32 %v7335, %v6240
        %v7337 = vadd.f32 %v7336, %v6246
        %v7338 = vadd.f32 %v7337, %v6250
        %v7339 = vadd.f32 %v7338, %v6256
        %v7340 = vadd.f32 %v7339, %v6260
        %v7341 = vadd.f32 %v7340, %v6266
        %v7342 = vadd.f32 %v7341, %v6270
        %v7343 = vrot.slane %v7342, 4
        %v7344 = vadd.f32 %v7342, %v7343
        %v7345 = vrot.slane %v7344, 2
        %v7346 = vadd.f32 %v7344, %v7345
        %v7347 = vrot.slane %v7346, 1
        %v7348 = vadd.f32 %v7346, %v7347
        %v7349 = vadd.f32 %v6198, %v6202
        %v7350 = vadd.f32 %v7349, %v6208
        %v7351 = vadd.f32 %v7350, %v6212
        %v7352 = vadd.f32 %v7351, %v6218
        %v7353 = vadd.f32 %v7352, %v6222
        %v7354 = vadd.f32 %v7353, %v6228
        %v7355 = vadd.f32 %v7354, %v6232
        %v7356 = vadd.f32 %v7355, %v6238
        %v7357 = vadd.f32 %v7356, %v6242
        %v7358 = vadd.f32 %v7357, %v6248
        %v7359 = vadd.f32 %v7358, %v6252
        %v7360 = vadd.f32 %v7359, %v6258
        %v7361 = vadd.f32 %v7360, %v6262
        %v7362 = vadd.f32 %v7361, %v6268
        %v7363 = vadd.f32 %v7362, %v6272
        %v7364 = vrot.slane %v7363, 4
        %v7365 = vadd.f32 %v7363, %v7364
        %v7366 = vrot.slane %v7365, 2
        %v7367 = vadd.f32 %v7365, %v7366
        %v7368 = vrot.slane %v7367, 1
        %v7369 = vadd.f32 %v7367, %v7368
        %v7370 = vadd.f32 %v6761, %v6765
        %v7371 = vadd.f32 %v7370, %v6771
        %v7372 = vadd.f32 %v7371, %v6775
        %v7373 = vadd.f32 %v7372, %v6781
        %v7374 = vadd.f32 %v7373, %v6785
        %v7375 = vadd.f32 %v7374, %v6791
        %v7376 = vadd.f32 %v7375, %v6795
        %v7377 = vadd.f32 %v7376, %v6801
        %v7378 = vadd.f32 %v7377, %v6805
        %v7379 = vadd.f32 %v7378, %v6811
        %v7380 = vadd.f32 %v7379, %v6815
        %v7381 = vadd.f32 %v7380, %v6821
        %v7382 = vadd.f32 %v7381, %v6825
        %v7383 = vadd.f32 %v7382, %v6831
        %v7384 = vadd.f32 %v7383, %v6835
        %v7385 = vrot.slane %v7384, 4
        %v7386 = vadd.f32 %v7384, %v7385
        %v7387 = vrot.slane %v7386, 2
        %v7388 = vadd.f32 %v7386, %v7387
        %v7389 = vrot.slane %v7388, 1
        %v7390 = vadd.f32 %v7388, %v7389
        %v7391 = vadd.f32 %v6763, %v6767
        %v7392 = vadd.f32 %v7391, %v6773
        %v7393 = vadd.f32 %v7392, %v6777
        %v7394 = vadd.f32 %v7393, %v6783
        %v7395 = vadd.f32 %v7394, %v6787
        %v7396 = vadd.f32 %v7395, %v6793
        %v7397 = vadd.f32 %v7396, %v6797
        %v7398 = vadd.f32 %v7397, %v6803
        %v7399 = vadd.f32 %v7398, %v6807
        %v7400 = vadd.f32 %v7399, %v6813
        %v7401 = vadd.f32 %v7400, %v6817
        %v7402 = vadd.f32 %v7401, %v6823
        %v7403 = vadd.f32 %v7402, %v6827
        %v7404 = vadd.f32 %v7403, %v6833
        %v7405 = vadd.f32 %v7404, %v6837
        %v7406 = vrot.slane %v7405, 4
        %v7407 = vadd.f32 %v7405, %v7406
        %v7408 = vrot.slane %v7407, 2
        %v7409 = vadd.f32 %v7407, %v7408
        %v7410 = vrot.slane %v7409, 1
        %v7411 = vadd.f32 %v7409, %v7410
        %v7412 = vadd.f32 %v7262, %v7265
        %v7413 = vadd.f32 %v7412, %v7270
        %v7414 = vadd.f32 %v7413, %v7273
        %v7415 = vadd.f32 %v7414, %v7278
        %v7416 = vadd.f32 %v7415, %v7281
        %v7417 = vadd.f32 %v7416, %v7286
        %v7418 = vadd.f32 %v7417, %v7289
        %v7419 = vadd.f32 %v7418, %v7294
        %v7420 = vadd.f32 %v7419, %v7297
        %v7421 = vadd.f32 %v7420, %v7302
        %v7422 = vadd.f32 %v7421, %v7305
        %v7423 = vadd.f32 %v7422, %v7310
        %v7424 = vadd.f32 %v7423, %v7313
        %v7425 = vadd.f32 %v7424, %v7318
        %v7426 = vadd.f32 %v7425, %v7321
        %v7427 = vrot.slane %v7426, 4
        %v7428 = vadd.f32 %v7426, %v7427
        %v7429 = vrot.slane %v7428, 2
        %v7430 = vadd.f32 %v7428, %v7429
        %v7431 = vrot.slane %v7430, 1
        %v7432 = vadd.f32 %v7430, %v7431
        %v7433 = vrcp.pop 128.0
        %v7434 = vmul.f32 %v7348, %v7433
        %v7435 = vmul.f32 %v7369, %v7433
        %v7436 = vmul.f32 %v7390, %v7433
        %v7437 = vmul.f32 %v7411, %v7433
        %v7438 = vmul.f32 %v7432, %v7433
        %v7439 = vsub.f32 %v6196, %v7434
        %v7440 = vsub.f32 %v6198, %v7435
        %v7441 = vsub.f32 %v6761, %v7436
        %v7442 = vsub.f32 %v6763, %v7437
        %v7443 = vsub.f32 %v7262, %v7438
        %v7444 = vsub.f32 %v6200, %v7434
        %v7445 = vsub.f32 %v6202, %v7435
        %v7446 = vsub.f32 %v6765, %v7436
        %v7447 = vsub.f32 %v6767, %v7437
        %v7448 = vsub.f32 %v7265, %v7438
        %v7449 = vsub.f32 %v6206, %v7434
        %v7450 = vsub.f32 %v6208, %v7435
        %v7451 = vsub.f32 %v6771, %v7436
        %v7452 = vsub.f32 %v6773, %v7437
        %v7453 = vsub.f32 %v7270, %v7438
        %v7454 = vsub.f32 %v6210, %v7434
        %v7455 = vsub.f32 %v6212, %v7435
        %v7456 = vsub.f32 %v6775, %v7436
        %v7457 = vsub.f32 %v6777, %v7437
        %v7458 = vsub.f32 %v7273, %v7438
        %v7459 = vsub.f32 %v6216, %v7434
        %v7460 = vsub.f32 %v6218, %v7435
        %v7461 = vsub.f32 %v6781, %v7436
        %v7462 = vsub.f32 %v6783, %v7437
        %v7463 = vsub.f32 %v7278, %v7438
        %v7464 = vsub.f32 %v6220, %v7434
        %v7465 = vsub.f32 %v6222, %v7435
        %v7466 = vsub.f32 %v6785, %v7436
        %v7467 = vsub.f32 %v6787, %v7437
        %v7468 = vsub.f32 %v7281, %v7438
        %v7469 = vsub.f32 %v6226, %v7434
        %v7470 = vsub.f32 %v6228, %v7435
        %v7471 = vsub.f32 %v6791, %v7436
        %v7472 = vsub.f32 %v6793, %v7437
        %v7473 = vsub.f32 %v7286, %v7438
        %v7474 = vsub.f32 %v6230, %v7434
        %v7475 = vsub.f32 %v6232, %v7435
        %v7476 = vsub.f32 %v6795, %v7436
        %v7477 = vsub.f32 %v6797, %v7437
        %v7478 = vsub.f32 %v7289, %v7438
        %v7479 = vsub.f32 %v6236, %v7434
        %v7480 = vsub.f32 %v6238, %v7435
        %v7481 = vsub.f32 %v6801, %v7436
        %v7482 = vsub.f32 %v6803, %v7437
        %v7483 = vsub.f32 %v7294, %v7438
        %v7484 = vsub.f32 %v6240, %v7434
        %v7485 = vsub.f32 %v6242, %v7435
        %v7486 = vsub.f32 %v6805, %v7436
        %v7487 = vsub.f32 %v6807, %v7437
        %v7488 = vsub.f32 %v7297, %v7438
        %v7489 = vsub.f32 %v6246, %v7434
        %v7490 = vsub.f32 %v6248, %v7435
        %v7491 = vsub.f32 %v6811, %v7436
        %v7492 = vsub.f32 %v6813, %v7437
        %v7493 = vsub.f32 %v7302, %v7438
        %v7494 = vsub.f32 %v6250, %v7434
        %v7495 = vsub.f32 %v6252, %v7435
        %v7496 = vsub.f32 %v6815, %v7436
        %v7497 = vsub.f32 %v6817, %v7437
        %v7498 = vsub.f32 %v7305, %v7438
        %v7499 = vsub.f32 %v6256, %v7434
        %v7500 = vsub.f32 %v6258, %v7435
        %v7501 = vsub.f32 %v6821, %v7436
        %v7502 = vsub.f32 %v6823, %v7437
        %v7503 = vsub.f32 %v7310, %v7438
        %v7504 = vsub.f32 %v6260, %v7434
        %v7505 = vsub.f32 %v6262, %v7435
        %v7506 = vsub.f32 %v6825, %v7436
        %v7507 = vsub.f32 %v6827, %v7437
        %v7508 = vsub.f32 %v7313, %v7438
        %v7509 = vsub.f32 %v6266, %v7434
        %v7510 = vsub.f32 %v6268, %v7435
        %v7511 = vsub.f32 %v6831, %v7436
        %v7512 = vsub.f32 %v6833, %v7437
        %v7513 = vsub.f32 %v7318, %v7438
        %v7514 = vsub.f32 %v6270, %v7434
        %v7515 = vsub.f32 %v6272, %v7435
        %v7516 = vsub.f32 %v6835, %v7436
        %v7517 = vsub.f32 %v6837, %v7437
        %v7518 = vsub.f32 %v7321, %v7438
        %v7519 = vmul.f32 %v7439, %v7439
        %v7520 = vmul.f32 %v7440, %v7440
        %v7521 = vmul.f32 %v7441, %v7441
        %v7522 = vmul.f32 %v7442, %v7442
        %v7523 = vmul.f32 %v7443, %v7443
        %v7524 = vmul.f32 %v7444, %v7444
        %v7525 = vmul.f32 %v7445, %v7445
        %v7526 = vmul.f32 %v7446, %v7446
        %v7527 = vmul.f32 %v7447, %v7447
        %v7528 = vmul.f32 %v7448, %v7448
        %v7529 = vmul.f32 %v7449, %v7449
        %v7530 = vmul.f32 %v7450, %v7450
        %v7531 = vmul.f32 %v7451, %v7451
        %v7532 = vmul.f32 %v7452, %v7452
        %v7533 = vmul.f32 %v7453, %v7453
        %v7534 = vmul.f32 %v7454, %v7454
        %v7535 = vmul.f32 %v7455, %v7455
        %v7536 = vmul.f32 %v7456, %v7456
        %v7537 = vmul.f32 %v7457, %v7457
        %v7538 = vmul.f32 %v7458, %v7458
        %v7539 = vmul.f32 %v7459, %v7459
        %v7540 = vmul.f32 %v7460, %v7460
        %v7541 = vmul.f32 %v7461, %v7461
        %v7542 = vmul.f32 %v7462, %v7462
        %v7543 = vmul.f32 %v7463, %v7463
        %v7544 = vmul.f32 %v7464, %v7464
        %v7545 = vmul.f32 %v7465, %v7465
        %v7546 = vmul.f32 %v7466, %v7466
        %v7547 = vmul.f32 %v7467, %v7467
        %v7548 = vmul.f32 %v7468, %v7468
        %v7549 = vmul.f32 %v7469, %v7469
        %v7550 = vmul.f32 %v7470, %v7470
        %v7551 = vmul.f32 %v7471, %v7471
        %v7552 = vmul.f32 %v7472, %v7472
        %v7553 = vmul.f32 %v7473, %v7473
        %v7554 = vmul.f32 %v7474, %v7474
        %v7555 = vmul.f32 %v7475, %v7475
        %v7556 = vmul.f32 %v7476, %v7476
        %v7557 = vmul.f32 %v7477, %v7477
        %v7558 = vmul.f32 %v7478, %v7478
        %v7559 = vmul.f32 %v7479, %v7479
        %v7560 = vmul.f32 %v7480, %v7480
        %v7561 = vmul.f32 %v7481, %v7481
        %v7562 = vmul.f32 %v7482, %v7482
        %v7563 = vmul.f32 %v7483, %v7483
        %v7564 = vmul.f32 %v7484, %v7484
        %v7565 = vmul.f32 %v7485, %v7485
        %v7566 = vmul.f32 %v7486, %v7486
        %v7567 = vmul.f32 %v7487, %v7487
        %v7568 = vmul.f32 %v7488, %v7488
        %v7569 = vmul.f32 %v7489, %v7489
        %v7570 = vmul.f32 %v7490, %v7490
        %v7571 = vmul.f32 %v7491, %v7491
        %v7572 = vmul.f32 %v7492, %v7492
        %v7573 = vmul.f32 %v7493, %v7493
        %v7574 = vmul.f32 %v7494, %v7494
        %v7575 = vmul.f32 %v7495, %v7495
        %v7576 = vmul.f32 %v7496, %v7496
        %v7577 = vmul.f32 %v7497, %v7497
        %v7578 = vmul.f32 %v7498, %v7498
        %v7579 = vmul.f32 %v7499, %v7499
        %v7580 = vmul.f32 %v7500, %v7500
        %v7581 = vmul.f32 %v7501, %v7501
        %v7582 = vmul.f32 %v7502, %v7502
        %v7583 = vmul.f32 %v7503, %v7503
        %v7584 = vmul.f32 %v7504, %v7504
        %v7585 = vmul.f32 %v7505, %v7505
        %v7586 = vmul.f32 %v7506, %v7506
        %v7587 = vmul.f32 %v7507, %v7507
        %v7588 = vmul.f32 %v7508, %v7508
        %v7589 = vmul.f32 %v7509, %v7509
        %v7590 = vmul.f32 %v7510, %v7510
        %v7591 = vmul.f32 %v7511, %v7511
        %v7592 = vmul.f32 %v7512, %v7512
        %v7593 = vmul.f32 %v7513, %v7513
        %v7594 = vmul.f32 %v7514, %v7514
        %v7595 = vmul.f32 %v7515, %v7515
        %v7596 = vmul.f32 %v7516, %v7516
        %v7597 = vmul.f32 %v7517, %v7517
        %v7598 = vmul.f32 %v7518, %v7518
        %v7599 = vadd.f32 %v7519, %v7524
        %v7600 = vadd.f32 %v7599, %v7529
        %v7601 = vadd.f32 %v7600, %v7534
        %v7602 = vadd.f32 %v7601, %v7539
        %v7603 = vadd.f32 %v7602, %v7544
        %v7604 = vadd.f32 %v7603, %v7549
        %v7605 = vadd.f32 %v7604, %v7554
        %v7606 = vadd.f32 %v7605, %v7559
        %v7607 = vadd.f32 %v7606, %v7564
        %v7608 = vadd.f32 %v7607, %v7569
        %v7609 = vadd.f32 %v7608, %v7574
        %v7610 = vadd.f32 %v7609, %v7579
        %v7611 = vadd.f32 %v7610, %v7584
        %v7612 = vadd.f32 %v7611, %v7589
        %v7613 = vadd.f32 %v7612, %v7594
        %v7614 = vrot.slane %v7613, 4
        %v7615 = vadd.f32 %v7613, %v7614
        %v7616 = vrot.slane %v7615, 2
        %v7617 = vadd.f32 %v7615, %v7616
        %v7618 = vrot.slane %v7617, 1
        %v7619 = vadd.f32 %v7617, %v7618
        %v7620 = vadd.f32 %v7520, %v7525
        %v7621 = vadd.f32 %v7620, %v7530
        %v7622 = vadd.f32 %v7621, %v7535
        %v7623 = vadd.f32 %v7622, %v7540
        %v7624 = vadd.f32 %v7623, %v7545
        %v7625 = vadd.f32 %v7624, %v7550
        %v7626 = vadd.f32 %v7625, %v7555
        %v7627 = vadd.f32 %v7626, %v7560
        %v7628 = vadd.f32 %v7627, %v7565
        %v7629 = vadd.f32 %v7628, %v7570
        %v7630 = vadd.f32 %v7629, %v7575
        %v7631 = vadd.f32 %v7630, %v7580
        %v7632 = vadd.f32 %v7631, %v7585
        %v7633 = vadd.f32 %v7632, %v7590
        %v7634 = vadd.f32 %v7633, %v7595
        %v7635 = vrot.slane %v7634, 4
        %v7636 = vadd.f32 %v7634, %v7635
        %v7637 = vrot.slane %v7636, 2
        %v7638 = vadd.f32 %v7636, %v7637
        %v7639 = vrot.slane %v7638, 1
        %v7640 = vadd.f32 %v7638, %v7639
        %v7641 = vadd.f32 %v7521, %v7526
        %v7642 = vadd.f32 %v7641, %v7531
        %v7643 = vadd.f32 %v7642, %v7536
        %v7644 = vadd.f32 %v7643, %v7541
        %v7645 = vadd.f32 %v7644, %v7546
        %v7646 = vadd.f32 %v7645, %v7551
        %v7647 = vadd.f32 %v7646, %v7556
        %v7648 = vadd.f32 %v7647, %v7561
        %v7649 = vadd.f32 %v7648, %v7566
        %v7650 = vadd.f32 %v7649, %v7571
        %v7651 = vadd.f32 %v7650, %v7576
        %v7652 = vadd.f32 %v7651, %v7581
        %v7653 = vadd.f32 %v7652, %v7586
        %v7654 = vadd.f32 %v7653, %v7591
        %v7655 = vadd.f32 %v7654, %v7596
        %v7656 = vrot.slane %v7655, 4
        %v7657 = vadd.f32 %v7655, %v7656
        %v7658 = vrot.slane %v7657, 2
        %v7659 = vadd.f32 %v7657, %v7658
        %v7660 = vrot.slane %v7659, 1
        %v7661 = vadd.f32 %v7659, %v7660
        %v7662 = vadd.f32 %v7522, %v7527
        %v7663 = vadd.f32 %v7662, %v7532
        %v7664 = vadd.f32 %v7663, %v7537
        %v7665 = vadd.f32 %v7664, %v7542
        %v7666 = vadd.f32 %v7665, %v7547
        %v7667 = vadd.f32 %v7666, %v7552
        %v7668 = vadd.f32 %v7667, %v7557
        %v7669 = vadd.f32 %v7668, %v7562
        %v7670 = vadd.f32 %v7669, %v7567
        %v7671 = vadd.f32 %v7670, %v7572
        %v7672 = vadd.f32 %v7671, %v7577
        %v7673 = vadd.f32 %v7672, %v7582
        %v7674 = vadd.f32 %v7673, %v7587
        %v7675 = vadd.f32 %v7674, %v7592
        %v7676 = vadd.f32 %v7675, %v7597
        %v7677 = vrot.slane %v7676, 4
        %v7678 = vadd.f32 %v7676, %v7677
        %v7679 = vrot.slane %v7678, 2
        %v7680 = vadd.f32 %v7678, %v7679
        %v7681 = vrot.slane %v7680, 1
        %v7682 = vadd.f32 %v7680, %v7681
        %v7683 = vadd.f32 %v7523, %v7528
        %v7684 = vadd.f32 %v7683, %v7533
        %v7685 = vadd.f32 %v7684, %v7538
        %v7686 = vadd.f32 %v7685, %v7543
        %v7687 = vadd.f32 %v7686, %v7548
        %v7688 = vadd.f32 %v7687, %v7553
        %v7689 = vadd.f32 %v7688, %v7558
        %v7690 = vadd.f32 %v7689, %v7563
        %v7691 = vadd.f32 %v7690, %v7568
        %v7692 = vadd.f32 %v7691, %v7573
        %v7693 = vadd.f32 %v7692, %v7578
        %v7694 = vadd.f32 %v7693, %v7583
        %v7695 = vadd.f32 %v7694, %v7588
        %v7696 = vadd.f32 %v7695, %v7593
        %v7697 = vadd.f32 %v7696, %v7598
        %v7698 = vrot.slane %v7697, 4
        %v7699 = vadd.f32 %v7697, %v7698
        %v7700 = vrot.slane %v7699, 2
        %v7701 = vadd.f32 %v7699, %v7700
        %v7702 = vrot.slane %v7701, 1
        %v7703 = vadd.f32 %v7701, %v7702
        %v7704 = vmul.f32 %v7619, %v7433
        %v7705 = vmul.f32 %v7640, %v7433
        %v7706 = vmul.f32 %v7661, %v7433
        %v7707 = vmul.f32 %v7682, %v7433
        %v7708 = vmul.f32 %v7703, %v7433
        %v7709 = vadd.f32 %v7704, 1e-05
        %v7710 = vadd.f32 %v7705, 1e-05
        %v7711 = vadd.f32 %v7706, 1e-05
        %v7712 = vadd.f32 %v7707, 1e-05
        %v7713 = vadd.f32 %v7708, 1e-05
        %v7714 = vrsqrt.pop %v7709
        %v7715 = vrsqrt.pop %v7710
        %v7716 = vrsqrt.pop %v7711
        %v7717 = vrsqrt.pop %v7712
        %v7718 = vrsqrt.pop %v7713
        %v7719 = vmul.f32 %v7439, %v7714
        %v7720 = vmul.f32 %v7440, %v7715
        %v7721 = vmul.f32 %v7441, %v7716
        %v7722 = vmul.f32 %v7442, %v7717
        %v7723 = vmul.f32 %v7443, %v7718
        %v7724 = vmul.f32 %v7444, %v7714
        %v7725 = vmul.f32 %v7445, %v7715
        %v7726 = vmul.f32 %v7446, %v7716
        %v7727 = vmul.f32 %v7447, %v7717
        %v7728 = vmul.f32 %v7448, %v7718
        %v7729 = vmul.f32 %v7449, %v7714
        %v7730 = vmul.f32 %v7450, %v7715
        %v7731 = vmul.f32 %v7451, %v7716
        %v7732 = vmul.f32 %v7452, %v7717
        %v7733 = vmul.f32 %v7453, %v7718
        %v7734 = vmul.f32 %v7454, %v7714
        %v7735 = vmul.f32 %v7455, %v7715
        %v7736 = vmul.f32 %v7456, %v7716
        %v7737 = vmul.f32 %v7457, %v7717
        %v7738 = vmul.f32 %v7458, %v7718
        %v7739 = vmul.f32 %v7459, %v7714
        %v7740 = vmul.f32 %v7460, %v7715
        %v7741 = vmul.f32 %v7461, %v7716
        %v7742 = vmul.f32 %v7462, %v7717
        %v7743 = vmul.f32 %v7463, %v7718
        %v7744 = vmul.f32 %v7464, %v7714
        %v7745 = vmul.f32 %v7465, %v7715
        %v7746 = vmul.f32 %v7466, %v7716
        %v7747 = vmul.f32 %v7467, %v7717
        %v7748 = vmul.f32 %v7468, %v7718
        %v7749 = vmul.f32 %v7469, %v7714
        %v7750 = vmul.f32 %v7470, %v7715
        %v7751 = vmul.f32 %v7471, %v7716
        %v7752 = vmul.f32 %v7472, %v7717
        %v7753 = vmul.f32 %v7473, %v7718
        %v7754 = vmul.f32 %v7474, %v7714
        %v7755 = vmul.f32 %v7475, %v7715
        %v7756 = vmul.f32 %v7476, %v7716
        %v7757 = vmul.f32 %v7477, %v7717
        %v7758 = vmul.f32 %v7478, %v7718
        %v7759 = vmul.f32 %v7479, %v7714
        %v7760 = vmul.f32 %v7480, %v7715
        %v7761 = vmul.f32 %v7481, %v7716
        %v7762 = vmul.f32 %v7482, %v7717
        %v7763 = vmul.f32 %v7483, %v7718
        %v7764 = vmul.f32 %v7484, %v7714
        %v7765 = vmul.f32 %v7485, %v7715
        %v7766 = vmul.f32 %v7486, %v7716
        %v7767 = vmul.f32 %v7487, %v7717
        %v7768 = vmul.f32 %v7488, %v7718
        %v7769 = vmul.f32 %v7489, %v7714
        %v7770 = vmul.f32 %v7490, %v7715
        %v7771 = vmul.f32 %v7491, %v7716
        %v7772 = vmul.f32 %v7492, %v7717
        %v7773 = vmul.f32 %v7493, %v7718
        %v7774 = vmul.f32 %v7494, %v7714
        %v7775 = vmul.f32 %v7495, %v7715
        %v7776 = vmul.f32 %v7496, %v7716
        %v7777 = vmul.f32 %v7497, %v7717
        %v7778 = vmul.f32 %v7498, %v7718
        %v7779 = vmul.f32 %v7499, %v7714
        %v7780 = vmul.f32 %v7500, %v7715
        %v7781 = vmul.f32 %v7501, %v7716
        %v7782 = vmul.f32 %v7502, %v7717
        %v7783 = vmul.f32 %v7503, %v7718
        %v7784 = vmul.f32 %v7504, %v7714
        %v7785 = vmul.f32 %v7505, %v7715
        %v7786 = vmul.f32 %v7506, %v7716
        %v7787 = vmul.f32 %v7507, %v7717
        %v7788 = vmul.f32 %v7508, %v7718
        %v7789 = vmul.f32 %v7509, %v7714
        %v7790 = vmul.f32 %v7510, %v7715
        %v7791 = vmul.f32 %v7511, %v7716
        %v7792 = vmul.f32 %v7512, %v7717
        %v7793 = vmul.f32 %v7513, %v7718
        %v7794 = vmul.f32 %v7514, %v7714
        %v7795 = vmul.f32 %v7515, %v7715
        %v7796 = vmul.f32 %v7516, %v7716
        %v7797 = vmul.f32 %v7517, %v7717
        %v7798 = vmul.f32 %v7518, %v7718
        %v7800 = vlaneseq
        %v7801 = vshrl.u32 %v7800, 7
        %v7802 = vsub.s32 0, %v7801
        %v7803 = vrot.slane %v7325, %v7802
        %v7804 = vlaneseq
        %v7805 = vshrl.u32 %v7804, 7
        %v7806 = vsub.s32 1, %v7805
        %v7807 = vrot.slane %v7325, %v7806
        %v7808 = vlaneseq
        %v7809 = vshrl.u32 %v7808, 7
        %v7810 = vsub.s32 2, %v7809
        %v7811 = vrot.slane %v7325, %v7810
        %v7812 = vlaneseq
        %v7813 = vshrl.u32 %v7812, 7
        %v7814 = vsub.s32 3, %v7813
        %v7815 = vrot.slane %v7325, %v7814
        %v7816 = vlaneseq
        %v7817 = vshrl.u32 %v7816, 7
        %v7818 = vsub.s32 4, %v7817
        %v7819 = vrot.slane %v7325, %v7818
        %v7825 = vmul.f32 %v7719, %v7803
        %v7826 = vmul.f32 %v7720, %v7807
        %v7827 = vmul.f32 %v7721, %v7811
        %v7828 = vmul.f32 %v7722, %v7815
        %v7829 = vmul.f32 %v7723, %v7819
        %v7830 = vmul.f32 %v7724, %v7803
        %v7831 = vmul.f32 %v7725, %v7807
        %v7832 = vmul.f32 %v7726, %v7811
        %v7833 = vmul.f32 %v7727, %v7815
        %v7834 = vmul.f32 %v7728, %v7819
        %v7835 = vmul.f32 %v7729, %v7803
        %v7836 = vmul.f32 %v7730, %v7807
        %v7837 = vmul.f32 %v7731, %v7811
        %v7838 = vmul.f32 %v7732, %v7815
        %v7839 = vmul.f32 %v7733, %v7819
        %v7840 = vmul.f32 %v7734, %v7803
        %v7841 = vmul.f32 %v7735, %v7807
        %v7842 = vmul.f32 %v7736, %v7811
        %v7843 = vmul.f32 %v7737, %v7815
        %v7844 = vmul.f32 %v7738, %v7819
        %v7845 = vmul.f32 %v7739, %v7803
        %v7846 = vmul.f32 %v7740, %v7807
        %v7847 = vmul.f32 %v7741, %v7811
        %v7848 = vmul.f32 %v7742, %v7815
        %v7849 = vmul.f32 %v7743, %v7819
        %v7850 = vmul.f32 %v7744, %v7803
        %v7851 = vmul.f32 %v7745, %v7807
        %v7852 = vmul.f32 %v7746, %v7811
        %v7853 = vmul.f32 %v7747, %v7815
        %v7854 = vmul.f32 %v7748, %v7819
        %v7855 = vmul.f32 %v7749, %v7803
        %v7856 = vmul.f32 %v7750, %v7807
        %v7857 = vmul.f32 %v7751, %v7811
        %v7858 = vmul.f32 %v7752, %v7815
        %v7859 = vmul.f32 %v7753, %v7819
        %v7860 = vmul.f32 %v7754, %v7803
        %v7861 = vmul.f32 %v7755, %v7807
        %v7862 = vmul.f32 %v7756, %v7811
        %v7863 = vmul.f32 %v7757, %v7815
        %v7864 = vmul.f32 %v7758, %v7819
        %v7865 = vmul.f32 %v7759, %v7803
        %v7866 = vmul.f32 %v7760, %v7807
        %v7867 = vmul.f32 %v7761, %v7811
        %v7868 = vmul.f32 %v7762, %v7815
        %v7869 = vmul.f32 %v7763, %v7819
        %v7870 = vmul.f32 %v7764, %v7803
        %v7871 = vmul.f32 %v7765, %v7807
        %v7872 = vmul.f32 %v7766, %v7811
        %v7873 = vmul.f32 %v7767, %v7815
        %v7874 = vmul.f32 %v7768, %v7819
        %v7875 = vmul.f32 %v7769, %v7803
        %v7876 = vmul.f32 %v7770, %v7807
        %v7877 = vmul.f32 %v7771, %v7811
        %v7878 = vmul.f32 %v7772, %v7815
        %v7879 = vmul.f32 %v7773, %v7819
        %v7880 = vmul.f32 %v7774, %v7803
        %v7881 = vmul.f32 %v7775, %v7807
        %v7882 = vmul.f32 %v7776, %v7811
        %v7883 = vmul.f32 %v7777, %v7815
        %v7884 = vmul.f32 %v7778, %v7819
        %v7885 = vmul.f32 %v7779, %v7803
        %v7886 = vmul.f32 %v7780, %v7807
        %v7887 = vmul.f32 %v7781, %v7811
        %v7888 = vmul.f32 %v7782, %v7815
        %v7889 = vmul.f32 %v7783, %v7819
        %v7890 = vmul.f32 %v7784, %v7803
        %v7891 = vmul.f32 %v7785, %v7807
        %v7892 = vmul.f32 %v7786, %v7811
        %v7893 = vmul.f32 %v7787, %v7815
        %v7894 = vmul.f32 %v7788, %v7819
        %v7895 = vmul.f32 %v7789, %v7803
        %v7896 = vmul.f32 %v7790, %v7807
        %v7897 = vmul.f32 %v7791, %v7811
        %v7898 = vmul.f32 %v7792, %v7815
        %v7899 = vmul.f32 %v7793, %v7819
        %v7900 = vmul.f32 %v7794, %v7803
        %v7901 = vmul.f32 %v7795, %v7807
        %v7902 = vmul.f32 %v7796, %v7811
        %v7903 = vmul.f32 %v7797, %v7815
        %v7904 = vmul.f32 %v7798, %v7819
        %v7906 = vlaneseq
        %v7907 = vshrl.u32 %v7906, 7
        %v7908 = vsub.s32 0, %v7907
        %v7909 = vrot.slane %v7327, %v7908
        %v7910 = vlaneseq
        %v7911 = vshrl.u32 %v7910, 7
        %v7912 = vsub.s32 1, %v7911
        %v7913 = vrot.slane %v7327, %v7912
        %v7914 = vlaneseq
        %v7915 = vshrl.u32 %v7914, 7
        %v7916 = vsub.s32 2, %v7915
        %v7917 = vrot.slane %v7327, %v7916
        %v7918 = vlaneseq
        %v7919 = vshrl.u32 %v7918, 7
        %v7920 = vsub.s32 3, %v7919
        %v7921 = vrot.slane %v7327, %v7920
        %v7922 = vlaneseq
        %v7923 = vshrl.u32 %v7922, 7
        %v7924 = vsub.s32 4, %v7923
        %v7925 = vrot.slane %v7327, %v7924
        %v7931 = vadd.f32 %v7825, %v7909
        %v7932 = vadd.f32 %v7826, %v7913
        %v7933 = vadd.f32 %v7827, %v7917
        %v7934 = vadd.f32 %v7828, %v7921
        %v7935 = vadd.f32 %v7829, %v7925
        %v7936 = vadd.f32 %v7830, %v7909
        %v7937 = vadd.f32 %v7831, %v7913
        %v7938 = vadd.f32 %v7832, %v7917
        %v7939 = vadd.f32 %v7833, %v7921
        %v7940 = vadd.f32 %v7834, %v7925
        %v7941 = vadd.f32 %v7835, %v7909
        %v7942 = vadd.f32 %v7836, %v7913
        %v7943 = vadd.f32 %v7837, %v7917
        %v7944 = vadd.f32 %v7838, %v7921
        %v7945 = vadd.f32 %v7839, %v7925
        %v7946 = vadd.f32 %v7840, %v7909
        %v7947 = vadd.f32 %v7841, %v7913
        %v7948 = vadd.f32 %v7842, %v7917
        %v7949 = vadd.f32 %v7843, %v7921
        %v7950 = vadd.f32 %v7844, %v7925
        %v7951 = vadd.f32 %v7845, %v7909
        %v7952 = vadd.f32 %v7846, %v7913
        %v7953 = vadd.f32 %v7847, %v7917
        %v7954 = vadd.f32 %v7848, %v7921
        %v7955 = vadd.f32 %v7849, %v7925
        %v7956 = vadd.f32 %v7850, %v7909
        %v7957 = vadd.f32 %v7851, %v7913
        %v7958 = vadd.f32 %v7852, %v7917
        %v7959 = vadd.f32 %v7853, %v7921
        %v7960 = vadd.f32 %v7854, %v7925
        %v7961 = vadd.f32 %v7855, %v7909
        %v7962 = vadd.f32 %v7856, %v7913
        %v7963 = vadd.f32 %v7857, %v7917
        %v7964 = vadd.f32 %v7858, %v7921
        %v7965 = vadd.f32 %v7859, %v7925
        %v7966 = vadd.f32 %v7860, %v7909
        %v7967 = vadd.f32 %v7861, %v7913
        %v7968 = vadd.f32 %v7862, %v7917
        %v7969 = vadd.f32 %v7863, %v7921
        %v7970 = vadd.f32 %v7864, %v7925
        %v7971 = vadd.f32 %v7865, %v7909
        %v7972 = vadd.f32 %v7866, %v7913
        %v7973 = vadd.f32 %v7867, %v7917
        %v7974 = vadd.f32 %v7868, %v7921
        %v7975 = vadd.f32 %v7869, %v7925
        %v7976 = vadd.f32 %v7870, %v7909
        %v7977 = vadd.f32 %v7871, %v7913
        %v7978 = vadd.f32 %v7872, %v7917
        %v7979 = vadd.f32 %v7873, %v7921
        %v7980 = vadd.f32 %v7874, %v7925
        %v7981 = vadd.f32 %v7875, %v7909
        %v7982 = vadd.f32 %v7876, %v7913
        %v7983 = vadd.f32 %v7877, %v7917
        %v7984 = vadd.f32 %v7878, %v7921
        %v7985 = vadd.f32 %v7879, %v7925
        %v7986 = vadd.f32 %v7880, %v7909
        %v7987 = vadd.f32 %v7881, %v7913
        %v7988 = vadd.f32 %v7882, %v7917
        %v7989 = vadd.f32 %v7883, %v7921
        %v7990 = vadd.f32 %v7884, %v7925
        %v7991 = vadd.f32 %v7885, %v7909
        %v7992 = vadd.f32 %v7886, %v7913
        %v7993 = vadd.f32 %v7887, %v7917
        %v7994 = vadd.f32 %v7888, %v7921
        %v7995 = vadd.f32 %v7889, %v7925
        %v7996 = vadd.f32 %v7890, %v7909
        %v7997 = vadd.f32 %v7891, %v7913
        %v7998 = vadd.f32 %v7892, %v7917
        %v7999 = vadd.f32 %v7893, %v7921
        %v8000 = vadd.f32 %v7894, %v7925
        %v8001 = vadd.f32 %v7895, %v7909
        %v8002 = vadd.f32 %v7896, %v7913
        %v8003 = vadd.f32 %v7897, %v7917
        %v8004 = vadd.f32 %v7898, %v7921
        %v8005 = vadd.f32 %v7899, %v7925
        %v8006 = vadd.f32 %v7900, %v7909
        %v8007 = vadd.f32 %v7901, %v7913
        %v8008 = vadd.f32 %v7902, %v7917
        %v8009 = vadd.f32 %v7903, %v7921
        %v8010 = vadd.f32 %v7904, %v7925
        %v8011 = vmax.f32 %v7931, 0.0
        %v8012 = vmax.f32 %v7932, 0.0
        %v8013 = vmax.f32 %v7933, 0.0
        %v8014 = vmax.f32 %v7934, 0.0
        %v8015 = vmax.f32 %v7935, 0.0
        %v8016 = vmax.f32 %v7936, 0.0
        %v8017 = vmax.f32 %v7937, 0.0
        %v8018 = vmax.f32 %v7938, 0.0
        %v8019 = vmax.f32 %v7939, 0.0
        %v8020 = vmax.f32 %v7940, 0.0
        %v8021 = vmax.f32 %v7941, 0.0
        %v8022 = vmax.f32 %v7942, 0.0
        %v8023 = vmax.f32 %v7943, 0.0
        %v8024 = vmax.f32 %v7944, 0.0
        %v8025 = vmax.f32 %v7945, 0.0
        %v8026 = vmax.f32 %v7946, 0.0
        %v8027 = vmax.f32 %v7947, 0.0
        %v8028 = vmax.f32 %v7948, 0.0
        %v8029 = vmax.f32 %v7949, 0.0
        %v8030 = vmax.f32 %v7950, 0.0
        %v8031 = vmax.f32 %v7951, 0.0
        %v8032 = vmax.f32 %v7952, 0.0
        %v8033 = vmax.f32 %v7953, 0.0
        %v8034 = vmax.f32 %v7954, 0.0
        %v8035 = vmax.f32 %v7955, 0.0
        %v8036 = vmax.f32 %v7956, 0.0
        %v8037 = vmax.f32 %v7957, 0.0
        %v8038 = vmax.f32 %v7958, 0.0
        %v8039 = vmax.f32 %v7959, 0.0
        %v8040 = vmax.f32 %v7960, 0.0
        %v8041 = vmax.f32 %v7961, 0.0
        %v8042 = vmax.f32 %v7962, 0.0
        %v8043 = vmax.f32 %v7963, 0.0
        %v8044 = vmax.f32 %v7964, 0.0
        %v8045 = vmax.f32 %v7965, 0.0
        %v8046 = vmax.f32 %v7966, 0.0
        %v8047 = vmax.f32 %v7967, 0.0
        %v8048 = vmax.f32 %v7968, 0.0
        %v8049 = vmax.f32 %v7969, 0.0
        %v8050 = vmax.f32 %v7970, 0.0
        %v8051 = vmax.f32 %v7971, 0.0
        %v8052 = vmax.f32 %v7972, 0.0
        %v8053 = vmax.f32 %v7973, 0.0
        %v8054 = vmax.f32 %v7974, 0.0
        %v8055 = vmax.f32 %v7975, 0.0
        %v8056 = vmax.f32 %v7976, 0.0
        %v8057 = vmax.f32 %v7977, 0.0
        %v8058 = vmax.f32 %v7978, 0.0
        %v8059 = vmax.f32 %v7979, 0.0
        %v8060 = vmax.f32 %v7980, 0.0
        %v8061 = vmax.f32 %v7981, 0.0
        %v8062 = vmax.f32 %v7982, 0.0
        %v8063 = vmax.f32 %v7983, 0.0
        %v8064 = vmax.f32 %v7984, 0.0
        %v8065 = vmax.f32 %v7985, 0.0
        %v8066 = vmax.f32 %v7986, 0.0
        %v8067 = vmax.f32 %v7987, 0.0
        %v8068 = vmax.f32 %v7988, 0.0
        %v8069 = vmax.f32 %v7989, 0.0
        %v8070 = vmax.f32 %v7990, 0.0
        %v8071 = vmax.f32 %v7991, 0.0
        %v8072 = vmax.f32 %v7992, 0.0
        %v8073 = vmax.f32 %v7993, 0.0
        %v8074 = vmax.f32 %v7994, 0.0
        %v8075 = vmax.f32 %v7995, 0.0
        %v8076 = vmax.f32 %v7996, 0.0
        %v8077 = vmax.f32 %v7997, 0.0
        %v8078 = vmax.f32 %v7998, 0.0
        %v8079 = vmax.f32 %v7999, 0.0
        %v8080 = vmax.f32 %v8000, 0.0
        %v8081 = vmax.f32 %v8001, 0.0
        %v8082 = vmax.f32 %v8002, 0.0
        %v8083 = vmax.f32 %v8003, 0.0
        %v8084 = vmax.f32 %v8004, 0.0
        %v8085 = vmax.f32 %v8005, 0.0
        %v8086 = vmax.f32 %v8006, 0.0
        %v8087 = vmax.f32 %v8007, 0.0
        %v8088 = vmax.f32 %v8008, 0.0
        %v8089 = vmax.f32 %v8009, 0.0
        %v8090 = vmax.f32 %v8010, 0.0
        %v8091 = vld [vmem:[#allocation15] sm:$0xff]
        %v8092 = vld [vmem:[#allocation15 + $0x8] sm:$0xff]
        %v8093 = vld [vmem:[#allocation15 + $0x10] sm:$0xff]
        %v8094 = vld [vmem:[#allocation15 + $0x18] sm:$0xff]
        %v8095 = vld [vmem:[#allocation15 + $0x20] sm:$0xff]
        %v8096 = vld [vmem:[#allocation15 + $0x28] sm:$0xff]
        %v8097 = vld [vmem:[#allocation15 + $0x30] sm:$0xff]
        %v8098 = vld [vmem:[#allocation15 + $0x38] sm:$0xff]
        %v8099 = vld [vmem:[#allocation15 + $0x40] sm:$0xff]
        %v8100 = vld [vmem:[#allocation15 + $0x48] sm:$0xff]
        %v8101 = vld [vmem:[#allocation15 + $0x50] sm:$0xff]
        %v8102 = vld [vmem:[#allocation15 + $0x58] sm:$0xff]
        %v8103 = vld [vmem:[#allocation15 + $0x60] sm:$0xff]
        %v8104 = vld [vmem:[#allocation15 + $0x68] sm:$0xff]
        %v8105 = vld [vmem:[#allocation15 + $0x70] sm:$0xff]
        %v8106 = vld [vmem:[#allocation15 + $0x78] sm:$0xff]
        %v8107 = vld [vmem:[#allocation15 + $0x80] sm:$0xff]
        %v8108 = vld [vmem:[#allocation15 + $0x88] sm:$0xff]
        %v8109 = vld [vmem:[#allocation15 + $0x90] sm:$0xff]
        %v8110 = vld [vmem:[#allocation15 + $0x98] sm:$0xff]
        %v8111 = vld [vmem:[#allocation15 + $0xa0] sm:$0xff]
        %v8112 = vld [vmem:[#allocation15 + $0xa8] sm:$0xff]
        %v8113 = vld [vmem:[#allocation15 + $0xb0] sm:$0xff]
        %v8114 = vld [vmem:[#allocation15 + $0xb8] sm:$0xff]
        %v8115 = vld [vmem:[#allocation15 + $0xc0] sm:$0xff]
        %v8116 = vld [vmem:[#allocation15 + $0xc8] sm:$0xff]
        %v8117 = vld [vmem:[#allocation15 + $0xd0] sm:$0xff]
        %v8118 = vld [vmem:[#allocation15 + $0xd8] sm:$0xff]
        %v8119 = vld [vmem:[#allocation15 + $0xe0] sm:$0xff]
        %v8120 = vld [vmem:[#allocation15 + $0xe8] sm:$0xff]
        %v8121 = vld [vmem:[#allocation15 + $0xf0] sm:$0xff]
        %v8122 = vld [vmem:[#allocation15 + $0xf8] sm:$0xff]
        %v8123 = vpack.c.bf16 %v8016, %v8011
        %v8124 = vpack.c.bf16 %v8017, %v8012
        %v8125 = vpack.c.bf16 %v8018, %v8013
        %v8126 = vpack.c.bf16 %v8019, %v8014
        %v8127 = vpack.c.bf16 %v8020, %v8015
        %v8128 = vpack.c.bf16 %v8026, %v8021
        %v8129 = vpack.c.bf16 %v8027, %v8022
        %v8130 = vpack.c.bf16 %v8028, %v8023
        %v8131 = vpack.c.bf16 %v8029, %v8024
        %v8132 = vpack.c.bf16 %v8030, %v8025
        %v8133 = vpack.c.bf16 %v8036, %v8031
        %v8134 = vpack.c.bf16 %v8037, %v8032
        %v8135 = vpack.c.bf16 %v8038, %v8033
        %v8136 = vpack.c.bf16 %v8039, %v8034
        %v8137 = vpack.c.bf16 %v8040, %v8035
        %v8138 = vpack.c.bf16 %v8046, %v8041
        %v8139 = vpack.c.bf16 %v8047, %v8042
        %v8140 = vpack.c.bf16 %v8048, %v8043
        %v8141 = vpack.c.bf16 %v8049, %v8044
        %v8142 = vpack.c.bf16 %v8050, %v8045
        %v8143 = vpack.c.bf16 %v8056, %v8051
        %v8144 = vpack.c.bf16 %v8057, %v8052
        %v8145 = vpack.c.bf16 %v8058, %v8053
        %v8146 = vpack.c.bf16 %v8059, %v8054
        %v8147 = vpack.c.bf16 %v8060, %v8055
        %v8148 = vpack.c.bf16 %v8066, %v8061
        %v8149 = vpack.c.bf16 %v8067, %v8062
        %v8150 = vpack.c.bf16 %v8068, %v8063
        %v8151 = vpack.c.bf16 %v8069, %v8064
        %v8152 = vpack.c.bf16 %v8070, %v8065
        %v8153 = vpack.c.bf16 %v8076, %v8071
        %v8154 = vpack.c.bf16 %v8077, %v8072
        %v8155 = vpack.c.bf16 %v8078, %v8073
        %v8156 = vpack.c.bf16 %v8079, %v8074
        %v8157 = vpack.c.bf16 %v8080, %v8075
        %v8158 = vpack.c.bf16 %v8086, %v8081
        %v8159 = vpack.c.bf16 %v8087, %v8082
        %v8160 = vpack.c.bf16 %v8088, %v8083
        %v8161 = vpack.c.bf16 %v8089, %v8084
        %v8162 = vpack.c.bf16 %v8090, %v8085
        %v8163 = vld [vmem:[%s457] sm:$0xff]
        %v8164 = vld [vmem:[%s457 + $0x8] sm:$0xff]
        %v8165 = vld [vmem:[%s457 + $0x10] sm:$0xff]
        %v8166 = vld [vmem:[%s457 + $0x18] sm:$0xff]
        %v8167 = vld [vmem:[%s457 + $0x20] sm:$0xff]
        %v8168 = vld [vmem:[%s457 + $0x28] sm:$0xff]
        %v8169 = vld [vmem:[%s457 + $0x30] sm:$0xff]
        %v8170 = vld [vmem:[%s457 + $0x38] sm:$0xff]
        %v8171 = vld [vmem:[%s457 + $0x40] sm:$0xff]
        %v8172 = vld [vmem:[%s457 + $0x48] sm:$0xff]
        %v8173 = vld [vmem:[%s457 + $0x50] sm:$0xff]
        %v8174 = vld [vmem:[%s457 + $0x58] sm:$0xff]
        %v8175 = vld [vmem:[%s457 + $0x60] sm:$0xff]
        %v8176 = vld [vmem:[%s457 + $0x68] sm:$0xff]
        %v8177 = vld [vmem:[%s457 + $0x70] sm:$0xff]
        %v8178 = vld [vmem:[%s457 + $0x78] sm:$0xff]
        %v8179 = vld [vmem:[%s457 + $0x80] sm:$0xff]
        %v8180 = vld [vmem:[%s457 + $0x88] sm:$0xff]
        %v8181 = vld [vmem:[%s457 + $0x90] sm:$0xff]
        %v8182 = vld [vmem:[%s457 + $0x98] sm:$0xff]
        %v8183 = vld [vmem:[%s457 + $0xa0] sm:$0xff]
        %v8184 = vld [vmem:[%s457 + $0xa8] sm:$0xff]
        %v8185 = vld [vmem:[%s457 + $0xb0] sm:$0xff]
        %v8186 = vld [vmem:[%s457 + $0xb8] sm:$0xff]
        %v8187 = vld [vmem:[%s457 + $0xc0] sm:$0xff]
        %v8188 = vld [vmem:[%s457 + $0xc8] sm:$0xff]
        %v8189 = vld [vmem:[%s457 + $0xd0] sm:$0xff]
        %v8190 = vld [vmem:[%s457 + $0xd8] sm:$0xff]
        %v8191 = vld [vmem:[%s457 + $0xe0] sm:$0xff]
        %v8192 = vld [vmem:[%s457 + $0xe8] sm:$0xff]
        %v8193 = vld [vmem:[%s457 + $0xf0] sm:$0xff]
        %v8194 = vld [vmem:[%s457 + $0xf8] sm:$0xff]
        %v8195 = vld [vmem:[%s457 + $0x100] sm:$0xff]
        %v8196 = vld [vmem:[%s457 + $0x108] sm:$0xff]
        %v8197 = vld [vmem:[%s457 + $0x110] sm:$0xff]
        %v8198 = vld [vmem:[%s457 + $0x118] sm:$0xff]
        %v8199 = vld [vmem:[%s457 + $0x120] sm:$0xff]
        %v8200 = vld [vmem:[%s457 + $0x128] sm:$0xff]
        %v8201 = vld [vmem:[%s457 + $0x130] sm:$0xff]
        %v8202 = vld [vmem:[%s457 + $0x138] sm:$0xff]
        %v8203 = vld [vmem:[%s457 + $0x140] sm:$0xff]
        %v8204 = vld [vmem:[%s457 + $0x148] sm:$0xff]
        %v8205 = vld [vmem:[%s457 + $0x150] sm:$0xff]
        %v8206 = vld [vmem:[%s457 + $0x158] sm:$0xff]
        %v8207 = vld [vmem:[%s457 + $0x160] sm:$0xff]
        %v8208 = vld [vmem:[%s457 + $0x168] sm:$0xff]
        %v8209 = vld [vmem:[%s457 + $0x170] sm:$0xff]
        %v8210 = vld [vmem:[%s457 + $0x178] sm:$0xff]
        %v8211 = vld [vmem:[%s457 + $0x180] sm:$0xff]
        %v8212 = vld [vmem:[%s457 + $0x188] sm:$0xff]
        %v8213 = vld [vmem:[%s457 + $0x190] sm:$0xff]
        %v8214 = vld [vmem:[%s457 + $0x198] sm:$0xff]
        %v8215 = vld [vmem:[%s457 + $0x1a0] sm:$0xff]
        %v8216 = vld [vmem:[%s457 + $0x1a8] sm:$0xff]
        %v8217 = vld [vmem:[%s457 + $0x1b0] sm:$0xff]
        %v8218 = vld [vmem:[%s457 + $0x1b8] sm:$0xff]
        %v8219 = vld [vmem:[%s457 + $0x1c0] sm:$0xff]
        %v8220 = vld [vmem:[%s457 + $0x1c8] sm:$0xff]
        %v8221 = vld [vmem:[%s457 + $0x1d0] sm:$0xff]
        %v8222 = vld [vmem:[%s457 + $0x1d8] sm:$0xff]
        %v8223 = vld [vmem:[%s457 + $0x1e0] sm:$0xff]
        %v8224 = vld [vmem:[%s457 + $0x1e8] sm:$0xff]
        %v8225 = vld [vmem:[%s457 + $0x1f0] sm:$0xff]
        %v8226 = vld [vmem:[%s457 + $0x1f8] sm:$0xff]
        %v8227 = vld [vmem:[%s457 + $0x200] sm:$0xff]
        %v8228 = vld [vmem:[%s457 + $0x208] sm:$0xff]
        %v8229 = vld [vmem:[%s457 + $0x210] sm:$0xff]
        %v8230 = vld [vmem:[%s457 + $0x218] sm:$0xff]
        %v8231 = vld [vmem:[%s457 + $0x220] sm:$0xff]
        %v8232 = vld [vmem:[%s457 + $0x228] sm:$0xff]
        %v8233 = vld [vmem:[%s457 + $0x230] sm:$0xff]
        %v8234 = vld [vmem:[%s457 + $0x238] sm:$0xff]
        %v8235 = vld [vmem:[%s457 + $0x240] sm:$0xff]
        %v8236 = vld [vmem:[%s457 + $0x248] sm:$0xff]
        %v8237 = vld [vmem:[%s457 + $0x250] sm:$0xff]
        %v8238 = vld [vmem:[%s457 + $0x258] sm:$0xff]
        %v8239 = vld [vmem:[%s457 + $0x260] sm:$0xff]
        %v8240 = vld [vmem:[%s457 + $0x268] sm:$0xff]
        %v8241 = vld [vmem:[%s457 + $0x270] sm:$0xff]
        %v8242 = vld [vmem:[%s457 + $0x278] sm:$0xff]
        %v8323 = vunpack.c.l.b16 %v8163
        %v8324 = vunpack.c.h.b16 %v8163
        %v8325 = vunpack.c.l.b16 %v8164
        %v8326 = vunpack.c.h.b16 %v8164
        %v8327 = vunpack.c.l.b16 %v8165
        %v8328 = vunpack.c.h.b16 %v8165
        %v8329 = vunpack.c.l.b16 %v8166
        %v8330 = vunpack.c.h.b16 %v8166
        %v8331 = vunpack.c.l.b16 %v8167
        %v8332 = vunpack.c.h.b16 %v8167
        %v8333 = vunpack.c.l.b16 %v8168
        %v8334 = vunpack.c.h.b16 %v8168
        %v8335 = vunpack.c.l.b16 %v8169
        %v8336 = vunpack.c.h.b16 %v8169
        %v8337 = vunpack.c.l.b16 %v8170
        %v8338 = vunpack.c.h.b16 %v8170
        %v8339 = vunpack.c.l.b16 %v8171
        %v8340 = vunpack.c.h.b16 %v8171
        %v8341 = vunpack.c.l.b16 %v8172
        %v8342 = vunpack.c.h.b16 %v8172
        %v8343 = vunpack.c.l.b16 %v8173
        %v8344 = vunpack.c.h.b16 %v8173
        %v8345 = vunpack.c.l.b16 %v8174
        %v8346 = vunpack.c.h.b16 %v8174
        %v8347 = vunpack.c.l.b16 %v8175
        %v8348 = vunpack.c.h.b16 %v8175
        %v8349 = vunpack.c.l.b16 %v8176
        %v8350 = vunpack.c.h.b16 %v8176
        %v8351 = vunpack.c.l.b16 %v8177
        %v8352 = vunpack.c.h.b16 %v8177
        %v8353 = vunpack.c.l.b16 %v8178
        %v8354 = vunpack.c.h.b16 %v8178
        %v8355 = vunpack.c.l.b16 %v8179
        %v8356 = vunpack.c.h.b16 %v8179
        %v8357 = vunpack.c.l.b16 %v8180
        %v8358 = vunpack.c.h.b16 %v8180
        %v8359 = vunpack.c.l.b16 %v8181
        %v8360 = vunpack.c.h.b16 %v8181
        %v8361 = vunpack.c.l.b16 %v8182
        %v8362 = vunpack.c.h.b16 %v8182
        %v8363 = vunpack.c.l.b16 %v8183
        %v8364 = vunpack.c.h.b16 %v8183
        %v8365 = vunpack.c.l.b16 %v8184
        %v8366 = vunpack.c.h.b16 %v8184
        %v8367 = vunpack.c.l.b16 %v8185
        %v8368 = vunpack.c.h.b16 %v8185
        %v8369 = vunpack.c.l.b16 %v8186
        %v8370 = vunpack.c.h.b16 %v8186
        %v8371 = vunpack.c.l.b16 %v8187
        %v8372 = vunpack.c.h.b16 %v8187
        %v8373 = vunpack.c.l.b16 %v8188
        %v8374 = vunpack.c.h.b16 %v8188
        %v8375 = vunpack.c.l.b16 %v8189
        %v8376 = vunpack.c.h.b16 %v8189
        %v8377 = vunpack.c.l.b16 %v8190
        %v8378 = vunpack.c.h.b16 %v8190
        %v8379 = vunpack.c.l.b16 %v8191
        %v8380 = vunpack.c.h.b16 %v8191
        %v8381 = vunpack.c.l.b16 %v8192
        %v8382 = vunpack.c.h.b16 %v8192
        %v8383 = vunpack.c.l.b16 %v8193
        %v8384 = vunpack.c.h.b16 %v8193
        %v8385 = vunpack.c.l.b16 %v8194
        %v8386 = vunpack.c.h.b16 %v8194
        %v8387 = vunpack.c.l.b16 %v8195
        %v8388 = vunpack.c.h.b16 %v8195
        %v8389 = vunpack.c.l.b16 %v8196
        %v8390 = vunpack.c.h.b16 %v8196
        %v8391 = vunpack.c.l.b16 %v8197
        %v8392 = vunpack.c.h.b16 %v8197
        %v8393 = vunpack.c.l.b16 %v8198
        %v8394 = vunpack.c.h.b16 %v8198
        %v8395 = vunpack.c.l.b16 %v8199
        %v8396 = vunpack.c.h.b16 %v8199
        %v8397 = vunpack.c.l.b16 %v8200
        %v8398 = vunpack.c.h.b16 %v8200
        %v8399 = vunpack.c.l.b16 %v8201
        %v8400 = vunpack.c.h.b16 %v8201
        %v8401 = vunpack.c.l.b16 %v8202
        %v8402 = vunpack.c.h.b16 %v8202
        %v8403 = vunpack.c.l.b16 %v8203
        %v8404 = vunpack.c.h.b16 %v8203
        %v8405 = vunpack.c.l.b16 %v8204
        %v8406 = vunpack.c.h.b16 %v8204
        %v8407 = vunpack.c.l.b16 %v8205
        %v8408 = vunpack.c.h.b16 %v8205
        %v8409 = vunpack.c.l.b16 %v8206
        %v8410 = vunpack.c.h.b16 %v8206
        %v8411 = vunpack.c.l.b16 %v8207
        %v8412 = vunpack.c.h.b16 %v8207
        %v8413 = vunpack.c.l.b16 %v8208
        %v8414 = vunpack.c.h.b16 %v8208
        %v8415 = vunpack.c.l.b16 %v8209
        %v8416 = vunpack.c.h.b16 %v8209
        %v8417 = vunpack.c.l.b16 %v8210
        %v8418 = vunpack.c.h.b16 %v8210
        %v8419 = vunpack.c.l.b16 %v8211
        %v8420 = vunpack.c.h.b16 %v8211
        %v8421 = vunpack.c.l.b16 %v8212
        %v8422 = vunpack.c.h.b16 %v8212
        %v8423 = vunpack.c.l.b16 %v8213
        %v8424 = vunpack.c.h.b16 %v8213
        %v8425 = vunpack.c.l.b16 %v8214
        %v8426 = vunpack.c.h.b16 %v8214
        %v8427 = vunpack.c.l.b16 %v8215
        %v8428 = vunpack.c.h.b16 %v8215
        %v8429 = vunpack.c.l.b16 %v8216
        %v8430 = vunpack.c.h.b16 %v8216
        %v8431 = vunpack.c.l.b16 %v8217
        %v8432 = vunpack.c.h.b16 %v8217
        %v8433 = vunpack.c.l.b16 %v8218
        %v8434 = vunpack.c.h.b16 %v8218
        %v8435 = vunpack.c.l.b16 %v8219
        %v8436 = vunpack.c.h.b16 %v8219
        %v8437 = vunpack.c.l.b16 %v8220
        %v8438 = vunpack.c.h.b16 %v8220
        %v8439 = vunpack.c.l.b16 %v8221
        %v8440 = vunpack.c.h.b16 %v8221
        %v8441 = vunpack.c.l.b16 %v8222
        %v8442 = vunpack.c.h.b16 %v8222
        %v8443 = vunpack.c.l.b16 %v8223
        %v8444 = vunpack.c.h.b16 %v8223
        %v8445 = vunpack.c.l.b16 %v8224
        %v8446 = vunpack.c.h.b16 %v8224
        %v8447 = vunpack.c.l.b16 %v8225
        %v8448 = vunpack.c.h.b16 %v8225
        %v8449 = vunpack.c.l.b16 %v8226
        %v8450 = vunpack.c.h.b16 %v8226
        %v8451 = vunpack.c.l.b16 %v8227
        %v8452 = vunpack.c.h.b16 %v8227
        %v8453 = vunpack.c.l.b16 %v8228
        %v8454 = vunpack.c.h.b16 %v8228
        %v8455 = vunpack.c.l.b16 %v8229
        %v8456 = vunpack.c.h.b16 %v8229
        %v8457 = vunpack.c.l.b16 %v8230
        %v8458 = vunpack.c.h.b16 %v8230
        %v8459 = vunpack.c.l.b16 %v8231
        %v8460 = vunpack.c.h.b16 %v8231
        %v8461 = vunpack.c.l.b16 %v8232
        %v8462 = vunpack.c.h.b16 %v8232
        %v8463 = vunpack.c.l.b16 %v8233
        %v8464 = vunpack.c.h.b16 %v8233
        %v8465 = vunpack.c.l.b16 %v8234
        %v8466 = vunpack.c.h.b16 %v8234
        %v8467 = vunpack.c.l.b16 %v8235
        %v8468 = vunpack.c.h.b16 %v8235
        %v8469 = vunpack.c.l.b16 %v8236
        %v8470 = vunpack.c.h.b16 %v8236
        %v8471 = vunpack.c.l.b16 %v8237
        %v8472 = vunpack.c.h.b16 %v8237
        %v8473 = vunpack.c.l.b16 %v8238
        %v8474 = vunpack.c.h.b16 %v8238
        %v8475 = vunpack.c.l.b16 %v8239
        %v8476 = vunpack.c.h.b16 %v8239
        %v8477 = vunpack.c.l.b16 %v8240
        %v8478 = vunpack.c.h.b16 %v8240
        %v8479 = vunpack.c.l.b16 %v8241
        %v8480 = vunpack.c.h.b16 %v8241
        %v8481 = vunpack.c.l.b16 %v8242
        %v8482 = vunpack.c.h.b16 %v8242
        %v8483 = vpack.c.b16 %v8325, %v8323
        %v8484 = vpack.c.b16 %v8326, %v8324
        %v8485 = vpack.c.b16 %v8329, %v8327
        %v8486 = vpack.c.b16 %v8330, %v8328
        %v8487 = vpack.c.b16 %v8333, %v8331
        %v8488 = vpack.c.b16 %v8334, %v8332
        %v8489 = vpack.c.b16 %v8337, %v8335
        %v8490 = vpack.c.b16 %v8338, %v8336
        %v8491 = vpack.c.b16 %v8341, %v8339
        %v8492 = vpack.c.b16 %v8342, %v8340
        %v8493 = vpack.c.b16 %v8345, %v8343
        %v8494 = vpack.c.b16 %v8346, %v8344
        %v8495 = vpack.c.b16 %v8349, %v8347
        %v8496 = vpack.c.b16 %v8350, %v8348
        %v8497 = vpack.c.b16 %v8353, %v8351
        %v8498 = vpack.c.b16 %v8354, %v8352
        %v8499 = vpack.c.b16 %v8357, %v8355
        %v8500 = vpack.c.b16 %v8358, %v8356
        %v8501 = vpack.c.b16 %v8361, %v8359
        %v8502 = vpack.c.b16 %v8362, %v8360
        %v8503 = vpack.c.b16 %v8365, %v8363
        %v8504 = vpack.c.b16 %v8366, %v8364
        %v8505 = vpack.c.b16 %v8369, %v8367
        %v8506 = vpack.c.b16 %v8370, %v8368
        %v8507 = vpack.c.b16 %v8373, %v8371
        %v8508 = vpack.c.b16 %v8374, %v8372
        %v8509 = vpack.c.b16 %v8377, %v8375
        %v8510 = vpack.c.b16 %v8378, %v8376
        %v8511 = vpack.c.b16 %v8381, %v8379
        %v8512 = vpack.c.b16 %v8382, %v8380
        %v8513 = vpack.c.b16 %v8385, %v8383
        %v8514 = vpack.c.b16 %v8386, %v8384
        %v8515 = vpack.c.b16 %v8389, %v8387
        %v8516 = vpack.c.b16 %v8390, %v8388
        %v8517 = vpack.c.b16 %v8393, %v8391
        %v8518 = vpack.c.b16 %v8394, %v8392
        %v8519 = vpack.c.b16 %v8397, %v8395
        %v8520 = vpack.c.b16 %v8398, %v8396
        %v8521 = vpack.c.b16 %v8401, %v8399
        %v8522 = vpack.c.b16 %v8402, %v8400
        %v8523 = vpack.c.b16 %v8405, %v8403
        %v8524 = vpack.c.b16 %v8406, %v8404
        %v8525 = vpack.c.b16 %v8409, %v8407
        %v8526 = vpack.c.b16 %v8410, %v8408
        %v8527 = vpack.c.b16 %v8413, %v8411
        %v8528 = vpack.c.b16 %v8414, %v8412
        %v8529 = vpack.c.b16 %v8417, %v8415
        %v8530 = vpack.c.b16 %v8418, %v8416
        %v8531 = vpack.c.b16 %v8421, %v8419
        %v8532 = vpack.c.b16 %v8422, %v8420
        %v8533 = vpack.c.b16 %v8425, %v8423
        %v8534 = vpack.c.b16 %v8426, %v8424
        %v8535 = vpack.c.b16 %v8429, %v8427
        %v8536 = vpack.c.b16 %v8430, %v8428
        %v8537 = vpack.c.b16 %v8433, %v8431
        %v8538 = vpack.c.b16 %v8434, %v8432
        %v8539 = vpack.c.b16 %v8437, %v8435
        %v8540 = vpack.c.b16 %v8438, %v8436
        %v8541 = vpack.c.b16 %v8441, %v8439
        %v8542 = vpack.c.b16 %v8442, %v8440
        %v8543 = vpack.c.b16 %v8445, %v8443
        %v8544 = vpack.c.b16 %v8446, %v8444
        %v8545 = vpack.c.b16 %v8449, %v8447
        %v8546 = vpack.c.b16 %v8450, %v8448
        %v8547 = vpack.c.b16 %v8453, %v8451
        %v8548 = vpack.c.b16 %v8454, %v8452
        %v8549 = vpack.c.b16 %v8457, %v8455
        %v8550 = vpack.c.b16 %v8458, %v8456
        %v8551 = vpack.c.b16 %v8461, %v8459
        %v8552 = vpack.c.b16 %v8462, %v8460
        %v8553 = vpack.c.b16 %v8465, %v8463
        %v8554 = vpack.c.b16 %v8466, %v8464
        %v8555 = vpack.c.b16 %v8469, %v8467
        %v8556 = vpack.c.b16 %v8470, %v8468
        %v8557 = vpack.c.b16 %v8473, %v8471
        %v8558 = vpack.c.b16 %v8474, %v8472
        %v8559 = vpack.c.b16 %v8477, %v8475
        %v8560 = vpack.c.b16 %v8478, %v8476
        %v8561 = vpack.c.b16 %v8481, %v8479
        %v8562 = vpack.c.b16 %v8482, %v8480
        %8643 = vmatprep.subr.bf16.mxu0 %v8484
        %8644 = vmatpush1.bf16.msra.mxu0 %v8483
        %8645 = vmatprep.subr.bf16.mxu0 %v8486
        %8646 = vmatpush1.bf16.msra.mxu0 %v8485
        %8647 = vmatprep.subr.bf16.mxu0 %v8488
        %8648 = vmatpush1.bf16.msra.mxu0 %v8487
        %8649 = vmatprep.subr.bf16.mxu0 %v8490
        %8650 = vmatpush1.bf16.msra.mxu0 %v8489
        %8651 = vmatprep.subr.bf16.mxu0 %v8492
        %8652 = vmatpush1.bf16.msra.mxu0 %v8491
        %8653 = vmatprep.subr.bf16.mxu0 %v8494
        %8654 = vmatpush1.bf16.msra.mxu0 %v8493
        %8655 = vmatprep.subr.bf16.mxu0 %v8496
        %8656 = vmatpush1.bf16.msra.mxu0 %v8495
        %8657 = vmatprep.subr.bf16.mxu0 %v8498
        %8658 = vmatpush1.bf16.msra.mxu0 %v8497
        %8659 = vmatprep.subr.bf16.mxu0 %v8500
        %8660 = vmatpush1.bf16.msra.mxu0 %v8499
        %8661 = vmatprep.subr.bf16.mxu0 %v8502
        %8662 = vmatpush1.bf16.msra.mxu0 %v8501
        %8663 = vmatprep.subr.bf16.mxu0 %v8504
        %8664 = vmatpush1.bf16.msra.mxu0 %v8503
        %8665 = vmatprep.subr.bf16.mxu0 %v8506
        %8666 = vmatpush1.bf16.msra.mxu0 %v8505
        %8667 = vmatprep.subr.bf16.mxu0 %v8508
        %8668 = vmatpush1.bf16.msra.mxu0 %v8507
        %8669 = vmatprep.subr.bf16.mxu0 %v8510
        %8670 = vmatpush1.bf16.msra.mxu0 %v8509
        %8671 = vmatprep.subr.bf16.mxu0 %v8512
        %8672 = vmatpush1.bf16.msra.mxu0 %v8511
        %8673 = vmatprep.subr.bf16.mxu0 %v8514
        %8674 = vmatpush1.bf16.msra.mxu0 %v8513
        %8675 = vmatprep.mubr.bf16.mxu0 %v8124
        %8676 = vmatmul.mubr.bf16.gmra.mrb[0].mxu0 %v8123
        %v8677 = vpop.f32.mrb[0].mxu0
        %v8678 = vadd.f32 0.0, %v8677
        %v8679 = vpop.f32.mrb[0].mxu0
        %v8680 = vadd.f32 0.0, %v8679
        %v8681 = vpop.f32.mrb[0].mxu0
        %v8682 = vadd.f32 0.0, %v8681
        %v8683 = vpop.f32.mrb[0].mxu0
        %v8684 = vadd.f32 0.0, %v8683
        %8685 = vmatprep.mubr.bf16.mxu0 %v8129
        %8686 = vmatmul.mubr.bf16.gmra.mrb[0].mxu0 %v8128
        %v8687 = vpop.f32.mrb[0].mxu0
        %v8688 = vadd.f32 0.0, %v8687
        %v8689 = vpop.f32.mrb[0].mxu0
        %v8690 = vadd.f32 0.0, %v8689
        %v8691 = vpop.f32.mrb[0].mxu0
        %v8692 = vadd.f32 0.0, %v8691
        %v8693 = vpop.f32.mrb[0].mxu0
        %v8694 = vadd.f32 0.0, %v8693
        %8695 = vmatprep.mubr.bf16.mxu0 %v8134
        %8696 = vmatmul.mubr.bf16.gmra.mrb[0].mxu0 %v8133
        %v8697 = vpop.f32.mrb[0].mxu0
        %v8698 = vadd.f32 0.0, %v8697
        %v8699 = vpop.f32.mrb[0].mxu0
        %v8700 = vadd.f32 0.0, %v8699
        %v8701 = vpop.f32.mrb[0].mxu0
        %v8702 = vadd.f32 0.0, %v8701
        %v8703 = vpop.f32.mrb[0].mxu0
        %v8704 = vadd.f32 0.0, %v8703
        %8705 = vmatprep.mubr.bf16.mxu0 %v8139
        %8706 = vmatmul.mubr.bf16.gmra.mrb[0].mxu0 %v8138
        %v8707 = vpop.f32.mrb[0].mxu0
        %v8708 = vadd.f32 0.0, %v8707
        %v8709 = vpop.f32.mrb[0].mxu0
        %v8710 = vadd.f32 0.0, %v8709
        %v8711 = vpop.f32.mrb[0].mxu0
        %v8712 = vadd.f32 0.0, %v8711
        %v8713 = vpop.f32.mrb[0].mxu0
        %v8714 = vadd.f32 0.0, %v8713
        %8715 = vmatprep.mubr.bf16.mxu0 %v8144
        %8716 = vmatmul.mubr.bf16.gmra.mrb[0].mxu0 %v8143
        %v8717 = vpop.f32.mrb[0].mxu0
        %v8718 = vadd.f32 0.0, %v8717
        %v8719 = vpop.f32.mrb[0].mxu0
        %v8720 = vadd.f32 0.0, %v8719
        %v8721 = vpop.f32.mrb[0].mxu0
        %v8722 = vadd.f32 0.0, %v8721
        %v8723 = vpop.f32.mrb[0].mxu0
        %v8724 = vadd.f32 0.0, %v8723
        %8725 = vmatprep.mubr.bf16.mxu0 %v8149
        %8726 = vmatmul.mubr.bf16.gmra.mrb[0].mxu0 %v8148
        %v8727 = vpop.f32.mrb[0].mxu0
        %v8728 = vadd.f32 0.0, %v8727
        %v8729 = vpop.f32.mrb[0].mxu0
        %v8730 = vadd.f32 0.0, %v8729
        %v8731 = vpop.f32.mrb[0].mxu0
        %v8732 = vadd.f32 0.0, %v8731
        %v8733 = vpop.f32.mrb[0].mxu0
        %v8734 = vadd.f32 0.0, %v8733
        %8735 = vmatprep.mubr.bf16.mxu0 %v8154
        %8736 = vmatmul.mubr.bf16.gmra.mrb[0].mxu0 %v8153
        %v8737 = vpop.f32.mrb[0].mxu0
        %v8738 = vadd.f32 0.0, %v8737
        %v8739 = vpop.f32.mrb[0].mxu0
        %v8740 = vadd.f32 0.0, %v8739
        %v8741 = vpop.f32.mrb[0].mxu0
        %v8742 = vadd.f32 0.0, %v8741
        %v8743 = vpop.f32.mrb[0].mxu0
        %v8744 = vadd.f32 0.0, %v8743
        %8745 = vmatprep.mubr.bf16.mxu0 %v8159
        %8746 = vmatmul.mubr.bf16.gmra.mrb[0].mxu0 %v8158
        %v8747 = vpop.f32.mrb[0].mxu0
        %v8748 = vadd.f32 0.0, %v8747
        %v8749 = vpop.f32.mrb[0].mxu0
        %v8750 = vadd.f32 0.0, %v8749
        %v8751 = vpop.f32.mrb[0].mxu0
        %v8752 = vadd.f32 0.0, %v8751
        %v8753 = vpop.f32.mrb[0].mxu0
        %v8754 = vadd.f32 0.0, %v8753
        %8755 = vdwg.mxu0
        %8756 = vmatprep.subr.bf16.mxu0 %v8516
        %8757 = vmatpush1.bf16.msra.mxu0 %v8515
        %8758 = vmatprep.subr.bf16.mxu0 %v8518
        %8759 = vmatpush1.bf16.msra.mxu0 %v8517
        %8760 = vmatprep.subr.bf16.mxu0 %v8520
        %8761 = vmatpush1.bf16.msra.mxu0 %v8519
        %8762 = vmatprep.subr.bf16.mxu0 %v8522
        %8763 = vmatpush1.bf16.msra.mxu0 %v8521
        %8764 = vmatprep.subr.bf16.mxu0 %v8524
        %8765 = vmatpush1.bf16.msra.mxu0 %v8523
        %8766 = vmatprep.subr.bf16.mxu0 %v8526
        %8767 = vmatpush1.bf16.msra.mxu0 %v8525
        %8768 = vmatprep.subr.bf16.mxu0 %v8528
        %8769 = vmatpush1.bf16.msra.mxu0 %v8527
        %8770 = vmatprep.subr.bf16.mxu0 %v8530
        %8771 = vmatpush1.bf16.msra.mxu0 %v8529
        %8772 = vmatprep.subr.bf16.mxu0 %v8532
        %8773 = vmatpush1.bf16.msra.mxu0 %v8531
        %8774 = vmatprep.subr.bf16.mxu0 %v8534
        %8775 = vmatpush1.bf16.msra.mxu0 %v8533
        %8776 = vmatprep.subr.bf16.mxu0 %v8536
        %8777 = vmatpush1.bf16.msra.mxu0 %v8535
        %8778 = vmatprep.subr.bf16.mxu0 %v8538
        %8779 = vmatpush1.bf16.msra.mxu0 %v8537
        %8780 = vmatprep.subr.bf16.mxu0 %v8540
        %8781 = vmatpush1.bf16.msra.mxu0 %v8539
        %8782 = vmatprep.subr.bf16.mxu0 %v8542
        %8783 = vmatpush1.bf16.msra.mxu0 %v8541
        %8784 = vmatprep.subr.bf16.mxu0 %v8544
        %8785 = vmatpush1.bf16.msra.mxu0 %v8543
        %8786 = vmatprep.subr.bf16.mxu0 %v8546
        %8787 = vmatpush1.bf16.msra.mxu0 %v8545
        %8788 = vmatprep.mubr.bf16.mxu0 %v8126
        %8789 = vmatmul.mubr.bf16.gmra.mrb[0].mxu0 %v8125
        %v8790 = vpop.f32.mrb[0].mxu0
        %v8791 = vadd.f32 %v8678, %v8790
        %v8792 = vpop.f32.mrb[0].mxu0
        %v8793 = vadd.f32 %v8680, %v8792
        %v8794 = vpop.f32.mrb[0].mxu0
        %v8795 = vadd.f32 %v8682, %v8794
        %v8796 = vpop.f32.mrb[0].mxu0
        %v8797 = vadd.f32 %v8684, %v8796
        %8798 = vmatprep.mubr.bf16.mxu0 %v8131
        %8799 = vmatmul.mubr.bf16.gmra.mrb[0].mxu0 %v8130
        %v8800 = vpop.f32.mrb[0].mxu0
        %v8801 = vadd.f32 %v8688, %v8800
        %v8802 = vpop.f32.mrb[0].mxu0
        %v8803 = vadd.f32 %v8690, %v8802
        %v8804 = vpop.f32.mrb[0].mxu0
        %v8805 = vadd.f32 %v8692, %v8804
        %v8806 = vpop.f32.mrb[0].mxu0
        %v8807 = vadd.f32 %v8694, %v8806
        %8808 = vmatprep.mubr.bf16.mxu0 %v8136
        %8809 = vmatmul.mubr.bf16.gmra.mrb[0].mxu0 %v8135
        %v8810 = vpop.f32.mrb[0].mxu0
        %v8811 = vadd.f32 %v8698, %v8810
        %v8812 = vpop.f32.mrb[0].mxu0
        %v8813 = vadd.f32 %v8700, %v8812
        %v8814 = vpop.f32.mrb[0].mxu0
        %v8815 = vadd.f32 %v8702, %v8814
        %v8816 = vpop.f32.mrb[0].mxu0
        %v8817 = vadd.f32 %v8704, %v8816
        %8818 = vmatprep.mubr.bf16.mxu0 %v8141
        %8819 = vmatmul.mubr.bf16.gmra.mrb[0].mxu0 %v8140
        %v8820 = vpop.f32.mrb[0].mxu0
        %v8821 = vadd.f32 %v8708, %v8820
        %v8822 = vpop.f32.mrb[0].mxu0
        %v8823 = vadd.f32 %v8710, %v8822
        %v8824 = vpop.f32.mrb[0].mxu0
        %v8825 = vadd.f32 %v8712, %v8824
        %v8826 = vpop.f32.mrb[0].mxu0
        %v8827 = vadd.f32 %v8714, %v8826
        %8828 = vmatprep.mubr.bf16.mxu0 %v8146
        %8829 = vmatmul.mubr.bf16.gmra.mrb[0].mxu0 %v8145
        %v8830 = vpop.f32.mrb[0].mxu0
        %v8831 = vadd.f32 %v8718, %v8830
        %v8832 = vpop.f32.mrb[0].mxu0
        %v8833 = vadd.f32 %v8720, %v8832
        %v8834 = vpop.f32.mrb[0].mxu0
        %v8835 = vadd.f32 %v8722, %v8834
        %v8836 = vpop.f32.mrb[0].mxu0
        %v8837 = vadd.f32 %v8724, %v8836
        %8838 = vmatprep.mubr.bf16.mxu0 %v8151
        %8839 = vmatmul.mubr.bf16.gmra.mrb[0].mxu0 %v8150
        %v8840 = vpop.f32.mrb[0].mxu0
        %v8841 = vadd.f32 %v8728, %v8840
        %v8842 = vpop.f32.mrb[0].mxu0
        %v8843 = vadd.f32 %v8730, %v8842
        %v8844 = vpop.f32.mrb[0].mxu0
        %v8845 = vadd.f32 %v8732, %v8844
        %v8846 = vpop.f32.mrb[0].mxu0
        %v8847 = vadd.f32 %v8734, %v8846
        %8848 = vmatprep.mubr.bf16.mxu0 %v8156
        %8849 = vmatmul.mubr.bf16.gmra.mrb[0].mxu0 %v8155
        %v8850 = vpop.f32.mrb[0].mxu0
        %v8851 = vadd.f32 %v8738, %v8850
        %v8852 = vpop.f32.mrb[0].mxu0
        %v8853 = vadd.f32 %v8740, %v8852
        %v8854 = vpop.f32.mrb[0].mxu0
        %v8855 = vadd.f32 %v8742, %v8854
        %v8856 = vpop.f32.mrb[0].mxu0
        %v8857 = vadd.f32 %v8744, %v8856
        %8858 = vmatprep.mubr.bf16.mxu0 %v8161
        %8859 = vmatmul.mubr.bf16.gmra.mrb[0].mxu0 %v8160
        %v8860 = vpop.f32.mrb[0].mxu0
        %v8861 = vadd.f32 %v8748, %v8860
        %v8862 = vpop.f32.mrb[0].mxu0
        %v8863 = vadd.f32 %v8750, %v8862
        %v8864 = vpop.f32.mrb[0].mxu0
        %v8865 = vadd.f32 %v8752, %v8864
        %v8866 = vpop.f32.mrb[0].mxu0
        %v8867 = vadd.f32 %v8754, %v8866
        %8868 = vdwg.mxu0
        %8869 = vmatprep.subr.bf16.mxu0 %v8548
        %8870 = vmatpush1.bf16.msra.mxu0 %v8547
        %8871 = vmatprep.subr.bf16.mxu0 %v8550
        %8872 = vmatpush1.bf16.msra.mxu0 %v8549
        %8873 = vmatprep.subr.bf16.mxu0 %v8552
        %8874 = vmatpush1.bf16.msra.mxu0 %v8551
        %8875 = vmatprep.subr.bf16.mxu0 %v8554
        %8876 = vmatpush1.bf16.msra.mxu0 %v8553
        %8877 = vmatprep.subr.bf16.mxu0 %v8556
        %8878 = vmatpush1.bf16.msra.mxu0 %v8555
        %8879 = vmatprep.subr.bf16.mxu0 %v8558
        %8880 = vmatpush1.bf16.msra.mxu0 %v8557
        %8881 = vmatprep.subr.bf16.mxu0 %v8560
        %8882 = vmatpush1.bf16.msra.mxu0 %v8559
        %8883 = vmatprep.subr.bf16.mxu0 %v8562
        %8884 = vmatpush1.bf16.msra.mxu0 %v8561
        %8885 = vmatprep.subr.bf16.mxu0 0
        %8886 = vmatpush1.bf16.msra.mxu0 0
        %8887 = vmatprep.subr.bf16.mxu0 0
        %8888 = vmatpush1.bf16.msra.mxu0 0
        %8889 = vmatprep.subr.bf16.mxu0 0
        %8890 = vmatpush1.bf16.msra.mxu0 0
        %8891 = vmatprep.subr.bf16.mxu0 0
        %8892 = vmatpush1.bf16.msra.mxu0 0
        %8893 = vmatprep.subr.bf16.mxu0 0
        %8894 = vmatpush1.bf16.msra.mxu0 0
        %8895 = vmatprep.subr.bf16.mxu0 0
        %8896 = vmatpush1.bf16.msra.mxu0 0
        %8897 = vmatprep.subr.bf16.mxu0 0
        %8898 = vmatpush1.bf16.msra.mxu0 0
        %8899 = vmatprep.subr.bf16.mxu0 0
        %8900 = vmatpush1.bf16.msra.mxu0 0
        %8901 = vmatprep.mubr.bf16.mxu0 0
        %8902 = vmatmul.mubr.bf16.gmra.mrb[0].mxu0 %v8127
        %v8903 = vpop.f32.mrb[0].mxu0
        %v8904 = vadd.f32 %v8791, %v8903
        %v8905 = vpop.f32.mrb[0].mxu0
        %v8906 = vadd.f32 %v8793, %v8905
        %v8907 = vpop.f32.mrb[0].mxu0
        %v8908 = vadd.f32 %v8795, %v8907
        %v8909 = vpop.f32.mrb[0].mxu0
        %v8910 = vadd.f32 %v8797, %v8909
        %8911 = vmatprep.mubr.bf16.mxu0 0
        %8912 = vmatmul.mubr.bf16.gmra.mrb[0].mxu0 %v8132
        %v8913 = vpop.f32.mrb[0].mxu0
        %v8914 = vadd.f32 %v8801, %v8913
        %v8915 = vpop.f32.mrb[0].mxu0
        %v8916 = vadd.f32 %v8803, %v8915
        %v8917 = vpop.f32.mrb[0].mxu0
        %v8918 = vadd.f32 %v8805, %v8917
        %v8919 = vpop.f32.mrb[0].mxu0
        %v8920 = vadd.f32 %v8807, %v8919
        %8921 = vmatprep.mubr.bf16.mxu0 0
        %8922 = vmatmul.mubr.bf16.gmra.mrb[0].mxu0 %v8137
        %v8923 = vpop.f32.mrb[0].mxu0
        %v8924 = vadd.f32 %v8811, %v8923
        %v8925 = vpop.f32.mrb[0].mxu0
        %v8926 = vadd.f32 %v8813, %v8925
        %v8927 = vpop.f32.mrb[0].mxu0
        %v8928 = vadd.f32 %v8815, %v8927
        %v8929 = vpop.f32.mrb[0].mxu0
        %v8930 = vadd.f32 %v8817, %v8929
        %8931 = vmatprep.mubr.bf16.mxu0 0
        %8932 = vmatmul.mubr.bf16.gmra.mrb[0].mxu0 %v8142
        %v8933 = vpop.f32.mrb[0].mxu0
        %v8934 = vadd.f32 %v8821, %v8933
        %v8935 = vpop.f32.mrb[0].mxu0
        %v8936 = vadd.f32 %v8823, %v8935
        %v8937 = vpop.f32.mrb[0].mxu0
        %v8938 = vadd.f32 %v8825, %v8937
        %v8939 = vpop.f32.mrb[0].mxu0
        %v8940 = vadd.f32 %v8827, %v8939
        %8941 = vmatprep.mubr.bf16.mxu0 0
        %8942 = vmatmul.mubr.bf16.gmra.mrb[0].mxu0 %v8147
        %v8943 = vpop.f32.mrb[0].mxu0
        %v8944 = vadd.f32 %v8831, %v8943
        %v8945 = vpop.f32.mrb[0].mxu0
        %v8946 = vadd.f32 %v8833, %v8945
        %v8947 = vpop.f32.mrb[0].mxu0
        %v8948 = vadd.f32 %v8835, %v8947
        %v8949 = vpop.f32.mrb[0].mxu0
        %v8950 = vadd.f32 %v8837, %v8949
        %8951 = vmatprep.mubr.bf16.mxu0 0
        %8952 = vmatmul.mubr.bf16.gmra.mrb[0].mxu0 %v8152
        %v8953 = vpop.f32.mrb[0].mxu0
        %v8954 = vadd.f32 %v8841, %v8953
        %v8955 = vpop.f32.mrb[0].mxu0
        %v8956 = vadd.f32 %v8843, %v8955
        %v8957 = vpop.f32.mrb[0].mxu0
        %v8958 = vadd.f32 %v8845, %v8957
        %v8959 = vpop.f32.mrb[0].mxu0
        %v8960 = vadd.f32 %v8847, %v8959
        %8961 = vmatprep.mubr.bf16.mxu0 0
        %8962 = vmatmul.mubr.bf16.gmra.mrb[0].mxu0 %v8157
        %v8963 = vpop.f32.mrb[0].mxu0
        %v8964 = vadd.f32 %v8851, %v8963
        %v8965 = vpop.f32.mrb[0].mxu0
        %v8966 = vadd.f32 %v8853, %v8965
        %v8967 = vpop.f32.mrb[0].mxu0
        %v8968 = vadd.f32 %v8855, %v8967
        %v8969 = vpop.f32.mrb[0].mxu0
        %v8970 = vadd.f32 %v8857, %v8969
        %8971 = vmatprep.mubr.bf16.mxu0 0
        %8972 = vmatmul.mubr.bf16.gmra.mrb[0].mxu0 %v8162
        %v8973 = vpop.f32.mrb[0].mxu0
        %v8974 = vadd.f32 %v8861, %v8973
        %v8975 = vpop.f32.mrb[0].mxu0
        %v8976 = vadd.f32 %v8863, %v8975
        %v8977 = vpop.f32.mrb[0].mxu0
        %v8978 = vadd.f32 %v8865, %v8977
        %v8979 = vpop.f32.mrb[0].mxu0
        %v8980 = vadd.f32 %v8867, %v8979
        %8981 = vdwg.mxu0
        %v8982 = vadd.f32 %v8091, %v8904
        %v8983 = vadd.f32 %v8092, %v8906
        %v8984 = vadd.f32 %v8093, %v8908
        %v8985 = vadd.f32 %v8094, %v8910
        %v8986 = vadd.f32 %v8095, %v8914
        %v8987 = vadd.f32 %v8096, %v8916
        %v8988 = vadd.f32 %v8097, %v8918
        %v8989 = vadd.f32 %v8098, %v8920
        %v8990 = vadd.f32 %v8099, %v8924
        %v8991 = vadd.f32 %v8100, %v8926
        %v8992 = vadd.f32 %v8101, %v8928
        %v8993 = vadd.f32 %v8102, %v8930
        %v8994 = vadd.f32 %v8103, %v8934
        %v8995 = vadd.f32 %v8104, %v8936
        %v8996 = vadd.f32 %v8105, %v8938
        %v8997 = vadd.f32 %v8106, %v8940
        %v8998 = vadd.f32 %v8107, %v8944
        %v8999 = vadd.f32 %v8108, %v8946
        %v9000 = vadd.f32 %v8109, %v8948
        %v9001 = vadd.f32 %v8110, %v8950
        %v9002 = vadd.f32 %v8111, %v8954
        %v9003 = vadd.f32 %v8112, %v8956
        %v9004 = vadd.f32 %v8113, %v8958
        %v9005 = vadd.f32 %v8114, %v8960
        %v9006 = vadd.f32 %v8115, %v8964
        %v9007 = vadd.f32 %v8116, %v8966
        %v9008 = vadd.f32 %v8117, %v8968
        %v9009 = vadd.f32 %v8118, %v8970
        %v9010 = vadd.f32 %v8119, %v8974
        %v9011 = vadd.f32 %v8120, %v8976
        %v9012 = vadd.f32 %v8121, %v8978
        %v9013 = vadd.f32 %v8122, %v8980
        %9014 = vst [vmem:[#allocation15] sm:$0xff] %v8982
        %9015 = vst [vmem:[#allocation15 + $0x8] sm:$0xff] %v8983
        %9016 = vst [vmem:[#allocation15 + $0x10] sm:$0xff] %v8984
        %9017 = vst [vmem:[#allocation15 + $0x18] sm:$0xff] %v8985
        %9018 = vst [vmem:[#allocation15 + $0x20] sm:$0xff] %v8986
        %9019 = vst [vmem:[#allocation15 + $0x28] sm:$0xff] %v8987
        %9020 = vst [vmem:[#allocation15 + $0x30] sm:$0xff] %v8988
        %9021 = vst [vmem:[#allocation15 + $0x38] sm:$0xff] %v8989
        %9022 = vst [vmem:[#allocation15 + $0x40] sm:$0xff] %v8990
        %9023 = vst [vmem:[#allocation15 + $0x48] sm:$0xff] %v8991
        %9024 = vst [vmem:[#allocation15 + $0x50] sm:$0xff] %v8992
        %9025 = vst [vmem:[#allocation15 + $0x58] sm:$0xff] %v8993
        %9026 = vst [vmem:[#allocation15 + $0x60] sm:$0xff] %v8994
        %9027 = vst [vmem:[#allocation15 + $0x68] sm:$0xff] %v8995
        %9028 = vst [vmem:[#allocation15 + $0x70] sm:$0xff] %v8996
        %9029 = vst [vmem:[#allocation15 + $0x78] sm:$0xff] %v8997
        %9030 = vst [vmem:[#allocation15 + $0x80] sm:$0xff] %v8998
        %9031 = vst [vmem:[#allocation15 + $0x88] sm:$0xff] %v8999
        %9032 = vst [vmem:[#allocation15 + $0x90] sm:$0xff] %v9000
        %9033 = vst [vmem:[#allocation15 + $0x98] sm:$0xff] %v9001
        %9034 = vst [vmem:[#allocation15 + $0xa0] sm:$0xff] %v9002
        %9035 = vst [vmem:[#allocation15 + $0xa8] sm:$0xff] %v9003
        %9036 = vst [vmem:[#allocation15 + $0xb0] sm:$0xff] %v9004
        %9037 = vst [vmem:[#allocation15 + $0xb8] sm:$0xff] %v9005
        %9038 = vst [vmem:[#allocation15 + $0xc0] sm:$0xff] %v9006
        %9039 = vst [vmem:[#allocation15 + $0xc8] sm:$0xff] %v9007
        %9040 = vst [vmem:[#allocation15 + $0xd0] sm:$0xff] %v9008
        %9041 = vst [vmem:[#allocation15 + $0xd8] sm:$0xff] %v9009
        %9042 = vst [vmem:[#allocation15 + $0xe0] sm:$0xff] %v9010
        %9043 = vst [vmem:[#allocation15 + $0xe8] sm:$0xff] %v9011
        %9044 = vst [vmem:[#allocation15 + $0xf0] sm:$0xff] %v9012
        %9045 = vst [vmem:[#allocation15 + $0xf8] sm:$0xff] %v9013
        %p9046 = scmp.eq.s32.totalorder %s25, 1
        // Predicated region
        $region97: #{tpu_custom_call.1} parent=59 // pred_check
          %p9047 = pneg %p9046
        $region98: #{tpu_custom_call.1} parent=59 // pred_check_branch
          %9049 = sbr.rel (%p9047) target = $region100
        $region99: #{tpu_custom_call.1} parent=59 // pred_region
          %v9050 = vld [vmem:[#allocation15] sm:$0xff]
          %v9051 = vld [vmem:[#allocation15 + $0x8] sm:$0xff]
          %v9052 = vld [vmem:[#allocation15 + $0x10] sm:$0xff]
          %v9053 = vld [vmem:[#allocation15 + $0x18] sm:$0xff]
          %v9054 = vld [vmem:[#allocation15 + $0x20] sm:$0xff]
          %v9055 = vld [vmem:[#allocation15 + $0x28] sm:$0xff]
          %v9056 = vld [vmem:[#allocation15 + $0x30] sm:$0xff]
          %v9057 = vld [vmem:[#allocation15 + $0x38] sm:$0xff]
          %v9058 = vld [vmem:[#allocation15 + $0x40] sm:$0xff]
          %v9059 = vld [vmem:[#allocation15 + $0x48] sm:$0xff]
          %v9060 = vld [vmem:[#allocation15 + $0x50] sm:$0xff]
          %v9061 = vld [vmem:[#allocation15 + $0x58] sm:$0xff]
          %v9062 = vld [vmem:[#allocation15 + $0x60] sm:$0xff]
          %v9063 = vld [vmem:[#allocation15 + $0x68] sm:$0xff]
          %v9064 = vld [vmem:[#allocation15 + $0x70] sm:$0xff]
          %v9065 = vld [vmem:[#allocation15 + $0x78] sm:$0xff]
          %v9066 = vld [vmem:[#allocation15 + $0x80] sm:$0xff]
          %v9067 = vld [vmem:[#allocation15 + $0x88] sm:$0xff]
          %v9068 = vld [vmem:[#allocation15 + $0x90] sm:$0xff]
          %v9069 = vld [vmem:[#allocation15 + $0x98] sm:$0xff]
          %v9070 = vld [vmem:[#allocation15 + $0xa0] sm:$0xff]
          %v9071 = vld [vmem:[#allocation15 + $0xa8] sm:$0xff]
          %v9072 = vld [vmem:[#allocation15 + $0xb0] sm:$0xff]
          %v9073 = vld [vmem:[#allocation15 + $0xb8] sm:$0xff]
          %v9074 = vld [vmem:[#allocation15 + $0xc0] sm:$0xff]
          %v9075 = vld [vmem:[#allocation15 + $0xc8] sm:$0xff]
          %v9076 = vld [vmem:[#allocation15 + $0xd0] sm:$0xff]
          %v9077 = vld [vmem:[#allocation15 + $0xd8] sm:$0xff]
          %v9078 = vld [vmem:[#allocation15 + $0xe0] sm:$0xff]
          %v9079 = vld [vmem:[#allocation15 + $0xe8] sm:$0xff]
          %v9080 = vld [vmem:[#allocation15 + $0xf0] sm:$0xff]
          %v9081 = vld [vmem:[#allocation15 + $0xf8] sm:$0xff]
          %v9082 = vld [vmem:[#allocation14] sm:$0x3]
          %v9084 = vlaneseq
          %v9085 = vshrl.u32 %v9084, 7
          %v9086 = vsub.s32 0, %v9085
          %v9087 = vrot.slane %v9082, %v9086
          %v9088 = vlaneseq
          %v9089 = vshrl.u32 %v9088, 7
          %v9090 = vsub.s32 1, %v9089
          %v9091 = vrot.slane %v9082, %v9090
          %v9094 = vadd.f32 %v9050, %v9087
          %v9095 = vadd.f32 %v9051, %v9091
          %v9096 = vadd.f32 %v9052, %v9087
          %v9097 = vadd.f32 %v9053, %v9091
          %v9098 = vadd.f32 %v9054, %v9087
          %v9099 = vadd.f32 %v9055, %v9091
          %v9100 = vadd.f32 %v9056, %v9087
          %v9101 = vadd.f32 %v9057, %v9091
          %v9102 = vadd.f32 %v9058, %v9087
          %v9103 = vadd.f32 %v9059, %v9091
          %v9104 = vadd.f32 %v9060, %v9087
          %v9105 = vadd.f32 %v9061, %v9091
          %v9106 = vadd.f32 %v9062, %v9087
          %v9107 = vadd.f32 %v9063, %v9091
          %v9108 = vadd.f32 %v9064, %v9087
          %v9109 = vadd.f32 %v9065, %v9091
          %v9110 = vadd.f32 %v9066, %v9087
          %v9111 = vadd.f32 %v9067, %v9091
          %v9112 = vadd.f32 %v9068, %v9087
          %v9113 = vadd.f32 %v9069, %v9091
          %v9114 = vadd.f32 %v9070, %v9087
          %v9115 = vadd.f32 %v9071, %v9091
          %v9116 = vadd.f32 %v9072, %v9087
          %v9117 = vadd.f32 %v9073, %v9091
          %v9118 = vadd.f32 %v9074, %v9087
          %v9119 = vadd.f32 %v9075, %v9091
          %v9120 = vadd.f32 %v9076, %v9087
          %v9121 = vadd.f32 %v9077, %v9091
          %v9122 = vadd.f32 %v9078, %v9087
          %v9123 = vadd.f32 %v9079, %v9091
          %v9124 = vadd.f32 %v9080, %v9087
          %v9125 = vadd.f32 %v9081, %v9091
          %v9126 = vtanh.pop %v9094
          %v9127 = vtanh.pop %v9095
          %v9128 = vtanh.pop %v9096
          %v9129 = vtanh.pop %v9097
          %v9130 = vtanh.pop %v9098
          %v9131 = vtanh.pop %v9099
          %v9132 = vtanh.pop %v9100
          %v9133 = vtanh.pop %v9101
          %v9134 = vtanh.pop %v9102
          %v9135 = vtanh.pop %v9103
          %v9136 = vtanh.pop %v9104
          %v9137 = vtanh.pop %v9105
          %v9138 = vtanh.pop %v9106
          %v9139 = vtanh.pop %v9107
          %v9140 = vtanh.pop %v9108
          %v9141 = vtanh.pop %v9109
          %v9142 = vtanh.pop %v9110
          %v9143 = vtanh.pop %v9111
          %v9144 = vtanh.pop %v9112
          %v9145 = vtanh.pop %v9113
          %v9146 = vtanh.pop %v9114
          %v9147 = vtanh.pop %v9115
          %v9148 = vtanh.pop %v9116
          %v9149 = vtanh.pop %v9117
          %v9150 = vtanh.pop %v9118
          %v9151 = vtanh.pop %v9119
          %v9152 = vtanh.pop %v9120
          %v9153 = vtanh.pop %v9121
          %v9154 = vtanh.pop %v9122
          %v9155 = vtanh.pop %v9123
          %v9156 = vtanh.pop %v9124
          %v9157 = vtanh.pop %v9125
          %9158 = vst [vmem:[#allocation15] sm:$0xff] %v9126
          %9159 = vst [vmem:[#allocation15 + $0x8] sm:$0xff] %v9127
          %9160 = vst [vmem:[#allocation15 + $0x10] sm:$0xff] %v9128
          %9161 = vst [vmem:[#allocation15 + $0x18] sm:$0xff] %v9129
          %9162 = vst [vmem:[#allocation15 + $0x20] sm:$0xff] %v9130
          %9163 = vst [vmem:[#allocation15 + $0x28] sm:$0xff] %v9131
          %9164 = vst [vmem:[#allocation15 + $0x30] sm:$0xff] %v9132
          %9165 = vst [vmem:[#allocation15 + $0x38] sm:$0xff] %v9133
          %9166 = vst [vmem:[#allocation15 + $0x40] sm:$0xff] %v9134
          %9167 = vst [vmem:[#allocation15 + $0x48] sm:$0xff] %v9135
          %9168 = vst [vmem:[#allocation15 + $0x50] sm:$0xff] %v9136
          %9169 = vst [vmem:[#allocation15 + $0x58] sm:$0xff] %v9137
          %9170 = vst [vmem:[#allocation15 + $0x60] sm:$0xff] %v9138
          %9171 = vst [vmem:[#allocation15 + $0x68] sm:$0xff] %v9139
          %9172 = vst [vmem:[#allocation15 + $0x70] sm:$0xff] %v9140
          %9173 = vst [vmem:[#allocation15 + $0x78] sm:$0xff] %v9141
          %9174 = vst [vmem:[#allocation15 + $0x80] sm:$0xff] %v9142
          %9175 = vst [vmem:[#allocation15 + $0x88] sm:$0xff] %v9143
          %9176 = vst [vmem:[#allocation15 + $0x90] sm:$0xff] %v9144
          %9177 = vst [vmem:[#allocation15 + $0x98] sm:$0xff] %v9145
          %9178 = vst [vmem:[#allocation15 + $0xa0] sm:$0xff] %v9146
          %9179 = vst [vmem:[#allocation15 + $0xa8] sm:$0xff] %v9147
          %9180 = vst [vmem:[#allocation15 + $0xb0] sm:$0xff] %v9148
          %9181 = vst [vmem:[#allocation15 + $0xb8] sm:$0xff] %v9149
          %9182 = vst [vmem:[#allocation15 + $0xc0] sm:$0xff] %v9150
          %9183 = vst [vmem:[#allocation15 + $0xc8] sm:$0xff] %v9151
          %9184 = vst [vmem:[#allocation15 + $0xd0] sm:$0xff] %v9152
          %9185 = vst [vmem:[#allocation15 + $0xd8] sm:$0xff] %v9153
          %9186 = vst [vmem:[#allocation15 + $0xe0] sm:$0xff] %v9154
          %9187 = vst [vmem:[#allocation15 + $0xe8] sm:$0xff] %v9155
          %9188 = vst [vmem:[#allocation15 + $0xf0] sm:$0xff] %v9156
          %9189 = vst [vmem:[#allocation15 + $0xf8] sm:$0xff] %v9157
        $region100: #{tpu_custom_call.1} parent=59 // pred_fallthru
          _
        // Predicated region
        $region101: #{tpu_custom_call.1} parent=59 // pred_check
          %p9190 = pneg %p263
        $region102: #{tpu_custom_call.1} parent=59 // pred_check_branch
          %9192 = sbr.rel (%p9190) target = $region104
        $region103: #{tpu_custom_call.1} parent=59 // pred_region
          %s9194 = ssub.s32 4096, 4096
          %9195 = vsyncadd [#allocation5], %s9194
          %s9196 = sshll.u32 [#allocation15], 4
          %s9197 = int_to_ptr.vmem [resolvable:$true] %s9196
          %9202 = dma.vmem_to_hbm [thread:$0]  %s9197, 4096, %s10, [#allocation5], 256, 256, 16
        $region104: #{tpu_custom_call.1} parent=59 // pred_fallthru
          _
        // Predicated region
        $region105: #{tpu_custom_call.1} parent=59 // pred_check
          %p9203 = pneg %p263
        $region106: #{tpu_custom_call.1} parent=59 // pred_check_branch
          %9205 = sbr.rel (%p9203) target = $region108
        $region107: #{tpu_custom_call.1} parent=59 // pred_region
          %9206 = dma.done [#allocation5], 4096
        $region108: #{tpu_custom_call.1} parent=59 // pred_fallthru
          _
      $region60: #{tpu_custom_call.1} parent=5 // pred_fallthru
        _
      %p9207 = scmp.le.s32.totalorder 2, %s20
      // Predicated region
      $region109: #{tpu_custom_call.1} parent=5 // pred_check
        %p9208 = pneg %p9207
      $region110: #{tpu_custom_call.1} parent=5 // pred_check_branch
        %9210 = sbr.rel (%p9208) target = $region112
      $region111: #{tpu_custom_call.1} parent=5 // pred_region
        %s9211 = ssub.s32 %s20, 2
      $region112: #{tpu_custom_call.1} parent=5 // pred_fallthru
        _
    $region6: #{tpu_custom_call.1} parent=1 // loop_footer
      %s24 = sadd.s32 1, %s20
    $region7: #{tpu_custom_call.1} parent=1 // loop_footer_branch
      %19 = sbr.rel target = $region3
    $region8: #{tpu_custom_call.1} parent=1 // loop_exit
      _
    %9212 = vsyncpa [#allocation4], 1
    %s9213 = scalar_lea.sflag [#allocation4], 1
    %9214 = vsyncpa %s9213, 1
    %9215 = vsyncpa [#allocation7], 1
    %9216 = vsyncpa [#allocation10], 1
    %9217 = vsyncpa [#allocation5], 1
    %s9218 = scalar_lea.sflag [#allocation5], 1
    %9219 = vsyncpa %s9218, 1

</llo_original>
